<compile_context>
chip_gen: v5e
topology: v5e:2x2
jax: 0.10.0
libtpu: 0.0.40
codegen_flags: <defaults>
</compile_context>

<pallas_src>
import functools

import jax
import jax.numpy as jnp
from jax.experimental import pallas as pl
from jax.experimental.pallas import tpu as pltpu


# ------------------------- Pallas kernels -------------------------

def _convT_mm_kernel(w_ref, p_ref, b_ref, o_ref, *, activation):
    # o[n, m] = act( sum_k w[n, k] * p[k, m] + b[n] )   (channels in sublanes, pixels in lanes)
    acc = jnp.dot(w_ref[...], p_ref[...], preferred_element_type=jnp.float32)
    acc = acc + b_ref[...]                      # (N, TM) + (N, 1) lane-broadcast
    if activation == "relu":
        acc = jnp.maximum(acc, 0.0)
    elif activation == "tanh":
        acc = jnp.tanh(acc)
    o_ref[...] = acc.astype(o_ref.dtype)


def convT_mm(wmat, patches, bias, *, activation, out_dtype, tile_m=4096):
    """Fused (4*Cout, 9*Cin) @ (9*Cin, M) + bias + activation, M-tiled grid."""
    N, K = wmat.shape
    K2, M = patches.shape
    assert K == K2
    tm = M if M <= tile_m else tile_m           # full-dim block when small (exempt from 128 rule)
    grid = (pl.cdiv(M, tm),)
    flops = 2 * M * K * N
    bytes_accessed = (patches.size * patches.dtype.itemsize
                      + wmat.size * wmat.dtype.itemsize
                      + bias.size * bias.dtype.itemsize
                      + M * N * jnp.dtype(out_dtype).itemsize)
    return pl.pallas_call(
        functools.partial(_convT_mm_kernel, activation=activation),
        out_shape=jax.ShapeDtypeStruct((N, M), out_dtype),
        grid=grid,
        in_specs=[
            pl.BlockSpec((N, K), lambda i: (0, 0)),
            pl.BlockSpec((K, tm), lambda i: (0, i)),
            pl.BlockSpec((N, 1), lambda i: (0, 0)),
        ],
        out_specs=pl.BlockSpec((N, tm), lambda i: (0, i)),
        compiler_params=pltpu.CompilerParams(dimension_semantics=("parallel",)),
        cost_estimate=pl.CostEstimate(
            flops=flops,
            transcendentals=M * N if activation == "tanh" else 0,
            bytes_accessed=bytes_accessed),
    )(wmat, patches, bias)


def _linear_kernel(x_ref, w_ref, b_ref, o_ref):
    acc = jnp.dot(x_ref[...], w_ref[...], preferred_element_type=jnp.float32)
    o_ref[...] = (acc + b_ref[...]).astype(o_ref.dtype)


def linear(x, w, b, out_dtype=jnp.float32):
    """o = x @ w + b  (tiny M=B rows; single block, full-dim BlockSpecs)."""
    M, K = x.shape
    K2, N = w.shape
    assert K == K2
    return pl.pallas_call(
        _linear_kernel,
        out_shape=jax.ShapeDtypeStruct((M, N), out_dtype),
        grid=(1,),
        in_specs=[
            pl.BlockSpec((M, K), lambda i: (0, 0)),
            pl.BlockSpec((K, N), lambda i: (0, 0)),
            pl.BlockSpec((1, N), lambda i: (0, 0)),
        ],
        out_specs=pl.BlockSpec((M, N), lambda i: (0, 0)),
        cost_estimate=pl.CostEstimate(
            flops=2 * M * K * N, transcendentals=0,
            bytes_accessed=(x.size * x.dtype.itemsize + w.size * w.dtype.itemsize
                            + b.size * b.dtype.itemsize
                            + M * N * jnp.dtype(out_dtype).itemsize)),
    )(x, w, b)


# ------------------------- plain-JAX glue -------------------------

def extract_patches_3x3_cf(x):
    """x: (C, B, H, W) -> (9*C, B*H*W). Zero-padded 3x3 neighborhoods; rows tap-major/chan-minor."""
    C, B, H, W = x.shape
    xp = jnp.pad(x, ((0, 0), (0, 0), (1, 1), (1, 1)))
    taps = [xp[:, :, di:di + H, dj:dj + W] for di in range(3) for dj in range(3)]
    return jnp.stack(taps, axis=0).reshape(9 * C, B * H * W)


def pixel_shuffle_cf(y, cout, b, h, w):
    """y: (4*cout, b*h*w), rows ordered (dh, dw, cout) -> (cout, b, 2h, 2w)."""
    y = y.reshape(2, 2, cout, b, h, w)
    y = jnp.transpose(y, (2, 3, 4, 0, 5, 1))      # (cout, b, h, dh, w, dw)
    return y.reshape(cout, b, 2 * h, 2 * w)


# ConvTranspose(4,2,1): output pixel of parity d uses input offsets e in {-1,0,+1} with these
# kernel taps (missing -> no contribution, handled by zero weight entries).
_KMAP = {(0, 0): 3, (0, 1): 1, (1, 1): 2, (1, 2): 0}   # (parity, e+1) -> kernel index


def pack_convT_bn(w_pt, b_pt, gamma, beta, rmean, rvar, eps=1e-5):
    """Fold ConvTranspose2d(4,2,1) weight (Cin,Cout,4,4) + eval-mode BN into a
    (4*Cout, 9*Cin) bf16 matmul weight and a (4*Cout, 1) f32 bias."""
    cin, cout = w_pt.shape[0], w_pt.shape[1]
    scale = gamma / jnp.sqrt(rvar + eps)                    # (Cout,)
    bias = (b_pt - rmean) * scale + beta                    # (Cout,)
    w2 = jnp.zeros((4 * cout, 9 * cin), jnp.float32)
    for dh in range(2):
        for dw in range(2):
            row = (dh * 2 + dw) * cout
            for ei in range(3):
                for ej in range(3):
                    kh = _KMAP.get((dh, ei))
                    kw = _KMAP.get((dw, ej))
                    if kh is None or kw is None:
                        continue
                    col = (ei * 3 + ej) * cin
                    blk = (w_pt[:, :, kh, kw] * scale[None, :]).T   # (Cout, Cin)
                    w2 = w2.at[row:row + cout, col:col + cin].set(blk)
    b2 = jnp.tile(bias, 4).reshape(4 * cout, 1)
    return w2.astype(jnp.bfloat16), b2.astype(jnp.float32)


DECODER_CHANNELS = [24, 24, 12, 6, 6, 3]


def init_params(key, n_hidden=1024, n_classes=10):
    k = iter(jax.random.split(key, 24))
    params = dict(
        cls_w=jax.random.normal(next(k), (n_hidden, n_classes), jnp.float32) / jnp.sqrt(float(n_hidden)),
        cls_b=0.01 * jax.random.normal(next(k), (n_classes,), jnp.float32),
        proj_w=jax.random.normal(next(k), (n_hidden, 3 * 8 * 7 * 7), jnp.float32) / jnp.sqrt(float(n_hidden)),
        proj_b=0.01 * jax.random.normal(next(k), (3 * 8 * 7 * 7,), jnp.float32),
        convs=[],
    )
    for i in range(len(DECODER_CHANNELS) - 1):
        cin, cout = DECODER_CHANNELS[i], DECODER_CHANNELS[i + 1]
        params["convs"].append(dict(
            w=jax.random.normal(next(k), (cin, cout, 4, 4), jnp.float32) / jnp.sqrt(cin * 16.0),
            b=0.05 * jax.random.normal(next(k), (cout,), jnp.float32),
            gamma=1.0 + 0.1 * jax.random.normal(next(k), (cout,), jnp.float32),
            beta=0.1 * jax.random.normal(next(k), (cout,), jnp.float32),
            rmean=jnp.zeros((cout,), jnp.float32),
            rvar=jnp.ones((cout,), jnp.float32),
        ))
    return params


def pack_params(params):
    packed = dict(
        cls_w=params["cls_w"], cls_b=params["cls_b"].reshape(1, -1),
        proj_w=params["proj_w"], proj_b=params["proj_b"].reshape(1, -1),
        conv_w=[], conv_b=[],
    )
    for p in params["convs"]:
        w2, b2 = pack_convT_bn(p["w"], p["b"], p["gamma"], p["beta"], p["rmean"], p["rvar"])
        packed["conv_w"].append(w2)
        packed["conv_b"].append(b2)
    return packed


@jax.jit
def reconstructor_forward(hidden, packed):
    """hidden: (B, n_hidden) backbone features -> (logits (B,10), reconstruction (B,3,224,224))."""
    B = hidden.shape[0]
    logits = linear(hidden, packed["cls_w"], packed["cls_b"], jnp.float32)

    # decoder: proj -> view(B, 24, 7, 7) -> channels-first (24, B, 7, 7), bf16 activations
    proj = linear(hidden, packed["proj_w"], packed["proj_b"], jnp.float32)
    x = jnp.transpose(proj.reshape(B, 24, 7, 7), (1, 0, 2, 3)).astype(jnp.bfloat16)

    h, w = 7, 7
    n_layers = len(DECODER_CHANNELS) - 1
    for li in range(n_layers):
        cout = DECODER_CHANNELS[li + 1]
        last = (li == n_layers - 1)
        patches = extract_patches_3x3_cf(x)                     # (9*Cin, B*h*w) bf16
        y = convT_mm(packed["conv_w"][li], patches, packed["conv_b"][li],
                     activation="tanh" if last else "relu",
                     out_dtype=jnp.float32 if last else jnp.bfloat16)
        x = pixel_shuffle_cf(y, cout, B, h, w)                  # (Cout, B, 2h, 2w)
        h, w = 2 * h, 2 * w

    recon = jnp.transpose(x, (1, 0, 2, 3))                      # (B, 3, 224, 224) f32
    return logits, recon


if __name__ == "__main__":
    key = jax.random.PRNGKey(0)
    kx, kp = jax.random.split(key)
    B, n_hidden = 2, 1024   # densenet121 feature width
    # TODO(synk): external densenet121 backbone not implemented; hidden = backbone(image).
    hidden = jax.random.normal(kx, (B, n_hidden), jnp.float32)
    params = init_params(kp, n_hidden=n_hidden, n_classes=10)
    packed = pack_params(params)

    logits, recon = jax.block_until_ready(reconstructor_forward(hidden, packed))
    assert logits.shape == (B, 10), logits.shape
    assert recon.shape == (B, 3, 224, 224), recon.shape
    assert bool(jnp.all(jnp.isfinite(logits)))
    assert bool(jnp.all(jnp.isfinite(recon)))
    assert bool(jnp.all(jnp.abs(recon) <= 1.0 + 1e-3))   # tanh range
    print("KERNEL_OK")
</pallas_src>

<mosaic_0001>
module attributes {stable_mosaic.version = 11 : i64} {
  func.func @_linear_kernel(%arg0: i32, %arg1: memref<2x1024xf32, #tpu.memory_space<vmem>>, %arg2: memref<1024x1176xf32, #tpu.memory_space<vmem>>, %arg3: memref<1x1176xf32, #tpu.memory_space<vmem>>, %arg4: memref<2x1176xf32, #tpu.memory_space<vmem>>) attributes {dimension_semantics = [#tpu.dimension_semantics<arbitrary>], iteration_bounds = array<i64: 1>, scalar_prefetch = 0 : i64, scratch_operands = 0 : i64, tpu.core_type = #tpu.core_type<tc>, window_params = [{pipeline_mode = #tpu.pipeline_mode<synchronous>, transform_indices = @transform_0, window_bounds = array<i64: 2, 1024>}, {pipeline_mode = #tpu.pipeline_mode<synchronous>, transform_indices = @transform_1, window_bounds = array<i64: 1024, 1176>}, {pipeline_mode = #tpu.pipeline_mode<synchronous>, transform_indices = @transform_2, window_bounds = array<i64: 1, 1176>}, {pipeline_mode = #tpu.pipeline_mode<synchronous>, transform_indices = @transform_3, window_bounds = array<i64: 2, 1176>}]} {
    %c0 = arith.constant 0 : index
    %c0_0 = arith.constant 0 : index
    %0 = vector.load %arg1[%c0, %c0_0] : memref<2x1024xf32, #tpu.memory_space<vmem>>, vector<2x1024xf32>
    %c0_1 = arith.constant 0 : index
    %c0_2 = arith.constant 0 : index
    %1 = vector.load %arg2[%c0_1, %c0_2] : memref<1024x1176xf32, #tpu.memory_space<vmem>>, vector<1024x1176xf32>
    %cst = arith.constant dense<0.000000e+00> : vector<2x1176xf32>
    %2 = tpu.matmul %0, %1, %cst {dimension_numbers = #tpu.dot_dimension_numbers<[1], [0], [0], [1], [0, 0, 1, 1], [], []>} : vector<2x1024xf32>, vector<1024x1176xf32>, vector<2x1176xf32> -> vector<2x1176xf32>
    %c0_3 = arith.constant 0 : index
    %c0_4 = arith.constant 0 : index
    %3 = vector.load %arg3[%c0_3, %c0_4] : memref<1x1176xf32, #tpu.memory_space<vmem>>, vector<1x1176xf32>
    %4 = vector.broadcast %3 : vector<1x1176xf32> to vector<2x1176xf32>
    %5 = arith.addf %2, %4 : vector<2x1176xf32>
    %c0_5 = arith.constant 0 : index
    %c0_6 = arith.constant 0 : index
    %6 = vector.load %arg4[%c0_5, %c0_6] : memref<2x1176xf32, #tpu.memory_space<vmem>>, vector<2x1176xf32>
    tpu.vector_store %arg4[%c0_5, %c0_6], %5 {strides = array<i32>} : memref<2x1176xf32, #tpu.memory_space<vmem>>, vector<2x1176xf32>,
    return
  }
  func.func @transform_0(%arg0: i32) -> (i32, i32) {
    %c0_i32 = arith.constant 0 : i32
    %c0_i32_0 = arith.constant 0 : i32
    %c0_i32_1 = arith.constant 0 : i32
    return %c0_i32, %c0_i32_0 : i32, i32
  }
  func.func @transform_1(%arg0: i32) -> (i32, i32) {
    %c0_i32 = arith.constant 0 : i32
    %c0_i32_0 = arith.constant 0 : i32
    %c0_i32_1 = arith.constant 0 : i32
    return %c0_i32, %c0_i32_0 : i32, i32
  }
  func.func @transform_2(%arg0: i32) -> (i32, i32) {
    %c0_i32 = arith.constant 0 : i32
    %c0_i32_0 = arith.constant 0 : i32
    %c0_i32_1 = arith.constant 0 : i32
    return %c0_i32, %c0_i32_0 : i32, i32
  }
  func.func @transform_3(%arg0: i32) -> (i32, i32) {
    %c0_i32 = arith.constant 0 : i32
    %c0_i32_0 = arith.constant 0 : i32
    %c0_i32_1 = arith.constant 0 : i32
    return %c0_i32, %c0_i32_0 : i32, i32
  }
}

module attributes {stable_mosaic.version = 11 : i64} {
  func.func @_convT_mm_kernel(%arg0: i32, %arg1: memref<96x216xbf16, #tpu.memory_space<vmem>>, %arg2: memref<216x98xbf16, #tpu.memory_space<vmem>>, %arg3: memref<96x1xf32, #tpu.memory_space<vmem>>, %arg4: memref<96x98xbf16, #tpu.memory_space<vmem>>) attributes {dimension_semantics = [#tpu.dimension_semantics<parallel>], iteration_bounds = array<i64: 1>, scalar_prefetch = 0 : i64, scratch_operands = 0 : i64, tpu.core_type = #tpu.core_type<tc>, window_params = [{pipeline_mode = #tpu.pipeline_mode<synchronous>, transform_indices = @transform_0, window_bounds = array<i64: 96, 216>}, {transform_indices = @transform_1, window_bounds = array<i64: 216, 98>}, {pipeline_mode = #tpu.pipeline_mode<synchronous>, transform_indices = @transform_2, window_bounds = array<i64: 96, 1>}, {transform_indices = @transform_3, window_bounds = array<i64: 96, 98>}]} {
    %c0 = arith.constant 0 : index
    %c0_0 = arith.constant 0 : index
    %0 = vector.load %arg1[%c0, %c0_0] : memref<96x216xbf16, #tpu.memory_space<vmem>>, vector<96x216xbf16>
    %c0_1 = arith.constant 0 : index
    %c0_2 = arith.constant 0 : index
    %1 = vector.load %arg2[%c0_1, %c0_2] : memref<216x98xbf16, #tpu.memory_space<vmem>>, vector<216x98xbf16>
    %cst = arith.constant dense<0.000000e+00> : vector<96x98xf32>
    %2 = tpu.matmul %0, %1, %cst {dimension_numbers = #tpu.dot_dimension_numbers<[1], [0], [0], [1], [0, 0, 1, 1], [], []>} : vector<96x216xbf16>, vector<216x98xbf16>, vector<96x98xf32> -> vector<96x98xf32>
    %c0_3 = arith.constant 0 : index
    %c0_4 = arith.constant 0 : index
    %3 = vector.load %arg3[%c0_3, %c0_4] : memref<96x1xf32, #tpu.memory_space<vmem>>, vector<96x1xf32>
    %4 = vector.broadcast %3 : vector<96x1xf32> to vector<96x98xf32>
    %5 = arith.addf %2, %4 : vector<96x98xf32>
    %cst_5 = arith.constant 0.000000e+00 : f32
    %6 = vector.broadcast %cst_5 : f32 to vector<96x98xf32>
    %7 = arith.maximumf %5, %6 : vector<96x98xf32>
    %8 = arith.truncf %7 : vector<96x98xf32> to vector<96x98xbf16>
    %c0_6 = arith.constant 0 : index
    %c0_7 = arith.constant 0 : index
    %9 = vector.load %arg4[%c0_6, %c0_7] : memref<96x98xbf16, #tpu.memory_space<vmem>>, vector<96x98xbf16>
    tpu.vector_store %arg4[%c0_6, %c0_7], %8 {strides = array<i32>} : memref<96x98xbf16, #tpu.memory_space<vmem>>, vector<96x98xbf16>,
    return
  }
  func.func @transform_0(%arg0: i32) -> (i32, i32) {
    %c0_i32 = arith.constant 0 : i32
    %c0_i32_0 = arith.constant 0 : i32
    %c0_i32_1 = arith.constant 0 : i32
    return %c0_i32, %c0_i32_0 : i32, i32
  }
  func.func @transform_1(%arg0: i32) -> (i32, i32) {
    %c0_i32 = arith.constant 0 : i32
    %c0_i32_0 = arith.constant 0 : i32
    return %c0_i32, %arg0 : i32, i32
  }
  func.func @transform_2(%arg0: i32) -> (i32, i32) {
    %c0_i32 = arith.constant 0 : i32
    %c0_i32_0 = arith.constant 0 : i32
    %c0_i32_1 = arith.constant 0 : i32
    return %c0_i32, %c0_i32_0 : i32, i32
  }
  func.func @transform_3(%arg0: i32) -> (i32, i32) {
    %c0_i32 = arith.constant 0 : i32
    %c0_i32_0 = arith.constant 0 : i32
    return %c0_i32, %arg0 : i32, i32
  }
}

module attributes {stable_mosaic.version = 11 : i64} {
  func.func @_convT_mm_kernel(%arg0: i32, %arg1: memref<48x216xbf16, #tpu.memory_space<vmem>>, %arg2: memref<216x392xbf16, #tpu.memory_space<vmem>>, %arg3: memref<48x1xf32, #tpu.memory_space<vmem>>, %arg4: memref<48x392xbf16, #tpu.memory_space<vmem>>) attributes {dimension_semantics = [#tpu.dimension_semantics<parallel>], iteration_bounds = array<i64: 1>, scalar_prefetch = 0 : i64, scratch_operands = 0 : i64, tpu.core_type = #tpu.core_type<tc>, window_params = [{pipeline_mode = #tpu.pipeline_mode<synchronous>, transform_indices = @transform_0, window_bounds = array<i64: 48, 216>}, {transform_indices = @transform_1, window_bounds = array<i64: 216, 392>}, {pipeline_mode = #tpu.pipeline_mode<synchronous>, transform_indices = @transform_2, window_bounds = array<i64: 48, 1>}, {transform_indices = @transform_3, window_bounds = array<i64: 48, 392>}]} {
    %c0 = arith.constant 0 : index
    %c0_0 = arith.constant 0 : index
    %0 = vector.load %arg1[%c0, %c0_0] : memref<48x216xbf16, #tpu.memory_space<vmem>>, vector<48x216xbf16>
    %c0_1 = arith.constant 0 : index
    %c0_2 = arith.constant 0 : index
    %1 = vector.load %arg2[%c0_1, %c0_2] : memref<216x392xbf16, #tpu.memory_space<vmem>>, vector<216x392xbf16>
    %cst = arith.constant dense<0.000000e+00> : vector<48x392xf32>
    %2 = tpu.matmul %0, %1, %cst {dimension_numbers = #tpu.dot_dimension_numbers<[1], [0], [0], [1], [0, 0, 1, 1], [], []>} : vector<48x216xbf16>, vector<216x392xbf16>, vector<48x392xf32> -> vector<48x392xf32>
    %c0_3 = arith.constant 0 : index
    %c0_4 = arith.constant 0 : index
    %3 = vector.load %arg3[%c0_3, %c0_4] : memref<48x1xf32, #tpu.memory_space<vmem>>, vector<48x1xf32>
    %4 = vector.broadcast %3 : vector<48x1xf32> to vector<48x392xf32>
    %5 = arith.addf %2, %4 : vector<48x392xf32>
    %cst_5 = arith.constant 0.000000e+00 : f32
    %6 = vector.broadcast %cst_5 : f32 to vector<48x392xf32>
    %7 = arith.maximumf %5, %6 : vector<48x392xf32>
    %8 = arith.truncf %7 : vector<48x392xf32> to vector<48x392xbf16>
    %c0_6 = arith.constant 0 : index
    %c0_7 = arith.constant 0 : index
    %9 = vector.load %arg4[%c0_6, %c0_7] : memref<48x392xbf16, #tpu.memory_space<vmem>>, vector<48x392xbf16>
    tpu.vector_store %arg4[%c0_6, %c0_7], %8 {strides = array<i32>} : memref<48x392xbf16, #tpu.memory_space<vmem>>, vector<48x392xbf16>,
    return
  }
  func.func @transform_0(%arg0: i32) -> (i32, i32) {
    %c0_i32 = arith.constant 0 : i32
    %c0_i32_0 = arith.constant 0 : i32
    %c0_i32_1 = arith.constant 0 : i32
    return %c0_i32, %c0_i32_0 : i32, i32
  }
  func.func @transform_1(%arg0: i32) -> (i32, i32) {
    %c0_i32 = arith.constant 0 : i32
    %c0_i32_0 = arith.constant 0 : i32
    return %c0_i32, %arg0 : i32, i32
  }
  func.func @transform_2(%arg0: i32) -> (i32, i32) {
    %c0_i32 = arith.constant 0 : i32
    %c0_i32_0 = arith.constant 0 : i32
    %c0_i32_1 = arith.constant 0 : i32
    return %c0_i32, %c0_i32_0 : i32, i32
  }
  func.func @transform_3(%arg0: i32) -> (i32, i32) {
    %c0_i32 = arith.constant 0 : i32
    %c0_i32_0 = arith.constant 0 : i32
    return %c0_i32, %arg0 : i32, i32
  }
}

module attributes {stable_mosaic.version = 11 : i64} {
  func.func @_convT_mm_kernel(%arg0: i32, %arg1: memref<24x108xbf16, #tpu.memory_space<vmem>>, %arg2: memref<108x1568xbf16, #tpu.memory_space<vmem>>, %arg3: memref<24x1xf32, #tpu.memory_space<vmem>>, %arg4: memref<24x1568xbf16, #tpu.memory_space<vmem>>) attributes {dimension_semantics = [#tpu.dimension_semantics<parallel>], iteration_bounds = array<i64: 1>, scalar_prefetch = 0 : i64, scratch_operands = 0 : i64, tpu.core_type = #tpu.core_type<tc>, window_params = [{pipeline_mode = #tpu.pipeline_mode<synchronous>, transform_indices = @transform_0, window_bounds = array<i64: 24, 108>}, {transform_indices = @transform_1, window_bounds = array<i64: 108, 1568>}, {pipeline_mode = #tpu.pipeline_mode<synchronous>, transform_indices = @transform_2, window_bounds = array<i64: 24, 1>}, {transform_indices = @transform_3, window_bounds = array<i64: 24, 1568>}]} {
    %c0 = arith.constant 0 : index
    %c0_0 = arith.constant 0 : index
    %0 = vector.load %arg1[%c0, %c0_0] : memref<24x108xbf16, #tpu.memory_space<vmem>>, vector<24x108xbf16>
    %c0_1 = arith.constant 0 : index
    %c0_2 = arith.constant 0 : index
    %1 = vector.load %arg2[%c0_1, %c0_2] : memref<108x1568xbf16, #tpu.memory_space<vmem>>, vector<108x1568xbf16>
    %cst = arith.constant dense<0.000000e+00> : vector<24x1568xf32>
    %2 = tpu.matmul %0, %1, %cst {dimension_numbers = #tpu.dot_dimension_numbers<[1], [0], [0], [1], [0, 0, 1, 1], [], []>} : vector<24x108xbf16>, vector<108x1568xbf16>, vector<24x1568xf32> -> vector<24x1568xf32>
    %c0_3 = arith.constant 0 : index
    %c0_4 = arith.constant 0 : index
    %3 = vector.load %arg3[%c0_3, %c0_4] : memref<24x1xf32, #tpu.memory_space<vmem>>, vector<24x1xf32>
    %4 = vector.broadcast %3 : vector<24x1xf32> to vector<24x1568xf32>
    %5 = arith.addf %2, %4 : vector<24x1568xf32>
    %cst_5 = arith.constant 0.000000e+00 : f32
    %6 = vector.broadcast %cst_5 : f32 to vector<24x1568xf32>
    %7 = arith.maximumf %5, %6 : vector<24x1568xf32>
    %8 = arith.truncf %7 : vector<24x1568xf32> to vector<24x1568xbf16>
    %c0_6 = arith.constant 0 : index
    %c0_7 = arith.constant 0 : index
    %9 = vector.load %arg4[%c0_6, %c0_7] : memref<24x1568xbf16, #tpu.memory_space<vmem>>, vector<24x1568xbf16>
    tpu.vector_store %arg4[%c0_6, %c0_7], %8 {strides = array<i32>} : memref<24x1568xbf16, #tpu.memory_space<vmem>>, vector<24x1568xbf16>,
    return
  }
  func.func @transform_0(%arg0: i32) -> (i32, i32) {
    %c0_i32 = arith.constant 0 : i32
    %c0_i32_0 = arith.constant 0 : i32
    %c0_i32_1 = arith.constant 0 : i32
    return %c0_i32, %c0_i32_0 : i32, i32
  }
  func.func @transform_1(%arg0: i32) -> (i32, i32) {
    %c0_i32 = arith.constant 0 : i32
    %c0_i32_0 = arith.constant 0 : i32
    return %c0_i32, %arg0 : i32, i32
  }
  func.func @transform_2(%arg0: i32) -> (i32, i32) {
    %c0_i32 = arith.constant 0 : i32
    %c0_i32_0 = arith.constant 0 : i32
    %c0_i32_1 = arith.constant 0 : i32
    return %c0_i32, %c0_i32_0 : i32, i32
  }
  func.func @transform_3(%arg0: i32) -> (i32, i32) {
    %c0_i32 = arith.constant 0 : i32
    %c0_i32_0 = arith.constant 0 : i32
    return %c0_i32, %arg0 : i32, i32
  }
}

module attributes {stable_mosaic.version = 11 : i64} {
  func.func @_convT_mm_kernel(%arg0: i32, %arg1: memref<24x54xbf16, #tpu.memory_space<vmem>>, %arg2: memref<54x4096xbf16, #tpu.memory_space<vmem>>, %arg3: memref<24x1xf32, #tpu.memory_space<vmem>>, %arg4: memref<24x4096xbf16, #tpu.memory_space<vmem>>) attributes {dimension_semantics = [#tpu.dimension_semantics<parallel>], iteration_bounds = array<i64: 2>, scalar_prefetch = 0 : i64, scratch_operands = 0 : i64, tpu.core_type = #tpu.core_type<tc>, window_params = [{pipeline_mode = #tpu.pipeline_mode<synchronous>, transform_indices = @transform_0, window_bounds = array<i64: 24, 54>}, {transform_indices = @transform_1, window_bounds = array<i64: 54, 4096>}, {pipeline_mode = #tpu.pipeline_mode<synchronous>, transform_indices = @transform_2, window_bounds = array<i64: 24, 1>}, {transform_indices = @transform_3, window_bounds = array<i64: 24, 4096>}]} {
    %c0 = arith.constant 0 : index
    %c0_0 = arith.constant 0 : index
    %0 = vector.load %arg1[%c0, %c0_0] : memref<24x54xbf16, #tpu.memory_space<vmem>>, vector<24x54xbf16>
    %c0_1 = arith.constant 0 : index
    %c0_2 = arith.constant 0 : index
    %1 = vector.load %arg2[%c0_1, %c0_2] : memref<54x4096xbf16, #tpu.memory_space<vmem>>, vector<54x4096xbf16>
    %cst = arith.constant dense<0.000000e+00> : vector<24x4096xf32>
    %2 = tpu.matmul %0, %1, %cst {dimension_numbers = #tpu.dot_dimension_numbers<[1], [0], [0], [1], [0, 0, 1, 1], [], []>} : vector<24x54xbf16>, vector<54x4096xbf16>, vector<24x4096xf32> -> vector<24x4096xf32>
    %c0_3 = arith.constant 0 : index
    %c0_4 = arith.constant 0 : index
    %3 = vector.load %arg3[%c0_3, %c0_4] : memref<24x1xf32, #tpu.memory_space<vmem>>, vector<24x1xf32>
    %4 = vector.broadcast %3 : vector<24x1xf32> to vector<24x4096xf32>
    %5 = arith.addf %2, %4 : vector<24x4096xf32>
    %cst_5 = arith.constant 0.000000e+00 : f32
    %6 = vector.broadcast %cst_5 : f32 to vector<24x4096xf32>
    %7 = arith.maximumf %5, %6 : vector<24x4096xf32>
    %8 = arith.truncf %7 : vector<24x4096xf32> to vector<24x4096xbf16>
    %c0_6 = arith.constant 0 : index
    %c0_7 = arith.constant 0 : index
    %9 = vector.load %arg4[%c0_6, %c0_7] : memref<24x4096xbf16, #tpu.memory_space<vmem>>, vector<24x4096xbf16>
    tpu.vector_store %arg4[%c0_6, %c0_7], %8 {strides = array<i32>} : memref<24x4096xbf16, #tpu.memory_space<vmem>>, vector<24x4096xbf16>,
    return
  }
  func.func @transform_0(%arg0: i32) -> (i32, i32) {
    %c0_i32 = arith.constant 0 : i32
    %c0_i32_0 = arith.constant 0 : i32
    %c0_i32_1 = arith.constant 0 : i32
    return %c0_i32, %c0_i32_0 : i32, i32
  }
  func.func @transform_1(%arg0: i32) -> (i32, i32) {
    %c0_i32 = arith.constant 0 : i32
    %c0_i32_0 = arith.constant 0 : i32
    return %c0_i32, %arg0 : i32, i32
  }
  func.func @transform_2(%arg0: i32) -> (i32, i32) {
    %c0_i32 = arith.constant 0 : i32
    %c0_i32_0 = arith.constant 0 : i32
    %c0_i32_1 = arith.constant 0 : i32
    return %c0_i32, %c0_i32_0 : i32, i32
  }
  func.func @transform_3(%arg0: i32) -> (i32, i32) {
    %c0_i32 = arith.constant 0 : i32
    %c0_i32_0 = arith.constant 0 : i32
    return %c0_i32, %arg0 : i32, i32
  }
}

module attributes {stable_mosaic.version = 11 : i64} {
  func.func @_convT_mm_kernel(%arg0: i32, %arg1: memref<12x54xbf16, #tpu.memory_space<vmem>>, %arg2: memref<54x4096xbf16, #tpu.memory_space<vmem>>, %arg3: memref<12x1xf32, #tpu.memory_space<vmem>>, %arg4: memref<12x4096xf32, #tpu.memory_space<vmem>>) attributes {dimension_semantics = [#tpu.dimension_semantics<parallel>], iteration_bounds = array<i64: 7>, scalar_prefetch = 0 : i64, scratch_operands = 0 : i64, tpu.core_type = #tpu.core_type<tc>, window_params = [{pipeline_mode = #tpu.pipeline_mode<synchronous>, transform_indices = @transform_0, window_bounds = array<i64: 12, 54>}, {transform_indices = @transform_1, window_bounds = array<i64: 54, 4096>}, {pipeline_mode = #tpu.pipeline_mode<synchronous>, transform_indices = @transform_2, window_bounds = array<i64: 12, 1>}, {transform_indices = @transform_3, window_bounds = array<i64: 12, 4096>}]} {
    %c0 = arith.constant 0 : index
    %c0_0 = arith.constant 0 : index
    %0 = vector.load %arg1[%c0, %c0_0] : memref<12x54xbf16, #tpu.memory_space<vmem>>, vector<12x54xbf16>
    %c0_1 = arith.constant 0 : index
    %c0_2 = arith.constant 0 : index
    %1 = vector.load %arg2[%c0_1, %c0_2] : memref<54x4096xbf16, #tpu.memory_space<vmem>>, vector<54x4096xbf16>
    %cst = arith.constant dense<0.000000e+00> : vector<12x4096xf32>
    %2 = tpu.matmul %0, %1, %cst {dimension_numbers = #tpu.dot_dimension_numbers<[1], [0], [0], [1], [0, 0, 1, 1], [], []>} : vector<12x54xbf16>, vector<54x4096xbf16>, vector<12x4096xf32> -> vector<12x4096xf32>
    %c0_3 = arith.constant 0 : index
    %c0_4 = arith.constant 0 : index
    %3 = vector.load %arg3[%c0_3, %c0_4] : memref<12x1xf32, #tpu.memory_space<vmem>>, vector<12x1xf32>
    %4 = vector.broadcast %3 : vector<12x1xf32> to vector<12x4096xf32>
    %5 = arith.addf %2, %4 : vector<12x4096xf32>
    %6 = math.tanh %5 : vector<12x4096xf32>
    %c0_5 = arith.constant 0 : index
    %c0_6 = arith.constant 0 : index
    %7 = vector.load %arg4[%c0_5, %c0_6] : memref<12x4096xf32, #tpu.memory_space<vmem>>, vector<12x4096xf32>
    tpu.vector_store %arg4[%c0_5, %c0_6], %6 {strides = array<i32>} : memref<12x4096xf32, #tpu.memory_space<vmem>>, vector<12x4096xf32>,
    return
  }
  func.func @transform_0(%arg0: i32) -> (i32, i32) {
    %c0_i32 = arith.constant 0 : i32
    %c0_i32_0 = arith.constant 0 : i32
    %c0_i32_1 = arith.constant 0 : i32
    return %c0_i32, %c0_i32_0 : i32, i32
  }
  func.func @transform_1(%arg0: i32) -> (i32, i32) {
    %c0_i32 = arith.constant 0 : i32
    %c0_i32_0 = arith.constant 0 : i32
    return %c0_i32, %arg0 : i32, i32
  }
  func.func @transform_2(%arg0: i32) -> (i32, i32) {
    %c0_i32 = arith.constant 0 : i32
    %c0_i32_0 = arith.constant 0 : i32
    %c0_i32_1 = arith.constant 0 : i32
    return %c0_i32, %c0_i32_0 : i32, i32
  }
  func.func @transform_3(%arg0: i32) -> (i32, i32) {
    %c0_i32 = arith.constant 0 : i32
    %c0_i32_0 = arith.constant 0 : i32
    return %c0_i32, %arg0 : i32, i32
  }
}

module attributes {stable_mosaic.version = 11 : i64} {
  func.func @_linear_kernel(%arg0: i32, %arg1: memref<2x1024xf32, #tpu.memory_space<vmem>>, %arg2: memref<1024x10xf32, #tpu.memory_space<vmem>>, %arg3: memref<1x10xf32, #tpu.memory_space<vmem>>, %arg4: memref<2x10xf32, #tpu.memory_space<vmem>>) attributes {dimension_semantics = [#tpu.dimension_semantics<arbitrary>], iteration_bounds = array<i64: 1>, scalar_prefetch = 0 : i64, scratch_operands = 0 : i64, tpu.core_type = #tpu.core_type<tc>, window_params = [{pipeline_mode = #tpu.pipeline_mode<synchronous>, transform_indices = @transform_0, window_bounds = array<i64: 2, 1024>}, {pipeline_mode = #tpu.pipeline_mode<synchronous>, transform_indices = @transform_1, window_bounds = array<i64: 1024, 10>}, {pipeline_mode = #tpu.pipeline_mode<synchronous>, transform_indices = @transform_2, window_bounds = array<i64: 1, 10>}, {pipeline_mode = #tpu.pipeline_mode<synchronous>, transform_indices = @transform_3, window_bounds = array<i64: 2, 10>}]} {
    %c0 = arith.constant 0 : index
    %c0_0 = arith.constant 0 : index
    %0 = vector.load %arg1[%c0, %c0_0] : memref<2x1024xf32, #tpu.memory_space<vmem>>, vector<2x1024xf32>
    %c0_1 = arith.constant 0 : index
    %c0_2 = arith.constant 0 : index
    %1 = vector.load %arg2[%c0_1, %c0_2] : memref<1024x10xf32, #tpu.memory_space<vmem>>, vector<1024x10xf32>
    %cst = arith.constant dense<0.000000e+00> : vector<2x10xf32>
    %2 = tpu.matmul %0, %1, %cst {dimension_numbers = #tpu.dot_dimension_numbers<[1], [0], [0], [1], [0, 0, 1, 1], [], []>} : vector<2x1024xf32>, vector<1024x10xf32>, vector<2x10xf32> -> vector<2x10xf32>
    %c0_3 = arith.constant 0 : index
    %c0_4 = arith.constant 0 : index
    %3 = vector.load %arg3[%c0_3, %c0_4] : memref<1x10xf32, #tpu.memory_space<vmem>>, vector<1x10xf32>
    %4 = vector.broadcast %3 : vector<1x10xf32> to vector<2x10xf32>
    %5 = arith.addf %2, %4 : vector<2x10xf32>
    %c0_5 = arith.constant 0 : index
    %c0_6 = arith.constant 0 : index
    %6 = vector.load %arg4[%c0_5, %c0_6] : memref<2x10xf32, #tpu.memory_space<vmem>>, vector<2x10xf32>
    tpu.vector_store %arg4[%c0_5, %c0_6], %5 {strides = array<i32>} : memref<2x10xf32, #tpu.memory_space<vmem>>, vector<2x10xf32>,
    return
  }
  func.func @transform_0(%arg0: i32) -> (i32, i32) {
    %c0_i32 = arith.constant 0 : i32
    %c0_i32_0 = arith.constant 0 : i32
    %c0_i32_1 = arith.constant 0 : i32
    return %c0_i32, %c0_i32_0 : i32, i32
  }
  func.func @transform_1(%arg0: i32) -> (i32, i32) {
    %c0_i32 = arith.constant 0 : i32
    %c0_i32_0 = arith.constant 0 : i32
    %c0_i32_1 = arith.constant 0 : i32
    return %c0_i32, %c0_i32_0 : i32, i32
  }
  func.func @transform_2(%arg0: i32) -> (i32, i32) {
    %c0_i32 = arith.constant 0 : i32
    %c0_i32_0 = arith.constant 0 : i32
    %c0_i32_1 = arith.constant 0 : i32
    return %c0_i32, %c0_i32_0 : i32, i32
  }
  func.func @transform_3(%arg0: i32) -> (i32, i32) {
    %c0_i32 = arith.constant 0 : i32
    %c0_i32_0 = arith.constant 0 : i32
    %c0_i32_1 = arith.constant 0 : i32
    return %c0_i32, %c0_i32_0 : i32, i32
  }
}

</mosaic_0001>

<llo_original>
// kernel: reconstructor_forward.9
$region0: #{reconstructor_forward.9}
  #allocation0 [shape = 'u32[]', space=smem, size = 0x4, offset = 0x4, fixed_abs, tag = 'smem constant byte address 0x4 - core index']
  #allocation1 [shape = 'u32[72,128]{1,0:T(1,128)}', space=vmem, size = 0x9000, scoped, tag = 'internal scratch']
  %s0 = inlined_call_operand.vmem [shape: bf16[96,216], index: 0, kind: input, shape index: {}]
  %s1 = inlined_call_operand.vmem [shape: bf16[216,98], index: 1, kind: input, shape index: {}]
  %s2 = inlined_call_operand.vmem [shape: f32[96,1], index: 2, kind: input, shape index: {}]
  %s3 = inlined_call_operand.vmem [shape: bf16[96,98], index: 3, kind: output, shape index: {}]
  %s4 = sld [smem:[#allocation0]]
  $region22: #{reconstructor_forward.9} parent=0
    _
  %s6 = ssub.s32 1, %s4
  %s7 = scalar_select 0, %s6, %s4
  // Predicated region
  $region2: #{reconstructor_forward.9} parent=0 // pred_check
    _
  $region3: #{reconstructor_forward.9} parent=0 // pred_check_branch
    %9 = sbr.rel (0) target = $region5
  $region4: #{reconstructor_forward.9} parent=0 // pred_region
    _
  $region5: #{reconstructor_forward.9} parent=0 // pred_fallthru
    _
  // Predicated region
  $region6: #{reconstructor_forward.9} parent=0 // pred_check
    _
  $region7: #{reconstructor_forward.9} parent=0 // pred_check_branch
    %11 = sbr.rel (0) target = $region9
  $region8: #{reconstructor_forward.9} parent=0 // pred_region
    _
  $region9: #{reconstructor_forward.9} parent=0 // pred_fallthru
    _
  // Predicated region
  $region10: #{reconstructor_forward.9} parent=0 // pred_check
    _
  $region11: #{reconstructor_forward.9} parent=0 // pred_check_branch
    %13 = sbr.rel (0) target = $region13
  $region12: #{reconstructor_forward.9} parent=0 // pred_region
    _
  $region13: #{reconstructor_forward.9} parent=0 // pred_fallthru
    _
  %v15 = vld [vmem:[%s0] sm:$0xff]
  %v16 = vld [vmem:[%s0 + $0x8] sm:$0xff]
  %v17 = vld [vmem:[%s0 + $0x10] sm:$0xff]
  %v18 = vld [vmem:[%s0 + $0x18] sm:$0xff]
  %v19 = vld [vmem:[%s0 + $0x20] sm:$0xff]
  %v20 = vld [vmem:[%s0 + $0x28] sm:$0xff]
  %v21 = vld [vmem:[%s0 + $0x30] sm:$0xff]
  %v22 = vld [vmem:[%s0 + $0x38] sm:$0xff]
  %v23 = vld [vmem:[%s0 + $0x40] sm:$0xff]
  %v24 = vld [vmem:[%s0 + $0x48] sm:$0xff]
  %v25 = vld [vmem:[%s0 + $0x50] sm:$0xff]
  %v26 = vld [vmem:[%s0 + $0x58] sm:$0xff]
  %v27 = vld [vmem:[%s1] sm:$0xf]
  %v28 = vld [vmem:[%s1 + $0x4] sm:$0xf]
  %v29 = vld [vmem:[%s1 + $0x8] sm:$0xf]
  %v30 = vld [vmem:[%s1 + $0xc] sm:$0xf]
  %v31 = vld [vmem:[%s1 + $0x10] sm:$0xf]
  %v32 = vld [vmem:[%s1 + $0x14] sm:$0xf]
  %v33 = vld [vmem:[%s1 + $0x18] sm:$0xf]
  %v34 = vld [vmem:[%s1 + $0x1c] sm:$0xf]
  %v35 = vld [vmem:[%s1 + $0x20] sm:$0xf]
  %v36 = vld [vmem:[%s1 + $0x24] sm:$0xf]
  %v37 = vld [vmem:[%s1 + $0x28] sm:$0xf]
  %v38 = vld [vmem:[%s1 + $0x2c] sm:$0xf]
  %v39 = vld [vmem:[%s1 + $0x30] sm:$0xf]
  %v40 = vld [vmem:[%s1 + $0x34] sm:$0xf]
  %v41 = vld [vmem:[%s1 + $0x38] sm:$0xf]
  %v42 = vld [vmem:[%s1 + $0x3c] sm:$0xf]
  %v43 = vld [vmem:[%s1 + $0x40] sm:$0xf]
  %v44 = vld [vmem:[%s1 + $0x44] sm:$0xf]
  %v45 = vld [vmem:[%s1 + $0x48] sm:$0xf]
  %v46 = vld [vmem:[%s1 + $0x4c] sm:$0xf]
  %v47 = vld [vmem:[%s1 + $0x50] sm:$0xf]
  %v48 = vld [vmem:[%s1 + $0x54] sm:$0xf]
  %v49 = vld [vmem:[%s1 + $0x58] sm:$0xf]
  %v50 = vld [vmem:[%s1 + $0x5c] sm:$0xf]
  %v51 = vld [vmem:[%s1 + $0x60] sm:$0xf]
  %v52 = vld [vmem:[%s1 + $0x64] sm:$0xf]
  %v53 = vld [vmem:[%s1 + $0x68] sm:$0xf]
  %v54 = vld [vmem:[%s2] sm:$0xff]
  %v55 = vld [vmem:[%s2 + $0x8] sm:$0xff]
  %v56 = vld [vmem:[%s2 + $0x10] sm:$0xff]
  %v57 = vld [vmem:[%s2 + $0x18] sm:$0xff]
  %v58 = vld [vmem:[%s2 + $0x20] sm:$0xff]
  %v59 = vld [vmem:[%s2 + $0x28] sm:$0xff]
  %v60 = vld [vmem:[%s2 + $0x30] sm:$0xff]
  %v61 = vld [vmem:[%s2 + $0x38] sm:$0xff]
  %v62 = vld [vmem:[%s2 + $0x40] sm:$0xff]
  %v63 = vld [vmem:[%s2 + $0x48] sm:$0xff]
  %v64 = vld [vmem:[%s2 + $0x50] sm:$0xff]
  %v65 = vld [vmem:[%s2 + $0x58] sm:$0xff]
  %67 = vset.pattern.permute.xlu0 0
  %68 = vperm.xlu0 %67, %v54
  %v69 = vpop.permute.xlu0 %68
  %72 = vset.pattern.permute.xlu0 0
  %73 = vperm.xlu0 %72, %v55
  %v74 = vpop.permute.xlu0 %73
  %77 = vset.pattern.permute.xlu0 0
  %78 = vperm.xlu0 %77, %v56
  %v79 = vpop.permute.xlu0 %78
  %82 = vset.pattern.permute.xlu0 0
  %83 = vperm.xlu0 %82, %v57
  %v84 = vpop.permute.xlu0 %83
  %87 = vset.pattern.permute.xlu0 0
  %88 = vperm.xlu0 %87, %v58
  %v89 = vpop.permute.xlu0 %88
  %92 = vset.pattern.permute.xlu0 0
  %93 = vperm.xlu0 %92, %v59
  %v94 = vpop.permute.xlu0 %93
  %97 = vset.pattern.permute.xlu0 0
  %98 = vperm.xlu0 %97, %v60
  %v99 = vpop.permute.xlu0 %98
  %102 = vset.pattern.permute.xlu0 0
  %103 = vperm.xlu0 %102, %v61
  %v104 = vpop.permute.xlu0 %103
  %107 = vset.pattern.permute.xlu0 0
  %108 = vperm.xlu0 %107, %v62
  %v109 = vpop.permute.xlu0 %108
  %112 = vset.pattern.permute.xlu0 0
  %113 = vperm.xlu0 %112, %v63
  %v114 = vpop.permute.xlu0 %113
  %117 = vset.pattern.permute.xlu0 0
  %118 = vperm.xlu0 %117, %v64
  %v119 = vpop.permute.xlu0 %118
  %122 = vset.pattern.permute.xlu0 0
  %123 = vperm.xlu0 %122, %v65
  %v124 = vpop.permute.xlu0 %123
  %v138 = vunpack.c.l.b16 %v15
  %v139 = vunpack.c.h.b16 %v15
  %v140 = vunpack.c.l.b16 %v16
  %v141 = vunpack.c.h.b16 %v16
  %v142 = vunpack.c.l.b16 %v17
  %v143 = vunpack.c.h.b16 %v17
  %v144 = vunpack.c.l.b16 %v18
  %v145 = vunpack.c.h.b16 %v18
  %v146 = vunpack.c.l.b16 %v19
  %v147 = vunpack.c.h.b16 %v19
  %v148 = vunpack.c.l.b16 %v20
  %v149 = vunpack.c.h.b16 %v20
  %v150 = vunpack.c.l.b16 %v21
  %v151 = vunpack.c.h.b16 %v21
  %v152 = vunpack.c.l.b16 %v22
  %v153 = vunpack.c.h.b16 %v22
  %v154 = vunpack.c.l.b16 %v23
  %v155 = vunpack.c.h.b16 %v23
  %v156 = vunpack.c.l.b16 %v24
  %v157 = vunpack.c.h.b16 %v24
  %v158 = vunpack.c.l.b16 %v25
  %v159 = vunpack.c.h.b16 %v25
  %v160 = vunpack.c.l.b16 %v26
  %v161 = vunpack.c.h.b16 %v26
  %v162 = vpack.c.b16 %v140, %v138
  %v163 = vpack.c.b16 %v141, %v139
  %v164 = vpack.c.b16 %v144, %v142
  %v165 = vpack.c.b16 %v145, %v143
  %v166 = vpack.c.b16 %v148, %v146
  %v167 = vpack.c.b16 %v149, %v147
  %v168 = vpack.c.b16 %v152, %v150
  %v169 = vpack.c.b16 %v153, %v151
  %v170 = vpack.c.b16 %v156, %v154
  %v171 = vpack.c.b16 %v157, %v155
  %v172 = vpack.c.b16 %v160, %v158
  %v173 = vpack.c.b16 %v161, %v159
  %v207 = vunpack.c.l.b16 %v27
  %v208 = vunpack.c.l.b16 %v28
  %v209 = vunpack.c.l.b16 %v29
  %v210 = vunpack.c.l.b16 %v30
  %v211 = vunpack.c.l.b16 %v31
  %v212 = vunpack.c.l.b16 %v32
  %v213 = vunpack.c.l.b16 %v33
  %v214 = vunpack.c.l.b16 %v34
  %v215 = vunpack.c.l.b16 %v35
  %v216 = vunpack.c.l.b16 %v36
  %v217 = vunpack.c.l.b16 %v37
  %v218 = vunpack.c.l.b16 %v38
  %v219 = vunpack.c.l.b16 %v39
  %v220 = vunpack.c.l.b16 %v40
  %v221 = vunpack.c.l.b16 %v41
  %v222 = vunpack.c.l.b16 %v42
  %v223 = vunpack.c.l.b16 %v43
  %v224 = vunpack.c.l.b16 %v44
  %v225 = vunpack.c.l.b16 %v45
  %v226 = vunpack.c.l.b16 %v46
  %v227 = vunpack.c.l.b16 %v47
  %v228 = vunpack.c.l.b16 %v48
  %v229 = vunpack.c.l.b16 %v49
  %v230 = vunpack.c.l.b16 %v50
  %v231 = vunpack.c.l.b16 %v51
  %v232 = vunpack.c.l.b16 %v52
  %v233 = vunpack.c.l.b16 %v53
  %v234 = vpack.c.b16 %v208, %v207
  %v235 = vpack.c.b16 %v210, %v209
  %v236 = vpack.c.b16 %v212, %v211
  %v237 = vpack.c.b16 %v214, %v213
  %v238 = vpack.c.b16 %v216, %v215
  %v239 = vpack.c.b16 %v218, %v217
  %v240 = vpack.c.b16 %v220, %v219
  %v241 = vpack.c.b16 %v222, %v221
  %v242 = vpack.c.b16 %v224, %v223
  %v243 = vpack.c.b16 %v226, %v225
  %v244 = vpack.c.b16 %v228, %v227
  %v245 = vpack.c.b16 %v230, %v229
  %v246 = vpack.c.b16 %v232, %v231
  %v247 = vpack.c.b16 %v233, %v233
  %vm261 = vcmask 719872
  %v263 = vsel %vm261, %v163, 0
  %v266 = vsel %vm261, %v165, 0
  %v269 = vsel %vm261, %v167, 0
  %v272 = vsel %vm261, %v169, 0
  %v275 = vsel %vm261, %v171, 0
  %v278 = vsel %vm261, %v173, 0
  %vm280 = vcmask 1043456
  %v282 = vsel %vm280, %v247, 0
  %284 = vmatpush.bf16.msra.mxu0 %v241
  %285 = vmatpush.bf16.msra.mxu0 %v240
  %286 = vmatpush.bf16.msra.mxu0 %v239
  %287 = vmatpush.bf16.msra.mxu0 %v238
  %288 = vmatpush.bf16.msra.mxu0 %v237
  %289 = vmatpush.bf16.msra.mxu0 %v236
  %290 = vmatpush.bf16.msra.mxu0 %v235
  %291 = vmatpush.bf16.msra.mxu0 %v234
  %292 = vmatmul.bf16.gmra.mxu0 %v162
  %v293 = vpop.f32.mrf.mxu0
  %v294 = vadd.f32 %v69, %v293
  %v295 = vpop.f32.mrf.mxu0
  %v296 = vadd.f32 %v74, %v295
  %297 = vmatmul.bf16.gmra.mxu0 %v164
  %v298 = vpop.f32.mrf.mxu0
  %v299 = vadd.f32 %v79, %v298
  %v300 = vpop.f32.mrf.mxu0
  %v301 = vadd.f32 %v84, %v300
  %302 = vmatmul.bf16.gmra.mxu0 %v166
  %v303 = vpop.f32.mrf.mxu0
  %v304 = vadd.f32 %v89, %v303
  %v305 = vpop.f32.mrf.mxu0
  %v306 = vadd.f32 %v94, %v305
  %307 = vmatmul.bf16.gmra.mxu0 %v168
  %v308 = vpop.f32.mrf.mxu0
  %v309 = vadd.f32 %v99, %v308
  %v310 = vpop.f32.mrf.mxu0
  %v311 = vadd.f32 %v104, %v310
  %312 = vmatmul.bf16.gmra.mxu0 %v170
  %v313 = vpop.f32.mrf.mxu0
  %v314 = vadd.f32 %v109, %v313
  %v315 = vpop.f32.mrf.mxu0
  %v316 = vadd.f32 %v114, %v315
  %317 = vmatmul.bf16.gmra.mxu0 %v172
  %v318 = vpop.f32.mrf.mxu0
  %v319 = vadd.f32 %v119, %v318
  %v320 = vpop.f32.mrf.mxu0
  %v321 = vadd.f32 %v124, %v320
  %322 = vdwg.mxu0
  %323 = vmatpush.bf16.msra.mxu0 0
  %324 = vmatpush.bf16.msra.mxu0 0
  %325 = vmatpush.bf16.msra.mxu0 %v282
  %326 = vmatpush.bf16.msra.mxu0 %v246
  %327 = vmatpush.bf16.msra.mxu0 %v245
  %328 = vmatpush.bf16.msra.mxu0 %v244
  %329 = vmatpush.bf16.msra.mxu0 %v243
  %330 = vmatpush.bf16.msra.mxu0 %v242
  %331 = vmatmul.bf16.gmra.mxu0 %v263
  %v332 = vpop.f32.mrf.mxu0
  %v333 = vadd.f32 %v294, %v332
  %v334 = vpop.f32.mrf.mxu0
  %v335 = vadd.f32 %v296, %v334
  %336 = vmatmul.bf16.gmra.mxu0 %v266
  %v337 = vpop.f32.mrf.mxu0
  %v338 = vadd.f32 %v299, %v337
  %v339 = vpop.f32.mrf.mxu0
  %v340 = vadd.f32 %v301, %v339
  %341 = vmatmul.bf16.gmra.mxu0 %v269
  %v342 = vpop.f32.mrf.mxu0
  %v343 = vadd.f32 %v304, %v342
  %v344 = vpop.f32.mrf.mxu0
  %v345 = vadd.f32 %v306, %v344
  %346 = vmatmul.bf16.gmra.mxu0 %v272
  %v347 = vpop.f32.mrf.mxu0
  %v348 = vadd.f32 %v309, %v347
  %v349 = vpop.f32.mrf.mxu0
  %v350 = vadd.f32 %v311, %v349
  %351 = vmatmul.bf16.gmra.mxu0 %v275
  %v352 = vpop.f32.mrf.mxu0
  %v353 = vadd.f32 %v314, %v352
  %v354 = vpop.f32.mrf.mxu0
  %v355 = vadd.f32 %v316, %v354
  %356 = vmatmul.bf16.gmra.mxu0 %v278
  %v357 = vpop.f32.mrf.mxu0
  %v358 = vadd.f32 %v319, %v357
  %v359 = vpop.f32.mrf.mxu0
  %v360 = vadd.f32 %v321, %v359
  %361 = vdwg.mxu0
  %v362 = vmax.f32 %v333, 0.0
  %v363 = vmax.f32 %v335, 0.0
  %v364 = vmax.f32 %v338, 0.0
  %v365 = vmax.f32 %v340, 0.0
  %v366 = vmax.f32 %v343, 0.0
  %v367 = vmax.f32 %v345, 0.0
  %v368 = vmax.f32 %v348, 0.0
  %v369 = vmax.f32 %v350, 0.0
  %v370 = vmax.f32 %v353, 0.0
  %v371 = vmax.f32 %v355, 0.0
  %v372 = vmax.f32 %v358, 0.0
  %v373 = vmax.f32 %v360, 0.0
  %v374 = vpack.c.bf16 %v362, %v362
  %v375 = vpack.c.bf16 %v363, %v363
  %v376 = vpack.c.bf16 %v364, %v364
  %v377 = vpack.c.bf16 %v365, %v365
  %v378 = vpack.c.bf16 %v366, %v366
  %v379 = vpack.c.bf16 %v367, %v367
  %v380 = vpack.c.bf16 %v368, %v368
  %v381 = vpack.c.bf16 %v369, %v369
  %v382 = vpack.c.bf16 %v370, %v370
  %v383 = vpack.c.bf16 %v371, %v371
  %v384 = vpack.c.bf16 %v372, %v372
  %v385 = vpack.c.bf16 %v373, %v373
  %vm386 = vcmask 797696
  %387 = vst.msk [vmem:[%s3] sm:$0xf] %vm386, %v374
  %388 = vst.msk [vmem:[%s3 + $0x4] sm:$0xf] %vm386, %v375
  %389 = vst.msk [vmem:[%s3 + $0x8] sm:$0xf] %vm386, %v376
  %390 = vst.msk [vmem:[%s3 + $0xc] sm:$0xf] %vm386, %v377
  %391 = vst.msk [vmem:[%s3 + $0x10] sm:$0xf] %vm386, %v378
  %392 = vst.msk [vmem:[%s3 + $0x14] sm:$0xf] %vm386, %v379
  %393 = vst.msk [vmem:[%s3 + $0x18] sm:$0xf] %vm386, %v380
  %394 = vst.msk [vmem:[%s3 + $0x1c] sm:$0xf] %vm386, %v381
  %395 = vst.msk [vmem:[%s3 + $0x20] sm:$0xf] %vm386, %v382
  %396 = vst.msk [vmem:[%s3 + $0x24] sm:$0xf] %vm386, %v383
  %397 = vst.msk [vmem:[%s3 + $0x28] sm:$0xf] %vm386, %v384
  %398 = vst.msk [vmem:[%s3 + $0x2c] sm:$0xf] %vm386, %v385
  // Predicated region
  $region14: #{reconstructor_forward.9} parent=0 // pred_check
    _
  $region15: #{reconstructor_forward.9} parent=0 // pred_check_branch
    %400 = sbr.rel (0) target = $region17
  $region16: #{reconstructor_forward.9} parent=0 // pred_region
    _
  $region17: #{reconstructor_forward.9} parent=0 // pred_fallthru
    _
  // Predicated region
  $region18: #{reconstructor_forward.9} parent=0 // pred_check
    _
  $region19: #{reconstructor_forward.9} parent=0 // pred_check_branch
    %402 = sbr.rel (0) target = $region21
  $region20: #{reconstructor_forward.9} parent=0 // pred_region
    _
  $region21: #{reconstructor_forward.9} parent=0 // pred_fallthru
    _

// kernel: reconstructor_forward.8
$region0: #{reconstructor_forward.8}
  #allocation0 [shape = 'u32[]', space=smem, size = 0x4, offset = 0x4, fixed_abs, tag = 'smem constant byte address 0x4 - core index']
  #allocation1 [shape = 'u32[72,128]{1,0:T(1,128)}', space=vmem, size = 0x9000, scoped, tag = 'internal scratch']
  %s0 = inlined_call_operand.vmem [shape: f32[2,1024], index: 0, kind: input, shape index: {}]
  %s1 = inlined_call_operand.vmem [shape: f32[1024,1176], index: 1, kind: input, shape index: {}]
  %s2 = inlined_call_operand.vmem [shape: f32[1,1176], index: 2, kind: input, shape index: {}]
  %s3 = inlined_call_operand.vmem [shape: f32[2,1176], index: 3, kind: output, shape index: {}]
  %s4 = sld [smem:[#allocation0]]
  $region22: #{reconstructor_forward.8} parent=0
    _
  %s6 = ssub.s32 1, %s4
  %s7 = scalar_select 0, %s6, %s4
  // Predicated region
  $region2: #{reconstructor_forward.8} parent=0 // pred_check
    _
  $region3: #{reconstructor_forward.8} parent=0 // pred_check_branch
    %9 = sbr.rel (0) target = $region5
  $region4: #{reconstructor_forward.8} parent=0 // pred_region
    _
  $region5: #{reconstructor_forward.8} parent=0 // pred_fallthru
    _
  // Predicated region
  $region6: #{reconstructor_forward.8} parent=0 // pred_check
    _
  $region7: #{reconstructor_forward.8} parent=0 // pred_check_branch
    %11 = sbr.rel (0) target = $region9
  $region8: #{reconstructor_forward.8} parent=0 // pred_region
    _
  $region9: #{reconstructor_forward.8} parent=0 // pred_fallthru
    _
  // Predicated region
  $region10: #{reconstructor_forward.8} parent=0 // pred_check
    _
  $region11: #{reconstructor_forward.8} parent=0 // pred_check_branch
    %13 = sbr.rel (0) target = $region13
  $region12: #{reconstructor_forward.8} parent=0 // pred_region
    _
  $region13: #{reconstructor_forward.8} parent=0 // pred_fallthru
    _
  %v14 = vld [vmem:[%s0] sm:$0xff]
  %v15 = vld [vmem:[%s0 + $0x8] sm:$0xff]
  %v16 = vld [vmem:[%s1] sm:$0xff]
  %v17 = vld [vmem:[%s1 + $0x8] sm:$0xff]
  %v18 = vld [vmem:[%s1 + $0x10] sm:$0xff]
  %v19 = vld [vmem:[%s1 + $0x18] sm:$0xff]
  %v20 = vld [vmem:[%s1 + $0x20] sm:$0xff]
  %v21 = vld [vmem:[%s1 + $0x28] sm:$0xff]
  %v22 = vld [vmem:[%s1 + $0x30] sm:$0xff]
  %v23 = vld [vmem:[%s1 + $0x38] sm:$0xff]
  %v24 = vld [vmem:[%s1 + $0x40] sm:$0xff]
  %v25 = vld [vmem:[%s1 + $0x48] sm:$0xff]
  %v26 = vld [vmem:[%s1 + $0x50] sm:$0xff]
  %v27 = vld [vmem:[%s1 + $0x58] sm:$0xff]
  %v28 = vld [vmem:[%s1 + $0x60] sm:$0xff]
  %v29 = vld [vmem:[%s1 + $0x68] sm:$0xff]
  %v30 = vld [vmem:[%s1 + $0x70] sm:$0xff]
  %v31 = vld [vmem:[%s1 + $0x78] sm:$0xff]
  %v32 = vld [vmem:[%s1 + $0x80] sm:$0xff]
  %v33 = vld [vmem:[%s1 + $0x88] sm:$0xff]
  %v34 = vld [vmem:[%s1 + $0x90] sm:$0xff]
  %v35 = vld [vmem:[%s1 + $0x98] sm:$0xff]
  %v36 = vld [vmem:[%s1 + $0xa0] sm:$0xff]
  %v37 = vld [vmem:[%s1 + $0xa8] sm:$0xff]
  %v38 = vld [vmem:[%s1 + $0xb0] sm:$0xff]
  %v39 = vld [vmem:[%s1 + $0xb8] sm:$0xff]
  %v40 = vld [vmem:[%s1 + $0xc0] sm:$0xff]
  %v41 = vld [vmem:[%s1 + $0xc8] sm:$0xff]
  %v42 = vld [vmem:[%s1 + $0xd0] sm:$0xff]
  %v43 = vld [vmem:[%s1 + $0xd8] sm:$0xff]
  %v44 = vld [vmem:[%s1 + $0xe0] sm:$0xff]
  %v45 = vld [vmem:[%s1 + $0xe8] sm:$0xff]
  %v46 = vld [vmem:[%s1 + $0xf0] sm:$0xff]
  %v47 = vld [vmem:[%s1 + $0xf8] sm:$0xff]
  %v48 = vld [vmem:[%s1 + $0x100] sm:$0xff]
  %v49 = vld [vmem:[%s1 + $0x108] sm:$0xff]
  %v50 = vld [vmem:[%s1 + $0x110] sm:$0xff]
  %v51 = vld [vmem:[%s1 + $0x118] sm:$0xff]
  %v52 = vld [vmem:[%s1 + $0x120] sm:$0xff]
  %v53 = vld [vmem:[%s1 + $0x128] sm:$0xff]
  %v54 = vld [vmem:[%s1 + $0x130] sm:$0xff]
  %v55 = vld [vmem:[%s1 + $0x138] sm:$0xff]
  %v56 = vld [vmem:[%s1 + $0x140] sm:$0xff]
  %v57 = vld [vmem:[%s1 + $0x148] sm:$0xff]
  %v58 = vld [vmem:[%s1 + $0x150] sm:$0xff]
  %v59 = vld [vmem:[%s1 + $0x158] sm:$0xff]
  %v60 = vld [vmem:[%s1 + $0x160] sm:$0xff]
  %v61 = vld [vmem:[%s1 + $0x168] sm:$0xff]
  %v62 = vld [vmem:[%s1 + $0x170] sm:$0xff]
  %v63 = vld [vmem:[%s1 + $0x178] sm:$0xff]
  %v64 = vld [vmem:[%s1 + $0x180] sm:$0xff]
  %v65 = vld [vmem:[%s1 + $0x188] sm:$0xff]
  %v66 = vld [vmem:[%s1 + $0x190] sm:$0xff]
  %v67 = vld [vmem:[%s1 + $0x198] sm:$0xff]
  %v68 = vld [vmem:[%s1 + $0x1a0] sm:$0xff]
  %v69 = vld [vmem:[%s1 + $0x1a8] sm:$0xff]
  %v70 = vld [vmem:[%s1 + $0x1b0] sm:$0xff]
  %v71 = vld [vmem:[%s1 + $0x1b8] sm:$0xff]
  %v72 = vld [vmem:[%s1 + $0x1c0] sm:$0xff]
  %v73 = vld [vmem:[%s1 + $0x1c8] sm:$0xff]
  %v74 = vld [vmem:[%s1 + $0x1d0] sm:$0xff]
  %v75 = vld [vmem:[%s1 + $0x1d8] sm:$0xff]
  %v76 = vld [vmem:[%s1 + $0x1e0] sm:$0xff]
  %v77 = vld [vmem:[%s1 + $0x1e8] sm:$0xff]
  %v78 = vld [vmem:[%s1 + $0x1f0] sm:$0xff]
  %v79 = vld [vmem:[%s1 + $0x1f8] sm:$0xff]
  %v80 = vld [vmem:[%s1 + $0x200] sm:$0xff]
  %v81 = vld [vmem:[%s1 + $0x208] sm:$0xff]
  %v82 = vld [vmem:[%s1 + $0x210] sm:$0xff]
  %v83 = vld [vmem:[%s1 + $0x218] sm:$0xff]
  %v84 = vld [vmem:[%s1 + $0x220] sm:$0xff]
  %v85 = vld [vmem:[%s1 + $0x228] sm:$0xff]
  %v86 = vld [vmem:[%s1 + $0x230] sm:$0xff]
  %v87 = vld [vmem:[%s1 + $0x238] sm:$0xff]
  %v88 = vld [vmem:[%s1 + $0x240] sm:$0xff]
  %v89 = vld [vmem:[%s1 + $0x248] sm:$0xff]
  %v90 = vld [vmem:[%s1 + $0x250] sm:$0xff]
  %v91 = vld [vmem:[%s1 + $0x258] sm:$0xff]
  %v92 = vld [vmem:[%s1 + $0x260] sm:$0xff]
  %v93 = vld [vmem:[%s1 + $0x268] sm:$0xff]
  %v94 = vld [vmem:[%s1 + $0x270] sm:$0xff]
  %v95 = vld [vmem:[%s1 + $0x278] sm:$0xff]
  %v96 = vld [vmem:[%s1 + $0x280] sm:$0xff]
  %v97 = vld [vmem:[%s1 + $0x288] sm:$0xff]
  %v98 = vld [vmem:[%s1 + $0x290] sm:$0xff]
  %v99 = vld [vmem:[%s1 + $0x298] sm:$0xff]
  %v100 = vld [vmem:[%s1 + $0x2a0] sm:$0xff]
  %v101 = vld [vmem:[%s1 + $0x2a8] sm:$0xff]
  %v102 = vld [vmem:[%s1 + $0x2b0] sm:$0xff]
  %v103 = vld [vmem:[%s1 + $0x2b8] sm:$0xff]
  %v104 = vld [vmem:[%s1 + $0x2c0] sm:$0xff]
  %v105 = vld [vmem:[%s1 + $0x2c8] sm:$0xff]
  %v106 = vld [vmem:[%s1 + $0x2d0] sm:$0xff]
  %v107 = vld [vmem:[%s1 + $0x2d8] sm:$0xff]
  %v108 = vld [vmem:[%s1 + $0x2e0] sm:$0xff]
  %v109 = vld [vmem:[%s1 + $0x2e8] sm:$0xff]
  %v110 = vld [vmem:[%s1 + $0x2f0] sm:$0xff]
  %v111 = vld [vmem:[%s1 + $0x2f8] sm:$0xff]
  %v112 = vld [vmem:[%s1 + $0x300] sm:$0xff]
  %v113 = vld [vmem:[%s1 + $0x308] sm:$0xff]
  %v114 = vld [vmem:[%s1 + $0x310] sm:$0xff]
  %v115 = vld [vmem:[%s1 + $0x318] sm:$0xff]
  %v116 = vld [vmem:[%s1 + $0x320] sm:$0xff]
  %v117 = vld [vmem:[%s1 + $0x328] sm:$0xff]
  %v118 = vld [vmem:[%s1 + $0x330] sm:$0xff]
  %v119 = vld [vmem:[%s1 + $0x338] sm:$0xff]
  %v120 = vld [vmem:[%s1 + $0x340] sm:$0xff]
  %v121 = vld [vmem:[%s1 + $0x348] sm:$0xff]
  %v122 = vld [vmem:[%s1 + $0x350] sm:$0xff]
  %v123 = vld [vmem:[%s1 + $0x358] sm:$0xff]
  %v124 = vld [vmem:[%s1 + $0x360] sm:$0xff]
  %v125 = vld [vmem:[%s1 + $0x368] sm:$0xff]
  %v126 = vld [vmem:[%s1 + $0x370] sm:$0xff]
  %v127 = vld [vmem:[%s1 + $0x378] sm:$0xff]
  %v128 = vld [vmem:[%s1 + $0x380] sm:$0xff]
  %v129 = vld [vmem:[%s1 + $0x388] sm:$0xff]
  %v130 = vld [vmem:[%s1 + $0x390] sm:$0xff]
  %v131 = vld [vmem:[%s1 + $0x398] sm:$0xff]
  %v132 = vld [vmem:[%s1 + $0x3a0] sm:$0xff]
  %v133 = vld [vmem:[%s1 + $0x3a8] sm:$0xff]
  %v134 = vld [vmem:[%s1 + $0x3b0] sm:$0xff]
  %v135 = vld [vmem:[%s1 + $0x3b8] sm:$0xff]
  %v136 = vld [vmem:[%s1 + $0x3c0] sm:$0xff]
  %v137 = vld [vmem:[%s1 + $0x3c8] sm:$0xff]
  %v138 = vld [vmem:[%s1 + $0x3d0] sm:$0xff]
  %v139 = vld [vmem:[%s1 + $0x3d8] sm:$0xff]
  %v140 = vld [vmem:[%s1 + $0x3e0] sm:$0xff]
  %v141 = vld [vmem:[%s1 + $0x3e8] sm:$0xff]
  %v142 = vld [vmem:[%s1 + $0x3f0] sm:$0xff]
  %v143 = vld [vmem:[%s1 + $0x3f8] sm:$0xff]
  %v144 = vld [vmem:[%s1 + $0x400] sm:$0xff]
  %v145 = vld [vmem:[%s1 + $0x408] sm:$0xff]
  %v146 = vld [vmem:[%s1 + $0x410] sm:$0xff]
  %v147 = vld [vmem:[%s1 + $0x418] sm:$0xff]
  %v148 = vld [vmem:[%s1 + $0x420] sm:$0xff]
  %v149 = vld [vmem:[%s1 + $0x428] sm:$0xff]
  %v150 = vld [vmem:[%s1 + $0x430] sm:$0xff]
  %v151 = vld [vmem:[%s1 + $0x438] sm:$0xff]
  %v152 = vld [vmem:[%s1 + $0x440] sm:$0xff]
  %v153 = vld [vmem:[%s1 + $0x448] sm:$0xff]
  %v154 = vld [vmem:[%s1 + $0x450] sm:$0xff]
  %v155 = vld [vmem:[%s1 + $0x458] sm:$0xff]
  %v156 = vld [vmem:[%s1 + $0x460] sm:$0xff]
  %v157 = vld [vmem:[%s1 + $0x468] sm:$0xff]
  %v158 = vld [vmem:[%s1 + $0x470] sm:$0xff]
  %v159 = vld [vmem:[%s1 + $0x478] sm:$0xff]
  %v160 = vld [vmem:[%s1 + $0x480] sm:$0xff]
  %v161 = vld [vmem:[%s1 + $0x488] sm:$0xff]
  %v162 = vld [vmem:[%s1 + $0x490] sm:$0xff]
  %v163 = vld [vmem:[%s1 + $0x498] sm:$0xff]
  %v164 = vld [vmem:[%s1 + $0x4a0] sm:$0xff]
  %v165 = vld [vmem:[%s1 + $0x4a8] sm:$0xff]
  %v166 = vld [vmem:[%s1 + $0x4b0] sm:$0xff]
  %v167 = vld [vmem:[%s1 + $0x4b8] sm:$0xff]
  %v168 = vld [vmem:[%s1 + $0x4c0] sm:$0xff]
  %v169 = vld [vmem:[%s1 + $0x4c8] sm:$0xff]
  %v170 = vld [vmem:[%s1 + $0x4d0] sm:$0xff]
  %v171 = vld [vmem:[%s1 + $0x4d8] sm:$0xff]
  %v172 = vld [vmem:[%s1 + $0x4e0] sm:$0xff]
  %v173 = vld [vmem:[%s1 + $0x4e8] sm:$0xff]
  %v174 = vld [vmem:[%s1 + $0x4f0] sm:$0xff]
  %v175 = vld [vmem:[%s1 + $0x4f8] sm:$0xff]
  %v176 = vld [vmem:[%s1 + $0x500] sm:$0xff]
  %v177 = vld [vmem:[%s1 + $0x508] sm:$0xff]
  %v178 = vld [vmem:[%s1 + $0x510] sm:$0xff]
  %v179 = vld [vmem:[%s1 + $0x518] sm:$0xff]
  %v180 = vld [vmem:[%s1 + $0x520] sm:$0xff]
  %v181 = vld [vmem:[%s1 + $0x528] sm:$0xff]
  %v182 = vld [vmem:[%s1 + $0x530] sm:$0xff]
  %v183 = vld [vmem:[%s1 + $0x538] sm:$0xff]
  %v184 = vld [vmem:[%s1 + $0x540] sm:$0xff]
  %v185 = vld [vmem:[%s1 + $0x548] sm:$0xff]
  %v186 = vld [vmem:[%s1 + $0x550] sm:$0xff]
  %v187 = vld [vmem:[%s1 + $0x558] sm:$0xff]
  %v188 = vld [vmem:[%s1 + $0x560] sm:$0xff]
  %v189 = vld [vmem:[%s1 + $0x568] sm:$0xff]
  %v190 = vld [vmem:[%s1 + $0x570] sm:$0xff]
  %v191 = vld [vmem:[%s1 + $0x578] sm:$0xff]
  %v192 = vld [vmem:[%s1 + $0x580] sm:$0xff]
  %v193 = vld [vmem:[%s1 + $0x588] sm:$0xff]
  %v194 = vld [vmem:[%s1 + $0x590] sm:$0xff]
  %v195 = vld [vmem:[%s1 + $0x598] sm:$0xff]
  %v196 = vld [vmem:[%s1 + $0x5a0] sm:$0xff]
  %v197 = vld [vmem:[%s1 + $0x5a8] sm:$0xff]
  %v198 = vld [vmem:[%s1 + $0x5b0] sm:$0xff]
  %v199 = vld [vmem:[%s1 + $0x5b8] sm:$0xff]
  %v200 = vld [vmem:[%s1 + $0x5c0] sm:$0xff]
  %v201 = vld [vmem:[%s1 + $0x5c8] sm:$0xff]
  %v202 = vld [vmem:[%s1 + $0x5d0] sm:$0xff]
  %v203 = vld [vmem:[%s1 + $0x5d8] sm:$0xff]
  %v204 = vld [vmem:[%s1 + $0x5e0] sm:$0xff]
  %v205 = vld [vmem:[%s1 + $0x5e8] sm:$0xff]
  %v206 = vld [vmem:[%s1 + $0x5f0] sm:$0xff]
  %v207 = vld [vmem:[%s1 + $0x5f8] sm:$0xff]
  %v208 = vld [vmem:[%s1 + $0x600] sm:$0xff]
  %v209 = vld [vmem:[%s1 + $0x608] sm:$0xff]
  %v210 = vld [vmem:[%s1 + $0x610] sm:$0xff]
  %v211 = vld [vmem:[%s1 + $0x618] sm:$0xff]
  %v212 = vld [vmem:[%s1 + $0x620] sm:$0xff]
  %v213 = vld [vmem:[%s1 + $0x628] sm:$0xff]
  %v214 = vld [vmem:[%s1 + $0x630] sm:$0xff]
  %v215 = vld [vmem:[%s1 + $0x638] sm:$0xff]
  %v216 = vld [vmem:[%s1 + $0x640] sm:$0xff]
  %v217 = vld [vmem:[%s1 + $0x648] sm:$0xff]
  %v218 = vld [vmem:[%s1 + $0x650] sm:$0xff]
  %v219 = vld [vmem:[%s1 + $0x658] sm:$0xff]
  %v220 = vld [vmem:[%s1 + $0x660] sm:$0xff]
  %v221 = vld [vmem:[%s1 + $0x668] sm:$0xff]
  %v222 = vld [vmem:[%s1 + $0x670] sm:$0xff]
  %v223 = vld [vmem:[%s1 + $0x678] sm:$0xff]
  %v224 = vld [vmem:[%s1 + $0x680] sm:$0xff]
  %v225 = vld [vmem:[%s1 + $0x688] sm:$0xff]
  %v226 = vld [vmem:[%s1 + $0x690] sm:$0xff]
  %v227 = vld [vmem:[%s1 + $0x698] sm:$0xff]
  %v228 = vld [vmem:[%s1 + $0x6a0] sm:$0xff]
  %v229 = vld [vmem:[%s1 + $0x6a8] sm:$0xff]
  %v230 = vld [vmem:[%s1 + $0x6b0] sm:$0xff]
  %v231 = vld [vmem:[%s1 + $0x6b8] sm:$0xff]
  %v232 = vld [vmem:[%s1 + $0x6c0] sm:$0xff]
  %v233 = vld [vmem:[%s1 + $0x6c8] sm:$0xff]
  %v234 = vld [vmem:[%s1 + $0x6d0] sm:$0xff]
  %v235 = vld [vmem:[%s1 + $0x6d8] sm:$0xff]
  %v236 = vld [vmem:[%s1 + $0x6e0] sm:$0xff]
  %v237 = vld [vmem:[%s1 + $0x6e8] sm:$0xff]
  %v238 = vld [vmem:[%s1 + $0x6f0] sm:$0xff]
  %v239 = vld [vmem:[%s1 + $0x6f8] sm:$0xff]
  %v240 = vld [vmem:[%s1 + $0x700] sm:$0xff]
  %v241 = vld [vmem:[%s1 + $0x708] sm:$0xff]
  %v242 = vld [vmem:[%s1 + $0x710] sm:$0xff]
  %v243 = vld [vmem:[%s1 + $0x718] sm:$0xff]
  %v244 = vld [vmem:[%s1 + $0x720] sm:$0xff]
  %v245 = vld [vmem:[%s1 + $0x728] sm:$0xff]
  %v246 = vld [vmem:[%s1 + $0x730] sm:$0xff]
  %v247 = vld [vmem:[%s1 + $0x738] sm:$0xff]
  %v248 = vld [vmem:[%s1 + $0x740] sm:$0xff]
  %v249 = vld [vmem:[%s1 + $0x748] sm:$0xff]
  %v250 = vld [vmem:[%s1 + $0x750] sm:$0xff]
  %v251 = vld [vmem:[%s1 + $0x758] sm:$0xff]
  %v252 = vld [vmem:[%s1 + $0x760] sm:$0xff]
  %v253 = vld [vmem:[%s1 + $0x768] sm:$0xff]
  %v254 = vld [vmem:[%s1 + $0x770] sm:$0xff]
  %v255 = vld [vmem:[%s1 + $0x778] sm:$0xff]
  %v256 = vld [vmem:[%s1 + $0x780] sm:$0xff]
  %v257 = vld [vmem:[%s1 + $0x788] sm:$0xff]
  %v258 = vld [vmem:[%s1 + $0x790] sm:$0xff]
  %v259 = vld [vmem:[%s1 + $0x798] sm:$0xff]
  %v260 = vld [vmem:[%s1 + $0x7a0] sm:$0xff]
  %v261 = vld [vmem:[%s1 + $0x7a8] sm:$0xff]
  %v262 = vld [vmem:[%s1 + $0x7b0] sm:$0xff]
  %v263 = vld [vmem:[%s1 + $0x7b8] sm:$0xff]
  %v264 = vld [vmem:[%s1 + $0x7c0] sm:$0xff]
  %v265 = vld [vmem:[%s1 + $0x7c8] sm:$0xff]
  %v266 = vld [vmem:[%s1 + $0x7d0] sm:$0xff]
  %v267 = vld [vmem:[%s1 + $0x7d8] sm:$0xff]
  %v268 = vld [vmem:[%s1 + $0x7e0] sm:$0xff]
  %v269 = vld [vmem:[%s1 + $0x7e8] sm:$0xff]
  %v270 = vld [vmem:[%s1 + $0x7f0] sm:$0xff]
  %v271 = vld [vmem:[%s1 + $0x7f8] sm:$0xff]
  %v272 = vld [vmem:[%s1 + $0x800] sm:$0xff]
  %v273 = vld [vmem:[%s1 + $0x808] sm:$0xff]
  %v274 = vld [vmem:[%s1 + $0x810] sm:$0xff]
  %v275 = vld [vmem:[%s1 + $0x818] sm:$0xff]
  %v276 = vld [vmem:[%s1 + $0x820] sm:$0xff]
  %v277 = vld [vmem:[%s1 + $0x828] sm:$0xff]
  %v278 = vld [vmem:[%s1 + $0x830] sm:$0xff]
  %v279 = vld [vmem:[%s1 + $0x838] sm:$0xff]
  %v280 = vld [vmem:[%s1 + $0x840] sm:$0xff]
  %v281 = vld [vmem:[%s1 + $0x848] sm:$0xff]
  %v282 = vld [vmem:[%s1 + $0x850] sm:$0xff]
  %v283 = vld [vmem:[%s1 + $0x858] sm:$0xff]
  %v284 = vld [vmem:[%s1 + $0x860] sm:$0xff]
  %v285 = vld [vmem:[%s1 + $0x868] sm:$0xff]
  %v286 = vld [vmem:[%s1 + $0x870] sm:$0xff]
  %v287 = vld [vmem:[%s1 + $0x878] sm:$0xff]
  %v288 = vld [vmem:[%s1 + $0x880] sm:$0xff]
  %v289 = vld [vmem:[%s1 + $0x888] sm:$0xff]
  %v290 = vld [vmem:[%s1 + $0x890] sm:$0xff]
  %v291 = vld [vmem:[%s1 + $0x898] sm:$0xff]
  %v292 = vld [vmem:[%s1 + $0x8a0] sm:$0xff]
  %v293 = vld [vmem:[%s1 + $0x8a8] sm:$0xff]
  %v294 = vld [vmem:[%s1 + $0x8b0] sm:$0xff]
  %v295 = vld [vmem:[%s1 + $0x8b8] sm:$0xff]
  %v296 = vld [vmem:[%s1 + $0x8c0] sm:$0xff]
  %v297 = vld [vmem:[%s1 + $0x8c8] sm:$0xff]
  %v298 = vld [vmem:[%s1 + $0x8d0] sm:$0xff]
  %v299 = vld [vmem:[%s1 + $0x8d8] sm:$0xff]
  %v300 = vld [vmem:[%s1 + $0x8e0] sm:$0xff]
  %v301 = vld [vmem:[%s1 + $0x8e8] sm:$0xff]
  %v302 = vld [vmem:[%s1 + $0x8f0] sm:$0xff]
  %v303 = vld [vmem:[%s1 + $0x8f8] sm:$0xff]
  %v304 = vld [vmem:[%s1 + $0x900] sm:$0xff]
  %v305 = vld [vmem:[%s1 + $0x908] sm:$0xff]
  %v306 = vld [vmem:[%s1 + $0x910] sm:$0xff]
  %v307 = vld [vmem:[%s1 + $0x918] sm:$0xff]
  %v308 = vld [vmem:[%s1 + $0x920] sm:$0xff]
  %v309 = vld [vmem:[%s1 + $0x928] sm:$0xff]
  %v310 = vld [vmem:[%s1 + $0x930] sm:$0xff]
  %v311 = vld [vmem:[%s1 + $0x938] sm:$0xff]
  %v312 = vld [vmem:[%s1 + $0x940] sm:$0xff]
  %v313 = vld [vmem:[%s1 + $0x948] sm:$0xff]
  %v314 = vld [vmem:[%s1 + $0x950] sm:$0xff]
  %v315 = vld [vmem:[%s1 + $0x958] sm:$0xff]
  %v316 = vld [vmem:[%s1 + $0x960] sm:$0xff]
  %v317 = vld [vmem:[%s1 + $0x968] sm:$0xff]
  %v318 = vld [vmem:[%s1 + $0x970] sm:$0xff]
  %v319 = vld [vmem:[%s1 + $0x978] sm:$0xff]
  %v320 = vld [vmem:[%s1 + $0x980] sm:$0xff]
  %v321 = vld [vmem:[%s1 + $0x988] sm:$0xff]
  %v322 = vld [vmem:[%s1 + $0x990] sm:$0xff]
  %v323 = vld [vmem:[%s1 + $0x998] sm:$0xff]
  %v324 = vld [vmem:[%s1 + $0x9a0] sm:$0xff]
  %v325 = vld [vmem:[%s1 + $0x9a8] sm:$0xff]
  %v326 = vld [vmem:[%s1 + $0x9b0] sm:$0xff]
  %v327 = vld [vmem:[%s1 + $0x9b8] sm:$0xff]
  %v328 = vld [vmem:[%s1 + $0x9c0] sm:$0xff]
  %v329 = vld [vmem:[%s1 + $0x9c8] sm:$0xff]
  %v330 = vld [vmem:[%s1 + $0x9d0] sm:$0xff]
  %v331 = vld [vmem:[%s1 + $0x9d8] sm:$0xff]
  %v332 = vld [vmem:[%s1 + $0x9e0] sm:$0xff]
  %v333 = vld [vmem:[%s1 + $0x9e8] sm:$0xff]
  %v334 = vld [vmem:[%s1 + $0x9f0] sm:$0xff]
  %v335 = vld [vmem:[%s1 + $0x9f8] sm:$0xff]
  %v336 = vld [vmem:[%s1 + $0xa00] sm:$0xff]
  %v337 = vld [vmem:[%s1 + $0xa08] sm:$0xff]
  %v338 = vld [vmem:[%s1 + $0xa10] sm:$0xff]
  %v339 = vld [vmem:[%s1 + $0xa18] sm:$0xff]
  %v340 = vld [vmem:[%s1 + $0xa20] sm:$0xff]
  %v341 = vld [vmem:[%s1 + $0xa28] sm:$0xff]
  %v342 = vld [vmem:[%s1 + $0xa30] sm:$0xff]
  %v343 = vld [vmem:[%s1 + $0xa38] sm:$0xff]
  %v344 = vld [vmem:[%s1 + $0xa40] sm:$0xff]
  %v345 = vld [vmem:[%s1 + $0xa48] sm:$0xff]
  %v346 = vld [vmem:[%s1 + $0xa50] sm:$0xff]
  %v347 = vld [vmem:[%s1 + $0xa58] sm:$0xff]
  %v348 = vld [vmem:[%s1 + $0xa60] sm:$0xff]
  %v349 = vld [vmem:[%s1 + $0xa68] sm:$0xff]
  %v350 = vld [vmem:[%s1 + $0xa70] sm:$0xff]
  %v351 = vld [vmem:[%s1 + $0xa78] sm:$0xff]
  %v352 = vld [vmem:[%s1 + $0xa80] sm:$0xff]
  %v353 = vld [vmem:[%s1 + $0xa88] sm:$0xff]
  %v354 = vld [vmem:[%s1 + $0xa90] sm:$0xff]
  %v355 = vld [vmem:[%s1 + $0xa98] sm:$0xff]
  %v356 = vld [vmem:[%s1 + $0xaa0] sm:$0xff]
  %v357 = vld [vmem:[%s1 + $0xaa8] sm:$0xff]
  %v358 = vld [vmem:[%s1 + $0xab0] sm:$0xff]
  %v359 = vld [vmem:[%s1 + $0xab8] sm:$0xff]
  %v360 = vld [vmem:[%s1 + $0xac0] sm:$0xff]
  %v361 = vld [vmem:[%s1 + $0xac8] sm:$0xff]
  %v362 = vld [vmem:[%s1 + $0xad0] sm:$0xff]
  %v363 = vld [vmem:[%s1 + $0xad8] sm:$0xff]
  %v364 = vld [vmem:[%s1 + $0xae0] sm:$0xff]
  %v365 = vld [vmem:[%s1 + $0xae8] sm:$0xff]
  %v366 = vld [vmem:[%s1 + $0xaf0] sm:$0xff]
  %v367 = vld [vmem:[%s1 + $0xaf8] sm:$0xff]
  %v368 = vld [vmem:[%s1 + $0xb00] sm:$0xff]
  %v369 = vld [vmem:[%s1 + $0xb08] sm:$0xff]
  %v370 = vld [vmem:[%s1 + $0xb10] sm:$0xff]
  %v371 = vld [vmem:[%s1 + $0xb18] sm:$0xff]
  %v372 = vld [vmem:[%s1 + $0xb20] sm:$0xff]
  %v373 = vld [vmem:[%s1 + $0xb28] sm:$0xff]
  %v374 = vld [vmem:[%s1 + $0xb30] sm:$0xff]
  %v375 = vld [vmem:[%s1 + $0xb38] sm:$0xff]
  %v376 = vld [vmem:[%s1 + $0xb40] sm:$0xff]
  %v377 = vld [vmem:[%s1 + $0xb48] sm:$0xff]
  %v378 = vld [vmem:[%s1 + $0xb50] sm:$0xff]
  %v379 = vld [vmem:[%s1 + $0xb58] sm:$0xff]
  %v380 = vld [vmem:[%s1 + $0xb60] sm:$0xff]
  %v381 = vld [vmem:[%s1 + $0xb68] sm:$0xff]
  %v382 = vld [vmem:[%s1 + $0xb70] sm:$0xff]
  %v383 = vld [vmem:[%s1 + $0xb78] sm:$0xff]
  %v384 = vld [vmem:[%s1 + $0xb80] sm:$0xff]
  %v385 = vld [vmem:[%s1 + $0xb88] sm:$0xff]
  %v386 = vld [vmem:[%s1 + $0xb90] sm:$0xff]
  %v387 = vld [vmem:[%s1 + $0xb98] sm:$0xff]
  %v388 = vld [vmem:[%s1 + $0xba0] sm:$0xff]
  %v389 = vld [vmem:[%s1 + $0xba8] sm:$0xff]
  %v390 = vld [vmem:[%s1 + $0xbb0] sm:$0xff]
  %v391 = vld [vmem:[%s1 + $0xbb8] sm:$0xff]
  %v392 = vld [vmem:[%s1 + $0xbc0] sm:$0xff]
  %v393 = vld [vmem:[%s1 + $0xbc8] sm:$0xff]
  %v394 = vld [vmem:[%s1 + $0xbd0] sm:$0xff]
  %v395 = vld [vmem:[%s1 + $0xbd8] sm:$0xff]
  %v396 = vld [vmem:[%s1 + $0xbe0] sm:$0xff]
  %v397 = vld [vmem:[%s1 + $0xbe8] sm:$0xff]
  %v398 = vld [vmem:[%s1 + $0xbf0] sm:$0xff]
  %v399 = vld [vmem:[%s1 + $0xbf8] sm:$0xff]
  %v400 = vld [vmem:[%s1 + $0xc00] sm:$0xff]
  %v401 = vld [vmem:[%s1 + $0xc08] sm:$0xff]
  %v402 = vld [vmem:[%s1 + $0xc10] sm:$0xff]
  %v403 = vld [vmem:[%s1 + $0xc18] sm:$0xff]
  %v404 = vld [vmem:[%s1 + $0xc20] sm:$0xff]
  %v405 = vld [vmem:[%s1 + $0xc28] sm:$0xff]
  %v406 = vld [vmem:[%s1 + $0xc30] sm:$0xff]
  %v407 = vld [vmem:[%s1 + $0xc38] sm:$0xff]
  %v408 = vld [vmem:[%s1 + $0xc40] sm:$0xff]
  %v409 = vld [vmem:[%s1 + $0xc48] sm:$0xff]
  %v410 = vld [vmem:[%s1 + $0xc50] sm:$0xff]
  %v411 = vld [vmem:[%s1 + $0xc58] sm:$0xff]
  %v412 = vld [vmem:[%s1 + $0xc60] sm:$0xff]
  %v413 = vld [vmem:[%s1 + $0xc68] sm:$0xff]
  %v414 = vld [vmem:[%s1 + $0xc70] sm:$0xff]
  %v415 = vld [vmem:[%s1 + $0xc78] sm:$0xff]
  %v416 = vld [vmem:[%s1 + $0xc80] sm:$0xff]
  %v417 = vld [vmem:[%s1 + $0xc88] sm:$0xff]
  %v418 = vld [vmem:[%s1 + $0xc90] sm:$0xff]
  %v419 = vld [vmem:[%s1 + $0xc98] sm:$0xff]
  %v420 = vld [vmem:[%s1 + $0xca0] sm:$0xff]
  %v421 = vld [vmem:[%s1 + $0xca8] sm:$0xff]
  %v422 = vld [vmem:[%s1 + $0xcb0] sm:$0xff]
  %v423 = vld [vmem:[%s1 + $0xcb8] sm:$0xff]
  %v424 = vld [vmem:[%s1 + $0xcc0] sm:$0xff]
  %v425 = vld [vmem:[%s1 + $0xcc8] sm:$0xff]
  %v426 = vld [vmem:[%s1 + $0xcd0] sm:$0xff]
  %v427 = vld [vmem:[%s1 + $0xcd8] sm:$0xff]
  %v428 = vld [vmem:[%s1 + $0xce0] sm:$0xff]
  %v429 = vld [vmem:[%s1 + $0xce8] sm:$0xff]
  %v430 = vld [vmem:[%s1 + $0xcf0] sm:$0xff]
  %v431 = vld [vmem:[%s1 + $0xcf8] sm:$0xff]
  %v432 = vld [vmem:[%s1 + $0xd00] sm:$0xff]
  %v433 = vld [vmem:[%s1 + $0xd08] sm:$0xff]
  %v434 = vld [vmem:[%s1 + $0xd10] sm:$0xff]
  %v435 = vld [vmem:[%s1 + $0xd18] sm:$0xff]
  %v436 = vld [vmem:[%s1 + $0xd20] sm:$0xff]
  %v437 = vld [vmem:[%s1 + $0xd28] sm:$0xff]
  %v438 = vld [vmem:[%s1 + $0xd30] sm:$0xff]
  %v439 = vld [vmem:[%s1 + $0xd38] sm:$0xff]
  %v440 = vld [vmem:[%s1 + $0xd40] sm:$0xff]
  %v441 = vld [vmem:[%s1 + $0xd48] sm:$0xff]
  %v442 = vld [vmem:[%s1 + $0xd50] sm:$0xff]
  %v443 = vld [vmem:[%s1 + $0xd58] sm:$0xff]
  %v444 = vld [vmem:[%s1 + $0xd60] sm:$0xff]
  %v445 = vld [vmem:[%s1 + $0xd68] sm:$0xff]
  %v446 = vld [vmem:[%s1 + $0xd70] sm:$0xff]
  %v447 = vld [vmem:[%s1 + $0xd78] sm:$0xff]
  %v448 = vld [vmem:[%s1 + $0xd80] sm:$0xff]
  %v449 = vld [vmem:[%s1 + $0xd88] sm:$0xff]
  %v450 = vld [vmem:[%s1 + $0xd90] sm:$0xff]
  %v451 = vld [vmem:[%s1 + $0xd98] sm:$0xff]
  %v452 = vld [vmem:[%s1 + $0xda0] sm:$0xff]
  %v453 = vld [vmem:[%s1 + $0xda8] sm:$0xff]
  %v454 = vld [vmem:[%s1 + $0xdb0] sm:$0xff]
  %v455 = vld [vmem:[%s1 + $0xdb8] sm:$0xff]
  %v456 = vld [vmem:[%s1 + $0xdc0] sm:$0xff]
  %v457 = vld [vmem:[%s1 + $0xdc8] sm:$0xff]
  %v458 = vld [vmem:[%s1 + $0xdd0] sm:$0xff]
  %v459 = vld [vmem:[%s1 + $0xdd8] sm:$0xff]
  %v460 = vld [vmem:[%s1 + $0xde0] sm:$0xff]
  %v461 = vld [vmem:[%s1 + $0xde8] sm:$0xff]
  %v462 = vld [vmem:[%s1 + $0xdf0] sm:$0xff]
  %v463 = vld [vmem:[%s1 + $0xdf8] sm:$0xff]
  %v464 = vld [vmem:[%s1 + $0xe00] sm:$0xff]
  %v465 = vld [vmem:[%s1 + $0xe08] sm:$0xff]
  %v466 = vld [vmem:[%s1 + $0xe10] sm:$0xff]
  %v467 = vld [vmem:[%s1 + $0xe18] sm:$0xff]
  %v468 = vld [vmem:[%s1 + $0xe20] sm:$0xff]
  %v469 = vld [vmem:[%s1 + $0xe28] sm:$0xff]
  %v470 = vld [vmem:[%s1 + $0xe30] sm:$0xff]
  %v471 = vld [vmem:[%s1 + $0xe38] sm:$0xff]
  %v472 = vld [vmem:[%s1 + $0xe40] sm:$0xff]
  %v473 = vld [vmem:[%s1 + $0xe48] sm:$0xff]
  %v474 = vld [vmem:[%s1 + $0xe50] sm:$0xff]
  %v475 = vld [vmem:[%s1 + $0xe58] sm:$0xff]
  %v476 = vld [vmem:[%s1 + $0xe60] sm:$0xff]
  %v477 = vld [vmem:[%s1 + $0xe68] sm:$0xff]
  %v478 = vld [vmem:[%s1 + $0xe70] sm:$0xff]
  %v479 = vld [vmem:[%s1 + $0xe78] sm:$0xff]
  %v480 = vld [vmem:[%s1 + $0xe80] sm:$0xff]
  %v481 = vld [vmem:[%s1 + $0xe88] sm:$0xff]
  %v482 = vld [vmem:[%s1 + $0xe90] sm:$0xff]
  %v483 = vld [vmem:[%s1 + $0xe98] sm:$0xff]
  %v484 = vld [vmem:[%s1 + $0xea0] sm:$0xff]
  %v485 = vld [vmem:[%s1 + $0xea8] sm:$0xff]
  %v486 = vld [vmem:[%s1 + $0xeb0] sm:$0xff]
  %v487 = vld [vmem:[%s1 + $0xeb8] sm:$0xff]
  %v488 = vld [vmem:[%s1 + $0xec0] sm:$0xff]
  %v489 = vld [vmem:[%s1 + $0xec8] sm:$0xff]
  %v490 = vld [vmem:[%s1 + $0xed0] sm:$0xff]
  %v491 = vld [vmem:[%s1 + $0xed8] sm:$0xff]
  %v492 = vld [vmem:[%s1 + $0xee0] sm:$0xff]
  %v493 = vld [vmem:[%s1 + $0xee8] sm:$0xff]
  %v494 = vld [vmem:[%s1 + $0xef0] sm:$0xff]
  %v495 = vld [vmem:[%s1 + $0xef8] sm:$0xff]
  %v496 = vld [vmem:[%s1 + $0xf00] sm:$0xff]
  %v497 = vld [vmem:[%s1 + $0xf08] sm:$0xff]
  %v498 = vld [vmem:[%s1 + $0xf10] sm:$0xff]
  %v499 = vld [vmem:[%s1 + $0xf18] sm:$0xff]
  %v500 = vld [vmem:[%s1 + $0xf20] sm:$0xff]
  %v501 = vld [vmem:[%s1 + $0xf28] sm:$0xff]
  %v502 = vld [vmem:[%s1 + $0xf30] sm:$0xff]
  %v503 = vld [vmem:[%s1 + $0xf38] sm:$0xff]
  %v504 = vld [vmem:[%s1 + $0xf40] sm:$0xff]
  %v505 = vld [vmem:[%s1 + $0xf48] sm:$0xff]
  %v506 = vld [vmem:[%s1 + $0xf50] sm:$0xff]
  %v507 = vld [vmem:[%s1 + $0xf58] sm:$0xff]
  %v508 = vld [vmem:[%s1 + $0xf60] sm:$0xff]
  %v509 = vld [vmem:[%s1 + $0xf68] sm:$0xff]
  %v510 = vld [vmem:[%s1 + $0xf70] sm:$0xff]
  %v511 = vld [vmem:[%s1 + $0xf78] sm:$0xff]
  %v512 = vld [vmem:[%s1 + $0xf80] sm:$0xff]
  %v513 = vld [vmem:[%s1 + $0xf88] sm:$0xff]
  %v514 = vld [vmem:[%s1 + $0xf90] sm:$0xff]
  %v515 = vld [vmem:[%s1 + $0xf98] sm:$0xff]
  %v516 = vld [vmem:[%s1 + $0xfa0] sm:$0xff]
  %v517 = vld [vmem:[%s1 + $0xfa8] sm:$0xff]
  %v518 = vld [vmem:[%s1 + $0xfb0] sm:$0xff]
  %v519 = vld [vmem:[%s1 + $0xfb8] sm:$0xff]
  %v520 = vld [vmem:[%s1 + $0xfc0] sm:$0xff]
  %v521 = vld [vmem:[%s1 + $0xfc8] sm:$0xff]
  %v522 = vld [vmem:[%s1 + $0xfd0] sm:$0xff]
  %v523 = vld [vmem:[%s1 + $0xfd8] sm:$0xff]
  %v524 = vld [vmem:[%s1 + $0xfe0] sm:$0xff]
  %v525 = vld [vmem:[%s1 + $0xfe8] sm:$0xff]
  %v526 = vld [vmem:[%s1 + $0xff0] sm:$0xff]
  %v527 = vld [vmem:[%s1 + $0xff8] sm:$0xff]
  %v528 = vld [vmem:[%s1 + $0x1000] sm:$0xff]
  %v529 = vld [vmem:[%s1 + $0x1008] sm:$0xff]
  %v530 = vld [vmem:[%s1 + $0x1010] sm:$0xff]
  %v531 = vld [vmem:[%s1 + $0x1018] sm:$0xff]
  %v532 = vld [vmem:[%s1 + $0x1020] sm:$0xff]
  %v533 = vld [vmem:[%s1 + $0x1028] sm:$0xff]
  %v534 = vld [vmem:[%s1 + $0x1030] sm:$0xff]
  %v535 = vld [vmem:[%s1 + $0x1038] sm:$0xff]
  %v536 = vld [vmem:[%s1 + $0x1040] sm:$0xff]
  %v537 = vld [vmem:[%s1 + $0x1048] sm:$0xff]
  %v538 = vld [vmem:[%s1 + $0x1050] sm:$0xff]
  %v539 = vld [vmem:[%s1 + $0x1058] sm:$0xff]
  %v540 = vld [vmem:[%s1 + $0x1060] sm:$0xff]
  %v541 = vld [vmem:[%s1 + $0x1068] sm:$0xff]
  %v542 = vld [vmem:[%s1 + $0x1070] sm:$0xff]
  %v543 = vld [vmem:[%s1 + $0x1078] sm:$0xff]
  %v544 = vld [vmem:[%s1 + $0x1080] sm:$0xff]
  %v545 = vld [vmem:[%s1 + $0x1088] sm:$0xff]
  %v546 = vld [vmem:[%s1 + $0x1090] sm:$0xff]
  %v547 = vld [vmem:[%s1 + $0x1098] sm:$0xff]
  %v548 = vld [vmem:[%s1 + $0x10a0] sm:$0xff]
  %v549 = vld [vmem:[%s1 + $0x10a8] sm:$0xff]
  %v550 = vld [vmem:[%s1 + $0x10b0] sm:$0xff]
  %v551 = vld [vmem:[%s1 + $0x10b8] sm:$0xff]
  %v552 = vld [vmem:[%s1 + $0x10c0] sm:$0xff]
  %v553 = vld [vmem:[%s1 + $0x10c8] sm:$0xff]
  %v554 = vld [vmem:[%s1 + $0x10d0] sm:$0xff]
  %v555 = vld [vmem:[%s1 + $0x10d8] sm:$0xff]
  %v556 = vld [vmem:[%s1 + $0x10e0] sm:$0xff]
  %v557 = vld [vmem:[%s1 + $0x10e8] sm:$0xff]
  %v558 = vld [vmem:[%s1 + $0x10f0] sm:$0xff]
  %v559 = vld [vmem:[%s1 + $0x10f8] sm:$0xff]
  %v560 = vld [vmem:[%s1 + $0x1100] sm:$0xff]
  %v561 = vld [vmem:[%s1 + $0x1108] sm:$0xff]
  %v562 = vld [vmem:[%s1 + $0x1110] sm:$0xff]
  %v563 = vld [vmem:[%s1 + $0x1118] sm:$0xff]
  %v564 = vld [vmem:[%s1 + $0x1120] sm:$0xff]
  %v565 = vld [vmem:[%s1 + $0x1128] sm:$0xff]
  %v566 = vld [vmem:[%s1 + $0x1130] sm:$0xff]
  %v567 = vld [vmem:[%s1 + $0x1138] sm:$0xff]
  %v568 = vld [vmem:[%s1 + $0x1140] sm:$0xff]
  %v569 = vld [vmem:[%s1 + $0x1148] sm:$0xff]
  %v570 = vld [vmem:[%s1 + $0x1150] sm:$0xff]
  %v571 = vld [vmem:[%s1 + $0x1158] sm:$0xff]
  %v572 = vld [vmem:[%s1 + $0x1160] sm:$0xff]
  %v573 = vld [vmem:[%s1 + $0x1168] sm:$0xff]
  %v574 = vld [vmem:[%s1 + $0x1170] sm:$0xff]
  %v575 = vld [vmem:[%s1 + $0x1178] sm:$0xff]
  %v576 = vld [vmem:[%s1 + $0x1180] sm:$0xff]
  %v577 = vld [vmem:[%s1 + $0x1188] sm:$0xff]
  %v578 = vld [vmem:[%s1 + $0x1190] sm:$0xff]
  %v579 = vld [vmem:[%s1 + $0x1198] sm:$0xff]
  %v580 = vld [vmem:[%s1 + $0x11a0] sm:$0xff]
  %v581 = vld [vmem:[%s1 + $0x11a8] sm:$0xff]
  %v582 = vld [vmem:[%s1 + $0x11b0] sm:$0xff]
  %v583 = vld [vmem:[%s1 + $0x11b8] sm:$0xff]
  %v584 = vld [vmem:[%s1 + $0x11c0] sm:$0xff]
  %v585 = vld [vmem:[%s1 + $0x11c8] sm:$0xff]
  %v586 = vld [vmem:[%s1 + $0x11d0] sm:$0xff]
  %v587 = vld [vmem:[%s1 + $0x11d8] sm:$0xff]
  %v588 = vld [vmem:[%s1 + $0x11e0] sm:$0xff]
  %v589 = vld [vmem:[%s1 + $0x11e8] sm:$0xff]
  %v590 = vld [vmem:[%s1 + $0x11f0] sm:$0xff]
  %v591 = vld [vmem:[%s1 + $0x11f8] sm:$0xff]
  %v592 = vld [vmem:[%s1 + $0x1200] sm:$0xff]
  %v593 = vld [vmem:[%s1 + $0x1208] sm:$0xff]
  %v594 = vld [vmem:[%s1 + $0x1210] sm:$0xff]
  %v595 = vld [vmem:[%s1 + $0x1218] sm:$0xff]
  %v596 = vld [vmem:[%s1 + $0x1220] sm:$0xff]
  %v597 = vld [vmem:[%s1 + $0x1228] sm:$0xff]
  %v598 = vld [vmem:[%s1 + $0x1230] sm:$0xff]
  %v599 = vld [vmem:[%s1 + $0x1238] sm:$0xff]
  %v600 = vld [vmem:[%s1 + $0x1240] sm:$0xff]
  %v601 = vld [vmem:[%s1 + $0x1248] sm:$0xff]
  %v602 = vld [vmem:[%s1 + $0x1250] sm:$0xff]
  %v603 = vld [vmem:[%s1 + $0x1258] sm:$0xff]
  %v604 = vld [vmem:[%s1 + $0x1260] sm:$0xff]
  %v605 = vld [vmem:[%s1 + $0x1268] sm:$0xff]
  %v606 = vld [vmem:[%s1 + $0x1270] sm:$0xff]
  %v607 = vld [vmem:[%s1 + $0x1278] sm:$0xff]
  %v608 = vld [vmem:[%s1 + $0x1280] sm:$0xff]
  %v609 = vld [vmem:[%s1 + $0x1288] sm:$0xff]
  %v610 = vld [vmem:[%s1 + $0x1290] sm:$0xff]
  %v611 = vld [vmem:[%s1 + $0x1298] sm:$0xff]
  %v612 = vld [vmem:[%s1 + $0x12a0] sm:$0xff]
  %v613 = vld [vmem:[%s1 + $0x12a8] sm:$0xff]
  %v614 = vld [vmem:[%s1 + $0x12b0] sm:$0xff]
  %v615 = vld [vmem:[%s1 + $0x12b8] sm:$0xff]
  %v616 = vld [vmem:[%s1 + $0x12c0] sm:$0xff]
  %v617 = vld [vmem:[%s1 + $0x12c8] sm:$0xff]
  %v618 = vld [vmem:[%s1 + $0x12d0] sm:$0xff]
  %v619 = vld [vmem:[%s1 + $0x12d8] sm:$0xff]
  %v620 = vld [vmem:[%s1 + $0x12e0] sm:$0xff]
  %v621 = vld [vmem:[%s1 + $0x12e8] sm:$0xff]
  %v622 = vld [vmem:[%s1 + $0x12f0] sm:$0xff]
  %v623 = vld [vmem:[%s1 + $0x12f8] sm:$0xff]
  %v624 = vld [vmem:[%s1 + $0x1300] sm:$0xff]
  %v625 = vld [vmem:[%s1 + $0x1308] sm:$0xff]
  %v626 = vld [vmem:[%s1 + $0x1310] sm:$0xff]
  %v627 = vld [vmem:[%s1 + $0x1318] sm:$0xff]
  %v628 = vld [vmem:[%s1 + $0x1320] sm:$0xff]
  %v629 = vld [vmem:[%s1 + $0x1328] sm:$0xff]
  %v630 = vld [vmem:[%s1 + $0x1330] sm:$0xff]
  %v631 = vld [vmem:[%s1 + $0x1338] sm:$0xff]
  %v632 = vld [vmem:[%s1 + $0x1340] sm:$0xff]
  %v633 = vld [vmem:[%s1 + $0x1348] sm:$0xff]
  %v634 = vld [vmem:[%s1 + $0x1350] sm:$0xff]
  %v635 = vld [vmem:[%s1 + $0x1358] sm:$0xff]
  %v636 = vld [vmem:[%s1 + $0x1360] sm:$0xff]
  %v637 = vld [vmem:[%s1 + $0x1368] sm:$0xff]
  %v638 = vld [vmem:[%s1 + $0x1370] sm:$0xff]
  %v639 = vld [vmem:[%s1 + $0x1378] sm:$0xff]
  %v640 = vld [vmem:[%s1 + $0x1380] sm:$0xff]
  %v641 = vld [vmem:[%s1 + $0x1388] sm:$0xff]
  %v642 = vld [vmem:[%s1 + $0x1390] sm:$0xff]
  %v643 = vld [vmem:[%s1 + $0x1398] sm:$0xff]
  %v644 = vld [vmem:[%s1 + $0x13a0] sm:$0xff]
  %v645 = vld [vmem:[%s1 + $0x13a8] sm:$0xff]
  %v646 = vld [vmem:[%s1 + $0x13b0] sm:$0xff]
  %v647 = vld [vmem:[%s1 + $0x13b8] sm:$0xff]
  %v648 = vld [vmem:[%s1 + $0x13c0] sm:$0xff]
  %v649 = vld [vmem:[%s1 + $0x13c8] sm:$0xff]
  %v650 = vld [vmem:[%s1 + $0x13d0] sm:$0xff]
  %v651 = vld [vmem:[%s1 + $0x13d8] sm:$0xff]
  %v652 = vld [vmem:[%s1 + $0x13e0] sm:$0xff]
  %v653 = vld [vmem:[%s1 + $0x13e8] sm:$0xff]
  %v654 = vld [vmem:[%s1 + $0x13f0] sm:$0xff]
  %v655 = vld [vmem:[%s1 + $0x13f8] sm:$0xff]
  %v656 = vld [vmem:[%s1 + $0x1400] sm:$0xff]
  %v657 = vld [vmem:[%s1 + $0x1408] sm:$0xff]
  %v658 = vld [vmem:[%s1 + $0x1410] sm:$0xff]
  %v659 = vld [vmem:[%s1 + $0x1418] sm:$0xff]
  %v660 = vld [vmem:[%s1 + $0x1420] sm:$0xff]
  %v661 = vld [vmem:[%s1 + $0x1428] sm:$0xff]
  %v662 = vld [vmem:[%s1 + $0x1430] sm:$0xff]
  %v663 = vld [vmem:[%s1 + $0x1438] sm:$0xff]
  %v664 = vld [vmem:[%s1 + $0x1440] sm:$0xff]
  %v665 = vld [vmem:[%s1 + $0x1448] sm:$0xff]
  %v666 = vld [vmem:[%s1 + $0x1450] sm:$0xff]
  %v667 = vld [vmem:[%s1 + $0x1458] sm:$0xff]
  %v668 = vld [vmem:[%s1 + $0x1460] sm:$0xff]
  %v669 = vld [vmem:[%s1 + $0x1468] sm:$0xff]
  %v670 = vld [vmem:[%s1 + $0x1470] sm:$0xff]
  %v671 = vld [vmem:[%s1 + $0x1478] sm:$0xff]
  %v672 = vld [vmem:[%s1 + $0x1480] sm:$0xff]
  %v673 = vld [vmem:[%s1 + $0x1488] sm:$0xff]
  %v674 = vld [vmem:[%s1 + $0x1490] sm:$0xff]
  %v675 = vld [vmem:[%s1 + $0x1498] sm:$0xff]
  %v676 = vld [vmem:[%s1 + $0x14a0] sm:$0xff]
  %v677 = vld [vmem:[%s1 + $0x14a8] sm:$0xff]
  %v678 = vld [vmem:[%s1 + $0x14b0] sm:$0xff]
  %v679 = vld [vmem:[%s1 + $0x14b8] sm:$0xff]
  %v680 = vld [vmem:[%s1 + $0x14c0] sm:$0xff]
  %v681 = vld [vmem:[%s1 + $0x14c8] sm:$0xff]
  %v682 = vld [vmem:[%s1 + $0x14d0] sm:$0xff]
  %v683 = vld [vmem:[%s1 + $0x14d8] sm:$0xff]
  %v684 = vld [vmem:[%s1 + $0x14e0] sm:$0xff]
  %v685 = vld [vmem:[%s1 + $0x14e8] sm:$0xff]
  %v686 = vld [vmem:[%s1 + $0x14f0] sm:$0xff]
  %v687 = vld [vmem:[%s1 + $0x14f8] sm:$0xff]
  %v688 = vld [vmem:[%s1 + $0x1500] sm:$0xff]
  %v689 = vld [vmem:[%s1 + $0x1508] sm:$0xff]
  %v690 = vld [vmem:[%s1 + $0x1510] sm:$0xff]
  %v691 = vld [vmem:[%s1 + $0x1518] sm:$0xff]
  %v692 = vld [vmem:[%s1 + $0x1520] sm:$0xff]
  %v693 = vld [vmem:[%s1 + $0x1528] sm:$0xff]
  %v694 = vld [vmem:[%s1 + $0x1530] sm:$0xff]
  %v695 = vld [vmem:[%s1 + $0x1538] sm:$0xff]
  %v696 = vld [vmem:[%s1 + $0x1540] sm:$0xff]
  %v697 = vld [vmem:[%s1 + $0x1548] sm:$0xff]
  %v698 = vld [vmem:[%s1 + $0x1550] sm:$0xff]
  %v699 = vld [vmem:[%s1 + $0x1558] sm:$0xff]
  %v700 = vld [vmem:[%s1 + $0x1560] sm:$0xff]
  %v701 = vld [vmem:[%s1 + $0x1568] sm:$0xff]
  %v702 = vld [vmem:[%s1 + $0x1570] sm:$0xff]
  %v703 = vld [vmem:[%s1 + $0x1578] sm:$0xff]
  %v704 = vld [vmem:[%s1 + $0x1580] sm:$0xff]
  %v705 = vld [vmem:[%s1 + $0x1588] sm:$0xff]
  %v706 = vld [vmem:[%s1 + $0x1590] sm:$0xff]
  %v707 = vld [vmem:[%s1 + $0x1598] sm:$0xff]
  %v708 = vld [vmem:[%s1 + $0x15a0] sm:$0xff]
  %v709 = vld [vmem:[%s1 + $0x15a8] sm:$0xff]
  %v710 = vld [vmem:[%s1 + $0x15b0] sm:$0xff]
  %v711 = vld [vmem:[%s1 + $0x15b8] sm:$0xff]
  %v712 = vld [vmem:[%s1 + $0x15c0] sm:$0xff]
  %v713 = vld [vmem:[%s1 + $0x15c8] sm:$0xff]
  %v714 = vld [vmem:[%s1 + $0x15d0] sm:$0xff]
  %v715 = vld [vmem:[%s1 + $0x15d8] sm:$0xff]
  %v716 = vld [vmem:[%s1 + $0x15e0] sm:$0xff]
  %v717 = vld [vmem:[%s1 + $0x15e8] sm:$0xff]
  %v718 = vld [vmem:[%s1 + $0x15f0] sm:$0xff]
  %v719 = vld [vmem:[%s1 + $0x15f8] sm:$0xff]
  %v720 = vld [vmem:[%s1 + $0x1600] sm:$0xff]
  %v721 = vld [vmem:[%s1 + $0x1608] sm:$0xff]
  %v722 = vld [vmem:[%s1 + $0x1610] sm:$0xff]
  %v723 = vld [vmem:[%s1 + $0x1618] sm:$0xff]
  %v724 = vld [vmem:[%s1 + $0x1620] sm:$0xff]
  %v725 = vld [vmem:[%s1 + $0x1628] sm:$0xff]
  %v726 = vld [vmem:[%s1 + $0x1630] sm:$0xff]
  %v727 = vld [vmem:[%s1 + $0x1638] sm:$0xff]
  %v728 = vld [vmem:[%s1 + $0x1640] sm:$0xff]
  %v729 = vld [vmem:[%s1 + $0x1648] sm:$0xff]
  %v730 = vld [vmem:[%s1 + $0x1650] sm:$0xff]
  %v731 = vld [vmem:[%s1 + $0x1658] sm:$0xff]
  %v732 = vld [vmem:[%s1 + $0x1660] sm:$0xff]
  %v733 = vld [vmem:[%s1 + $0x1668] sm:$0xff]
  %v734 = vld [vmem:[%s1 + $0x1670] sm:$0xff]
  %v735 = vld [vmem:[%s1 + $0x1678] sm:$0xff]
  %v736 = vld [vmem:[%s1 + $0x1680] sm:$0xff]
  %v737 = vld [vmem:[%s1 + $0x1688] sm:$0xff]
  %v738 = vld [vmem:[%s1 + $0x1690] sm:$0xff]
  %v739 = vld [vmem:[%s1 + $0x1698] sm:$0xff]
  %v740 = vld [vmem:[%s1 + $0x16a0] sm:$0xff]
  %v741 = vld [vmem:[%s1 + $0x16a8] sm:$0xff]
  %v742 = vld [vmem:[%s1 + $0x16b0] sm:$0xff]
  %v743 = vld [vmem:[%s1 + $0x16b8] sm:$0xff]
  %v744 = vld [vmem:[%s1 + $0x16c0] sm:$0xff]
  %v745 = vld [vmem:[%s1 + $0x16c8] sm:$0xff]
  %v746 = vld [vmem:[%s1 + $0x16d0] sm:$0xff]
  %v747 = vld [vmem:[%s1 + $0x16d8] sm:$0xff]
  %v748 = vld [vmem:[%s1 + $0x16e0] sm:$0xff]
  %v749 = vld [vmem:[%s1 + $0x16e8] sm:$0xff]
  %v750 = vld [vmem:[%s1 + $0x16f0] sm:$0xff]
  %v751 = vld [vmem:[%s1 + $0x16f8] sm:$0xff]
  %v752 = vld [vmem:[%s1 + $0x1700] sm:$0xff]
  %v753 = vld [vmem:[%s1 + $0x1708] sm:$0xff]
  %v754 = vld [vmem:[%s1 + $0x1710] sm:$0xff]
  %v755 = vld [vmem:[%s1 + $0x1718] sm:$0xff]
  %v756 = vld [vmem:[%s1 + $0x1720] sm:$0xff]
  %v757 = vld [vmem:[%s1 + $0x1728] sm:$0xff]
  %v758 = vld [vmem:[%s1 + $0x1730] sm:$0xff]
  %v759 = vld [vmem:[%s1 + $0x1738] sm:$0xff]
  %v760 = vld [vmem:[%s1 + $0x1740] sm:$0xff]
  %v761 = vld [vmem:[%s1 + $0x1748] sm:$0xff]
  %v762 = vld [vmem:[%s1 + $0x1750] sm:$0xff]
  %v763 = vld [vmem:[%s1 + $0x1758] sm:$0xff]
  %v764 = vld [vmem:[%s1 + $0x1760] sm:$0xff]
  %v765 = vld [vmem:[%s1 + $0x1768] sm:$0xff]
  %v766 = vld [vmem:[%s1 + $0x1770] sm:$0xff]
  %v767 = vld [vmem:[%s1 + $0x1778] sm:$0xff]
  %v768 = vld [vmem:[%s1 + $0x1780] sm:$0xff]
  %v769 = vld [vmem:[%s1 + $0x1788] sm:$0xff]
  %v770 = vld [vmem:[%s1 + $0x1790] sm:$0xff]
  %v771 = vld [vmem:[%s1 + $0x1798] sm:$0xff]
  %v772 = vld [vmem:[%s1 + $0x17a0] sm:$0xff]
  %v773 = vld [vmem:[%s1 + $0x17a8] sm:$0xff]
  %v774 = vld [vmem:[%s1 + $0x17b0] sm:$0xff]
  %v775 = vld [vmem:[%s1 + $0x17b8] sm:$0xff]
  %v776 = vld [vmem:[%s1 + $0x17c0] sm:$0xff]
  %v777 = vld [vmem:[%s1 + $0x17c8] sm:$0xff]
  %v778 = vld [vmem:[%s1 + $0x17d0] sm:$0xff]
  %v779 = vld [vmem:[%s1 + $0x17d8] sm:$0xff]
  %v780 = vld [vmem:[%s1 + $0x17e0] sm:$0xff]
  %v781 = vld [vmem:[%s1 + $0x17e8] sm:$0xff]
  %v782 = vld [vmem:[%s1 + $0x17f0] sm:$0xff]
  %v783 = vld [vmem:[%s1 + $0x17f8] sm:$0xff]
  %v784 = vld [vmem:[%s1 + $0x1800] sm:$0xff]
  %v785 = vld [vmem:[%s1 + $0x1808] sm:$0xff]
  %v786 = vld [vmem:[%s1 + $0x1810] sm:$0xff]
  %v787 = vld [vmem:[%s1 + $0x1818] sm:$0xff]
  %v788 = vld [vmem:[%s1 + $0x1820] sm:$0xff]
  %v789 = vld [vmem:[%s1 + $0x1828] sm:$0xff]
  %v790 = vld [vmem:[%s1 + $0x1830] sm:$0xff]
  %v791 = vld [vmem:[%s1 + $0x1838] sm:$0xff]
  %v792 = vld [vmem:[%s1 + $0x1840] sm:$0xff]
  %v793 = vld [vmem:[%s1 + $0x1848] sm:$0xff]
  %v794 = vld [vmem:[%s1 + $0x1850] sm:$0xff]
  %v795 = vld [vmem:[%s1 + $0x1858] sm:$0xff]
  %v796 = vld [vmem:[%s1 + $0x1860] sm:$0xff]
  %v797 = vld [vmem:[%s1 + $0x1868] sm:$0xff]
  %v798 = vld [vmem:[%s1 + $0x1870] sm:$0xff]
  %v799 = vld [vmem:[%s1 + $0x1878] sm:$0xff]
  %v800 = vld [vmem:[%s1 + $0x1880] sm:$0xff]
  %v801 = vld [vmem:[%s1 + $0x1888] sm:$0xff]
  %v802 = vld [vmem:[%s1 + $0x1890] sm:$0xff]
  %v803 = vld [vmem:[%s1 + $0x1898] sm:$0xff]
  %v804 = vld [vmem:[%s1 + $0x18a0] sm:$0xff]
  %v805 = vld [vmem:[%s1 + $0x18a8] sm:$0xff]
  %v806 = vld [vmem:[%s1 + $0x18b0] sm:$0xff]
  %v807 = vld [vmem:[%s1 + $0x18b8] sm:$0xff]
  %v808 = vld [vmem:[%s1 + $0x18c0] sm:$0xff]
  %v809 = vld [vmem:[%s1 + $0x18c8] sm:$0xff]
  %v810 = vld [vmem:[%s1 + $0x18d0] sm:$0xff]
  %v811 = vld [vmem:[%s1 + $0x18d8] sm:$0xff]
  %v812 = vld [vmem:[%s1 + $0x18e0] sm:$0xff]
  %v813 = vld [vmem:[%s1 + $0x18e8] sm:$0xff]
  %v814 = vld [vmem:[%s1 + $0x18f0] sm:$0xff]
  %v815 = vld [vmem:[%s1 + $0x18f8] sm:$0xff]
  %v816 = vld [vmem:[%s1 + $0x1900] sm:$0xff]
  %v817 = vld [vmem:[%s1 + $0x1908] sm:$0xff]
  %v818 = vld [vmem:[%s1 + $0x1910] sm:$0xff]
  %v819 = vld [vmem:[%s1 + $0x1918] sm:$0xff]
  %v820 = vld [vmem:[%s1 + $0x1920] sm:$0xff]
  %v821 = vld [vmem:[%s1 + $0x1928] sm:$0xff]
  %v822 = vld [vmem:[%s1 + $0x1930] sm:$0xff]
  %v823 = vld [vmem:[%s1 + $0x1938] sm:$0xff]
  %v824 = vld [vmem:[%s1 + $0x1940] sm:$0xff]
  %v825 = vld [vmem:[%s1 + $0x1948] sm:$0xff]
  %v826 = vld [vmem:[%s1 + $0x1950] sm:$0xff]
  %v827 = vld [vmem:[%s1 + $0x1958] sm:$0xff]
  %v828 = vld [vmem:[%s1 + $0x1960] sm:$0xff]
  %v829 = vld [vmem:[%s1 + $0x1968] sm:$0xff]
  %v830 = vld [vmem:[%s1 + $0x1970] sm:$0xff]
  %v831 = vld [vmem:[%s1 + $0x1978] sm:$0xff]
  %v832 = vld [vmem:[%s1 + $0x1980] sm:$0xff]
  %v833 = vld [vmem:[%s1 + $0x1988] sm:$0xff]
  %v834 = vld [vmem:[%s1 + $0x1990] sm:$0xff]
  %v835 = vld [vmem:[%s1 + $0x1998] sm:$0xff]
  %v836 = vld [vmem:[%s1 + $0x19a0] sm:$0xff]
  %v837 = vld [vmem:[%s1 + $0x19a8] sm:$0xff]
  %v838 = vld [vmem:[%s1 + $0x19b0] sm:$0xff]
  %v839 = vld [vmem:[%s1 + $0x19b8] sm:$0xff]
  %v840 = vld [vmem:[%s1 + $0x19c0] sm:$0xff]
  %v841 = vld [vmem:[%s1 + $0x19c8] sm:$0xff]
  %v842 = vld [vmem:[%s1 + $0x19d0] sm:$0xff]
  %v843 = vld [vmem:[%s1 + $0x19d8] sm:$0xff]
  %v844 = vld [vmem:[%s1 + $0x19e0] sm:$0xff]
  %v845 = vld [vmem:[%s1 + $0x19e8] sm:$0xff]
  %v846 = vld [vmem:[%s1 + $0x19f0] sm:$0xff]
  %v847 = vld [vmem:[%s1 + $0x19f8] sm:$0xff]
  %v848 = vld [vmem:[%s1 + $0x1a00] sm:$0xff]
  %v849 = vld [vmem:[%s1 + $0x1a08] sm:$0xff]
  %v850 = vld [vmem:[%s1 + $0x1a10] sm:$0xff]
  %v851 = vld [vmem:[%s1 + $0x1a18] sm:$0xff]
  %v852 = vld [vmem:[%s1 + $0x1a20] sm:$0xff]
  %v853 = vld [vmem:[%s1 + $0x1a28] sm:$0xff]
  %v854 = vld [vmem:[%s1 + $0x1a30] sm:$0xff]
  %v855 = vld [vmem:[%s1 + $0x1a38] sm:$0xff]
  %v856 = vld [vmem:[%s1 + $0x1a40] sm:$0xff]
  %v857 = vld [vmem:[%s1 + $0x1a48] sm:$0xff]
  %v858 = vld [vmem:[%s1 + $0x1a50] sm:$0xff]
  %v859 = vld [vmem:[%s1 + $0x1a58] sm:$0xff]
  %v860 = vld [vmem:[%s1 + $0x1a60] sm:$0xff]
  %v861 = vld [vmem:[%s1 + $0x1a68] sm:$0xff]
  %v862 = vld [vmem:[%s1 + $0x1a70] sm:$0xff]
  %v863 = vld [vmem:[%s1 + $0x1a78] sm:$0xff]
  %v864 = vld [vmem:[%s1 + $0x1a80] sm:$0xff]
  %v865 = vld [vmem:[%s1 + $0x1a88] sm:$0xff]
  %v866 = vld [vmem:[%s1 + $0x1a90] sm:$0xff]
  %v867 = vld [vmem:[%s1 + $0x1a98] sm:$0xff]
  %v868 = vld [vmem:[%s1 + $0x1aa0] sm:$0xff]
  %v869 = vld [vmem:[%s1 + $0x1aa8] sm:$0xff]
  %v870 = vld [vmem:[%s1 + $0x1ab0] sm:$0xff]
  %v871 = vld [vmem:[%s1 + $0x1ab8] sm:$0xff]
  %v872 = vld [vmem:[%s1 + $0x1ac0] sm:$0xff]
  %v873 = vld [vmem:[%s1 + $0x1ac8] sm:$0xff]
  %v874 = vld [vmem:[%s1 + $0x1ad0] sm:$0xff]
  %v875 = vld [vmem:[%s1 + $0x1ad8] sm:$0xff]
  %v876 = vld [vmem:[%s1 + $0x1ae0] sm:$0xff]
  %v877 = vld [vmem:[%s1 + $0x1ae8] sm:$0xff]
  %v878 = vld [vmem:[%s1 + $0x1af0] sm:$0xff]
  %v879 = vld [vmem:[%s1 + $0x1af8] sm:$0xff]
  %v880 = vld [vmem:[%s1 + $0x1b00] sm:$0xff]
  %v881 = vld [vmem:[%s1 + $0x1b08] sm:$0xff]
  %v882 = vld [vmem:[%s1 + $0x1b10] sm:$0xff]
  %v883 = vld [vmem:[%s1 + $0x1b18] sm:$0xff]
  %v884 = vld [vmem:[%s1 + $0x1b20] sm:$0xff]
  %v885 = vld [vmem:[%s1 + $0x1b28] sm:$0xff]
  %v886 = vld [vmem:[%s1 + $0x1b30] sm:$0xff]
  %v887 = vld [vmem:[%s1 + $0x1b38] sm:$0xff]
  %v888 = vld [vmem:[%s1 + $0x1b40] sm:$0xff]
  %v889 = vld [vmem:[%s1 + $0x1b48] sm:$0xff]
  %v890 = vld [vmem:[%s1 + $0x1b50] sm:$0xff]
  %v891 = vld [vmem:[%s1 + $0x1b58] sm:$0xff]
  %v892 = vld [vmem:[%s1 + $0x1b60] sm:$0xff]
  %v893 = vld [vmem:[%s1 + $0x1b68] sm:$0xff]
  %v894 = vld [vmem:[%s1 + $0x1b70] sm:$0xff]
  %v895 = vld [vmem:[%s1 + $0x1b78] sm:$0xff]
  %v896 = vld [vmem:[%s1 + $0x1b80] sm:$0xff]
  %v897 = vld [vmem:[%s1 + $0x1b88] sm:$0xff]
  %v898 = vld [vmem:[%s1 + $0x1b90] sm:$0xff]
  %v899 = vld [vmem:[%s1 + $0x1b98] sm:$0xff]
  %v900 = vld [vmem:[%s1 + $0x1ba0] sm:$0xff]
  %v901 = vld [vmem:[%s1 + $0x1ba8] sm:$0xff]
  %v902 = vld [vmem:[%s1 + $0x1bb0] sm:$0xff]
  %v903 = vld [vmem:[%s1 + $0x1bb8] sm:$0xff]
  %v904 = vld [vmem:[%s1 + $0x1bc0] sm:$0xff]
  %v905 = vld [vmem:[%s1 + $0x1bc8] sm:$0xff]
  %v906 = vld [vmem:[%s1 + $0x1bd0] sm:$0xff]
  %v907 = vld [vmem:[%s1 + $0x1bd8] sm:$0xff]
  %v908 = vld [vmem:[%s1 + $0x1be0] sm:$0xff]
  %v909 = vld [vmem:[%s1 + $0x1be8] sm:$0xff]
  %v910 = vld [vmem:[%s1 + $0x1bf0] sm:$0xff]
  %v911 = vld [vmem:[%s1 + $0x1bf8] sm:$0xff]
  %v912 = vld [vmem:[%s1 + $0x1c00] sm:$0xff]
  %v913 = vld [vmem:[%s1 + $0x1c08] sm:$0xff]
  %v914 = vld [vmem:[%s1 + $0x1c10] sm:$0xff]
  %v915 = vld [vmem:[%s1 + $0x1c18] sm:$0xff]
  %v916 = vld [vmem:[%s1 + $0x1c20] sm:$0xff]
  %v917 = vld [vmem:[%s1 + $0x1c28] sm:$0xff]
  %v918 = vld [vmem:[%s1 + $0x1c30] sm:$0xff]
  %v919 = vld [vmem:[%s1 + $0x1c38] sm:$0xff]
  %v920 = vld [vmem:[%s1 + $0x1c40] sm:$0xff]
  %v921 = vld [vmem:[%s1 + $0x1c48] sm:$0xff]
  %v922 = vld [vmem:[%s1 + $0x1c50] sm:$0xff]
  %v923 = vld [vmem:[%s1 + $0x1c58] sm:$0xff]
  %v924 = vld [vmem:[%s1 + $0x1c60] sm:$0xff]
  %v925 = vld [vmem:[%s1 + $0x1c68] sm:$0xff]
  %v926 = vld [vmem:[%s1 + $0x1c70] sm:$0xff]
  %v927 = vld [vmem:[%s1 + $0x1c78] sm:$0xff]
  %v928 = vld [vmem:[%s1 + $0x1c80] sm:$0xff]
  %v929 = vld [vmem:[%s1 + $0x1c88] sm:$0xff]
  %v930 = vld [vmem:[%s1 + $0x1c90] sm:$0xff]
  %v931 = vld [vmem:[%s1 + $0x1c98] sm:$0xff]
  %v932 = vld [vmem:[%s1 + $0x1ca0] sm:$0xff]
  %v933 = vld [vmem:[%s1 + $0x1ca8] sm:$0xff]
  %v934 = vld [vmem:[%s1 + $0x1cb0] sm:$0xff]
  %v935 = vld [vmem:[%s1 + $0x1cb8] sm:$0xff]
  %v936 = vld [vmem:[%s1 + $0x1cc0] sm:$0xff]
  %v937 = vld [vmem:[%s1 + $0x1cc8] sm:$0xff]
  %v938 = vld [vmem:[%s1 + $0x1cd0] sm:$0xff]
  %v939 = vld [vmem:[%s1 + $0x1cd8] sm:$0xff]
  %v940 = vld [vmem:[%s1 + $0x1ce0] sm:$0xff]
  %v941 = vld [vmem:[%s1 + $0x1ce8] sm:$0xff]
  %v942 = vld [vmem:[%s1 + $0x1cf0] sm:$0xff]
  %v943 = vld [vmem:[%s1 + $0x1cf8] sm:$0xff]
  %v944 = vld [vmem:[%s1 + $0x1d00] sm:$0xff]
  %v945 = vld [vmem:[%s1 + $0x1d08] sm:$0xff]
  %v946 = vld [vmem:[%s1 + $0x1d10] sm:$0xff]
  %v947 = vld [vmem:[%s1 + $0x1d18] sm:$0xff]
  %v948 = vld [vmem:[%s1 + $0x1d20] sm:$0xff]
  %v949 = vld [vmem:[%s1 + $0x1d28] sm:$0xff]
  %v950 = vld [vmem:[%s1 + $0x1d30] sm:$0xff]
  %v951 = vld [vmem:[%s1 + $0x1d38] sm:$0xff]
  %v952 = vld [vmem:[%s1 + $0x1d40] sm:$0xff]
  %v953 = vld [vmem:[%s1 + $0x1d48] sm:$0xff]
  %v954 = vld [vmem:[%s1 + $0x1d50] sm:$0xff]
  %v955 = vld [vmem:[%s1 + $0x1d58] sm:$0xff]
  %v956 = vld [vmem:[%s1 + $0x1d60] sm:$0xff]
  %v957 = vld [vmem:[%s1 + $0x1d68] sm:$0xff]
  %v958 = vld [vmem:[%s1 + $0x1d70] sm:$0xff]
  %v959 = vld [vmem:[%s1 + $0x1d78] sm:$0xff]
  %v960 = vld [vmem:[%s1 + $0x1d80] sm:$0xff]
  %v961 = vld [vmem:[%s1 + $0x1d88] sm:$0xff]
  %v962 = vld [vmem:[%s1 + $0x1d90] sm:$0xff]
  %v963 = vld [vmem:[%s1 + $0x1d98] sm:$0xff]
  %v964 = vld [vmem:[%s1 + $0x1da0] sm:$0xff]
  %v965 = vld [vmem:[%s1 + $0x1da8] sm:$0xff]
  %v966 = vld [vmem:[%s1 + $0x1db0] sm:$0xff]
  %v967 = vld [vmem:[%s1 + $0x1db8] sm:$0xff]
  %v968 = vld [vmem:[%s1 + $0x1dc0] sm:$0xff]
  %v969 = vld [vmem:[%s1 + $0x1dc8] sm:$0xff]
  %v970 = vld [vmem:[%s1 + $0x1dd0] sm:$0xff]
  %v971 = vld [vmem:[%s1 + $0x1dd8] sm:$0xff]
  %v972 = vld [vmem:[%s1 + $0x1de0] sm:$0xff]
  %v973 = vld [vmem:[%s1 + $0x1de8] sm:$0xff]
  %v974 = vld [vmem:[%s1 + $0x1df0] sm:$0xff]
  %v975 = vld [vmem:[%s1 + $0x1df8] sm:$0xff]
  %v976 = vld [vmem:[%s1 + $0x1e00] sm:$0xff]
  %v977 = vld [vmem:[%s1 + $0x1e08] sm:$0xff]
  %v978 = vld [vmem:[%s1 + $0x1e10] sm:$0xff]
  %v979 = vld [vmem:[%s1 + $0x1e18] sm:$0xff]
  %v980 = vld [vmem:[%s1 + $0x1e20] sm:$0xff]
  %v981 = vld [vmem:[%s1 + $0x1e28] sm:$0xff]
  %v982 = vld [vmem:[%s1 + $0x1e30] sm:$0xff]
  %v983 = vld [vmem:[%s1 + $0x1e38] sm:$0xff]
  %v984 = vld [vmem:[%s1 + $0x1e40] sm:$0xff]
  %v985 = vld [vmem:[%s1 + $0x1e48] sm:$0xff]
  %v986 = vld [vmem:[%s1 + $0x1e50] sm:$0xff]
  %v987 = vld [vmem:[%s1 + $0x1e58] sm:$0xff]
  %v988 = vld [vmem:[%s1 + $0x1e60] sm:$0xff]
  %v989 = vld [vmem:[%s1 + $0x1e68] sm:$0xff]
  %v990 = vld [vmem:[%s1 + $0x1e70] sm:$0xff]
  %v991 = vld [vmem:[%s1 + $0x1e78] sm:$0xff]
  %v992 = vld [vmem:[%s1 + $0x1e80] sm:$0xff]
  %v993 = vld [vmem:[%s1 + $0x1e88] sm:$0xff]
  %v994 = vld [vmem:[%s1 + $0x1e90] sm:$0xff]
  %v995 = vld [vmem:[%s1 + $0x1e98] sm:$0xff]
  %v996 = vld [vmem:[%s1 + $0x1ea0] sm:$0xff]
  %v997 = vld [vmem:[%s1 + $0x1ea8] sm:$0xff]
  %v998 = vld [vmem:[%s1 + $0x1eb0] sm:$0xff]
  %v999 = vld [vmem:[%s1 + $0x1eb8] sm:$0xff]
  %v1000 = vld [vmem:[%s1 + $0x1ec0] sm:$0xff]
  %v1001 = vld [vmem:[%s1 + $0x1ec8] sm:$0xff]
  %v1002 = vld [vmem:[%s1 + $0x1ed0] sm:$0xff]
  %v1003 = vld [vmem:[%s1 + $0x1ed8] sm:$0xff]
  %v1004 = vld [vmem:[%s1 + $0x1ee0] sm:$0xff]
  %v1005 = vld [vmem:[%s1 + $0x1ee8] sm:$0xff]
  %v1006 = vld [vmem:[%s1 + $0x1ef0] sm:$0xff]
  %v1007 = vld [vmem:[%s1 + $0x1ef8] sm:$0xff]
  %v1008 = vld [vmem:[%s1 + $0x1f00] sm:$0xff]
  %v1009 = vld [vmem:[%s1 + $0x1f08] sm:$0xff]
  %v1010 = vld [vmem:[%s1 + $0x1f10] sm:$0xff]
  %v1011 = vld [vmem:[%s1 + $0x1f18] sm:$0xff]
  %v1012 = vld [vmem:[%s1 + $0x1f20] sm:$0xff]
  %v1013 = vld [vmem:[%s1 + $0x1f28] sm:$0xff]
  %v1014 = vld [vmem:[%s1 + $0x1f30] sm:$0xff]
  %v1015 = vld [vmem:[%s1 + $0x1f38] sm:$0xff]
  %v1016 = vld [vmem:[%s1 + $0x1f40] sm:$0xff]
  %v1017 = vld [vmem:[%s1 + $0x1f48] sm:$0xff]
  %v1018 = vld [vmem:[%s1 + $0x1f50] sm:$0xff]
  %v1019 = vld [vmem:[%s1 + $0x1f58] sm:$0xff]
  %v1020 = vld [vmem:[%s1 + $0x1f60] sm:$0xff]
  %v1021 = vld [vmem:[%s1 + $0x1f68] sm:$0xff]
  %v1022 = vld [vmem:[%s1 + $0x1f70] sm:$0xff]
  %v1023 = vld [vmem:[%s1 + $0x1f78] sm:$0xff]
  %v1024 = vld [vmem:[%s1 + $0x1f80] sm:$0xff]
  %v1025 = vld [vmem:[%s1 + $0x1f88] sm:$0xff]
  %v1026 = vld [vmem:[%s1 + $0x1f90] sm:$0xff]
  %v1027 = vld [vmem:[%s1 + $0x1f98] sm:$0xff]
  %v1028 = vld [vmem:[%s1 + $0x1fa0] sm:$0xff]
  %v1029 = vld [vmem:[%s1 + $0x1fa8] sm:$0xff]
  %v1030 = vld [vmem:[%s1 + $0x1fb0] sm:$0xff]
  %v1031 = vld [vmem:[%s1 + $0x1fb8] sm:$0xff]
  %v1032 = vld [vmem:[%s1 + $0x1fc0] sm:$0xff]
  %v1033 = vld [vmem:[%s1 + $0x1fc8] sm:$0xff]
  %v1034 = vld [vmem:[%s1 + $0x1fd0] sm:$0xff]
  %v1035 = vld [vmem:[%s1 + $0x1fd8] sm:$0xff]
  %v1036 = vld [vmem:[%s1 + $0x1fe0] sm:$0xff]
  %v1037 = vld [vmem:[%s1 + $0x1fe8] sm:$0xff]
  %v1038 = vld [vmem:[%s1 + $0x1ff0] sm:$0xff]
  %v1039 = vld [vmem:[%s1 + $0x1ff8] sm:$0xff]
  %v1040 = vld [vmem:[%s1 + $0x2000] sm:$0xff]
  %v1041 = vld [vmem:[%s1 + $0x2008] sm:$0xff]
  %v1042 = vld [vmem:[%s1 + $0x2010] sm:$0xff]
  %v1043 = vld [vmem:[%s1 + $0x2018] sm:$0xff]
  %v1044 = vld [vmem:[%s1 + $0x2020] sm:$0xff]
  %v1045 = vld [vmem:[%s1 + $0x2028] sm:$0xff]
  %v1046 = vld [vmem:[%s1 + $0x2030] sm:$0xff]
  %v1047 = vld [vmem:[%s1 + $0x2038] sm:$0xff]
  %v1048 = vld [vmem:[%s1 + $0x2040] sm:$0xff]
  %v1049 = vld [vmem:[%s1 + $0x2048] sm:$0xff]
  %v1050 = vld [vmem:[%s1 + $0x2050] sm:$0xff]
  %v1051 = vld [vmem:[%s1 + $0x2058] sm:$0xff]
  %v1052 = vld [vmem:[%s1 + $0x2060] sm:$0xff]
  %v1053 = vld [vmem:[%s1 + $0x2068] sm:$0xff]
  %v1054 = vld [vmem:[%s1 + $0x2070] sm:$0xff]
  %v1055 = vld [vmem:[%s1 + $0x2078] sm:$0xff]
  %v1056 = vld [vmem:[%s1 + $0x2080] sm:$0xff]
  %v1057 = vld [vmem:[%s1 + $0x2088] sm:$0xff]
  %v1058 = vld [vmem:[%s1 + $0x2090] sm:$0xff]
  %v1059 = vld [vmem:[%s1 + $0x2098] sm:$0xff]
  %v1060 = vld [vmem:[%s1 + $0x20a0] sm:$0xff]
  %v1061 = vld [vmem:[%s1 + $0x20a8] sm:$0xff]
  %v1062 = vld [vmem:[%s1 + $0x20b0] sm:$0xff]
  %v1063 = vld [vmem:[%s1 + $0x20b8] sm:$0xff]
  %v1064 = vld [vmem:[%s1 + $0x20c0] sm:$0xff]
  %v1065 = vld [vmem:[%s1 + $0x20c8] sm:$0xff]
  %v1066 = vld [vmem:[%s1 + $0x20d0] sm:$0xff]
  %v1067 = vld [vmem:[%s1 + $0x20d8] sm:$0xff]
  %v1068 = vld [vmem:[%s1 + $0x20e0] sm:$0xff]
  %v1069 = vld [vmem:[%s1 + $0x20e8] sm:$0xff]
  %v1070 = vld [vmem:[%s1 + $0x20f0] sm:$0xff]
  %v1071 = vld [vmem:[%s1 + $0x20f8] sm:$0xff]
  %v1072 = vld [vmem:[%s1 + $0x2100] sm:$0xff]
  %v1073 = vld [vmem:[%s1 + $0x2108] sm:$0xff]
  %v1074 = vld [vmem:[%s1 + $0x2110] sm:$0xff]
  %v1075 = vld [vmem:[%s1 + $0x2118] sm:$0xff]
  %v1076 = vld [vmem:[%s1 + $0x2120] sm:$0xff]
  %v1077 = vld [vmem:[%s1 + $0x2128] sm:$0xff]
  %v1078 = vld [vmem:[%s1 + $0x2130] sm:$0xff]
  %v1079 = vld [vmem:[%s1 + $0x2138] sm:$0xff]
  %v1080 = vld [vmem:[%s1 + $0x2140] sm:$0xff]
  %v1081 = vld [vmem:[%s1 + $0x2148] sm:$0xff]
  %v1082 = vld [vmem:[%s1 + $0x2150] sm:$0xff]
  %v1083 = vld [vmem:[%s1 + $0x2158] sm:$0xff]
  %v1084 = vld [vmem:[%s1 + $0x2160] sm:$0xff]
  %v1085 = vld [vmem:[%s1 + $0x2168] sm:$0xff]
  %v1086 = vld [vmem:[%s1 + $0x2170] sm:$0xff]
  %v1087 = vld [vmem:[%s1 + $0x2178] sm:$0xff]
  %v1088 = vld [vmem:[%s1 + $0x2180] sm:$0xff]
  %v1089 = vld [vmem:[%s1 + $0x2188] sm:$0xff]
  %v1090 = vld [vmem:[%s1 + $0x2190] sm:$0xff]
  %v1091 = vld [vmem:[%s1 + $0x2198] sm:$0xff]
  %v1092 = vld [vmem:[%s1 + $0x21a0] sm:$0xff]
  %v1093 = vld [vmem:[%s1 + $0x21a8] sm:$0xff]
  %v1094 = vld [vmem:[%s1 + $0x21b0] sm:$0xff]
  %v1095 = vld [vmem:[%s1 + $0x21b8] sm:$0xff]
  %v1096 = vld [vmem:[%s1 + $0x21c0] sm:$0xff]
  %v1097 = vld [vmem:[%s1 + $0x21c8] sm:$0xff]
  %v1098 = vld [vmem:[%s1 + $0x21d0] sm:$0xff]
  %v1099 = vld [vmem:[%s1 + $0x21d8] sm:$0xff]
  %v1100 = vld [vmem:[%s1 + $0x21e0] sm:$0xff]
  %v1101 = vld [vmem:[%s1 + $0x21e8] sm:$0xff]
  %v1102 = vld [vmem:[%s1 + $0x21f0] sm:$0xff]
  %v1103 = vld [vmem:[%s1 + $0x21f8] sm:$0xff]
  %v1104 = vld [vmem:[%s1 + $0x2200] sm:$0xff]
  %v1105 = vld [vmem:[%s1 + $0x2208] sm:$0xff]
  %v1106 = vld [vmem:[%s1 + $0x2210] sm:$0xff]
  %v1107 = vld [vmem:[%s1 + $0x2218] sm:$0xff]
  %v1108 = vld [vmem:[%s1 + $0x2220] sm:$0xff]
  %v1109 = vld [vmem:[%s1 + $0x2228] sm:$0xff]
  %v1110 = vld [vmem:[%s1 + $0x2230] sm:$0xff]
  %v1111 = vld [vmem:[%s1 + $0x2238] sm:$0xff]
  %v1112 = vld [vmem:[%s1 + $0x2240] sm:$0xff]
  %v1113 = vld [vmem:[%s1 + $0x2248] sm:$0xff]
  %v1114 = vld [vmem:[%s1 + $0x2250] sm:$0xff]
  %v1115 = vld [vmem:[%s1 + $0x2258] sm:$0xff]
  %v1116 = vld [vmem:[%s1 + $0x2260] sm:$0xff]
  %v1117 = vld [vmem:[%s1 + $0x2268] sm:$0xff]
  %v1118 = vld [vmem:[%s1 + $0x2270] sm:$0xff]
  %v1119 = vld [vmem:[%s1 + $0x2278] sm:$0xff]
  %v1120 = vld [vmem:[%s1 + $0x2280] sm:$0xff]
  %v1121 = vld [vmem:[%s1 + $0x2288] sm:$0xff]
  %v1122 = vld [vmem:[%s1 + $0x2290] sm:$0xff]
  %v1123 = vld [vmem:[%s1 + $0x2298] sm:$0xff]
  %v1124 = vld [vmem:[%s1 + $0x22a0] sm:$0xff]
  %v1125 = vld [vmem:[%s1 + $0x22a8] sm:$0xff]
  %v1126 = vld [vmem:[%s1 + $0x22b0] sm:$0xff]
  %v1127 = vld [vmem:[%s1 + $0x22b8] sm:$0xff]
  %v1128 = vld [vmem:[%s1 + $0x22c0] sm:$0xff]
  %v1129 = vld [vmem:[%s1 + $0x22c8] sm:$0xff]
  %v1130 = vld [vmem:[%s1 + $0x22d0] sm:$0xff]
  %v1131 = vld [vmem:[%s1 + $0x22d8] sm:$0xff]
  %v1132 = vld [vmem:[%s1 + $0x22e0] sm:$0xff]
  %v1133 = vld [vmem:[%s1 + $0x22e8] sm:$0xff]
  %v1134 = vld [vmem:[%s1 + $0x22f0] sm:$0xff]
  %v1135 = vld [vmem:[%s1 + $0x22f8] sm:$0xff]
  %v1136 = vld [vmem:[%s1 + $0x2300] sm:$0xff]
  %v1137 = vld [vmem:[%s1 + $0x2308] sm:$0xff]
  %v1138 = vld [vmem:[%s1 + $0x2310] sm:$0xff]
  %v1139 = vld [vmem:[%s1 + $0x2318] sm:$0xff]
  %v1140 = vld [vmem:[%s1 + $0x2320] sm:$0xff]
  %v1141 = vld [vmem:[%s1 + $0x2328] sm:$0xff]
  %v1142 = vld [vmem:[%s1 + $0x2330] sm:$0xff]
  %v1143 = vld [vmem:[%s1 + $0x2338] sm:$0xff]
  %v1144 = vld [vmem:[%s1 + $0x2340] sm:$0xff]
  %v1145 = vld [vmem:[%s1 + $0x2348] sm:$0xff]
  %v1146 = vld [vmem:[%s1 + $0x2350] sm:$0xff]
  %v1147 = vld [vmem:[%s1 + $0x2358] sm:$0xff]
  %v1148 = vld [vmem:[%s1 + $0x2360] sm:$0xff]
  %v1149 = vld [vmem:[%s1 + $0x2368] sm:$0xff]
  %v1150 = vld [vmem:[%s1 + $0x2370] sm:$0xff]
  %v1151 = vld [vmem:[%s1 + $0x2378] sm:$0xff]
  %v1152 = vld [vmem:[%s1 + $0x2380] sm:$0xff]
  %v1153 = vld [vmem:[%s1 + $0x2388] sm:$0xff]
  %v1154 = vld [vmem:[%s1 + $0x2390] sm:$0xff]
  %v1155 = vld [vmem:[%s1 + $0x2398] sm:$0xff]
  %v1156 = vld [vmem:[%s1 + $0x23a0] sm:$0xff]
  %v1157 = vld [vmem:[%s1 + $0x23a8] sm:$0xff]
  %v1158 = vld [vmem:[%s1 + $0x23b0] sm:$0xff]
  %v1159 = vld [vmem:[%s1 + $0x23b8] sm:$0xff]
  %v1160 = vld [vmem:[%s1 + $0x23c0] sm:$0xff]
  %v1161 = vld [vmem:[%s1 + $0x23c8] sm:$0xff]
  %v1162 = vld [vmem:[%s1 + $0x23d0] sm:$0xff]
  %v1163 = vld [vmem:[%s1 + $0x23d8] sm:$0xff]
  %v1164 = vld [vmem:[%s1 + $0x23e0] sm:$0xff]
  %v1165 = vld [vmem:[%s1 + $0x23e8] sm:$0xff]
  %v1166 = vld [vmem:[%s1 + $0x23f0] sm:$0xff]
  %v1167 = vld [vmem:[%s1 + $0x23f8] sm:$0xff]
  %v1168 = vld [vmem:[%s1 + $0x2400] sm:$0xff]
  %v1169 = vld [vmem:[%s1 + $0x2408] sm:$0xff]
  %v1170 = vld [vmem:[%s1 + $0x2410] sm:$0xff]
  %v1171 = vld [vmem:[%s1 + $0x2418] sm:$0xff]
  %v1172 = vld [vmem:[%s1 + $0x2420] sm:$0xff]
  %v1173 = vld [vmem:[%s1 + $0x2428] sm:$0xff]
  %v1174 = vld [vmem:[%s1 + $0x2430] sm:$0xff]
  %v1175 = vld [vmem:[%s1 + $0x2438] sm:$0xff]
  %v1176 = vld [vmem:[%s1 + $0x2440] sm:$0xff]
  %v1177 = vld [vmem:[%s1 + $0x2448] sm:$0xff]
  %v1178 = vld [vmem:[%s1 + $0x2450] sm:$0xff]
  %v1179 = vld [vmem:[%s1 + $0x2458] sm:$0xff]
  %v1180 = vld [vmem:[%s1 + $0x2460] sm:$0xff]
  %v1181 = vld [vmem:[%s1 + $0x2468] sm:$0xff]
  %v1182 = vld [vmem:[%s1 + $0x2470] sm:$0xff]
  %v1183 = vld [vmem:[%s1 + $0x2478] sm:$0xff]
  %v1184 = vld [vmem:[%s1 + $0x2480] sm:$0xff]
  %v1185 = vld [vmem:[%s1 + $0x2488] sm:$0xff]
  %v1186 = vld [vmem:[%s1 + $0x2490] sm:$0xff]
  %v1187 = vld [vmem:[%s1 + $0x2498] sm:$0xff]
  %v1188 = vld [vmem:[%s1 + $0x24a0] sm:$0xff]
  %v1189 = vld [vmem:[%s1 + $0x24a8] sm:$0xff]
  %v1190 = vld [vmem:[%s1 + $0x24b0] sm:$0xff]
  %v1191 = vld [vmem:[%s1 + $0x24b8] sm:$0xff]
  %v1192 = vld [vmem:[%s1 + $0x24c0] sm:$0xff]
  %v1193 = vld [vmem:[%s1 + $0x24c8] sm:$0xff]
  %v1194 = vld [vmem:[%s1 + $0x24d0] sm:$0xff]
  %v1195 = vld [vmem:[%s1 + $0x24d8] sm:$0xff]
  %v1196 = vld [vmem:[%s1 + $0x24e0] sm:$0xff]
  %v1197 = vld [vmem:[%s1 + $0x24e8] sm:$0xff]
  %v1198 = vld [vmem:[%s1 + $0x24f0] sm:$0xff]
  %v1199 = vld [vmem:[%s1 + $0x24f8] sm:$0xff]
  %v1200 = vld [vmem:[%s1 + $0x2500] sm:$0xff]
  %v1201 = vld [vmem:[%s1 + $0x2508] sm:$0xff]
  %v1202 = vld [vmem:[%s1 + $0x2510] sm:$0xff]
  %v1203 = vld [vmem:[%s1 + $0x2518] sm:$0xff]
  %v1204 = vld [vmem:[%s1 + $0x2520] sm:$0xff]
  %v1205 = vld [vmem:[%s1 + $0x2528] sm:$0xff]
  %v1206 = vld [vmem:[%s1 + $0x2530] sm:$0xff]
  %v1207 = vld [vmem:[%s1 + $0x2538] sm:$0xff]
  %v1208 = vld [vmem:[%s1 + $0x2540] sm:$0xff]
  %v1209 = vld [vmem:[%s1 + $0x2548] sm:$0xff]
  %v1210 = vld [vmem:[%s1 + $0x2550] sm:$0xff]
  %v1211 = vld [vmem:[%s1 + $0x2558] sm:$0xff]
  %v1212 = vld [vmem:[%s1 + $0x2560] sm:$0xff]
  %v1213 = vld [vmem:[%s1 + $0x2568] sm:$0xff]
  %v1214 = vld [vmem:[%s1 + $0x2570] sm:$0xff]
  %v1215 = vld [vmem:[%s1 + $0x2578] sm:$0xff]
  %v1216 = vld [vmem:[%s1 + $0x2580] sm:$0xff]
  %v1217 = vld [vmem:[%s1 + $0x2588] sm:$0xff]
  %v1218 = vld [vmem:[%s1 + $0x2590] sm:$0xff]
  %v1219 = vld [vmem:[%s1 + $0x2598] sm:$0xff]
  %v1220 = vld [vmem:[%s1 + $0x25a0] sm:$0xff]
  %v1221 = vld [vmem:[%s1 + $0x25a8] sm:$0xff]
  %v1222 = vld [vmem:[%s1 + $0x25b0] sm:$0xff]
  %v1223 = vld [vmem:[%s1 + $0x25b8] sm:$0xff]
  %v1224 = vld [vmem:[%s1 + $0x25c0] sm:$0xff]
  %v1225 = vld [vmem:[%s1 + $0x25c8] sm:$0xff]
  %v1226 = vld [vmem:[%s1 + $0x25d0] sm:$0xff]
  %v1227 = vld [vmem:[%s1 + $0x25d8] sm:$0xff]
  %v1228 = vld [vmem:[%s1 + $0x25e0] sm:$0xff]
  %v1229 = vld [vmem:[%s1 + $0x25e8] sm:$0xff]
  %v1230 = vld [vmem:[%s1 + $0x25f0] sm:$0xff]
  %v1231 = vld [vmem:[%s1 + $0x25f8] sm:$0xff]
  %v1232 = vld [vmem:[%s1 + $0x2600] sm:$0xff]
  %v1233 = vld [vmem:[%s1 + $0x2608] sm:$0xff]
  %v1234 = vld [vmem:[%s1 + $0x2610] sm:$0xff]
  %v1235 = vld [vmem:[%s1 + $0x2618] sm:$0xff]
  %v1236 = vld [vmem:[%s1 + $0x2620] sm:$0xff]
  %v1237 = vld [vmem:[%s1 + $0x2628] sm:$0xff]
  %v1238 = vld [vmem:[%s1 + $0x2630] sm:$0xff]
  %v1239 = vld [vmem:[%s1 + $0x2638] sm:$0xff]
  %v1240 = vld [vmem:[%s1 + $0x2640] sm:$0xff]
  %v1241 = vld [vmem:[%s1 + $0x2648] sm:$0xff]
  %v1242 = vld [vmem:[%s1 + $0x2650] sm:$0xff]
  %v1243 = vld [vmem:[%s1 + $0x2658] sm:$0xff]
  %v1244 = vld [vmem:[%s1 + $0x2660] sm:$0xff]
  %v1245 = vld [vmem:[%s1 + $0x2668] sm:$0xff]
  %v1246 = vld [vmem:[%s1 + $0x2670] sm:$0xff]
  %v1247 = vld [vmem:[%s1 + $0x2678] sm:$0xff]
  %v1248 = vld [vmem:[%s1 + $0x2680] sm:$0xff]
  %v1249 = vld [vmem:[%s1 + $0x2688] sm:$0xff]
  %v1250 = vld [vmem:[%s1 + $0x2690] sm:$0xff]
  %v1251 = vld [vmem:[%s1 + $0x2698] sm:$0xff]
  %v1252 = vld [vmem:[%s1 + $0x26a0] sm:$0xff]
  %v1253 = vld [vmem:[%s1 + $0x26a8] sm:$0xff]
  %v1254 = vld [vmem:[%s1 + $0x26b0] sm:$0xff]
  %v1255 = vld [vmem:[%s1 + $0x26b8] sm:$0xff]
  %v1256 = vld [vmem:[%s1 + $0x26c0] sm:$0xff]
  %v1257 = vld [vmem:[%s1 + $0x26c8] sm:$0xff]
  %v1258 = vld [vmem:[%s1 + $0x26d0] sm:$0xff]
  %v1259 = vld [vmem:[%s1 + $0x26d8] sm:$0xff]
  %v1260 = vld [vmem:[%s1 + $0x26e0] sm:$0xff]
  %v1261 = vld [vmem:[%s1 + $0x26e8] sm:$0xff]
  %v1262 = vld [vmem:[%s1 + $0x26f0] sm:$0xff]
  %v1263 = vld [vmem:[%s1 + $0x26f8] sm:$0xff]
  %v1264 = vld [vmem:[%s1 + $0x2700] sm:$0xff]
  %v1265 = vld [vmem:[%s1 + $0x2708] sm:$0xff]
  %v1266 = vld [vmem:[%s1 + $0x2710] sm:$0xff]
  %v1267 = vld [vmem:[%s1 + $0x2718] sm:$0xff]
  %v1268 = vld [vmem:[%s1 + $0x2720] sm:$0xff]
  %v1269 = vld [vmem:[%s1 + $0x2728] sm:$0xff]
  %v1270 = vld [vmem:[%s1 + $0x2730] sm:$0xff]
  %v1271 = vld [vmem:[%s1 + $0x2738] sm:$0xff]
  %v1272 = vld [vmem:[%s1 + $0x2740] sm:$0xff]
  %v1273 = vld [vmem:[%s1 + $0x2748] sm:$0xff]
  %v1274 = vld [vmem:[%s1 + $0x2750] sm:$0xff]
  %v1275 = vld [vmem:[%s1 + $0x2758] sm:$0xff]
  %v1276 = vld [vmem:[%s1 + $0x2760] sm:$0xff]
  %v1277 = vld [vmem:[%s1 + $0x2768] sm:$0xff]
  %v1278 = vld [vmem:[%s1 + $0x2770] sm:$0xff]
  %v1279 = vld [vmem:[%s1 + $0x2778] sm:$0xff]
  %v1280 = vld [vmem:[%s1 + $0x2780] sm:$0xff]
  %v1281 = vld [vmem:[%s1 + $0x2788] sm:$0xff]
  %v1282 = vld [vmem:[%s1 + $0x2790] sm:$0xff]
  %v1283 = vld [vmem:[%s1 + $0x2798] sm:$0xff]
  %v1284 = vld [vmem:[%s1 + $0x27a0] sm:$0xff]
  %v1285 = vld [vmem:[%s1 + $0x27a8] sm:$0xff]
  %v1286 = vld [vmem:[%s1 + $0x27b0] sm:$0xff]
  %v1287 = vld [vmem:[%s1 + $0x27b8] sm:$0xff]
  %v1288 = vld [vmem:[%s1 + $0x27c0] sm:$0xff]
  %v1289 = vld [vmem:[%s1 + $0x27c8] sm:$0xff]
  %v1290 = vld [vmem:[%s1 + $0x27d0] sm:$0xff]
  %v1291 = vld [vmem:[%s1 + $0x27d8] sm:$0xff]
  %v1292 = vld [vmem:[%s1 + $0x27e0] sm:$0xff]
  %v1293 = vld [vmem:[%s1 + $0x27e8] sm:$0xff]
  %v1294 = vld [vmem:[%s1 + $0x27f0] sm:$0xff]
  %v1295 = vld [vmem:[%s1 + $0x27f8] sm:$0xff]
  %v1296 = vld [vmem:[%s2] sm:$0xff]
  %v1297 = vld [vmem:[%s2 + $0x8] sm:$0x3]
  %v1300 = vperm.slane %v1296, 0
  %v1301 = vperm.slane %v1296, 1
  %v1302 = vperm.slane %v1296, 2
  %v1303 = vperm.slane %v1296, 3
  %v1304 = vperm.slane %v1296, 4
  %v1305 = vperm.slane %v1296, 5
  %v1306 = vperm.slane %v1296, 6
  %v1307 = vperm.slane %v1296, 7
  %v1308 = vperm.slane %v1297, 0
  %v1309 = vperm.slane %v1297, 1
  %1322 = vst [vmem:[#allocation1] ss:$4 sm:$0xff] %v14
  %s1323 = scalar_lea.vmem [#allocation1], 32
  %1324 = vst [vmem:[%s1323] ss:$4 sm:$0xff] %v15
  %v1325 = vld.sshfl [vmem:[#allocation1] sm:$0xff pattern:$0x73625140]
  %v1326 = vld.sshfl [vmem:[#allocation1 + $0x8] sm:$0xff pattern:$0x73625140]
  %v1327 = vld.sshfl [vmem:[#allocation1 + $0x10] sm:$0xff pattern:$0x73625140]
  %v1328 = vld.sshfl [vmem:[#allocation1 + $0x18] sm:$0xff pattern:$0x73625140]
  %v1329 = vld.sshfl [vmem:[#allocation1 + $0x20] sm:$0xff pattern:$0x73625140]
  %v1330 = vld.sshfl [vmem:[#allocation1 + $0x28] sm:$0xff pattern:$0x73625140]
  %v1331 = vld.sshfl [vmem:[#allocation1 + $0x30] sm:$0xff pattern:$0x73625140]
  %v1332 = vld.sshfl [vmem:[#allocation1 + $0x38] sm:$0xff pattern:$0x73625140]
  %1341 = vmatpush.msra.mxu0 %v166
  %1342 = vmatpush.msra.mxu0 %v156
  %1343 = vmatpush.msra.mxu0 %v146
  %1344 = vmatpush.msra.mxu0 %v136
  %1345 = vmatpush.msra.mxu0 %v126
  %1346 = vmatpush.msra.mxu0 %v116
  %1347 = vmatpush.msra.mxu0 %v106
  %1348 = vmatpush.msra.mxu0 %v96
  %1349 = vmatpush.msra.mxu0 %v86
  %1350 = vmatpush.msra.mxu0 %v76
  %1351 = vmatpush.msra.mxu0 %v66
  %1352 = vmatpush.msra.mxu0 %v56
  %1353 = vmatpush.msra.mxu0 %v46
  %1354 = vmatpush.msra.mxu0 %v36
  %1355 = vmatpush.msra.mxu0 %v26
  %1356 = vmatpush.msra.mxu0 %v16
  %1357 = vmatmul.f32.gmra.mxu0 %v1325
  %v1358 = vpop.f32.mrf.mxu0
  %v1359 = vadd.f32 %v1300, %v1358
  %1360 = vdwg.mxu0
  %1361 = vmatpush.msra.mxu0 %v326
  %1362 = vmatpush.msra.mxu0 %v316
  %1363 = vmatpush.msra.mxu0 %v306
  %1364 = vmatpush.msra.mxu0 %v296
  %1365 = vmatpush.msra.mxu0 %v286
  %1366 = vmatpush.msra.mxu0 %v276
  %1367 = vmatpush.msra.mxu0 %v266
  %1368 = vmatpush.msra.mxu0 %v256
  %1369 = vmatpush.msra.mxu0 %v246
  %1370 = vmatpush.msra.mxu0 %v236
  %1371 = vmatpush.msra.mxu0 %v226
  %1372 = vmatpush.msra.mxu0 %v216
  %1373 = vmatpush.msra.mxu0 %v206
  %1374 = vmatpush.msra.mxu0 %v196
  %1375 = vmatpush.msra.mxu0 %v186
  %1376 = vmatpush.msra.mxu0 %v176
  %1377 = vmatmul.f32.gmra.mxu0 %v1326
  %v1378 = vpop.f32.mrf.mxu0
  %v1379 = vadd.f32 %v1359, %v1378
  %1380 = vdwg.mxu0
  %1381 = vmatpush.msra.mxu0 %v486
  %1382 = vmatpush.msra.mxu0 %v476
  %1383 = vmatpush.msra.mxu0 %v466
  %1384 = vmatpush.msra.mxu0 %v456
  %1385 = vmatpush.msra.mxu0 %v446
  %1386 = vmatpush.msra.mxu0 %v436
  %1387 = vmatpush.msra.mxu0 %v426
  %1388 = vmatpush.msra.mxu0 %v416
  %1389 = vmatpush.msra.mxu0 %v406
  %1390 = vmatpush.msra.mxu0 %v396
  %1391 = vmatpush.msra.mxu0 %v386
  %1392 = vmatpush.msra.mxu0 %v376
  %1393 = vmatpush.msra.mxu0 %v366
  %1394 = vmatpush.msra.mxu0 %v356
  %1395 = vmatpush.msra.mxu0 %v346
  %1396 = vmatpush.msra.mxu0 %v336
  %1397 = vmatmul.f32.gmra.mxu0 %v1327
  %v1398 = vpop.f32.mrf.mxu0
  %v1399 = vadd.f32 %v1379, %v1398
  %1400 = vdwg.mxu0
  %1401 = vmatpush.msra.mxu0 %v646
  %1402 = vmatpush.msra.mxu0 %v636
  %1403 = vmatpush.msra.mxu0 %v626
  %1404 = vmatpush.msra.mxu0 %v616
  %1405 = vmatpush.msra.mxu0 %v606
  %1406 = vmatpush.msra.mxu0 %v596
  %1407 = vmatpush.msra.mxu0 %v586
  %1408 = vmatpush.msra.mxu0 %v576
  %1409 = vmatpush.msra.mxu0 %v566
  %1410 = vmatpush.msra.mxu0 %v556
  %1411 = vmatpush.msra.mxu0 %v546
  %1412 = vmatpush.msra.mxu0 %v536
  %1413 = vmatpush.msra.mxu0 %v526
  %1414 = vmatpush.msra.mxu0 %v516
  %1415 = vmatpush.msra.mxu0 %v506
  %1416 = vmatpush.msra.mxu0 %v496
  %1417 = vmatmul.f32.gmra.mxu0 %v1328
  %v1418 = vpop.f32.mrf.mxu0
  %v1419 = vadd.f32 %v1399, %v1418
  %1420 = vdwg.mxu0
  %1421 = vmatpush.msra.mxu0 %v806
  %1422 = vmatpush.msra.mxu0 %v796
  %1423 = vmatpush.msra.mxu0 %v786
  %1424 = vmatpush.msra.mxu0 %v776
  %1425 = vmatpush.msra.mxu0 %v766
  %1426 = vmatpush.msra.mxu0 %v756
  %1427 = vmatpush.msra.mxu0 %v746
  %1428 = vmatpush.msra.mxu0 %v736
  %1429 = vmatpush.msra.mxu0 %v726
  %1430 = vmatpush.msra.mxu0 %v716
  %1431 = vmatpush.msra.mxu0 %v706
  %1432 = vmatpush.msra.mxu0 %v696
  %1433 = vmatpush.msra.mxu0 %v686
  %1434 = vmatpush.msra.mxu0 %v676
  %1435 = vmatpush.msra.mxu0 %v666
  %1436 = vmatpush.msra.mxu0 %v656
  %1437 = vmatmul.f32.gmra.mxu0 %v1329
  %v1438 = vpop.f32.mrf.mxu0
  %v1439 = vadd.f32 %v1419, %v1438
  %1440 = vdwg.mxu0
  %1441 = vmatpush.msra.mxu0 %v966
  %1442 = vmatpush.msra.mxu0 %v956
  %1443 = vmatpush.msra.mxu0 %v946
  %1444 = vmatpush.msra.mxu0 %v936
  %1445 = vmatpush.msra.mxu0 %v926
  %1446 = vmatpush.msra.mxu0 %v916
  %1447 = vmatpush.msra.mxu0 %v906
  %1448 = vmatpush.msra.mxu0 %v896
  %1449 = vmatpush.msra.mxu0 %v886
  %1450 = vmatpush.msra.mxu0 %v876
  %1451 = vmatpush.msra.mxu0 %v866
  %1452 = vmatpush.msra.mxu0 %v856
  %1453 = vmatpush.msra.mxu0 %v846
  %1454 = vmatpush.msra.mxu0 %v836
  %1455 = vmatpush.msra.mxu0 %v826
  %1456 = vmatpush.msra.mxu0 %v816
  %1457 = vmatmul.f32.gmra.mxu0 %v1330
  %v1458 = vpop.f32.mrf.mxu0
  %v1459 = vadd.f32 %v1439, %v1458
  %1460 = vdwg.mxu0
  %1461 = vmatpush.msra.mxu0 %v1126
  %1462 = vmatpush.msra.mxu0 %v1116
  %1463 = vmatpush.msra.mxu0 %v1106
  %1464 = vmatpush.msra.mxu0 %v1096
  %1465 = vmatpush.msra.mxu0 %v1086
  %1466 = vmatpush.msra.mxu0 %v1076
  %1467 = vmatpush.msra.mxu0 %v1066
  %1468 = vmatpush.msra.mxu0 %v1056
  %1469 = vmatpush.msra.mxu0 %v1046
  %1470 = vmatpush.msra.mxu0 %v1036
  %1471 = vmatpush.msra.mxu0 %v1026
  %1472 = vmatpush.msra.mxu0 %v1016
  %1473 = vmatpush.msra.mxu0 %v1006
  %1474 = vmatpush.msra.mxu0 %v996
  %1475 = vmatpush.msra.mxu0 %v986
  %1476 = vmatpush.msra.mxu0 %v976
  %1477 = vmatmul.f32.gmra.mxu0 %v1331
  %v1478 = vpop.f32.mrf.mxu0
  %v1479 = vadd.f32 %v1459, %v1478
  %1480 = vdwg.mxu0
  %1481 = vmatpush.msra.mxu0 %v1286
  %1482 = vmatpush.msra.mxu0 %v1276
  %1483 = vmatpush.msra.mxu0 %v1266
  %1484 = vmatpush.msra.mxu0 %v1256
  %1485 = vmatpush.msra.mxu0 %v1246
  %1486 = vmatpush.msra.mxu0 %v1236
  %1487 = vmatpush.msra.mxu0 %v1226
  %1488 = vmatpush.msra.mxu0 %v1216
  %1489 = vmatpush.msra.mxu0 %v1206
  %1490 = vmatpush.msra.mxu0 %v1196
  %1491 = vmatpush.msra.mxu0 %v1186
  %1492 = vmatpush.msra.mxu0 %v1176
  %1493 = vmatpush.msra.mxu0 %v1166
  %1494 = vmatpush.msra.mxu0 %v1156
  %1495 = vmatpush.msra.mxu0 %v1146
  %1496 = vmatpush.msra.mxu0 %v1136
  %1497 = vmatmul.f32.gmra.mxu0 %v1332
  %v1498 = vpop.f32.mrf.mxu0
  %v1499 = vadd.f32 %v1479, %v1498
  %1500 = vdwg.mxu0
  %1501 = vmatpush.msra.mxu0 %v167
  %1502 = vmatpush.msra.mxu0 %v157
  %1503 = vmatpush.msra.mxu0 %v147
  %1504 = vmatpush.msra.mxu0 %v137
  %1505 = vmatpush.msra.mxu0 %v127
  %1506 = vmatpush.msra.mxu0 %v117
  %1507 = vmatpush.msra.mxu0 %v107
  %1508 = vmatpush.msra.mxu0 %v97
  %1509 = vmatpush.msra.mxu0 %v87
  %1510 = vmatpush.msra.mxu0 %v77
  %1511 = vmatpush.msra.mxu0 %v67
  %1512 = vmatpush.msra.mxu0 %v57
  %1513 = vmatpush.msra.mxu0 %v47
  %1514 = vmatpush.msra.mxu0 %v37
  %1515 = vmatpush.msra.mxu0 %v27
  %1516 = vmatpush.msra.mxu0 %v17
  %1517 = vmatmul.f32.gmra.mxu0 %v1325
  %v1518 = vpop.f32.mrf.mxu0
  %v1519 = vadd.f32 %v1301, %v1518
  %1520 = vdwg.mxu0
  %1521 = vmatpush.msra.mxu0 %v327
  %1522 = vmatpush.msra.mxu0 %v317
  %1523 = vmatpush.msra.mxu0 %v307
  %1524 = vmatpush.msra.mxu0 %v297
  %1525 = vmatpush.msra.mxu0 %v287
  %1526 = vmatpush.msra.mxu0 %v277
  %1527 = vmatpush.msra.mxu0 %v267
  %1528 = vmatpush.msra.mxu0 %v257
  %1529 = vmatpush.msra.mxu0 %v247
  %1530 = vmatpush.msra.mxu0 %v237
  %1531 = vmatpush.msra.mxu0 %v227
  %1532 = vmatpush.msra.mxu0 %v217
  %1533 = vmatpush.msra.mxu0 %v207
  %1534 = vmatpush.msra.mxu0 %v197
  %1535 = vmatpush.msra.mxu0 %v187
  %1536 = vmatpush.msra.mxu0 %v177
  %1537 = vmatmul.f32.gmra.mxu0 %v1326
  %v1538 = vpop.f32.mrf.mxu0
  %v1539 = vadd.f32 %v1519, %v1538
  %1540 = vdwg.mxu0
  %1541 = vmatpush.msra.mxu0 %v487
  %1542 = vmatpush.msra.mxu0 %v477
  %1543 = vmatpush.msra.mxu0 %v467
  %1544 = vmatpush.msra.mxu0 %v457
  %1545 = vmatpush.msra.mxu0 %v447
  %1546 = vmatpush.msra.mxu0 %v437
  %1547 = vmatpush.msra.mxu0 %v427
  %1548 = vmatpush.msra.mxu0 %v417
  %1549 = vmatpush.msra.mxu0 %v407
  %1550 = vmatpush.msra.mxu0 %v397
  %1551 = vmatpush.msra.mxu0 %v387
  %1552 = vmatpush.msra.mxu0 %v377
  %1553 = vmatpush.msra.mxu0 %v367
  %1554 = vmatpush.msra.mxu0 %v357
  %1555 = vmatpush.msra.mxu0 %v347
  %1556 = vmatpush.msra.mxu0 %v337
  %1557 = vmatmul.f32.gmra.mxu0 %v1327
  %v1558 = vpop.f32.mrf.mxu0
  %v1559 = vadd.f32 %v1539, %v1558
  %1560 = vdwg.mxu0
  %1561 = vmatpush.msra.mxu0 %v647
  %1562 = vmatpush.msra.mxu0 %v637
  %1563 = vmatpush.msra.mxu0 %v627
  %1564 = vmatpush.msra.mxu0 %v617
  %1565 = vmatpush.msra.mxu0 %v607
  %1566 = vmatpush.msra.mxu0 %v597
  %1567 = vmatpush.msra.mxu0 %v587
  %1568 = vmatpush.msra.mxu0 %v577
  %1569 = vmatpush.msra.mxu0 %v567
  %1570 = vmatpush.msra.mxu0 %v557
  %1571 = vmatpush.msra.mxu0 %v547
  %1572 = vmatpush.msra.mxu0 %v537
  %1573 = vmatpush.msra.mxu0 %v527
  %1574 = vmatpush.msra.mxu0 %v517
  %1575 = vmatpush.msra.mxu0 %v507
  %1576 = vmatpush.msra.mxu0 %v497
  %1577 = vmatmul.f32.gmra.mxu0 %v1328
  %v1578 = vpop.f32.mrf.mxu0
  %v1579 = vadd.f32 %v1559, %v1578
  %1580 = vdwg.mxu0
  %1581 = vmatpush.msra.mxu0 %v807
  %1582 = vmatpush.msra.mxu0 %v797
  %1583 = vmatpush.msra.mxu0 %v787
  %1584 = vmatpush.msra.mxu0 %v777
  %1585 = vmatpush.msra.mxu0 %v767
  %1586 = vmatpush.msra.mxu0 %v757
  %1587 = vmatpush.msra.mxu0 %v747
  %1588 = vmatpush.msra.mxu0 %v737
  %1589 = vmatpush.msra.mxu0 %v727
  %1590 = vmatpush.msra.mxu0 %v717
  %1591 = vmatpush.msra.mxu0 %v707
  %1592 = vmatpush.msra.mxu0 %v697
  %1593 = vmatpush.msra.mxu0 %v687
  %1594 = vmatpush.msra.mxu0 %v677
  %1595 = vmatpush.msra.mxu0 %v667
  %1596 = vmatpush.msra.mxu0 %v657
  %1597 = vmatmul.f32.gmra.mxu0 %v1329
  %v1598 = vpop.f32.mrf.mxu0
  %v1599 = vadd.f32 %v1579, %v1598
  %1600 = vdwg.mxu0
  %1601 = vmatpush.msra.mxu0 %v967
  %1602 = vmatpush.msra.mxu0 %v957
  %1603 = vmatpush.msra.mxu0 %v947
  %1604 = vmatpush.msra.mxu0 %v937
  %1605 = vmatpush.msra.mxu0 %v927
  %1606 = vmatpush.msra.mxu0 %v917
  %1607 = vmatpush.msra.mxu0 %v907
  %1608 = vmatpush.msra.mxu0 %v897
  %1609 = vmatpush.msra.mxu0 %v887
  %1610 = vmatpush.msra.mxu0 %v877
  %1611 = vmatpush.msra.mxu0 %v867
  %1612 = vmatpush.msra.mxu0 %v857
  %1613 = vmatpush.msra.mxu0 %v847
  %1614 = vmatpush.msra.mxu0 %v837
  %1615 = vmatpush.msra.mxu0 %v827
  %1616 = vmatpush.msra.mxu0 %v817
  %1617 = vmatmul.f32.gmra.mxu0 %v1330
  %v1618 = vpop.f32.mrf.mxu0
  %v1619 = vadd.f32 %v1599, %v1618
  %1620 = vdwg.mxu0
  %1621 = vmatpush.msra.mxu0 %v1127
  %1622 = vmatpush.msra.mxu0 %v1117
  %1623 = vmatpush.msra.mxu0 %v1107
  %1624 = vmatpush.msra.mxu0 %v1097
  %1625 = vmatpush.msra.mxu0 %v1087
  %1626 = vmatpush.msra.mxu0 %v1077
  %1627 = vmatpush.msra.mxu0 %v1067
  %1628 = vmatpush.msra.mxu0 %v1057
  %1629 = vmatpush.msra.mxu0 %v1047
  %1630 = vmatpush.msra.mxu0 %v1037
  %1631 = vmatpush.msra.mxu0 %v1027
  %1632 = vmatpush.msra.mxu0 %v1017
  %1633 = vmatpush.msra.mxu0 %v1007
  %1634 = vmatpush.msra.mxu0 %v997
  %1635 = vmatpush.msra.mxu0 %v987
  %1636 = vmatpush.msra.mxu0 %v977
  %1637 = vmatmul.f32.gmra.mxu0 %v1331
  %v1638 = vpop.f32.mrf.mxu0
  %v1639 = vadd.f32 %v1619, %v1638
  %1640 = vdwg.mxu0
  %1641 = vmatpush.msra.mxu0 %v1287
  %1642 = vmatpush.msra.mxu0 %v1277
  %1643 = vmatpush.msra.mxu0 %v1267
  %1644 = vmatpush.msra.mxu0 %v1257
  %1645 = vmatpush.msra.mxu0 %v1247
  %1646 = vmatpush.msra.mxu0 %v1237
  %1647 = vmatpush.msra.mxu0 %v1227
  %1648 = vmatpush.msra.mxu0 %v1217
  %1649 = vmatpush.msra.mxu0 %v1207
  %1650 = vmatpush.msra.mxu0 %v1197
  %1651 = vmatpush.msra.mxu0 %v1187
  %1652 = vmatpush.msra.mxu0 %v1177
  %1653 = vmatpush.msra.mxu0 %v1167
  %1654 = vmatpush.msra.mxu0 %v1157
  %1655 = vmatpush.msra.mxu0 %v1147
  %1656 = vmatpush.msra.mxu0 %v1137
  %1657 = vmatmul.f32.gmra.mxu0 %v1332
  %v1658 = vpop.f32.mrf.mxu0
  %v1659 = vadd.f32 %v1639, %v1658
  %1660 = vdwg.mxu0
  %1661 = vmatpush.msra.mxu0 %v168
  %1662 = vmatpush.msra.mxu0 %v158
  %1663 = vmatpush.msra.mxu0 %v148
  %1664 = vmatpush.msra.mxu0 %v138
  %1665 = vmatpush.msra.mxu0 %v128
  %1666 = vmatpush.msra.mxu0 %v118
  %1667 = vmatpush.msra.mxu0 %v108
  %1668 = vmatpush.msra.mxu0 %v98
  %1669 = vmatpush.msra.mxu0 %v88
  %1670 = vmatpush.msra.mxu0 %v78
  %1671 = vmatpush.msra.mxu0 %v68
  %1672 = vmatpush.msra.mxu0 %v58
  %1673 = vmatpush.msra.mxu0 %v48
  %1674 = vmatpush.msra.mxu0 %v38
  %1675 = vmatpush.msra.mxu0 %v28
  %1676 = vmatpush.msra.mxu0 %v18
  %1677 = vmatmul.f32.gmra.mxu0 %v1325
  %v1678 = vpop.f32.mrf.mxu0
  %v1679 = vadd.f32 %v1302, %v1678
  %1680 = vdwg.mxu0
  %1681 = vmatpush.msra.mxu0 %v328
  %1682 = vmatpush.msra.mxu0 %v318
  %1683 = vmatpush.msra.mxu0 %v308
  %1684 = vmatpush.msra.mxu0 %v298
  %1685 = vmatpush.msra.mxu0 %v288
  %1686 = vmatpush.msra.mxu0 %v278
  %1687 = vmatpush.msra.mxu0 %v268
  %1688 = vmatpush.msra.mxu0 %v258
  %1689 = vmatpush.msra.mxu0 %v248
  %1690 = vmatpush.msra.mxu0 %v238
  %1691 = vmatpush.msra.mxu0 %v228
  %1692 = vmatpush.msra.mxu0 %v218
  %1693 = vmatpush.msra.mxu0 %v208
  %1694 = vmatpush.msra.mxu0 %v198
  %1695 = vmatpush.msra.mxu0 %v188
  %1696 = vmatpush.msra.mxu0 %v178
  %1697 = vmatmul.f32.gmra.mxu0 %v1326
  %v1698 = vpop.f32.mrf.mxu0
  %v1699 = vadd.f32 %v1679, %v1698
  %1700 = vdwg.mxu0
  %1701 = vmatpush.msra.mxu0 %v488
  %1702 = vmatpush.msra.mxu0 %v478
  %1703 = vmatpush.msra.mxu0 %v468
  %1704 = vmatpush.msra.mxu0 %v458
  %1705 = vmatpush.msra.mxu0 %v448
  %1706 = vmatpush.msra.mxu0 %v438
  %1707 = vmatpush.msra.mxu0 %v428
  %1708 = vmatpush.msra.mxu0 %v418
  %1709 = vmatpush.msra.mxu0 %v408
  %1710 = vmatpush.msra.mxu0 %v398
  %1711 = vmatpush.msra.mxu0 %v388
  %1712 = vmatpush.msra.mxu0 %v378
  %1713 = vmatpush.msra.mxu0 %v368
  %1714 = vmatpush.msra.mxu0 %v358
  %1715 = vmatpush.msra.mxu0 %v348
  %1716 = vmatpush.msra.mxu0 %v338
  %1717 = vmatmul.f32.gmra.mxu0 %v1327
  %v1718 = vpop.f32.mrf.mxu0
  %v1719 = vadd.f32 %v1699, %v1718
  %1720 = vdwg.mxu0
  %1721 = vmatpush.msra.mxu0 %v648
  %1722 = vmatpush.msra.mxu0 %v638
  %1723 = vmatpush.msra.mxu0 %v628
  %1724 = vmatpush.msra.mxu0 %v618
  %1725 = vmatpush.msra.mxu0 %v608
  %1726 = vmatpush.msra.mxu0 %v598
  %1727 = vmatpush.msra.mxu0 %v588
  %1728 = vmatpush.msra.mxu0 %v578
  %1729 = vmatpush.msra.mxu0 %v568
  %1730 = vmatpush.msra.mxu0 %v558
  %1731 = vmatpush.msra.mxu0 %v548
  %1732 = vmatpush.msra.mxu0 %v538
  %1733 = vmatpush.msra.mxu0 %v528
  %1734 = vmatpush.msra.mxu0 %v518
  %1735 = vmatpush.msra.mxu0 %v508
  %1736 = vmatpush.msra.mxu0 %v498
  %1737 = vmatmul.f32.gmra.mxu0 %v1328
  %v1738 = vpop.f32.mrf.mxu0
  %v1739 = vadd.f32 %v1719, %v1738
  %1740 = vdwg.mxu0
  %1741 = vmatpush.msra.mxu0 %v808
  %1742 = vmatpush.msra.mxu0 %v798
  %1743 = vmatpush.msra.mxu0 %v788
  %1744 = vmatpush.msra.mxu0 %v778
  %1745 = vmatpush.msra.mxu0 %v768
  %1746 = vmatpush.msra.mxu0 %v758
  %1747 = vmatpush.msra.mxu0 %v748
  %1748 = vmatpush.msra.mxu0 %v738
  %1749 = vmatpush.msra.mxu0 %v728
  %1750 = vmatpush.msra.mxu0 %v718
  %1751 = vmatpush.msra.mxu0 %v708
  %1752 = vmatpush.msra.mxu0 %v698
  %1753 = vmatpush.msra.mxu0 %v688
  %1754 = vmatpush.msra.mxu0 %v678
  %1755 = vmatpush.msra.mxu0 %v668
  %1756 = vmatpush.msra.mxu0 %v658
  %1757 = vmatmul.f32.gmra.mxu0 %v1329
  %v1758 = vpop.f32.mrf.mxu0
  %v1759 = vadd.f32 %v1739, %v1758
  %1760 = vdwg.mxu0
  %1761 = vmatpush.msra.mxu0 %v968
  %1762 = vmatpush.msra.mxu0 %v958
  %1763 = vmatpush.msra.mxu0 %v948
  %1764 = vmatpush.msra.mxu0 %v938
  %1765 = vmatpush.msra.mxu0 %v928
  %1766 = vmatpush.msra.mxu0 %v918
  %1767 = vmatpush.msra.mxu0 %v908
  %1768 = vmatpush.msra.mxu0 %v898
  %1769 = vmatpush.msra.mxu0 %v888
  %1770 = vmatpush.msra.mxu0 %v878
  %1771 = vmatpush.msra.mxu0 %v868
  %1772 = vmatpush.msra.mxu0 %v858
  %1773 = vmatpush.msra.mxu0 %v848
  %1774 = vmatpush.msra.mxu0 %v838
  %1775 = vmatpush.msra.mxu0 %v828
  %1776 = vmatpush.msra.mxu0 %v818
  %1777 = vmatmul.f32.gmra.mxu0 %v1330
  %v1778 = vpop.f32.mrf.mxu0
  %v1779 = vadd.f32 %v1759, %v1778
  %1780 = vdwg.mxu0
  %1781 = vmatpush.msra.mxu0 %v1128
  %1782 = vmatpush.msra.mxu0 %v1118
  %1783 = vmatpush.msra.mxu0 %v1108
  %1784 = vmatpush.msra.mxu0 %v1098
  %1785 = vmatpush.msra.mxu0 %v1088
  %1786 = vmatpush.msra.mxu0 %v1078
  %1787 = vmatpush.msra.mxu0 %v1068
  %1788 = vmatpush.msra.mxu0 %v1058
  %1789 = vmatpush.msra.mxu0 %v1048
  %1790 = vmatpush.msra.mxu0 %v1038
  %1791 = vmatpush.msra.mxu0 %v1028
  %1792 = vmatpush.msra.mxu0 %v1018
  %1793 = vmatpush.msra.mxu0 %v1008
  %1794 = vmatpush.msra.mxu0 %v998
  %1795 = vmatpush.msra.mxu0 %v988
  %1796 = vmatpush.msra.mxu0 %v978
  %1797 = vmatmul.f32.gmra.mxu0 %v1331
  %v1798 = vpop.f32.mrf.mxu0
  %v1799 = vadd.f32 %v1779, %v1798
  %1800 = vdwg.mxu0
  %1801 = vmatpush.msra.mxu0 %v1288
  %1802 = vmatpush.msra.mxu0 %v1278
  %1803 = vmatpush.msra.mxu0 %v1268
  %1804 = vmatpush.msra.mxu0 %v1258
  %1805 = vmatpush.msra.mxu0 %v1248
  %1806 = vmatpush.msra.mxu0 %v1238
  %1807 = vmatpush.msra.mxu0 %v1228
  %1808 = vmatpush.msra.mxu0 %v1218
  %1809 = vmatpush.msra.mxu0 %v1208
  %1810 = vmatpush.msra.mxu0 %v1198
  %1811 = vmatpush.msra.mxu0 %v1188
  %1812 = vmatpush.msra.mxu0 %v1178
  %1813 = vmatpush.msra.mxu0 %v1168
  %1814 = vmatpush.msra.mxu0 %v1158
  %1815 = vmatpush.msra.mxu0 %v1148
  %1816 = vmatpush.msra.mxu0 %v1138
  %1817 = vmatmul.f32.gmra.mxu0 %v1332
  %v1818 = vpop.f32.mrf.mxu0
  %v1819 = vadd.f32 %v1799, %v1818
  %1820 = vdwg.mxu0
  %1821 = vmatpush.msra.mxu0 %v169
  %1822 = vmatpush.msra.mxu0 %v159
  %1823 = vmatpush.msra.mxu0 %v149
  %1824 = vmatpush.msra.mxu0 %v139
  %1825 = vmatpush.msra.mxu0 %v129
  %1826 = vmatpush.msra.mxu0 %v119
  %1827 = vmatpush.msra.mxu0 %v109
  %1828 = vmatpush.msra.mxu0 %v99
  %1829 = vmatpush.msra.mxu0 %v89
  %1830 = vmatpush.msra.mxu0 %v79
  %1831 = vmatpush.msra.mxu0 %v69
  %1832 = vmatpush.msra.mxu0 %v59
  %1833 = vmatpush.msra.mxu0 %v49
  %1834 = vmatpush.msra.mxu0 %v39
  %1835 = vmatpush.msra.mxu0 %v29
  %1836 = vmatpush.msra.mxu0 %v19
  %1837 = vmatmul.f32.gmra.mxu0 %v1325
  %v1838 = vpop.f32.mrf.mxu0
  %v1839 = vadd.f32 %v1303, %v1838
  %1840 = vdwg.mxu0
  %1841 = vmatpush.msra.mxu0 %v329
  %1842 = vmatpush.msra.mxu0 %v319
  %1843 = vmatpush.msra.mxu0 %v309
  %1844 = vmatpush.msra.mxu0 %v299
  %1845 = vmatpush.msra.mxu0 %v289
  %1846 = vmatpush.msra.mxu0 %v279
  %1847 = vmatpush.msra.mxu0 %v269
  %1848 = vmatpush.msra.mxu0 %v259
  %1849 = vmatpush.msra.mxu0 %v249
  %1850 = vmatpush.msra.mxu0 %v239
  %1851 = vmatpush.msra.mxu0 %v229
  %1852 = vmatpush.msra.mxu0 %v219
  %1853 = vmatpush.msra.mxu0 %v209
  %1854 = vmatpush.msra.mxu0 %v199
  %1855 = vmatpush.msra.mxu0 %v189
  %1856 = vmatpush.msra.mxu0 %v179
  %1857 = vmatmul.f32.gmra.mxu0 %v1326
  %v1858 = vpop.f32.mrf.mxu0
  %v1859 = vadd.f32 %v1839, %v1858
  %1860 = vdwg.mxu0
  %1861 = vmatpush.msra.mxu0 %v489
  %1862 = vmatpush.msra.mxu0 %v479
  %1863 = vmatpush.msra.mxu0 %v469
  %1864 = vmatpush.msra.mxu0 %v459
  %1865 = vmatpush.msra.mxu0 %v449
  %1866 = vmatpush.msra.mxu0 %v439
  %1867 = vmatpush.msra.mxu0 %v429
  %1868 = vmatpush.msra.mxu0 %v419
  %1869 = vmatpush.msra.mxu0 %v409
  %1870 = vmatpush.msra.mxu0 %v399
  %1871 = vmatpush.msra.mxu0 %v389
  %1872 = vmatpush.msra.mxu0 %v379
  %1873 = vmatpush.msra.mxu0 %v369
  %1874 = vmatpush.msra.mxu0 %v359
  %1875 = vmatpush.msra.mxu0 %v349
  %1876 = vmatpush.msra.mxu0 %v339
  %1877 = vmatmul.f32.gmra.mxu0 %v1327
  %v1878 = vpop.f32.mrf.mxu0
  %v1879 = vadd.f32 %v1859, %v1878
  %1880 = vdwg.mxu0
  %1881 = vmatpush.msra.mxu0 %v649
  %1882 = vmatpush.msra.mxu0 %v639
  %1883 = vmatpush.msra.mxu0 %v629
  %1884 = vmatpush.msra.mxu0 %v619
  %1885 = vmatpush.msra.mxu0 %v609
  %1886 = vmatpush.msra.mxu0 %v599
  %1887 = vmatpush.msra.mxu0 %v589
  %1888 = vmatpush.msra.mxu0 %v579
  %1889 = vmatpush.msra.mxu0 %v569
  %1890 = vmatpush.msra.mxu0 %v559
  %1891 = vmatpush.msra.mxu0 %v549
  %1892 = vmatpush.msra.mxu0 %v539
  %1893 = vmatpush.msra.mxu0 %v529
  %1894 = vmatpush.msra.mxu0 %v519
  %1895 = vmatpush.msra.mxu0 %v509
  %1896 = vmatpush.msra.mxu0 %v499
  %1897 = vmatmul.f32.gmra.mxu0 %v1328
  %v1898 = vpop.f32.mrf.mxu0
  %v1899 = vadd.f32 %v1879, %v1898
  %1900 = vdwg.mxu0
  %1901 = vmatpush.msra.mxu0 %v809
  %1902 = vmatpush.msra.mxu0 %v799
  %1903 = vmatpush.msra.mxu0 %v789
  %1904 = vmatpush.msra.mxu0 %v779
  %1905 = vmatpush.msra.mxu0 %v769
  %1906 = vmatpush.msra.mxu0 %v759
  %1907 = vmatpush.msra.mxu0 %v749
  %1908 = vmatpush.msra.mxu0 %v739
  %1909 = vmatpush.msra.mxu0 %v729
  %1910 = vmatpush.msra.mxu0 %v719
  %1911 = vmatpush.msra.mxu0 %v709
  %1912 = vmatpush.msra.mxu0 %v699
  %1913 = vmatpush.msra.mxu0 %v689
  %1914 = vmatpush.msra.mxu0 %v679
  %1915 = vmatpush.msra.mxu0 %v669
  %1916 = vmatpush.msra.mxu0 %v659
  %1917 = vmatmul.f32.gmra.mxu0 %v1329
  %v1918 = vpop.f32.mrf.mxu0
  %v1919 = vadd.f32 %v1899, %v1918
  %1920 = vdwg.mxu0
  %1921 = vmatpush.msra.mxu0 %v969
  %1922 = vmatpush.msra.mxu0 %v959
  %1923 = vmatpush.msra.mxu0 %v949
  %1924 = vmatpush.msra.mxu0 %v939
  %1925 = vmatpush.msra.mxu0 %v929
  %1926 = vmatpush.msra.mxu0 %v919
  %1927 = vmatpush.msra.mxu0 %v909
  %1928 = vmatpush.msra.mxu0 %v899
  %1929 = vmatpush.msra.mxu0 %v889
  %1930 = vmatpush.msra.mxu0 %v879
  %1931 = vmatpush.msra.mxu0 %v869
  %1932 = vmatpush.msra.mxu0 %v859
  %1933 = vmatpush.msra.mxu0 %v849
  %1934 = vmatpush.msra.mxu0 %v839
  %1935 = vmatpush.msra.mxu0 %v829
  %1936 = vmatpush.msra.mxu0 %v819
  %1937 = vmatmul.f32.gmra.mxu0 %v1330
  %v1938 = vpop.f32.mrf.mxu0
  %v1939 = vadd.f32 %v1919, %v1938
  %1940 = vdwg.mxu0
  %1941 = vmatpush.msra.mxu0 %v1129
  %1942 = vmatpush.msra.mxu0 %v1119
  %1943 = vmatpush.msra.mxu0 %v1109
  %1944 = vmatpush.msra.mxu0 %v1099
  %1945 = vmatpush.msra.mxu0 %v1089
  %1946 = vmatpush.msra.mxu0 %v1079
  %1947 = vmatpush.msra.mxu0 %v1069
  %1948 = vmatpush.msra.mxu0 %v1059
  %1949 = vmatpush.msra.mxu0 %v1049
  %1950 = vmatpush.msra.mxu0 %v1039
  %1951 = vmatpush.msra.mxu0 %v1029
  %1952 = vmatpush.msra.mxu0 %v1019
  %1953 = vmatpush.msra.mxu0 %v1009
  %1954 = vmatpush.msra.mxu0 %v999
  %1955 = vmatpush.msra.mxu0 %v989
  %1956 = vmatpush.msra.mxu0 %v979
  %1957 = vmatmul.f32.gmra.mxu0 %v1331
  %v1958 = vpop.f32.mrf.mxu0
  %v1959 = vadd.f32 %v1939, %v1958
  %1960 = vdwg.mxu0
  %1961 = vmatpush.msra.mxu0 %v1289
  %1962 = vmatpush.msra.mxu0 %v1279
  %1963 = vmatpush.msra.mxu0 %v1269
  %1964 = vmatpush.msra.mxu0 %v1259
  %1965 = vmatpush.msra.mxu0 %v1249
  %1966 = vmatpush.msra.mxu0 %v1239
  %1967 = vmatpush.msra.mxu0 %v1229
  %1968 = vmatpush.msra.mxu0 %v1219
  %1969 = vmatpush.msra.mxu0 %v1209
  %1970 = vmatpush.msra.mxu0 %v1199
  %1971 = vmatpush.msra.mxu0 %v1189
  %1972 = vmatpush.msra.mxu0 %v1179
  %1973 = vmatpush.msra.mxu0 %v1169
  %1974 = vmatpush.msra.mxu0 %v1159
  %1975 = vmatpush.msra.mxu0 %v1149
  %1976 = vmatpush.msra.mxu0 %v1139
  %1977 = vmatmul.f32.gmra.mxu0 %v1332
  %v1978 = vpop.f32.mrf.mxu0
  %v1979 = vadd.f32 %v1959, %v1978
  %1980 = vdwg.mxu0
  %1981 = vmatpush.msra.mxu0 %v170
  %1982 = vmatpush.msra.mxu0 %v160
  %1983 = vmatpush.msra.mxu0 %v150
  %1984 = vmatpush.msra.mxu0 %v140
  %1985 = vmatpush.msra.mxu0 %v130
  %1986 = vmatpush.msra.mxu0 %v120
  %1987 = vmatpush.msra.mxu0 %v110
  %1988 = vmatpush.msra.mxu0 %v100
  %1989 = vmatpush.msra.mxu0 %v90
  %1990 = vmatpush.msra.mxu0 %v80
  %1991 = vmatpush.msra.mxu0 %v70
  %1992 = vmatpush.msra.mxu0 %v60
  %1993 = vmatpush.msra.mxu0 %v50
  %1994 = vmatpush.msra.mxu0 %v40
  %1995 = vmatpush.msra.mxu0 %v30
  %1996 = vmatpush.msra.mxu0 %v20
  %1997 = vmatmul.f32.gmra.mxu0 %v1325
  %v1998 = vpop.f32.mrf.mxu0
  %v1999 = vadd.f32 %v1304, %v1998
  %2000 = vdwg.mxu0
  %2001 = vmatpush.msra.mxu0 %v330
  %2002 = vmatpush.msra.mxu0 %v320
  %2003 = vmatpush.msra.mxu0 %v310
  %2004 = vmatpush.msra.mxu0 %v300
  %2005 = vmatpush.msra.mxu0 %v290
  %2006 = vmatpush.msra.mxu0 %v280
  %2007 = vmatpush.msra.mxu0 %v270
  %2008 = vmatpush.msra.mxu0 %v260
  %2009 = vmatpush.msra.mxu0 %v250
  %2010 = vmatpush.msra.mxu0 %v240
  %2011 = vmatpush.msra.mxu0 %v230
  %2012 = vmatpush.msra.mxu0 %v220
  %2013 = vmatpush.msra.mxu0 %v210
  %2014 = vmatpush.msra.mxu0 %v200
  %2015 = vmatpush.msra.mxu0 %v190
  %2016 = vmatpush.msra.mxu0 %v180
  %2017 = vmatmul.f32.gmra.mxu0 %v1326
  %v2018 = vpop.f32.mrf.mxu0
  %v2019 = vadd.f32 %v1999, %v2018
  %2020 = vdwg.mxu0
  %2021 = vmatpush.msra.mxu0 %v490
  %2022 = vmatpush.msra.mxu0 %v480
  %2023 = vmatpush.msra.mxu0 %v470
  %2024 = vmatpush.msra.mxu0 %v460
  %2025 = vmatpush.msra.mxu0 %v450
  %2026 = vmatpush.msra.mxu0 %v440
  %2027 = vmatpush.msra.mxu0 %v430
  %2028 = vmatpush.msra.mxu0 %v420
  %2029 = vmatpush.msra.mxu0 %v410
  %2030 = vmatpush.msra.mxu0 %v400
  %2031 = vmatpush.msra.mxu0 %v390
  %2032 = vmatpush.msra.mxu0 %v380
  %2033 = vmatpush.msra.mxu0 %v370
  %2034 = vmatpush.msra.mxu0 %v360
  %2035 = vmatpush.msra.mxu0 %v350
  %2036 = vmatpush.msra.mxu0 %v340
  %2037 = vmatmul.f32.gmra.mxu0 %v1327
  %v2038 = vpop.f32.mrf.mxu0
  %v2039 = vadd.f32 %v2019, %v2038
  %2040 = vdwg.mxu0
  %2041 = vmatpush.msra.mxu0 %v650
  %2042 = vmatpush.msra.mxu0 %v640
  %2043 = vmatpush.msra.mxu0 %v630
  %2044 = vmatpush.msra.mxu0 %v620
  %2045 = vmatpush.msra.mxu0 %v610
  %2046 = vmatpush.msra.mxu0 %v600
  %2047 = vmatpush.msra.mxu0 %v590
  %2048 = vmatpush.msra.mxu0 %v580
  %2049 = vmatpush.msra.mxu0 %v570
  %2050 = vmatpush.msra.mxu0 %v560
  %2051 = vmatpush.msra.mxu0 %v550
  %2052 = vmatpush.msra.mxu0 %v540
  %2053 = vmatpush.msra.mxu0 %v530
  %2054 = vmatpush.msra.mxu0 %v520
  %2055 = vmatpush.msra.mxu0 %v510
  %2056 = vmatpush.msra.mxu0 %v500
  %2057 = vmatmul.f32.gmra.mxu0 %v1328
  %v2058 = vpop.f32.mrf.mxu0
  %v2059 = vadd.f32 %v2039, %v2058
  %2060 = vdwg.mxu0
  %2061 = vmatpush.msra.mxu0 %v810
  %2062 = vmatpush.msra.mxu0 %v800
  %2063 = vmatpush.msra.mxu0 %v790
  %2064 = vmatpush.msra.mxu0 %v780
  %2065 = vmatpush.msra.mxu0 %v770
  %2066 = vmatpush.msra.mxu0 %v760
  %2067 = vmatpush.msra.mxu0 %v750
  %2068 = vmatpush.msra.mxu0 %v740
  %2069 = vmatpush.msra.mxu0 %v730
  %2070 = vmatpush.msra.mxu0 %v720
  %2071 = vmatpush.msra.mxu0 %v710
  %2072 = vmatpush.msra.mxu0 %v700
  %2073 = vmatpush.msra.mxu0 %v690
  %2074 = vmatpush.msra.mxu0 %v680
  %2075 = vmatpush.msra.mxu0 %v670
  %2076 = vmatpush.msra.mxu0 %v660
  %2077 = vmatmul.f32.gmra.mxu0 %v1329
  %v2078 = vpop.f32.mrf.mxu0
  %v2079 = vadd.f32 %v2059, %v2078
  %2080 = vdwg.mxu0
  %2081 = vmatpush.msra.mxu0 %v970
  %2082 = vmatpush.msra.mxu0 %v960
  %2083 = vmatpush.msra.mxu0 %v950
  %2084 = vmatpush.msra.mxu0 %v940
  %2085 = vmatpush.msra.mxu0 %v930
  %2086 = vmatpush.msra.mxu0 %v920
  %2087 = vmatpush.msra.mxu0 %v910
  %2088 = vmatpush.msra.mxu0 %v900
  %2089 = vmatpush.msra.mxu0 %v890
  %2090 = vmatpush.msra.mxu0 %v880
  %2091 = vmatpush.msra.mxu0 %v870
  %2092 = vmatpush.msra.mxu0 %v860
  %2093 = vmatpush.msra.mxu0 %v850
  %2094 = vmatpush.msra.mxu0 %v840
  %2095 = vmatpush.msra.mxu0 %v830
  %2096 = vmatpush.msra.mxu0 %v820
  %2097 = vmatmul.f32.gmra.mxu0 %v1330
  %v2098 = vpop.f32.mrf.mxu0
  %v2099 = vadd.f32 %v2079, %v2098
  %2100 = vdwg.mxu0
  %2101 = vmatpush.msra.mxu0 %v1130
  %2102 = vmatpush.msra.mxu0 %v1120
  %2103 = vmatpush.msra.mxu0 %v1110
  %2104 = vmatpush.msra.mxu0 %v1100
  %2105 = vmatpush.msra.mxu0 %v1090
  %2106 = vmatpush.msra.mxu0 %v1080
  %2107 = vmatpush.msra.mxu0 %v1070
  %2108 = vmatpush.msra.mxu0 %v1060
  %2109 = vmatpush.msra.mxu0 %v1050
  %2110 = vmatpush.msra.mxu0 %v1040
  %2111 = vmatpush.msra.mxu0 %v1030
  %2112 = vmatpush.msra.mxu0 %v1020
  %2113 = vmatpush.msra.mxu0 %v1010
  %2114 = vmatpush.msra.mxu0 %v1000
  %2115 = vmatpush.msra.mxu0 %v990
  %2116 = vmatpush.msra.mxu0 %v980
  %2117 = vmatmul.f32.gmra.mxu0 %v1331
  %v2118 = vpop.f32.mrf.mxu0
  %v2119 = vadd.f32 %v2099, %v2118
  %2120 = vdwg.mxu0
  %2121 = vmatpush.msra.mxu0 %v1290
  %2122 = vmatpush.msra.mxu0 %v1280
  %2123 = vmatpush.msra.mxu0 %v1270
  %2124 = vmatpush.msra.mxu0 %v1260
  %2125 = vmatpush.msra.mxu0 %v1250
  %2126 = vmatpush.msra.mxu0 %v1240
  %2127 = vmatpush.msra.mxu0 %v1230
  %2128 = vmatpush.msra.mxu0 %v1220
  %2129 = vmatpush.msra.mxu0 %v1210
  %2130 = vmatpush.msra.mxu0 %v1200
  %2131 = vmatpush.msra.mxu0 %v1190
  %2132 = vmatpush.msra.mxu0 %v1180
  %2133 = vmatpush.msra.mxu0 %v1170
  %2134 = vmatpush.msra.mxu0 %v1160
  %2135 = vmatpush.msra.mxu0 %v1150
  %2136 = vmatpush.msra.mxu0 %v1140
  %2137 = vmatmul.f32.gmra.mxu0 %v1332
  %v2138 = vpop.f32.mrf.mxu0
  %v2139 = vadd.f32 %v2119, %v2138
  %2140 = vdwg.mxu0
  %2141 = vmatpush.msra.mxu0 %v171
  %2142 = vmatpush.msra.mxu0 %v161
  %2143 = vmatpush.msra.mxu0 %v151
  %2144 = vmatpush.msra.mxu0 %v141
  %2145 = vmatpush.msra.mxu0 %v131
  %2146 = vmatpush.msra.mxu0 %v121
  %2147 = vmatpush.msra.mxu0 %v111
  %2148 = vmatpush.msra.mxu0 %v101
  %2149 = vmatpush.msra.mxu0 %v91
  %2150 = vmatpush.msra.mxu0 %v81
  %2151 = vmatpush.msra.mxu0 %v71
  %2152 = vmatpush.msra.mxu0 %v61
  %2153 = vmatpush.msra.mxu0 %v51
  %2154 = vmatpush.msra.mxu0 %v41
  %2155 = vmatpush.msra.mxu0 %v31
  %2156 = vmatpush.msra.mxu0 %v21
  %2157 = vmatmul.f32.gmra.mxu0 %v1325
  %v2158 = vpop.f32.mrf.mxu0
  %v2159 = vadd.f32 %v1305, %v2158
  %2160 = vdwg.mxu0
  %2161 = vmatpush.msra.mxu0 %v331
  %2162 = vmatpush.msra.mxu0 %v321
  %2163 = vmatpush.msra.mxu0 %v311
  %2164 = vmatpush.msra.mxu0 %v301
  %2165 = vmatpush.msra.mxu0 %v291
  %2166 = vmatpush.msra.mxu0 %v281
  %2167 = vmatpush.msra.mxu0 %v271
  %2168 = vmatpush.msra.mxu0 %v261
  %2169 = vmatpush.msra.mxu0 %v251
  %2170 = vmatpush.msra.mxu0 %v241
  %2171 = vmatpush.msra.mxu0 %v231
  %2172 = vmatpush.msra.mxu0 %v221
  %2173 = vmatpush.msra.mxu0 %v211
  %2174 = vmatpush.msra.mxu0 %v201
  %2175 = vmatpush.msra.mxu0 %v191
  %2176 = vmatpush.msra.mxu0 %v181
  %2177 = vmatmul.f32.gmra.mxu0 %v1326
  %v2178 = vpop.f32.mrf.mxu0
  %v2179 = vadd.f32 %v2159, %v2178
  %2180 = vdwg.mxu0
  %2181 = vmatpush.msra.mxu0 %v491
  %2182 = vmatpush.msra.mxu0 %v481
  %2183 = vmatpush.msra.mxu0 %v471
  %2184 = vmatpush.msra.mxu0 %v461
  %2185 = vmatpush.msra.mxu0 %v451
  %2186 = vmatpush.msra.mxu0 %v441
  %2187 = vmatpush.msra.mxu0 %v431
  %2188 = vmatpush.msra.mxu0 %v421
  %2189 = vmatpush.msra.mxu0 %v411
  %2190 = vmatpush.msra.mxu0 %v401
  %2191 = vmatpush.msra.mxu0 %v391
  %2192 = vmatpush.msra.mxu0 %v381
  %2193 = vmatpush.msra.mxu0 %v371
  %2194 = vmatpush.msra.mxu0 %v361
  %2195 = vmatpush.msra.mxu0 %v351
  %2196 = vmatpush.msra.mxu0 %v341
  %2197 = vmatmul.f32.gmra.mxu0 %v1327
  %v2198 = vpop.f32.mrf.mxu0
  %v2199 = vadd.f32 %v2179, %v2198
  %2200 = vdwg.mxu0
  %2201 = vmatpush.msra.mxu0 %v651
  %2202 = vmatpush.msra.mxu0 %v641
  %2203 = vmatpush.msra.mxu0 %v631
  %2204 = vmatpush.msra.mxu0 %v621
  %2205 = vmatpush.msra.mxu0 %v611
  %2206 = vmatpush.msra.mxu0 %v601
  %2207 = vmatpush.msra.mxu0 %v591
  %2208 = vmatpush.msra.mxu0 %v581
  %2209 = vmatpush.msra.mxu0 %v571
  %2210 = vmatpush.msra.mxu0 %v561
  %2211 = vmatpush.msra.mxu0 %v551
  %2212 = vmatpush.msra.mxu0 %v541
  %2213 = vmatpush.msra.mxu0 %v531
  %2214 = vmatpush.msra.mxu0 %v521
  %2215 = vmatpush.msra.mxu0 %v511
  %2216 = vmatpush.msra.mxu0 %v501
  %2217 = vmatmul.f32.gmra.mxu0 %v1328
  %v2218 = vpop.f32.mrf.mxu0
  %v2219 = vadd.f32 %v2199, %v2218
  %2220 = vdwg.mxu0
  %2221 = vmatpush.msra.mxu0 %v811
  %2222 = vmatpush.msra.mxu0 %v801
  %2223 = vmatpush.msra.mxu0 %v791
  %2224 = vmatpush.msra.mxu0 %v781
  %2225 = vmatpush.msra.mxu0 %v771
  %2226 = vmatpush.msra.mxu0 %v761
  %2227 = vmatpush.msra.mxu0 %v751
  %2228 = vmatpush.msra.mxu0 %v741
  %2229 = vmatpush.msra.mxu0 %v731
  %2230 = vmatpush.msra.mxu0 %v721
  %2231 = vmatpush.msra.mxu0 %v711
  %2232 = vmatpush.msra.mxu0 %v701
  %2233 = vmatpush.msra.mxu0 %v691
  %2234 = vmatpush.msra.mxu0 %v681
  %2235 = vmatpush.msra.mxu0 %v671
  %2236 = vmatpush.msra.mxu0 %v661
  %2237 = vmatmul.f32.gmra.mxu0 %v1329
  %v2238 = vpop.f32.mrf.mxu0
  %v2239 = vadd.f32 %v2219, %v2238
  %2240 = vdwg.mxu0
  %2241 = vmatpush.msra.mxu0 %v971
  %2242 = vmatpush.msra.mxu0 %v961
  %2243 = vmatpush.msra.mxu0 %v951
  %2244 = vmatpush.msra.mxu0 %v941
  %2245 = vmatpush.msra.mxu0 %v931
  %2246 = vmatpush.msra.mxu0 %v921
  %2247 = vmatpush.msra.mxu0 %v911
  %2248 = vmatpush.msra.mxu0 %v901
  %2249 = vmatpush.msra.mxu0 %v891
  %2250 = vmatpush.msra.mxu0 %v881
  %2251 = vmatpush.msra.mxu0 %v871
  %2252 = vmatpush.msra.mxu0 %v861
  %2253 = vmatpush.msra.mxu0 %v851
  %2254 = vmatpush.msra.mxu0 %v841
  %2255 = vmatpush.msra.mxu0 %v831
  %2256 = vmatpush.msra.mxu0 %v821
  %2257 = vmatmul.f32.gmra.mxu0 %v1330
  %v2258 = vpop.f32.mrf.mxu0
  %v2259 = vadd.f32 %v2239, %v2258
  %2260 = vdwg.mxu0
  %2261 = vmatpush.msra.mxu0 %v1131
  %2262 = vmatpush.msra.mxu0 %v1121
  %2263 = vmatpush.msra.mxu0 %v1111
  %2264 = vmatpush.msra.mxu0 %v1101
  %2265 = vmatpush.msra.mxu0 %v1091
  %2266 = vmatpush.msra.mxu0 %v1081
  %2267 = vmatpush.msra.mxu0 %v1071
  %2268 = vmatpush.msra.mxu0 %v1061
  %2269 = vmatpush.msra.mxu0 %v1051
  %2270 = vmatpush.msra.mxu0 %v1041
  %2271 = vmatpush.msra.mxu0 %v1031
  %2272 = vmatpush.msra.mxu0 %v1021
  %2273 = vmatpush.msra.mxu0 %v1011
  %2274 = vmatpush.msra.mxu0 %v1001
  %2275 = vmatpush.msra.mxu0 %v991
  %2276 = vmatpush.msra.mxu0 %v981
  %2277 = vmatmul.f32.gmra.mxu0 %v1331
  %v2278 = vpop.f32.mrf.mxu0
  %v2279 = vadd.f32 %v2259, %v2278
  %2280 = vdwg.mxu0
  %2281 = vmatpush.msra.mxu0 %v1291
  %2282 = vmatpush.msra.mxu0 %v1281
  %2283 = vmatpush.msra.mxu0 %v1271
  %2284 = vmatpush.msra.mxu0 %v1261
  %2285 = vmatpush.msra.mxu0 %v1251
  %2286 = vmatpush.msra.mxu0 %v1241
  %2287 = vmatpush.msra.mxu0 %v1231
  %2288 = vmatpush.msra.mxu0 %v1221
  %2289 = vmatpush.msra.mxu0 %v1211
  %2290 = vmatpush.msra.mxu0 %v1201
  %2291 = vmatpush.msra.mxu0 %v1191
  %2292 = vmatpush.msra.mxu0 %v1181
  %2293 = vmatpush.msra.mxu0 %v1171
  %2294 = vmatpush.msra.mxu0 %v1161
  %2295 = vmatpush.msra.mxu0 %v1151
  %2296 = vmatpush.msra.mxu0 %v1141
  %2297 = vmatmul.f32.gmra.mxu0 %v1332
  %v2298 = vpop.f32.mrf.mxu0
  %v2299 = vadd.f32 %v2279, %v2298
  %2300 = vdwg.mxu0
  %2301 = vmatpush.msra.mxu0 %v172
  %2302 = vmatpush.msra.mxu0 %v162
  %2303 = vmatpush.msra.mxu0 %v152
  %2304 = vmatpush.msra.mxu0 %v142
  %2305 = vmatpush.msra.mxu0 %v132
  %2306 = vmatpush.msra.mxu0 %v122
  %2307 = vmatpush.msra.mxu0 %v112
  %2308 = vmatpush.msra.mxu0 %v102
  %2309 = vmatpush.msra.mxu0 %v92
  %2310 = vmatpush.msra.mxu0 %v82
  %2311 = vmatpush.msra.mxu0 %v72
  %2312 = vmatpush.msra.mxu0 %v62
  %2313 = vmatpush.msra.mxu0 %v52
  %2314 = vmatpush.msra.mxu0 %v42
  %2315 = vmatpush.msra.mxu0 %v32
  %2316 = vmatpush.msra.mxu0 %v22
  %2317 = vmatmul.f32.gmra.mxu0 %v1325
  %v2318 = vpop.f32.mrf.mxu0
  %v2319 = vadd.f32 %v1306, %v2318
  %2320 = vdwg.mxu0
  %2321 = vmatpush.msra.mxu0 %v332
  %2322 = vmatpush.msra.mxu0 %v322
  %2323 = vmatpush.msra.mxu0 %v312
  %2324 = vmatpush.msra.mxu0 %v302
  %2325 = vmatpush.msra.mxu0 %v292
  %2326 = vmatpush.msra.mxu0 %v282
  %2327 = vmatpush.msra.mxu0 %v272
  %2328 = vmatpush.msra.mxu0 %v262
  %2329 = vmatpush.msra.mxu0 %v252
  %2330 = vmatpush.msra.mxu0 %v242
  %2331 = vmatpush.msra.mxu0 %v232
  %2332 = vmatpush.msra.mxu0 %v222
  %2333 = vmatpush.msra.mxu0 %v212
  %2334 = vmatpush.msra.mxu0 %v202
  %2335 = vmatpush.msra.mxu0 %v192
  %2336 = vmatpush.msra.mxu0 %v182
  %2337 = vmatmul.f32.gmra.mxu0 %v1326
  %v2338 = vpop.f32.mrf.mxu0
  %v2339 = vadd.f32 %v2319, %v2338
  %2340 = vdwg.mxu0
  %2341 = vmatpush.msra.mxu0 %v492
  %2342 = vmatpush.msra.mxu0 %v482
  %2343 = vmatpush.msra.mxu0 %v472
  %2344 = vmatpush.msra.mxu0 %v462
  %2345 = vmatpush.msra.mxu0 %v452
  %2346 = vmatpush.msra.mxu0 %v442
  %2347 = vmatpush.msra.mxu0 %v432
  %2348 = vmatpush.msra.mxu0 %v422
  %2349 = vmatpush.msra.mxu0 %v412
  %2350 = vmatpush.msra.mxu0 %v402
  %2351 = vmatpush.msra.mxu0 %v392
  %2352 = vmatpush.msra.mxu0 %v382
  %2353 = vmatpush.msra.mxu0 %v372
  %2354 = vmatpush.msra.mxu0 %v362
  %2355 = vmatpush.msra.mxu0 %v352
  %2356 = vmatpush.msra.mxu0 %v342
  %2357 = vmatmul.f32.gmra.mxu0 %v1327
  %v2358 = vpop.f32.mrf.mxu0
  %v2359 = vadd.f32 %v2339, %v2358
  %2360 = vdwg.mxu0
  %2361 = vmatpush.msra.mxu0 %v652
  %2362 = vmatpush.msra.mxu0 %v642
  %2363 = vmatpush.msra.mxu0 %v632
  %2364 = vmatpush.msra.mxu0 %v622
  %2365 = vmatpush.msra.mxu0 %v612
  %2366 = vmatpush.msra.mxu0 %v602
  %2367 = vmatpush.msra.mxu0 %v592
  %2368 = vmatpush.msra.mxu0 %v582
  %2369 = vmatpush.msra.mxu0 %v572
  %2370 = vmatpush.msra.mxu0 %v562
  %2371 = vmatpush.msra.mxu0 %v552
  %2372 = vmatpush.msra.mxu0 %v542
  %2373 = vmatpush.msra.mxu0 %v532
  %2374 = vmatpush.msra.mxu0 %v522
  %2375 = vmatpush.msra.mxu0 %v512
  %2376 = vmatpush.msra.mxu0 %v502
  %2377 = vmatmul.f32.gmra.mxu0 %v1328
  %v2378 = vpop.f32.mrf.mxu0
  %v2379 = vadd.f32 %v2359, %v2378
  %2380 = vdwg.mxu0
  %2381 = vmatpush.msra.mxu0 %v812
  %2382 = vmatpush.msra.mxu0 %v802
  %2383 = vmatpush.msra.mxu0 %v792
  %2384 = vmatpush.msra.mxu0 %v782
  %2385 = vmatpush.msra.mxu0 %v772
  %2386 = vmatpush.msra.mxu0 %v762
  %2387 = vmatpush.msra.mxu0 %v752
  %2388 = vmatpush.msra.mxu0 %v742
  %2389 = vmatpush.msra.mxu0 %v732
  %2390 = vmatpush.msra.mxu0 %v722
  %2391 = vmatpush.msra.mxu0 %v712
  %2392 = vmatpush.msra.mxu0 %v702
  %2393 = vmatpush.msra.mxu0 %v692
  %2394 = vmatpush.msra.mxu0 %v682
  %2395 = vmatpush.msra.mxu0 %v672
  %2396 = vmatpush.msra.mxu0 %v662
  %2397 = vmatmul.f32.gmra.mxu0 %v1329
  %v2398 = vpop.f32.mrf.mxu0
  %v2399 = vadd.f32 %v2379, %v2398
  %2400 = vdwg.mxu0
  %2401 = vmatpush.msra.mxu0 %v972
  %2402 = vmatpush.msra.mxu0 %v962
  %2403 = vmatpush.msra.mxu0 %v952
  %2404 = vmatpush.msra.mxu0 %v942
  %2405 = vmatpush.msra.mxu0 %v932
  %2406 = vmatpush.msra.mxu0 %v922
  %2407 = vmatpush.msra.mxu0 %v912
  %2408 = vmatpush.msra.mxu0 %v902
  %2409 = vmatpush.msra.mxu0 %v892
  %2410 = vmatpush.msra.mxu0 %v882
  %2411 = vmatpush.msra.mxu0 %v872
  %2412 = vmatpush.msra.mxu0 %v862
  %2413 = vmatpush.msra.mxu0 %v852
  %2414 = vmatpush.msra.mxu0 %v842
  %2415 = vmatpush.msra.mxu0 %v832
  %2416 = vmatpush.msra.mxu0 %v822
  %2417 = vmatmul.f32.gmra.mxu0 %v1330
  %v2418 = vpop.f32.mrf.mxu0
  %v2419 = vadd.f32 %v2399, %v2418
  %2420 = vdwg.mxu0
  %2421 = vmatpush.msra.mxu0 %v1132
  %2422 = vmatpush.msra.mxu0 %v1122
  %2423 = vmatpush.msra.mxu0 %v1112
  %2424 = vmatpush.msra.mxu0 %v1102
  %2425 = vmatpush.msra.mxu0 %v1092
  %2426 = vmatpush.msra.mxu0 %v1082
  %2427 = vmatpush.msra.mxu0 %v1072
  %2428 = vmatpush.msra.mxu0 %v1062
  %2429 = vmatpush.msra.mxu0 %v1052
  %2430 = vmatpush.msra.mxu0 %v1042
  %2431 = vmatpush.msra.mxu0 %v1032
  %2432 = vmatpush.msra.mxu0 %v1022
  %2433 = vmatpush.msra.mxu0 %v1012
  %2434 = vmatpush.msra.mxu0 %v1002
  %2435 = vmatpush.msra.mxu0 %v992
  %2436 = vmatpush.msra.mxu0 %v982
  %2437 = vmatmul.f32.gmra.mxu0 %v1331
  %v2438 = vpop.f32.mrf.mxu0
  %v2439 = vadd.f32 %v2419, %v2438
  %2440 = vdwg.mxu0
  %2441 = vmatpush.msra.mxu0 %v1292
  %2442 = vmatpush.msra.mxu0 %v1282
  %2443 = vmatpush.msra.mxu0 %v1272
  %2444 = vmatpush.msra.mxu0 %v1262
  %2445 = vmatpush.msra.mxu0 %v1252
  %2446 = vmatpush.msra.mxu0 %v1242
  %2447 = vmatpush.msra.mxu0 %v1232
  %2448 = vmatpush.msra.mxu0 %v1222
  %2449 = vmatpush.msra.mxu0 %v1212
  %2450 = vmatpush.msra.mxu0 %v1202
  %2451 = vmatpush.msra.mxu0 %v1192
  %2452 = vmatpush.msra.mxu0 %v1182
  %2453 = vmatpush.msra.mxu0 %v1172
  %2454 = vmatpush.msra.mxu0 %v1162
  %2455 = vmatpush.msra.mxu0 %v1152
  %2456 = vmatpush.msra.mxu0 %v1142
  %2457 = vmatmul.f32.gmra.mxu0 %v1332
  %v2458 = vpop.f32.mrf.mxu0
  %v2459 = vadd.f32 %v2439, %v2458
  %2460 = vdwg.mxu0
  %2461 = vmatpush.msra.mxu0 %v173
  %2462 = vmatpush.msra.mxu0 %v163
  %2463 = vmatpush.msra.mxu0 %v153
  %2464 = vmatpush.msra.mxu0 %v143
  %2465 = vmatpush.msra.mxu0 %v133
  %2466 = vmatpush.msra.mxu0 %v123
  %2467 = vmatpush.msra.mxu0 %v113
  %2468 = vmatpush.msra.mxu0 %v103
  %2469 = vmatpush.msra.mxu0 %v93
  %2470 = vmatpush.msra.mxu0 %v83
  %2471 = vmatpush.msra.mxu0 %v73
  %2472 = vmatpush.msra.mxu0 %v63
  %2473 = vmatpush.msra.mxu0 %v53
  %2474 = vmatpush.msra.mxu0 %v43
  %2475 = vmatpush.msra.mxu0 %v33
  %2476 = vmatpush.msra.mxu0 %v23
  %2477 = vmatmul.f32.gmra.mxu0 %v1325
  %v2478 = vpop.f32.mrf.mxu0
  %v2479 = vadd.f32 %v1307, %v2478
  %2480 = vdwg.mxu0
  %2481 = vmatpush.msra.mxu0 %v333
  %2482 = vmatpush.msra.mxu0 %v323
  %2483 = vmatpush.msra.mxu0 %v313
  %2484 = vmatpush.msra.mxu0 %v303
  %2485 = vmatpush.msra.mxu0 %v293
  %2486 = vmatpush.msra.mxu0 %v283
  %2487 = vmatpush.msra.mxu0 %v273
  %2488 = vmatpush.msra.mxu0 %v263
  %2489 = vmatpush.msra.mxu0 %v253
  %2490 = vmatpush.msra.mxu0 %v243
  %2491 = vmatpush.msra.mxu0 %v233
  %2492 = vmatpush.msra.mxu0 %v223
  %2493 = vmatpush.msra.mxu0 %v213
  %2494 = vmatpush.msra.mxu0 %v203
  %2495 = vmatpush.msra.mxu0 %v193
  %2496 = vmatpush.msra.mxu0 %v183
  %2497 = vmatmul.f32.gmra.mxu0 %v1326
  %v2498 = vpop.f32.mrf.mxu0
  %v2499 = vadd.f32 %v2479, %v2498
  %2500 = vdwg.mxu0
  %2501 = vmatpush.msra.mxu0 %v493
  %2502 = vmatpush.msra.mxu0 %v483
  %2503 = vmatpush.msra.mxu0 %v473
  %2504 = vmatpush.msra.mxu0 %v463
  %2505 = vmatpush.msra.mxu0 %v453
  %2506 = vmatpush.msra.mxu0 %v443
  %2507 = vmatpush.msra.mxu0 %v433
  %2508 = vmatpush.msra.mxu0 %v423
  %2509 = vmatpush.msra.mxu0 %v413
  %2510 = vmatpush.msra.mxu0 %v403
  %2511 = vmatpush.msra.mxu0 %v393
  %2512 = vmatpush.msra.mxu0 %v383
  %2513 = vmatpush.msra.mxu0 %v373
  %2514 = vmatpush.msra.mxu0 %v363
  %2515 = vmatpush.msra.mxu0 %v353
  %2516 = vmatpush.msra.mxu0 %v343
  %2517 = vmatmul.f32.gmra.mxu0 %v1327
  %v2518 = vpop.f32.mrf.mxu0
  %v2519 = vadd.f32 %v2499, %v2518
  %2520 = vdwg.mxu0
  %2521 = vmatpush.msra.mxu0 %v653
  %2522 = vmatpush.msra.mxu0 %v643
  %2523 = vmatpush.msra.mxu0 %v633
  %2524 = vmatpush.msra.mxu0 %v623
  %2525 = vmatpush.msra.mxu0 %v613
  %2526 = vmatpush.msra.mxu0 %v603
  %2527 = vmatpush.msra.mxu0 %v593
  %2528 = vmatpush.msra.mxu0 %v583
  %2529 = vmatpush.msra.mxu0 %v573
  %2530 = vmatpush.msra.mxu0 %v563
  %2531 = vmatpush.msra.mxu0 %v553
  %2532 = vmatpush.msra.mxu0 %v543
  %2533 = vmatpush.msra.mxu0 %v533
  %2534 = vmatpush.msra.mxu0 %v523
  %2535 = vmatpush.msra.mxu0 %v513
  %2536 = vmatpush.msra.mxu0 %v503
  %2537 = vmatmul.f32.gmra.mxu0 %v1328
  %v2538 = vpop.f32.mrf.mxu0
  %v2539 = vadd.f32 %v2519, %v2538
  %2540 = vdwg.mxu0
  %2541 = vmatpush.msra.mxu0 %v813
  %2542 = vmatpush.msra.mxu0 %v803
  %2543 = vmatpush.msra.mxu0 %v793
  %2544 = vmatpush.msra.mxu0 %v783
  %2545 = vmatpush.msra.mxu0 %v773
  %2546 = vmatpush.msra.mxu0 %v763
  %2547 = vmatpush.msra.mxu0 %v753
  %2548 = vmatpush.msra.mxu0 %v743
  %2549 = vmatpush.msra.mxu0 %v733
  %2550 = vmatpush.msra.mxu0 %v723
  %2551 = vmatpush.msra.mxu0 %v713
  %2552 = vmatpush.msra.mxu0 %v703
  %2553 = vmatpush.msra.mxu0 %v693
  %2554 = vmatpush.msra.mxu0 %v683
  %2555 = vmatpush.msra.mxu0 %v673
  %2556 = vmatpush.msra.mxu0 %v663
  %2557 = vmatmul.f32.gmra.mxu0 %v1329
  %v2558 = vpop.f32.mrf.mxu0
  %v2559 = vadd.f32 %v2539, %v2558
  %2560 = vdwg.mxu0
  %2561 = vmatpush.msra.mxu0 %v973
  %2562 = vmatpush.msra.mxu0 %v963
  %2563 = vmatpush.msra.mxu0 %v953
  %2564 = vmatpush.msra.mxu0 %v943
  %2565 = vmatpush.msra.mxu0 %v933
  %2566 = vmatpush.msra.mxu0 %v923
  %2567 = vmatpush.msra.mxu0 %v913
  %2568 = vmatpush.msra.mxu0 %v903
  %2569 = vmatpush.msra.mxu0 %v893
  %2570 = vmatpush.msra.mxu0 %v883
  %2571 = vmatpush.msra.mxu0 %v873
  %2572 = vmatpush.msra.mxu0 %v863
  %2573 = vmatpush.msra.mxu0 %v853
  %2574 = vmatpush.msra.mxu0 %v843
  %2575 = vmatpush.msra.mxu0 %v833
  %2576 = vmatpush.msra.mxu0 %v823
  %2577 = vmatmul.f32.gmra.mxu0 %v1330
  %v2578 = vpop.f32.mrf.mxu0
  %v2579 = vadd.f32 %v2559, %v2578
  %2580 = vdwg.mxu0
  %2581 = vmatpush.msra.mxu0 %v1133
  %2582 = vmatpush.msra.mxu0 %v1123
  %2583 = vmatpush.msra.mxu0 %v1113
  %2584 = vmatpush.msra.mxu0 %v1103
  %2585 = vmatpush.msra.mxu0 %v1093
  %2586 = vmatpush.msra.mxu0 %v1083
  %2587 = vmatpush.msra.mxu0 %v1073
  %2588 = vmatpush.msra.mxu0 %v1063
  %2589 = vmatpush.msra.mxu0 %v1053
  %2590 = vmatpush.msra.mxu0 %v1043
  %2591 = vmatpush.msra.mxu0 %v1033
  %2592 = vmatpush.msra.mxu0 %v1023
  %2593 = vmatpush.msra.mxu0 %v1013
  %2594 = vmatpush.msra.mxu0 %v1003
  %2595 = vmatpush.msra.mxu0 %v993
  %2596 = vmatpush.msra.mxu0 %v983
  %2597 = vmatmul.f32.gmra.mxu0 %v1331
  %v2598 = vpop.f32.mrf.mxu0
  %v2599 = vadd.f32 %v2579, %v2598
  %2600 = vdwg.mxu0
  %2601 = vmatpush.msra.mxu0 %v1293
  %2602 = vmatpush.msra.mxu0 %v1283
  %2603 = vmatpush.msra.mxu0 %v1273
  %2604 = vmatpush.msra.mxu0 %v1263
  %2605 = vmatpush.msra.mxu0 %v1253
  %2606 = vmatpush.msra.mxu0 %v1243
  %2607 = vmatpush.msra.mxu0 %v1233
  %2608 = vmatpush.msra.mxu0 %v1223
  %2609 = vmatpush.msra.mxu0 %v1213
  %2610 = vmatpush.msra.mxu0 %v1203
  %2611 = vmatpush.msra.mxu0 %v1193
  %2612 = vmatpush.msra.mxu0 %v1183
  %2613 = vmatpush.msra.mxu0 %v1173
  %2614 = vmatpush.msra.mxu0 %v1163
  %2615 = vmatpush.msra.mxu0 %v1153
  %2616 = vmatpush.msra.mxu0 %v1143
  %2617 = vmatmul.f32.gmra.mxu0 %v1332
  %v2618 = vpop.f32.mrf.mxu0
  %v2619 = vadd.f32 %v2599, %v2618
  %2620 = vdwg.mxu0
  %2621 = vmatpush.msra.mxu0 %v174
  %2622 = vmatpush.msra.mxu0 %v164
  %2623 = vmatpush.msra.mxu0 %v154
  %2624 = vmatpush.msra.mxu0 %v144
  %2625 = vmatpush.msra.mxu0 %v134
  %2626 = vmatpush.msra.mxu0 %v124
  %2627 = vmatpush.msra.mxu0 %v114
  %2628 = vmatpush.msra.mxu0 %v104
  %2629 = vmatpush.msra.mxu0 %v94
  %2630 = vmatpush.msra.mxu0 %v84
  %2631 = vmatpush.msra.mxu0 %v74
  %2632 = vmatpush.msra.mxu0 %v64
  %2633 = vmatpush.msra.mxu0 %v54
  %2634 = vmatpush.msra.mxu0 %v44
  %2635 = vmatpush.msra.mxu0 %v34
  %2636 = vmatpush.msra.mxu0 %v24
  %2637 = vmatmul.f32.gmra.mxu0 %v1325
  %v2638 = vpop.f32.mrf.mxu0
  %v2639 = vadd.f32 %v1308, %v2638
  %2640 = vdwg.mxu0
  %2641 = vmatpush.msra.mxu0 %v334
  %2642 = vmatpush.msra.mxu0 %v324
  %2643 = vmatpush.msra.mxu0 %v314
  %2644 = vmatpush.msra.mxu0 %v304
  %2645 = vmatpush.msra.mxu0 %v294
  %2646 = vmatpush.msra.mxu0 %v284
  %2647 = vmatpush.msra.mxu0 %v274
  %2648 = vmatpush.msra.mxu0 %v264
  %2649 = vmatpush.msra.mxu0 %v254
  %2650 = vmatpush.msra.mxu0 %v244
  %2651 = vmatpush.msra.mxu0 %v234
  %2652 = vmatpush.msra.mxu0 %v224
  %2653 = vmatpush.msra.mxu0 %v214
  %2654 = vmatpush.msra.mxu0 %v204
  %2655 = vmatpush.msra.mxu0 %v194
  %2656 = vmatpush.msra.mxu0 %v184
  %2657 = vmatmul.f32.gmra.mxu0 %v1326
  %v2658 = vpop.f32.mrf.mxu0
  %v2659 = vadd.f32 %v2639, %v2658
  %2660 = vdwg.mxu0
  %2661 = vmatpush.msra.mxu0 %v494
  %2662 = vmatpush.msra.mxu0 %v484
  %2663 = vmatpush.msra.mxu0 %v474
  %2664 = vmatpush.msra.mxu0 %v464
  %2665 = vmatpush.msra.mxu0 %v454
  %2666 = vmatpush.msra.mxu0 %v444
  %2667 = vmatpush.msra.mxu0 %v434
  %2668 = vmatpush.msra.mxu0 %v424
  %2669 = vmatpush.msra.mxu0 %v414
  %2670 = vmatpush.msra.mxu0 %v404
  %2671 = vmatpush.msra.mxu0 %v394
  %2672 = vmatpush.msra.mxu0 %v384
  %2673 = vmatpush.msra.mxu0 %v374
  %2674 = vmatpush.msra.mxu0 %v364
  %2675 = vmatpush.msra.mxu0 %v354
  %2676 = vmatpush.msra.mxu0 %v344
  %2677 = vmatmul.f32.gmra.mxu0 %v1327
  %v2678 = vpop.f32.mrf.mxu0
  %v2679 = vadd.f32 %v2659, %v2678
  %2680 = vdwg.mxu0
  %2681 = vmatpush.msra.mxu0 %v654
  %2682 = vmatpush.msra.mxu0 %v644
  %2683 = vmatpush.msra.mxu0 %v634
  %2684 = vmatpush.msra.mxu0 %v624
  %2685 = vmatpush.msra.mxu0 %v614
  %2686 = vmatpush.msra.mxu0 %v604
  %2687 = vmatpush.msra.mxu0 %v594
  %2688 = vmatpush.msra.mxu0 %v584
  %2689 = vmatpush.msra.mxu0 %v574
  %2690 = vmatpush.msra.mxu0 %v564
  %2691 = vmatpush.msra.mxu0 %v554
  %2692 = vmatpush.msra.mxu0 %v544
  %2693 = vmatpush.msra.mxu0 %v534
  %2694 = vmatpush.msra.mxu0 %v524
  %2695 = vmatpush.msra.mxu0 %v514
  %2696 = vmatpush.msra.mxu0 %v504
  %2697 = vmatmul.f32.gmra.mxu0 %v1328
  %v2698 = vpop.f32.mrf.mxu0
  %v2699 = vadd.f32 %v2679, %v2698
  %2700 = vdwg.mxu0
  %2701 = vmatpush.msra.mxu0 %v814
  %2702 = vmatpush.msra.mxu0 %v804
  %2703 = vmatpush.msra.mxu0 %v794
  %2704 = vmatpush.msra.mxu0 %v784
  %2705 = vmatpush.msra.mxu0 %v774
  %2706 = vmatpush.msra.mxu0 %v764
  %2707 = vmatpush.msra.mxu0 %v754
  %2708 = vmatpush.msra.mxu0 %v744
  %2709 = vmatpush.msra.mxu0 %v734
  %2710 = vmatpush.msra.mxu0 %v724
  %2711 = vmatpush.msra.mxu0 %v714
  %2712 = vmatpush.msra.mxu0 %v704
  %2713 = vmatpush.msra.mxu0 %v694
  %2714 = vmatpush.msra.mxu0 %v684
  %2715 = vmatpush.msra.mxu0 %v674
  %2716 = vmatpush.msra.mxu0 %v664
  %2717 = vmatmul.f32.gmra.mxu0 %v1329
  %v2718 = vpop.f32.mrf.mxu0
  %v2719 = vadd.f32 %v2699, %v2718
  %2720 = vdwg.mxu0
  %2721 = vmatpush.msra.mxu0 %v974
  %2722 = vmatpush.msra.mxu0 %v964
  %2723 = vmatpush.msra.mxu0 %v954
  %2724 = vmatpush.msra.mxu0 %v944
  %2725 = vmatpush.msra.mxu0 %v934
  %2726 = vmatpush.msra.mxu0 %v924
  %2727 = vmatpush.msra.mxu0 %v914
  %2728 = vmatpush.msra.mxu0 %v904
  %2729 = vmatpush.msra.mxu0 %v894
  %2730 = vmatpush.msra.mxu0 %v884
  %2731 = vmatpush.msra.mxu0 %v874
  %2732 = vmatpush.msra.mxu0 %v864
  %2733 = vmatpush.msra.mxu0 %v854
  %2734 = vmatpush.msra.mxu0 %v844
  %2735 = vmatpush.msra.mxu0 %v834
  %2736 = vmatpush.msra.mxu0 %v824
  %2737 = vmatmul.f32.gmra.mxu0 %v1330
  %v2738 = vpop.f32.mrf.mxu0
  %v2739 = vadd.f32 %v2719, %v2738
  %2740 = vdwg.mxu0
  %2741 = vmatpush.msra.mxu0 %v1134
  %2742 = vmatpush.msra.mxu0 %v1124
  %2743 = vmatpush.msra.mxu0 %v1114
  %2744 = vmatpush.msra.mxu0 %v1104
  %2745 = vmatpush.msra.mxu0 %v1094
  %2746 = vmatpush.msra.mxu0 %v1084
  %2747 = vmatpush.msra.mxu0 %v1074
  %2748 = vmatpush.msra.mxu0 %v1064
  %2749 = vmatpush.msra.mxu0 %v1054
  %2750 = vmatpush.msra.mxu0 %v1044
  %2751 = vmatpush.msra.mxu0 %v1034
  %2752 = vmatpush.msra.mxu0 %v1024
  %2753 = vmatpush.msra.mxu0 %v1014
  %2754 = vmatpush.msra.mxu0 %v1004
  %2755 = vmatpush.msra.mxu0 %v994
  %2756 = vmatpush.msra.mxu0 %v984
  %2757 = vmatmul.f32.gmra.mxu0 %v1331
  %v2758 = vpop.f32.mrf.mxu0
  %v2759 = vadd.f32 %v2739, %v2758
  %2760 = vdwg.mxu0
  %2761 = vmatpush.msra.mxu0 %v1294
  %2762 = vmatpush.msra.mxu0 %v1284
  %2763 = vmatpush.msra.mxu0 %v1274
  %2764 = vmatpush.msra.mxu0 %v1264
  %2765 = vmatpush.msra.mxu0 %v1254
  %2766 = vmatpush.msra.mxu0 %v1244
  %2767 = vmatpush.msra.mxu0 %v1234
  %2768 = vmatpush.msra.mxu0 %v1224
  %2769 = vmatpush.msra.mxu0 %v1214
  %2770 = vmatpush.msra.mxu0 %v1204
  %2771 = vmatpush.msra.mxu0 %v1194
  %2772 = vmatpush.msra.mxu0 %v1184
  %2773 = vmatpush.msra.mxu0 %v1174
  %2774 = vmatpush.msra.mxu0 %v1164
  %2775 = vmatpush.msra.mxu0 %v1154
  %2776 = vmatpush.msra.mxu0 %v1144
  %2777 = vmatmul.f32.gmra.mxu0 %v1332
  %v2778 = vpop.f32.mrf.mxu0
  %v2779 = vadd.f32 %v2759, %v2778
  %2780 = vdwg.mxu0
  %2781 = vmatpush.msra.mxu0 %v175
  %2782 = vmatpush.msra.mxu0 %v165
  %2783 = vmatpush.msra.mxu0 %v155
  %2784 = vmatpush.msra.mxu0 %v145
  %2785 = vmatpush.msra.mxu0 %v135
  %2786 = vmatpush.msra.mxu0 %v125
  %2787 = vmatpush.msra.mxu0 %v115
  %2788 = vmatpush.msra.mxu0 %v105
  %2789 = vmatpush.msra.mxu0 %v95
  %2790 = vmatpush.msra.mxu0 %v85
  %2791 = vmatpush.msra.mxu0 %v75
  %2792 = vmatpush.msra.mxu0 %v65
  %2793 = vmatpush.msra.mxu0 %v55
  %2794 = vmatpush.msra.mxu0 %v45
  %2795 = vmatpush.msra.mxu0 %v35
  %2796 = vmatpush.msra.mxu0 %v25
  %2797 = vmatmul.f32.gmra.mxu0 %v1325
  %v2798 = vpop.f32.mrf.mxu0
  %v2799 = vadd.f32 %v1309, %v2798
  %2800 = vdwg.mxu0
  %2801 = vmatpush.msra.mxu0 %v335
  %2802 = vmatpush.msra.mxu0 %v325
  %2803 = vmatpush.msra.mxu0 %v315
  %2804 = vmatpush.msra.mxu0 %v305
  %2805 = vmatpush.msra.mxu0 %v295
  %2806 = vmatpush.msra.mxu0 %v285
  %2807 = vmatpush.msra.mxu0 %v275
  %2808 = vmatpush.msra.mxu0 %v265
  %2809 = vmatpush.msra.mxu0 %v255
  %2810 = vmatpush.msra.mxu0 %v245
  %2811 = vmatpush.msra.mxu0 %v235
  %2812 = vmatpush.msra.mxu0 %v225
  %2813 = vmatpush.msra.mxu0 %v215
  %2814 = vmatpush.msra.mxu0 %v205
  %2815 = vmatpush.msra.mxu0 %v195
  %2816 = vmatpush.msra.mxu0 %v185
  %2817 = vmatmul.f32.gmra.mxu0 %v1326
  %v2818 = vpop.f32.mrf.mxu0
  %v2819 = vadd.f32 %v2799, %v2818
  %2820 = vdwg.mxu0
  %2821 = vmatpush.msra.mxu0 %v495
  %2822 = vmatpush.msra.mxu0 %v485
  %2823 = vmatpush.msra.mxu0 %v475
  %2824 = vmatpush.msra.mxu0 %v465
  %2825 = vmatpush.msra.mxu0 %v455
  %2826 = vmatpush.msra.mxu0 %v445
  %2827 = vmatpush.msra.mxu0 %v435
  %2828 = vmatpush.msra.mxu0 %v425
  %2829 = vmatpush.msra.mxu0 %v415
  %2830 = vmatpush.msra.mxu0 %v405
  %2831 = vmatpush.msra.mxu0 %v395
  %2832 = vmatpush.msra.mxu0 %v385
  %2833 = vmatpush.msra.mxu0 %v375
  %2834 = vmatpush.msra.mxu0 %v365
  %2835 = vmatpush.msra.mxu0 %v355
  %2836 = vmatpush.msra.mxu0 %v345
  %2837 = vmatmul.f32.gmra.mxu0 %v1327
  %v2838 = vpop.f32.mrf.mxu0
  %v2839 = vadd.f32 %v2819, %v2838
  %2840 = vdwg.mxu0
  %2841 = vmatpush.msra.mxu0 %v655
  %2842 = vmatpush.msra.mxu0 %v645
  %2843 = vmatpush.msra.mxu0 %v635
  %2844 = vmatpush.msra.mxu0 %v625
  %2845 = vmatpush.msra.mxu0 %v615
  %2846 = vmatpush.msra.mxu0 %v605
  %2847 = vmatpush.msra.mxu0 %v595
  %2848 = vmatpush.msra.mxu0 %v585
  %2849 = vmatpush.msra.mxu0 %v575
  %2850 = vmatpush.msra.mxu0 %v565
  %2851 = vmatpush.msra.mxu0 %v555
  %2852 = vmatpush.msra.mxu0 %v545
  %2853 = vmatpush.msra.mxu0 %v535
  %2854 = vmatpush.msra.mxu0 %v525
  %2855 = vmatpush.msra.mxu0 %v515
  %2856 = vmatpush.msra.mxu0 %v505
  %2857 = vmatmul.f32.gmra.mxu0 %v1328
  %v2858 = vpop.f32.mrf.mxu0
  %v2859 = vadd.f32 %v2839, %v2858
  %2860 = vdwg.mxu0
  %2861 = vmatpush.msra.mxu0 %v815
  %2862 = vmatpush.msra.mxu0 %v805
  %2863 = vmatpush.msra.mxu0 %v795
  %2864 = vmatpush.msra.mxu0 %v785
  %2865 = vmatpush.msra.mxu0 %v775
  %2866 = vmatpush.msra.mxu0 %v765
  %2867 = vmatpush.msra.mxu0 %v755
  %2868 = vmatpush.msra.mxu0 %v745
  %2869 = vmatpush.msra.mxu0 %v735
  %2870 = vmatpush.msra.mxu0 %v725
  %2871 = vmatpush.msra.mxu0 %v715
  %2872 = vmatpush.msra.mxu0 %v705
  %2873 = vmatpush.msra.mxu0 %v695
  %2874 = vmatpush.msra.mxu0 %v685
  %2875 = vmatpush.msra.mxu0 %v675
  %2876 = vmatpush.msra.mxu0 %v665
  %2877 = vmatmul.f32.gmra.mxu0 %v1329
  %v2878 = vpop.f32.mrf.mxu0
  %v2879 = vadd.f32 %v2859, %v2878
  %2880 = vdwg.mxu0
  %2881 = vmatpush.msra.mxu0 %v975
  %2882 = vmatpush.msra.mxu0 %v965
  %2883 = vmatpush.msra.mxu0 %v955
  %2884 = vmatpush.msra.mxu0 %v945
  %2885 = vmatpush.msra.mxu0 %v935
  %2886 = vmatpush.msra.mxu0 %v925
  %2887 = vmatpush.msra.mxu0 %v915
  %2888 = vmatpush.msra.mxu0 %v905
  %2889 = vmatpush.msra.mxu0 %v895
  %2890 = vmatpush.msra.mxu0 %v885
  %2891 = vmatpush.msra.mxu0 %v875
  %2892 = vmatpush.msra.mxu0 %v865
  %2893 = vmatpush.msra.mxu0 %v855
  %2894 = vmatpush.msra.mxu0 %v845
  %2895 = vmatpush.msra.mxu0 %v835
  %2896 = vmatpush.msra.mxu0 %v825
  %2897 = vmatmul.f32.gmra.mxu0 %v1330
  %v2898 = vpop.f32.mrf.mxu0
  %v2899 = vadd.f32 %v2879, %v2898
  %2900 = vdwg.mxu0
  %2901 = vmatpush.msra.mxu0 %v1135
  %2902 = vmatpush.msra.mxu0 %v1125
  %2903 = vmatpush.msra.mxu0 %v1115
  %2904 = vmatpush.msra.mxu0 %v1105
  %2905 = vmatpush.msra.mxu0 %v1095
  %2906 = vmatpush.msra.mxu0 %v1085
  %2907 = vmatpush.msra.mxu0 %v1075
  %2908 = vmatpush.msra.mxu0 %v1065
  %2909 = vmatpush.msra.mxu0 %v1055
  %2910 = vmatpush.msra.mxu0 %v1045
  %2911 = vmatpush.msra.mxu0 %v1035
  %2912 = vmatpush.msra.mxu0 %v1025
  %2913 = vmatpush.msra.mxu0 %v1015
  %2914 = vmatpush.msra.mxu0 %v1005
  %2915 = vmatpush.msra.mxu0 %v995
  %2916 = vmatpush.msra.mxu0 %v985
  %2917 = vmatmul.f32.gmra.mxu0 %v1331
  %v2918 = vpop.f32.mrf.mxu0
  %v2919 = vadd.f32 %v2899, %v2918
  %2920 = vdwg.mxu0
  %2921 = vmatpush.msra.mxu0 %v1295
  %2922 = vmatpush.msra.mxu0 %v1285
  %2923 = vmatpush.msra.mxu0 %v1275
  %2924 = vmatpush.msra.mxu0 %v1265
  %2925 = vmatpush.msra.mxu0 %v1255
  %2926 = vmatpush.msra.mxu0 %v1245
  %2927 = vmatpush.msra.mxu0 %v1235
  %2928 = vmatpush.msra.mxu0 %v1225
  %2929 = vmatpush.msra.mxu0 %v1215
  %2930 = vmatpush.msra.mxu0 %v1205
  %2931 = vmatpush.msra.mxu0 %v1195
  %2932 = vmatpush.msra.mxu0 %v1185
  %2933 = vmatpush.msra.mxu0 %v1175
  %2934 = vmatpush.msra.mxu0 %v1165
  %2935 = vmatpush.msra.mxu0 %v1155
  %2936 = vmatpush.msra.mxu0 %v1145
  %2937 = vmatmul.f32.gmra.mxu0 %v1332
  %v2938 = vpop.f32.mrf.mxu0
  %v2939 = vadd.f32 %v2919, %v2938
  %2940 = vdwg.mxu0
  %v2951 = vrot.slane %v1659, 6
  %v2952 = vrot.slane %v1819, 4
  %v2953 = vrot.slane %v1979, 2
  %v2954 = vrot.slane %v2299, 6
  %v2955 = vrot.slane %v2459, 4
  %v2956 = vrot.slane %v2619, 2
  %v2957 = vrot.slane %v2939, 6
  %vm2958 = vcmask 1041408
  %v2959 = vsel %vm2958, %v1499, %v2951
  %vm2960 = vcmask 1045508
  %v2961 = vsel %vm2960, %v2952, %v2953
  %vm2962 = vcmask 1043456
  %v2963 = vsel %vm2962, %v2959, %v2961
  %v2964 = vsel %vm2958, %v2139, %v2954
  %v2965 = vsel %vm2960, %v2955, %v2956
  %v2966 = vsel %vm2962, %v2964, %v2965
  %v2967 = vsel %vm2958, %v2779, %v2957
  %2971 = vst [vmem:[%s3] sm:$0xff] %v2963
  %2972 = vst [vmem:[%s3 + $0x8] sm:$0xff] %v2966
  %vm2973 = vcmask 191490
  %vm2974 = vmor %vm2973, %vm2958
  %2975 = vst.msk [vmem:[%s3 + $0x10] sm:$0xf] %vm2974, %v2967
  // Predicated region
  $region14: #{reconstructor_forward.8} parent=0 // pred_check
    _
  $region15: #{reconstructor_forward.8} parent=0 // pred_check_branch
    %2977 = sbr.rel (0) target = $region17
  $region16: #{reconstructor_forward.8} parent=0 // pred_region
    _
  $region17: #{reconstructor_forward.8} parent=0 // pred_fallthru
    _
  // Predicated region
  $region18: #{reconstructor_forward.8} parent=0 // pred_check
    _
  $region19: #{reconstructor_forward.8} parent=0 // pred_check_branch
    %2979 = sbr.rel (0) target = $region21
  $region20: #{reconstructor_forward.8} parent=0 // pred_region
    _
  $region21: #{reconstructor_forward.8} parent=0 // pred_fallthru
    _

// kernel: reconstructor_forward.10
$region0: #{reconstructor_forward.10}
  #allocation0 [shape = 'u32[]', space=smem, size = 0x4, offset = 0x4, fixed_abs, tag = 'smem constant byte address 0x4 - core index']
  #allocation1 [shape = 'u32[72,128]{1,0:T(1,128)}', space=vmem, size = 0x9000, scoped, tag = 'internal scratch']
  %s0 = inlined_call_operand.vmem [shape: bf16[48,216], index: 0, kind: input, shape index: {}]
  %s1 = inlined_call_operand.vmem [shape: bf16[216,392], index: 1, kind: input, shape index: {}]
  %s2 = inlined_call_operand.vmem [shape: f32[48,1], index: 2, kind: input, shape index: {}]
  %s3 = inlined_call_operand.vmem [shape: bf16[48,392], index: 3, kind: output, shape index: {}]
  %s4 = sld [smem:[#allocation0]]
  $region22: #{reconstructor_forward.10} parent=0
    _
  %s6 = ssub.s32 1, %s4
  %s7 = scalar_select 0, %s6, %s4
  // Predicated region
  $region2: #{reconstructor_forward.10} parent=0 // pred_check
    _
  $region3: #{reconstructor_forward.10} parent=0 // pred_check_branch
    %9 = sbr.rel (0) target = $region5
  $region4: #{reconstructor_forward.10} parent=0 // pred_region
    _
  $region5: #{reconstructor_forward.10} parent=0 // pred_fallthru
    _
  // Predicated region
  $region6: #{reconstructor_forward.10} parent=0 // pred_check
    _
  $region7: #{reconstructor_forward.10} parent=0 // pred_check_branch
    %11 = sbr.rel (0) target = $region9
  $region8: #{reconstructor_forward.10} parent=0 // pred_region
    _
  $region9: #{reconstructor_forward.10} parent=0 // pred_fallthru
    _
  // Predicated region
  $region10: #{reconstructor_forward.10} parent=0 // pred_check
    _
  $region11: #{reconstructor_forward.10} parent=0 // pred_check_branch
    %13 = sbr.rel (0) target = $region13
  $region12: #{reconstructor_forward.10} parent=0 // pred_region
    _
  $region13: #{reconstructor_forward.10} parent=0 // pred_fallthru
    _
  %v15 = vld [vmem:[%s0] sm:$0xff]
  %v16 = vld [vmem:[%s0 + $0x8] sm:$0xff]
  %v17 = vld [vmem:[%s0 + $0x10] sm:$0xff]
  %v18 = vld [vmem:[%s0 + $0x18] sm:$0xff]
  %v19 = vld [vmem:[%s0 + $0x20] sm:$0xff]
  %v20 = vld [vmem:[%s0 + $0x28] sm:$0xff]
  %v21 = vld [vmem:[%s1] sm:$0xff]
  %v22 = vld [vmem:[%s1 + $0x8] sm:$0xff]
  %v23 = vld [vmem:[%s1 + $0x10] sm:$0xff]
  %v24 = vld [vmem:[%s1 + $0x18] sm:$0xff]
  %v25 = vld [vmem:[%s1 + $0x20] sm:$0xff]
  %v26 = vld [vmem:[%s1 + $0x28] sm:$0xff]
  %v27 = vld [vmem:[%s1 + $0x30] sm:$0xff]
  %v28 = vld [vmem:[%s1 + $0x38] sm:$0xff]
  %v29 = vld [vmem:[%s1 + $0x40] sm:$0xff]
  %v30 = vld [vmem:[%s1 + $0x48] sm:$0xff]
  %v31 = vld [vmem:[%s1 + $0x50] sm:$0xff]
  %v32 = vld [vmem:[%s1 + $0x58] sm:$0xff]
  %v33 = vld [vmem:[%s1 + $0x60] sm:$0xff]
  %v34 = vld [vmem:[%s1 + $0x68] sm:$0xff]
  %v35 = vld [vmem:[%s1 + $0x70] sm:$0xff]
  %v36 = vld [vmem:[%s1 + $0x78] sm:$0xff]
  %v37 = vld [vmem:[%s1 + $0x80] sm:$0xff]
  %v38 = vld [vmem:[%s1 + $0x88] sm:$0xff]
  %v39 = vld [vmem:[%s1 + $0x90] sm:$0xff]
  %v40 = vld [vmem:[%s1 + $0x98] sm:$0xff]
  %v41 = vld [vmem:[%s1 + $0xa0] sm:$0xff]
  %v42 = vld [vmem:[%s1 + $0xa8] sm:$0xff]
  %v43 = vld [vmem:[%s1 + $0xb0] sm:$0xff]
  %v44 = vld [vmem:[%s1 + $0xb8] sm:$0xff]
  %v45 = vld [vmem:[%s1 + $0xc0] sm:$0xff]
  %v46 = vld [vmem:[%s1 + $0xc8] sm:$0xff]
  %v47 = vld [vmem:[%s1 + $0xd0] sm:$0xff]
  %v48 = vld [vmem:[%s1 + $0xd8] sm:$0xff]
  %v49 = vld [vmem:[%s1 + $0xe0] sm:$0xff]
  %v50 = vld [vmem:[%s1 + $0xe8] sm:$0xff]
  %v51 = vld [vmem:[%s1 + $0xf0] sm:$0xff]
  %v52 = vld [vmem:[%s1 + $0xf8] sm:$0xff]
  %v53 = vld [vmem:[%s1 + $0x100] sm:$0xff]
  %v54 = vld [vmem:[%s1 + $0x108] sm:$0xff]
  %v55 = vld [vmem:[%s1 + $0x110] sm:$0xff]
  %v56 = vld [vmem:[%s1 + $0x118] sm:$0xff]
  %v57 = vld [vmem:[%s1 + $0x120] sm:$0xff]
  %v58 = vld [vmem:[%s1 + $0x128] sm:$0xff]
  %v59 = vld [vmem:[%s1 + $0x130] sm:$0xff]
  %v60 = vld [vmem:[%s1 + $0x138] sm:$0xff]
  %v61 = vld [vmem:[%s1 + $0x140] sm:$0xff]
  %v62 = vld [vmem:[%s1 + $0x148] sm:$0xff]
  %v63 = vld [vmem:[%s1 + $0x150] sm:$0xff]
  %v64 = vld [vmem:[%s1 + $0x158] sm:$0xff]
  %v65 = vld [vmem:[%s1 + $0x160] sm:$0xff]
  %v66 = vld [vmem:[%s1 + $0x168] sm:$0xff]
  %v67 = vld [vmem:[%s1 + $0x170] sm:$0xff]
  %v68 = vld [vmem:[%s1 + $0x178] sm:$0xff]
  %v69 = vld [vmem:[%s1 + $0x180] sm:$0xff]
  %v70 = vld [vmem:[%s1 + $0x188] sm:$0xff]
  %v71 = vld [vmem:[%s1 + $0x190] sm:$0xff]
  %v72 = vld [vmem:[%s1 + $0x198] sm:$0xff]
  %v73 = vld [vmem:[%s1 + $0x1a0] sm:$0xff]
  %v74 = vld [vmem:[%s1 + $0x1a8] sm:$0xff]
  %v75 = vld [vmem:[%s2] sm:$0xff]
  %v76 = vld [vmem:[%s2 + $0x8] sm:$0xff]
  %v77 = vld [vmem:[%s2 + $0x10] sm:$0xff]
  %v78 = vld [vmem:[%s2 + $0x18] sm:$0xff]
  %v79 = vld [vmem:[%s2 + $0x20] sm:$0xff]
  %v80 = vld [vmem:[%s2 + $0x28] sm:$0xff]
  %82 = vset.pattern.permute.xlu0 0
  %83 = vperm.xlu0 %82, %v75
  %v84 = vpop.permute.xlu0 %83
  %87 = vset.pattern.permute.xlu0 0
  %88 = vperm.xlu0 %87, %v76
  %v89 = vpop.permute.xlu0 %88
  %92 = vset.pattern.permute.xlu0 0
  %93 = vperm.xlu0 %92, %v77
  %v94 = vpop.permute.xlu0 %93
  %97 = vset.pattern.permute.xlu0 0
  %98 = vperm.xlu0 %97, %v78
  %v99 = vpop.permute.xlu0 %98
  %102 = vset.pattern.permute.xlu0 0
  %103 = vperm.xlu0 %102, %v79
  %v104 = vpop.permute.xlu0 %103
  %107 = vset.pattern.permute.xlu0 0
  %108 = vperm.xlu0 %107, %v80
  %v109 = vpop.permute.xlu0 %108
  %v117 = vunpack.c.l.b16 %v15
  %v118 = vunpack.c.h.b16 %v15
  %v119 = vunpack.c.l.b16 %v16
  %v120 = vunpack.c.h.b16 %v16
  %v121 = vunpack.c.l.b16 %v17
  %v122 = vunpack.c.h.b16 %v17
  %v123 = vunpack.c.l.b16 %v18
  %v124 = vunpack.c.h.b16 %v18
  %v125 = vunpack.c.l.b16 %v19
  %v126 = vunpack.c.h.b16 %v19
  %v127 = vunpack.c.l.b16 %v20
  %v128 = vunpack.c.h.b16 %v20
  %v129 = vpack.c.b16 %v119, %v117
  %v130 = vpack.c.b16 %v120, %v118
  %v131 = vpack.c.b16 %v123, %v121
  %v132 = vpack.c.b16 %v124, %v122
  %v133 = vpack.c.b16 %v127, %v125
  %v134 = vpack.c.b16 %v128, %v126
  %v192 = vunpack.c.l.b16 %v21
  %v193 = vunpack.c.h.b16 %v21
  %v194 = vunpack.c.l.b16 %v22
  %v195 = vunpack.c.h.b16 %v22
  %v196 = vunpack.c.l.b16 %v23
  %v197 = vunpack.c.h.b16 %v23
  %v198 = vunpack.c.l.b16 %v24
  %v199 = vunpack.c.h.b16 %v24
  %v200 = vunpack.c.l.b16 %v25
  %v201 = vunpack.c.h.b16 %v25
  %v202 = vunpack.c.l.b16 %v26
  %v203 = vunpack.c.h.b16 %v26
  %v204 = vunpack.c.l.b16 %v27
  %v205 = vunpack.c.h.b16 %v27
  %v206 = vunpack.c.l.b16 %v28
  %v207 = vunpack.c.h.b16 %v28
  %v208 = vunpack.c.l.b16 %v29
  %v209 = vunpack.c.h.b16 %v29
  %v210 = vunpack.c.l.b16 %v30
  %v211 = vunpack.c.h.b16 %v30
  %v212 = vunpack.c.l.b16 %v31
  %v213 = vunpack.c.h.b16 %v31
  %v214 = vunpack.c.l.b16 %v32
  %v215 = vunpack.c.h.b16 %v32
  %v216 = vunpack.c.l.b16 %v33
  %v217 = vunpack.c.h.b16 %v33
  %v218 = vunpack.c.l.b16 %v34
  %v219 = vunpack.c.h.b16 %v34
  %v220 = vunpack.c.l.b16 %v35
  %v221 = vunpack.c.h.b16 %v35
  %v222 = vunpack.c.l.b16 %v36
  %v223 = vunpack.c.h.b16 %v36
  %v224 = vunpack.c.l.b16 %v37
  %v225 = vunpack.c.h.b16 %v37
  %v226 = vunpack.c.l.b16 %v38
  %v227 = vunpack.c.h.b16 %v38
  %v228 = vunpack.c.l.b16 %v39
  %v229 = vunpack.c.h.b16 %v39
  %v230 = vunpack.c.l.b16 %v40
  %v231 = vunpack.c.h.b16 %v40
  %v232 = vunpack.c.l.b16 %v41
  %v233 = vunpack.c.h.b16 %v41
  %v234 = vunpack.c.l.b16 %v42
  %v235 = vunpack.c.h.b16 %v42
  %v236 = vunpack.c.l.b16 %v43
  %v237 = vunpack.c.h.b16 %v43
  %v238 = vunpack.c.l.b16 %v44
  %v239 = vunpack.c.h.b16 %v44
  %v240 = vunpack.c.l.b16 %v45
  %v241 = vunpack.c.h.b16 %v45
  %v242 = vunpack.c.l.b16 %v46
  %v243 = vunpack.c.h.b16 %v46
  %v244 = vunpack.c.l.b16 %v47
  %v245 = vunpack.c.h.b16 %v47
  %v246 = vunpack.c.l.b16 %v48
  %v247 = vunpack.c.h.b16 %v48
  %v248 = vunpack.c.l.b16 %v49
  %v249 = vunpack.c.h.b16 %v49
  %v250 = vunpack.c.l.b16 %v50
  %v251 = vunpack.c.h.b16 %v50
  %v252 = vunpack.c.l.b16 %v51
  %v253 = vunpack.c.h.b16 %v51
  %v254 = vunpack.c.l.b16 %v52
  %v255 = vunpack.c.h.b16 %v52
  %v256 = vunpack.c.l.b16 %v53
  %v257 = vunpack.c.h.b16 %v53
  %v258 = vunpack.c.l.b16 %v54
  %v259 = vunpack.c.h.b16 %v54
  %v260 = vunpack.c.l.b16 %v55
  %v261 = vunpack.c.h.b16 %v55
  %v262 = vunpack.c.l.b16 %v56
  %v263 = vunpack.c.h.b16 %v56
  %v264 = vunpack.c.l.b16 %v57
  %v265 = vunpack.c.h.b16 %v57
  %v266 = vunpack.c.l.b16 %v58
  %v267 = vunpack.c.h.b16 %v58
  %v268 = vunpack.c.l.b16 %v59
  %v269 = vunpack.c.h.b16 %v59
  %v270 = vunpack.c.l.b16 %v60
  %v271 = vunpack.c.h.b16 %v60
  %v272 = vunpack.c.l.b16 %v61
  %v273 = vunpack.c.h.b16 %v61
  %v274 = vunpack.c.l.b16 %v62
  %v275 = vunpack.c.h.b16 %v62
  %v276 = vunpack.c.l.b16 %v63
  %v277 = vunpack.c.h.b16 %v63
  %v278 = vunpack.c.l.b16 %v64
  %v279 = vunpack.c.h.b16 %v64
  %v280 = vunpack.c.l.b16 %v65
  %v281 = vunpack.c.h.b16 %v65
  %v282 = vunpack.c.l.b16 %v66
  %v283 = vunpack.c.h.b16 %v66
  %v284 = vunpack.c.l.b16 %v67
  %v285 = vunpack.c.h.b16 %v67
  %v286 = vunpack.c.l.b16 %v68
  %v287 = vunpack.c.h.b16 %v68
  %v288 = vunpack.c.l.b16 %v69
  %v289 = vunpack.c.h.b16 %v69
  %v290 = vunpack.c.l.b16 %v70
  %v291 = vunpack.c.h.b16 %v70
  %v292 = vunpack.c.l.b16 %v71
  %v293 = vunpack.c.h.b16 %v71
  %v294 = vunpack.c.l.b16 %v72
  %v295 = vunpack.c.h.b16 %v72
  %v296 = vunpack.c.l.b16 %v73
  %v297 = vunpack.c.h.b16 %v73
  %v298 = vunpack.c.l.b16 %v74
  %v299 = vunpack.c.h.b16 %v74
  %v300 = vpack.c.b16 %v196, %v192
  %v301 = vpack.c.b16 %v197, %v193
  %v302 = vpack.c.b16 %v198, %v194
  %v303 = vpack.c.b16 %v199, %v195
  %v304 = vpack.c.b16 %v204, %v200
  %v305 = vpack.c.b16 %v205, %v201
  %v306 = vpack.c.b16 %v206, %v202
  %v307 = vpack.c.b16 %v207, %v203
  %v308 = vpack.c.b16 %v212, %v208
  %v309 = vpack.c.b16 %v213, %v209
  %v310 = vpack.c.b16 %v214, %v210
  %v311 = vpack.c.b16 %v215, %v211
  %v312 = vpack.c.b16 %v220, %v216
  %v313 = vpack.c.b16 %v221, %v217
  %v314 = vpack.c.b16 %v222, %v218
  %v315 = vpack.c.b16 %v223, %v219
  %v316 = vpack.c.b16 %v228, %v224
  %v317 = vpack.c.b16 %v229, %v225
  %v318 = vpack.c.b16 %v230, %v226
  %v319 = vpack.c.b16 %v231, %v227
  %v320 = vpack.c.b16 %v236, %v232
  %v321 = vpack.c.b16 %v237, %v233
  %v322 = vpack.c.b16 %v238, %v234
  %v323 = vpack.c.b16 %v239, %v235
  %v324 = vpack.c.b16 %v244, %v240
  %v325 = vpack.c.b16 %v245, %v241
  %v326 = vpack.c.b16 %v246, %v242
  %v327 = vpack.c.b16 %v247, %v243
  %v328 = vpack.c.b16 %v252, %v248
  %v329 = vpack.c.b16 %v253, %v249
  %v330 = vpack.c.b16 %v254, %v250
  %v331 = vpack.c.b16 %v255, %v251
  %v332 = vpack.c.b16 %v260, %v256
  %v333 = vpack.c.b16 %v261, %v257
  %v334 = vpack.c.b16 %v262, %v258
  %v335 = vpack.c.b16 %v263, %v259
  %v336 = vpack.c.b16 %v268, %v264
  %v337 = vpack.c.b16 %v269, %v265
  %v338 = vpack.c.b16 %v270, %v266
  %v339 = vpack.c.b16 %v271, %v267
  %v340 = vpack.c.b16 %v276, %v272
  %v341 = vpack.c.b16 %v277, %v273
  %v342 = vpack.c.b16 %v278, %v274
  %v343 = vpack.c.b16 %v279, %v275
  %v344 = vpack.c.b16 %v284, %v280
  %v345 = vpack.c.b16 %v285, %v281
  %v346 = vpack.c.b16 %v286, %v282
  %v347 = vpack.c.b16 %v287, %v283
  %v348 = vpack.c.b16 %v292, %v288
  %v349 = vpack.c.b16 %v293, %v289
  %v350 = vpack.c.b16 %v294, %v290
  %v351 = vpack.c.b16 %v295, %v291
  %v352 = vpack.c.b16 %v296, %v296
  %v353 = vpack.c.b16 %v297, %v297
  %v354 = vpack.c.b16 %v298, %v298
  %v355 = vpack.c.b16 %v299, %v299
  %vm408 = vcmask 719872
  %v410 = vsel %vm408, %v130, 0
  %v413 = vsel %vm408, %v132, 0
  %v416 = vsel %vm408, %v134, 0
  %vm418 = vcmask 1043456
  %v420 = vsel %vm418, %v352, 0
  %v423 = vsel %vm418, %v353, 0
  %v426 = vsel %vm418, %v354, 0
  %v429 = vsel %vm418, %v355, 0
  %431 = vmatpush.bf16.msra.mxu0 %v328
  %432 = vmatpush.bf16.msra.mxu0 %v324
  %433 = vmatpush.bf16.msra.mxu0 %v320
  %434 = vmatpush.bf16.msra.mxu0 %v316
  %435 = vmatpush.bf16.msra.mxu0 %v312
  %436 = vmatpush.bf16.msra.mxu0 %v308
  %437 = vmatpush.bf16.msra.mxu0 %v304
  %438 = vmatpush.bf16.msra.mxu0 %v300
  %439 = vmatmul.bf16.gmra.mxu0 %v129
  %v440 = vpop.f32.mrf.mxu0
  %v441 = vadd.f32 %v84, %v440
  %v442 = vpop.f32.mrf.mxu0
  %v443 = vadd.f32 %v89, %v442
  %444 = vmatmul.bf16.gmra.mxu0 %v131
  %v445 = vpop.f32.mrf.mxu0
  %v446 = vadd.f32 %v94, %v445
  %v447 = vpop.f32.mrf.mxu0
  %v448 = vadd.f32 %v99, %v447
  %449 = vmatmul.bf16.gmra.mxu0 %v133
  %v450 = vpop.f32.mrf.mxu0
  %v451 = vadd.f32 %v104, %v450
  %v452 = vpop.f32.mrf.mxu0
  %v453 = vadd.f32 %v109, %v452
  %454 = vdwg.mxu0
  %455 = vmatpush.bf16.msra.mxu0 0
  %456 = vmatpush.bf16.msra.mxu0 0
  %457 = vmatpush.bf16.msra.mxu0 %v420
  %458 = vmatpush.bf16.msra.mxu0 %v348
  %459 = vmatpush.bf16.msra.mxu0 %v344
  %460 = vmatpush.bf16.msra.mxu0 %v340
  %461 = vmatpush.bf16.msra.mxu0 %v336
  %462 = vmatpush.bf16.msra.mxu0 %v332
  %463 = vmatmul.bf16.gmra.mxu0 %v410
  %v464 = vpop.f32.mrf.mxu0
  %v465 = vadd.f32 %v441, %v464
  %v466 = vpop.f32.mrf.mxu0
  %v467 = vadd.f32 %v443, %v466
  %468 = vmatmul.bf16.gmra.mxu0 %v413
  %v469 = vpop.f32.mrf.mxu0
  %v470 = vadd.f32 %v446, %v469
  %v471 = vpop.f32.mrf.mxu0
  %v472 = vadd.f32 %v448, %v471
  %473 = vmatmul.bf16.gmra.mxu0 %v416
  %v474 = vpop.f32.mrf.mxu0
  %v475 = vadd.f32 %v451, %v474
  %v476 = vpop.f32.mrf.mxu0
  %v477 = vadd.f32 %v453, %v476
  %478 = vdwg.mxu0
  %479 = vmatpush.bf16.msra.mxu0 %v329
  %480 = vmatpush.bf16.msra.mxu0 %v325
  %481 = vmatpush.bf16.msra.mxu0 %v321
  %482 = vmatpush.bf16.msra.mxu0 %v317
  %483 = vmatpush.bf16.msra.mxu0 %v313
  %484 = vmatpush.bf16.msra.mxu0 %v309
  %485 = vmatpush.bf16.msra.mxu0 %v305
  %486 = vmatpush.bf16.msra.mxu0 %v301
  %487 = vmatmul.bf16.gmra.mxu0 %v129
  %v488 = vpop.f32.mrf.mxu0
  %v489 = vadd.f32 %v84, %v488
  %v490 = vpop.f32.mrf.mxu0
  %v491 = vadd.f32 %v89, %v490
  %492 = vmatmul.bf16.gmra.mxu0 %v131
  %v493 = vpop.f32.mrf.mxu0
  %v494 = vadd.f32 %v94, %v493
  %v495 = vpop.f32.mrf.mxu0
  %v496 = vadd.f32 %v99, %v495
  %497 = vmatmul.bf16.gmra.mxu0 %v133
  %v498 = vpop.f32.mrf.mxu0
  %v499 = vadd.f32 %v104, %v498
  %v500 = vpop.f32.mrf.mxu0
  %v501 = vadd.f32 %v109, %v500
  %502 = vdwg.mxu0
  %503 = vmatpush.bf16.msra.mxu0 0
  %504 = vmatpush.bf16.msra.mxu0 0
  %505 = vmatpush.bf16.msra.mxu0 %v423
  %506 = vmatpush.bf16.msra.mxu0 %v349
  %507 = vmatpush.bf16.msra.mxu0 %v345
  %508 = vmatpush.bf16.msra.mxu0 %v341
  %509 = vmatpush.bf16.msra.mxu0 %v337
  %510 = vmatpush.bf16.msra.mxu0 %v333
  %511 = vmatmul.bf16.gmra.mxu0 %v410
  %v512 = vpop.f32.mrf.mxu0
  %v513 = vadd.f32 %v489, %v512
  %v514 = vpop.f32.mrf.mxu0
  %v515 = vadd.f32 %v491, %v514
  %516 = vmatmul.bf16.gmra.mxu0 %v413
  %v517 = vpop.f32.mrf.mxu0
  %v518 = vadd.f32 %v494, %v517
  %v519 = vpop.f32.mrf.mxu0
  %v520 = vadd.f32 %v496, %v519
  %521 = vmatmul.bf16.gmra.mxu0 %v416
  %v522 = vpop.f32.mrf.mxu0
  %v523 = vadd.f32 %v499, %v522
  %v524 = vpop.f32.mrf.mxu0
  %v525 = vadd.f32 %v501, %v524
  %526 = vdwg.mxu0
  %527 = vmatpush.bf16.msra.mxu0 %v330
  %528 = vmatpush.bf16.msra.mxu0 %v326
  %529 = vmatpush.bf16.msra.mxu0 %v322
  %530 = vmatpush.bf16.msra.mxu0 %v318
  %531 = vmatpush.bf16.msra.mxu0 %v314
  %532 = vmatpush.bf16.msra.mxu0 %v310
  %533 = vmatpush.bf16.msra.mxu0 %v306
  %534 = vmatpush.bf16.msra.mxu0 %v302
  %535 = vmatmul.bf16.gmra.mxu0 %v129
  %v536 = vpop.f32.mrf.mxu0
  %v537 = vadd.f32 %v84, %v536
  %v538 = vpop.f32.mrf.mxu0
  %v539 = vadd.f32 %v89, %v538
  %540 = vmatmul.bf16.gmra.mxu0 %v131
  %v541 = vpop.f32.mrf.mxu0
  %v542 = vadd.f32 %v94, %v541
  %v543 = vpop.f32.mrf.mxu0
  %v544 = vadd.f32 %v99, %v543
  %545 = vmatmul.bf16.gmra.mxu0 %v133
  %v546 = vpop.f32.mrf.mxu0
  %v547 = vadd.f32 %v104, %v546
  %v548 = vpop.f32.mrf.mxu0
  %v549 = vadd.f32 %v109, %v548
  %550 = vdwg.mxu0
  %551 = vmatpush.bf16.msra.mxu0 0
  %552 = vmatpush.bf16.msra.mxu0 0
  %553 = vmatpush.bf16.msra.mxu0 %v426
  %554 = vmatpush.bf16.msra.mxu0 %v350
  %555 = vmatpush.bf16.msra.mxu0 %v346
  %556 = vmatpush.bf16.msra.mxu0 %v342
  %557 = vmatpush.bf16.msra.mxu0 %v338
  %558 = vmatpush.bf16.msra.mxu0 %v334
  %559 = vmatmul.bf16.gmra.mxu0 %v410
  %v560 = vpop.f32.mrf.mxu0
  %v561 = vadd.f32 %v537, %v560
  %v562 = vpop.f32.mrf.mxu0
  %v563 = vadd.f32 %v539, %v562
  %564 = vmatmul.bf16.gmra.mxu0 %v413
  %v565 = vpop.f32.mrf.mxu0
  %v566 = vadd.f32 %v542, %v565
  %v567 = vpop.f32.mrf.mxu0
  %v568 = vadd.f32 %v544, %v567
  %569 = vmatmul.bf16.gmra.mxu0 %v416
  %v570 = vpop.f32.mrf.mxu0
  %v571 = vadd.f32 %v547, %v570
  %v572 = vpop.f32.mrf.mxu0
  %v573 = vadd.f32 %v549, %v572
  %574 = vdwg.mxu0
  %575 = vmatpush.bf16.msra.mxu0 %v331
  %576 = vmatpush.bf16.msra.mxu0 %v327
  %577 = vmatpush.bf16.msra.mxu0 %v323
  %578 = vmatpush.bf16.msra.mxu0 %v319
  %579 = vmatpush.bf16.msra.mxu0 %v315
  %580 = vmatpush.bf16.msra.mxu0 %v311
  %581 = vmatpush.bf16.msra.mxu0 %v307
  %582 = vmatpush.bf16.msra.mxu0 %v303
  %583 = vmatmul.bf16.gmra.mxu0 %v129
  %v584 = vpop.f32.mrf.mxu0
  %v585 = vadd.f32 %v84, %v584
  %v586 = vpop.f32.mrf.mxu0
  %v587 = vadd.f32 %v89, %v586
  %588 = vmatmul.bf16.gmra.mxu0 %v131
  %v589 = vpop.f32.mrf.mxu0
  %v590 = vadd.f32 %v94, %v589
  %v591 = vpop.f32.mrf.mxu0
  %v592 = vadd.f32 %v99, %v591
  %593 = vmatmul.bf16.gmra.mxu0 %v133
  %v594 = vpop.f32.mrf.mxu0
  %v595 = vadd.f32 %v104, %v594
  %v596 = vpop.f32.mrf.mxu0
  %v597 = vadd.f32 %v109, %v596
  %598 = vdwg.mxu0
  %599 = vmatpush.bf16.msra.mxu0 0
  %600 = vmatpush.bf16.msra.mxu0 0
  %601 = vmatpush.bf16.msra.mxu0 %v429
  %602 = vmatpush.bf16.msra.mxu0 %v351
  %603 = vmatpush.bf16.msra.mxu0 %v347
  %604 = vmatpush.bf16.msra.mxu0 %v343
  %605 = vmatpush.bf16.msra.mxu0 %v339
  %606 = vmatpush.bf16.msra.mxu0 %v335
  %607 = vmatmul.bf16.gmra.mxu0 %v410
  %v608 = vpop.f32.mrf.mxu0
  %v609 = vadd.f32 %v585, %v608
  %v610 = vpop.f32.mrf.mxu0
  %v611 = vadd.f32 %v587, %v610
  %612 = vmatmul.bf16.gmra.mxu0 %v413
  %v613 = vpop.f32.mrf.mxu0
  %v614 = vadd.f32 %v590, %v613
  %v615 = vpop.f32.mrf.mxu0
  %v616 = vadd.f32 %v592, %v615
  %617 = vmatmul.bf16.gmra.mxu0 %v416
  %v618 = vpop.f32.mrf.mxu0
  %v619 = vadd.f32 %v595, %v618
  %v620 = vpop.f32.mrf.mxu0
  %v621 = vadd.f32 %v597, %v620
  %622 = vdwg.mxu0
  %v623 = vmax.f32 %v465, 0.0
  %v624 = vmax.f32 %v513, 0.0
  %v625 = vmax.f32 %v561, 0.0
  %v626 = vmax.f32 %v609, 0.0
  %v627 = vmax.f32 %v467, 0.0
  %v628 = vmax.f32 %v515, 0.0
  %v629 = vmax.f32 %v563, 0.0
  %v630 = vmax.f32 %v611, 0.0
  %v631 = vmax.f32 %v470, 0.0
  %v632 = vmax.f32 %v518, 0.0
  %v633 = vmax.f32 %v566, 0.0
  %v634 = vmax.f32 %v614, 0.0
  %v635 = vmax.f32 %v472, 0.0
  %v636 = vmax.f32 %v520, 0.0
  %v637 = vmax.f32 %v568, 0.0
  %v638 = vmax.f32 %v616, 0.0
  %v639 = vmax.f32 %v475, 0.0
  %v640 = vmax.f32 %v523, 0.0
  %v641 = vmax.f32 %v571, 0.0
  %v642 = vmax.f32 %v619, 0.0
  %v643 = vmax.f32 %v477, 0.0
  %v644 = vmax.f32 %v525, 0.0
  %v645 = vmax.f32 %v573, 0.0
  %v646 = vmax.f32 %v621, 0.0
  %v647 = vpack.c.bf16 %v624, %v623
  %v648 = vpack.c.bf16 %v626, %v625
  %v649 = vpack.c.bf16 %v628, %v627
  %v650 = vpack.c.bf16 %v630, %v629
  %v651 = vpack.c.bf16 %v632, %v631
  %v652 = vpack.c.bf16 %v634, %v633
  %v653 = vpack.c.bf16 %v636, %v635
  %v654 = vpack.c.bf16 %v638, %v637
  %v655 = vpack.c.bf16 %v640, %v639
  %v656 = vpack.c.bf16 %v642, %v641
  %v657 = vpack.c.bf16 %v644, %v643
  %v658 = vpack.c.bf16 %v646, %v645
  %659 = vst [vmem:[%s3] sm:$0xff] %v647
  %vm660 = vcmask 64516
  %vm661 = vmor %vm660, %vm418
  %662 = vst.msk [vmem:[%s3 + $0x8] sm:$0xff] %vm661, %v648
  %663 = vst [vmem:[%s3 + $0x10] sm:$0xff] %v649
  %664 = vst.msk [vmem:[%s3 + $0x18] sm:$0xff] %vm661, %v650
  %665 = vst [vmem:[%s3 + $0x20] sm:$0xff] %v651
  %666 = vst.msk [vmem:[%s3 + $0x28] sm:$0xff] %vm661, %v652
  %667 = vst [vmem:[%s3 + $0x30] sm:$0xff] %v653
  %668 = vst.msk [vmem:[%s3 + $0x38] sm:$0xff] %vm661, %v654
  %669 = vst [vmem:[%s3 + $0x40] sm:$0xff] %v655
  %670 = vst.msk [vmem:[%s3 + $0x48] sm:$0xff] %vm661, %v656
  %671 = vst [vmem:[%s3 + $0x50] sm:$0xff] %v657
  %672 = vst.msk [vmem:[%s3 + $0x58] sm:$0xff] %vm661, %v658
  // Predicated region
  $region14: #{reconstructor_forward.10} parent=0 // pred_check
    _
  $region15: #{reconstructor_forward.10} parent=0 // pred_check_branch
    %674 = sbr.rel (0) target = $region17
  $region16: #{reconstructor_forward.10} parent=0 // pred_region
    _
  $region17: #{reconstructor_forward.10} parent=0 // pred_fallthru
    _
  // Predicated region
  $region18: #{reconstructor_forward.10} parent=0 // pred_check
    _
  $region19: #{reconstructor_forward.10} parent=0 // pred_check_branch
    %676 = sbr.rel (0) target = $region21
  $region20: #{reconstructor_forward.10} parent=0 // pred_region
    _
  $region21: #{reconstructor_forward.10} parent=0 // pred_fallthru
    _

// kernel: reconstructor_forward.11
$region0: #{reconstructor_forward.11}
  #allocation0 [shape = 'u32[]', space=smem, size = 0x4, offset = 0x4, fixed_abs, tag = 'smem constant byte address 0x4 - core index']
  #allocation1 [shape = 'u32[72,128]{1,0:T(1,128)}', space=vmem, size = 0x9000, scoped, tag = 'internal scratch']
  %s0 = inlined_call_operand.vmem [shape: bf16[24,108], index: 0, kind: input, shape index: {}]
  %s1 = inlined_call_operand.vmem [shape: bf16[108,1568], index: 1, kind: input, shape index: {}]
  %s2 = inlined_call_operand.vmem [shape: f32[24,1], index: 2, kind: input, shape index: {}]
  %s3 = inlined_call_operand.vmem [shape: bf16[24,1568], index: 3, kind: output, shape index: {}]
  %s4 = sld [smem:[#allocation0]]
  $region22: #{reconstructor_forward.11} parent=0
    _
  %s6 = ssub.s32 1, %s4
  %s7 = scalar_select 0, %s6, %s4
  // Predicated region
  $region2: #{reconstructor_forward.11} parent=0 // pred_check
    _
  $region3: #{reconstructor_forward.11} parent=0 // pred_check_branch
    %9 = sbr.rel (0) target = $region5
  $region4: #{reconstructor_forward.11} parent=0 // pred_region
    _
  $region5: #{reconstructor_forward.11} parent=0 // pred_fallthru
    _
  // Predicated region
  $region6: #{reconstructor_forward.11} parent=0 // pred_check
    _
  $region7: #{reconstructor_forward.11} parent=0 // pred_check_branch
    %11 = sbr.rel (0) target = $region9
  $region8: #{reconstructor_forward.11} parent=0 // pred_region
    _
  $region9: #{reconstructor_forward.11} parent=0 // pred_fallthru
    _
  // Predicated region
  $region10: #{reconstructor_forward.11} parent=0 // pred_check
    _
  $region11: #{reconstructor_forward.11} parent=0 // pred_check_branch
    %13 = sbr.rel (0) target = $region13
  $region12: #{reconstructor_forward.11} parent=0 // pred_region
    _
  $region13: #{reconstructor_forward.11} parent=0 // pred_fallthru
    _
  %v15 = vld [vmem:[%s0] sm:$0xf]
  %v16 = vld [vmem:[%s0 + $0x4] sm:$0xf]
  %v17 = vld [vmem:[%s0 + $0x8] sm:$0xf]
  %v18 = vld [vmem:[%s1] sm:$0xff]
  %v19 = vld [vmem:[%s1 + $0x8] sm:$0xff]
  %v20 = vld [vmem:[%s1 + $0x10] sm:$0xff]
  %v21 = vld [vmem:[%s1 + $0x18] sm:$0xff]
  %v22 = vld [vmem:[%s1 + $0x20] sm:$0xff]
  %v23 = vld [vmem:[%s1 + $0x28] sm:$0xff]
  %v24 = vld [vmem:[%s1 + $0x30] sm:$0xf]
  %v25 = vld [vmem:[%s1 + $0x34] sm:$0xff]
  %v26 = vld [vmem:[%s1 + $0x3c] sm:$0xff]
  %v27 = vld [vmem:[%s1 + $0x44] sm:$0xff]
  %v28 = vld [vmem:[%s1 + $0x4c] sm:$0xff]
  %v29 = vld [vmem:[%s1 + $0x54] sm:$0xff]
  %v30 = vld [vmem:[%s1 + $0x5c] sm:$0xff]
  %v31 = vld [vmem:[%s1 + $0x64] sm:$0xf]
  %v32 = vld [vmem:[%s1 + $0x68] sm:$0xff]
  %v33 = vld [vmem:[%s1 + $0x70] sm:$0xff]
  %v34 = vld [vmem:[%s1 + $0x78] sm:$0xff]
  %v35 = vld [vmem:[%s1 + $0x80] sm:$0xff]
  %v36 = vld [vmem:[%s1 + $0x88] sm:$0xff]
  %v37 = vld [vmem:[%s1 + $0x90] sm:$0xff]
  %v38 = vld [vmem:[%s1 + $0x98] sm:$0xf]
  %v39 = vld [vmem:[%s1 + $0x9c] sm:$0xff]
  %v40 = vld [vmem:[%s1 + $0xa4] sm:$0xff]
  %v41 = vld [vmem:[%s1 + $0xac] sm:$0xff]
  %v42 = vld [vmem:[%s1 + $0xb4] sm:$0xff]
  %v43 = vld [vmem:[%s1 + $0xbc] sm:$0xff]
  %v44 = vld [vmem:[%s1 + $0xc4] sm:$0xff]
  %v45 = vld [vmem:[%s1 + $0xcc] sm:$0xf]
  %v46 = vld [vmem:[%s1 + $0xd0] sm:$0xff]
  %v47 = vld [vmem:[%s1 + $0xd8] sm:$0xff]
  %v48 = vld [vmem:[%s1 + $0xe0] sm:$0xff]
  %v49 = vld [vmem:[%s1 + $0xe8] sm:$0xff]
  %v50 = vld [vmem:[%s1 + $0xf0] sm:$0xff]
  %v51 = vld [vmem:[%s1 + $0xf8] sm:$0xff]
  %v52 = vld [vmem:[%s1 + $0x100] sm:$0xf]
  %v53 = vld [vmem:[%s1 + $0x104] sm:$0xff]
  %v54 = vld [vmem:[%s1 + $0x10c] sm:$0xff]
  %v55 = vld [vmem:[%s1 + $0x114] sm:$0xff]
  %v56 = vld [vmem:[%s1 + $0x11c] sm:$0xff]
  %v57 = vld [vmem:[%s1 + $0x124] sm:$0xff]
  %v58 = vld [vmem:[%s1 + $0x12c] sm:$0xff]
  %v59 = vld [vmem:[%s1 + $0x134] sm:$0xf]
  %v60 = vld [vmem:[%s1 + $0x138] sm:$0xff]
  %v61 = vld [vmem:[%s1 + $0x140] sm:$0xff]
  %v62 = vld [vmem:[%s1 + $0x148] sm:$0xff]
  %v63 = vld [vmem:[%s1 + $0x150] sm:$0xff]
  %v64 = vld [vmem:[%s1 + $0x158] sm:$0xff]
  %v65 = vld [vmem:[%s1 + $0x160] sm:$0xff]
  %v66 = vld [vmem:[%s1 + $0x168] sm:$0xf]
  %v67 = vld [vmem:[%s1 + $0x16c] sm:$0xff]
  %v68 = vld [vmem:[%s1 + $0x174] sm:$0xff]
  %v69 = vld [vmem:[%s1 + $0x17c] sm:$0xff]
  %v70 = vld [vmem:[%s1 + $0x184] sm:$0xff]
  %v71 = vld [vmem:[%s1 + $0x18c] sm:$0xff]
  %v72 = vld [vmem:[%s1 + $0x194] sm:$0xff]
  %v73 = vld [vmem:[%s1 + $0x19c] sm:$0xf]
  %v74 = vld [vmem:[%s1 + $0x1a0] sm:$0xff]
  %v75 = vld [vmem:[%s1 + $0x1a8] sm:$0xff]
  %v76 = vld [vmem:[%s1 + $0x1b0] sm:$0xff]
  %v77 = vld [vmem:[%s1 + $0x1b8] sm:$0xff]
  %v78 = vld [vmem:[%s1 + $0x1c0] sm:$0xff]
  %v79 = vld [vmem:[%s1 + $0x1c8] sm:$0xff]
  %v80 = vld [vmem:[%s1 + $0x1d0] sm:$0xf]
  %v81 = vld [vmem:[%s1 + $0x1d4] sm:$0xff]
  %v82 = vld [vmem:[%s1 + $0x1dc] sm:$0xff]
  %v83 = vld [vmem:[%s1 + $0x1e4] sm:$0xff]
  %v84 = vld [vmem:[%s1 + $0x1ec] sm:$0xff]
  %v85 = vld [vmem:[%s1 + $0x1f4] sm:$0xff]
  %v86 = vld [vmem:[%s1 + $0x1fc] sm:$0xff]
  %v87 = vld [vmem:[%s1 + $0x204] sm:$0xf]
  %v88 = vld [vmem:[%s1 + $0x208] sm:$0xff]
  %v89 = vld [vmem:[%s1 + $0x210] sm:$0xff]
  %v90 = vld [vmem:[%s1 + $0x218] sm:$0xff]
  %v91 = vld [vmem:[%s1 + $0x220] sm:$0xff]
  %v92 = vld [vmem:[%s1 + $0x228] sm:$0xff]
  %v93 = vld [vmem:[%s1 + $0x230] sm:$0xff]
  %v94 = vld [vmem:[%s1 + $0x238] sm:$0xf]
  %v95 = vld [vmem:[%s1 + $0x23c] sm:$0xff]
  %v96 = vld [vmem:[%s1 + $0x244] sm:$0xff]
  %v97 = vld [vmem:[%s1 + $0x24c] sm:$0xff]
  %v98 = vld [vmem:[%s1 + $0x254] sm:$0xff]
  %v99 = vld [vmem:[%s1 + $0x25c] sm:$0xff]
  %v100 = vld [vmem:[%s1 + $0x264] sm:$0xff]
  %v101 = vld [vmem:[%s1 + $0x26c] sm:$0xf]
  %v102 = vld [vmem:[%s1 + $0x270] sm:$0xff]
  %v103 = vld [vmem:[%s1 + $0x278] sm:$0xff]
  %v104 = vld [vmem:[%s1 + $0x280] sm:$0xff]
  %v105 = vld [vmem:[%s1 + $0x288] sm:$0xff]
  %v106 = vld [vmem:[%s1 + $0x290] sm:$0xff]
  %v107 = vld [vmem:[%s1 + $0x298] sm:$0xff]
  %v108 = vld [vmem:[%s1 + $0x2a0] sm:$0xf]
  %v109 = vld [vmem:[%s1 + $0x2a4] sm:$0x33]
  %v110 = vld [vmem:[%s1 + $0x2ac] sm:$0x33]
  %v111 = vld [vmem:[%s1 + $0x2b4] sm:$0x33]
  %v112 = vld [vmem:[%s1 + $0x2bc] sm:$0x33]
  %v113 = vld [vmem:[%s1 + $0x2c4] sm:$0x33]
  %v114 = vld [vmem:[%s1 + $0x2cc] sm:$0x33]
  %v115 = vld [vmem:[%s1 + $0x2d4] sm:$0x3]
  %v116 = vld [vmem:[%s2] sm:$0xff]
  %v117 = vld [vmem:[%s2 + $0x8] sm:$0xff]
  %v118 = vld [vmem:[%s2 + $0x10] sm:$0xff]
  %120 = vset.pattern.permute.xlu0 0
  %121 = vperm.xlu0 %120, %v116
  %v122 = vpop.permute.xlu0 %121
  %125 = vset.pattern.permute.xlu0 0
  %126 = vperm.xlu0 %125, %v117
  %v127 = vpop.permute.xlu0 %126
  %130 = vset.pattern.permute.xlu0 0
  %131 = vperm.xlu0 %130, %v118
  %v132 = vpop.permute.xlu0 %131
  %v137 = vunpack.c.l.b16 %v15
  %v138 = vunpack.c.l.b16 %v16
  %v139 = vunpack.c.l.b16 %v17
  %v140 = vpack.c.b16 %v138, %v137
  %v141 = vpack.c.b16 %v139, %v139
  %v240 = vunpack.c.l.b16 %v18
  %v241 = vunpack.c.h.b16 %v18
  %v242 = vunpack.c.l.b16 %v19
  %v243 = vunpack.c.h.b16 %v19
  %v244 = vunpack.c.l.b16 %v20
  %v245 = vunpack.c.h.b16 %v20
  %v246 = vunpack.c.l.b16 %v21
  %v247 = vunpack.c.h.b16 %v21
  %v248 = vunpack.c.l.b16 %v22
  %v249 = vunpack.c.h.b16 %v22
  %v250 = vunpack.c.l.b16 %v23
  %v251 = vunpack.c.h.b16 %v23
  %v252 = vunpack.c.l.b16 %v24
  %v253 = vunpack.c.l.b16 %v25
  %v254 = vunpack.c.h.b16 %v25
  %v255 = vunpack.c.l.b16 %v26
  %v256 = vunpack.c.h.b16 %v26
  %v257 = vunpack.c.l.b16 %v27
  %v258 = vunpack.c.h.b16 %v27
  %v259 = vunpack.c.l.b16 %v28
  %v260 = vunpack.c.h.b16 %v28
  %v261 = vunpack.c.l.b16 %v29
  %v262 = vunpack.c.h.b16 %v29
  %v263 = vunpack.c.l.b16 %v30
  %v264 = vunpack.c.h.b16 %v30
  %v265 = vunpack.c.l.b16 %v31
  %v266 = vunpack.c.l.b16 %v32
  %v267 = vunpack.c.h.b16 %v32
  %v268 = vunpack.c.l.b16 %v33
  %v269 = vunpack.c.h.b16 %v33
  %v270 = vunpack.c.l.b16 %v34
  %v271 = vunpack.c.h.b16 %v34
  %v272 = vunpack.c.l.b16 %v35
  %v273 = vunpack.c.h.b16 %v35
  %v274 = vunpack.c.l.b16 %v36
  %v275 = vunpack.c.h.b16 %v36
  %v276 = vunpack.c.l.b16 %v37
  %v277 = vunpack.c.h.b16 %v37
  %v278 = vunpack.c.l.b16 %v38
  %v279 = vunpack.c.l.b16 %v39
  %v280 = vunpack.c.h.b16 %v39
  %v281 = vunpack.c.l.b16 %v40
  %v282 = vunpack.c.h.b16 %v40
  %v283 = vunpack.c.l.b16 %v41
  %v284 = vunpack.c.h.b16 %v41
  %v285 = vunpack.c.l.b16 %v42
  %v286 = vunpack.c.h.b16 %v42
  %v287 = vunpack.c.l.b16 %v43
  %v288 = vunpack.c.h.b16 %v43
  %v289 = vunpack.c.l.b16 %v44
  %v290 = vunpack.c.h.b16 %v44
  %v291 = vunpack.c.l.b16 %v45
  %v292 = vunpack.c.l.b16 %v46
  %v293 = vunpack.c.h.b16 %v46
  %v294 = vunpack.c.l.b16 %v47
  %v295 = vunpack.c.h.b16 %v47
  %v296 = vunpack.c.l.b16 %v48
  %v297 = vunpack.c.h.b16 %v48
  %v298 = vunpack.c.l.b16 %v49
  %v299 = vunpack.c.h.b16 %v49
  %v300 = vunpack.c.l.b16 %v50
  %v301 = vunpack.c.h.b16 %v50
  %v302 = vunpack.c.l.b16 %v51
  %v303 = vunpack.c.h.b16 %v51
  %v304 = vunpack.c.l.b16 %v52
  %v305 = vunpack.c.l.b16 %v53
  %v306 = vunpack.c.h.b16 %v53
  %v307 = vunpack.c.l.b16 %v54
  %v308 = vunpack.c.h.b16 %v54
  %v309 = vunpack.c.l.b16 %v55
  %v310 = vunpack.c.h.b16 %v55
  %v311 = vunpack.c.l.b16 %v56
  %v312 = vunpack.c.h.b16 %v56
  %v313 = vunpack.c.l.b16 %v57
  %v314 = vunpack.c.h.b16 %v57
  %v315 = vunpack.c.l.b16 %v58
  %v316 = vunpack.c.h.b16 %v58
  %v317 = vunpack.c.l.b16 %v59
  %v318 = vunpack.c.l.b16 %v60
  %v319 = vunpack.c.h.b16 %v60
  %v320 = vunpack.c.l.b16 %v61
  %v321 = vunpack.c.h.b16 %v61
  %v322 = vunpack.c.l.b16 %v62
  %v323 = vunpack.c.h.b16 %v62
  %v324 = vunpack.c.l.b16 %v63
  %v325 = vunpack.c.h.b16 %v63
  %v326 = vunpack.c.l.b16 %v64
  %v327 = vunpack.c.h.b16 %v64
  %v328 = vunpack.c.l.b16 %v65
  %v329 = vunpack.c.h.b16 %v65
  %v330 = vunpack.c.l.b16 %v66
  %v331 = vunpack.c.l.b16 %v67
  %v332 = vunpack.c.h.b16 %v67
  %v333 = vunpack.c.l.b16 %v68
  %v334 = vunpack.c.h.b16 %v68
  %v335 = vunpack.c.l.b16 %v69
  %v336 = vunpack.c.h.b16 %v69
  %v337 = vunpack.c.l.b16 %v70
  %v338 = vunpack.c.h.b16 %v70
  %v339 = vunpack.c.l.b16 %v71
  %v340 = vunpack.c.h.b16 %v71
  %v341 = vunpack.c.l.b16 %v72
  %v342 = vunpack.c.h.b16 %v72
  %v343 = vunpack.c.l.b16 %v73
  %v344 = vunpack.c.l.b16 %v74
  %v345 = vunpack.c.h.b16 %v74
  %v346 = vunpack.c.l.b16 %v75
  %v347 = vunpack.c.h.b16 %v75
  %v348 = vunpack.c.l.b16 %v76
  %v349 = vunpack.c.h.b16 %v76
  %v350 = vunpack.c.l.b16 %v77
  %v351 = vunpack.c.h.b16 %v77
  %v352 = vunpack.c.l.b16 %v78
  %v353 = vunpack.c.h.b16 %v78
  %v354 = vunpack.c.l.b16 %v79
  %v355 = vunpack.c.h.b16 %v79
  %v356 = vunpack.c.l.b16 %v80
  %v357 = vunpack.c.l.b16 %v81
  %v358 = vunpack.c.h.b16 %v81
  %v359 = vunpack.c.l.b16 %v82
  %v360 = vunpack.c.h.b16 %v82
  %v361 = vunpack.c.l.b16 %v83
  %v362 = vunpack.c.h.b16 %v83
  %v363 = vunpack.c.l.b16 %v84
  %v364 = vunpack.c.h.b16 %v84
  %v365 = vunpack.c.l.b16 %v85
  %v366 = vunpack.c.h.b16 %v85
  %v367 = vunpack.c.l.b16 %v86
  %v368 = vunpack.c.h.b16 %v86
  %v369 = vunpack.c.l.b16 %v87
  %v370 = vunpack.c.l.b16 %v88
  %v371 = vunpack.c.h.b16 %v88
  %v372 = vunpack.c.l.b16 %v89
  %v373 = vunpack.c.h.b16 %v89
  %v374 = vunpack.c.l.b16 %v90
  %v375 = vunpack.c.h.b16 %v90
  %v376 = vunpack.c.l.b16 %v91
  %v377 = vunpack.c.h.b16 %v91
  %v378 = vunpack.c.l.b16 %v92
  %v379 = vunpack.c.h.b16 %v92
  %v380 = vunpack.c.l.b16 %v93
  %v381 = vunpack.c.h.b16 %v93
  %v382 = vunpack.c.l.b16 %v94
  %v383 = vunpack.c.l.b16 %v95
  %v384 = vunpack.c.h.b16 %v95
  %v385 = vunpack.c.l.b16 %v96
  %v386 = vunpack.c.h.b16 %v96
  %v387 = vunpack.c.l.b16 %v97
  %v388 = vunpack.c.h.b16 %v97
  %v389 = vunpack.c.l.b16 %v98
  %v390 = vunpack.c.h.b16 %v98
  %v391 = vunpack.c.l.b16 %v99
  %v392 = vunpack.c.h.b16 %v99
  %v393 = vunpack.c.l.b16 %v100
  %v394 = vunpack.c.h.b16 %v100
  %v395 = vunpack.c.l.b16 %v101
  %v396 = vunpack.c.l.b16 %v102
  %v397 = vunpack.c.h.b16 %v102
  %v398 = vunpack.c.l.b16 %v103
  %v399 = vunpack.c.h.b16 %v103
  %v400 = vunpack.c.l.b16 %v104
  %v401 = vunpack.c.h.b16 %v104
  %v402 = vunpack.c.l.b16 %v105
  %v403 = vunpack.c.h.b16 %v105
  %v404 = vunpack.c.l.b16 %v106
  %v405 = vunpack.c.h.b16 %v106
  %v406 = vunpack.c.l.b16 %v107
  %v407 = vunpack.c.h.b16 %v107
  %v408 = vunpack.c.l.b16 %v108
  %v409 = vunpack.c.l.b16 %v109
  %v410 = vunpack.c.h.b16 %v109
  %v411 = vunpack.c.l.b16 %v110
  %v412 = vunpack.c.h.b16 %v110
  %v413 = vunpack.c.l.b16 %v111
  %v414 = vunpack.c.h.b16 %v111
  %v415 = vunpack.c.l.b16 %v112
  %v416 = vunpack.c.h.b16 %v112
  %v417 = vunpack.c.l.b16 %v113
  %v418 = vunpack.c.h.b16 %v113
  %v419 = vunpack.c.l.b16 %v114
  %v420 = vunpack.c.h.b16 %v114
  %v421 = vunpack.c.l.b16 %v115
  %v422 = vpack.c.b16 %v253, %v240
  %v423 = vpack.c.b16 %v254, %v241
  %v424 = vpack.c.b16 %v255, %v242
  %v425 = vpack.c.b16 %v256, %v243
  %v426 = vpack.c.b16 %v257, %v244
  %v427 = vpack.c.b16 %v258, %v245
  %v428 = vpack.c.b16 %v259, %v246
  %v429 = vpack.c.b16 %v260, %v247
  %v430 = vpack.c.b16 %v261, %v248
  %v431 = vpack.c.b16 %v262, %v249
  %v432 = vpack.c.b16 %v263, %v250
  %v433 = vpack.c.b16 %v264, %v251
  %v434 = vpack.c.b16 %v265, %v252
  %v435 = vpack.c.b16 %v279, %v266
  %v436 = vpack.c.b16 %v280, %v267
  %v437 = vpack.c.b16 %v281, %v268
  %v438 = vpack.c.b16 %v282, %v269
  %v439 = vpack.c.b16 %v283, %v270
  %v440 = vpack.c.b16 %v284, %v271
  %v441 = vpack.c.b16 %v285, %v272
  %v442 = vpack.c.b16 %v286, %v273
  %v443 = vpack.c.b16 %v287, %v274
  %v444 = vpack.c.b16 %v288, %v275
  %v445 = vpack.c.b16 %v289, %v276
  %v446 = vpack.c.b16 %v290, %v277
  %v447 = vpack.c.b16 %v291, %v278
  %v448 = vpack.c.b16 %v305, %v292
  %v449 = vpack.c.b16 %v306, %v293
  %v450 = vpack.c.b16 %v307, %v294
  %v451 = vpack.c.b16 %v308, %v295
  %v452 = vpack.c.b16 %v309, %v296
  %v453 = vpack.c.b16 %v310, %v297
  %v454 = vpack.c.b16 %v311, %v298
  %v455 = vpack.c.b16 %v312, %v299
  %v456 = vpack.c.b16 %v313, %v300
  %v457 = vpack.c.b16 %v314, %v301
  %v458 = vpack.c.b16 %v315, %v302
  %v459 = vpack.c.b16 %v316, %v303
  %v460 = vpack.c.b16 %v317, %v304
  %v461 = vpack.c.b16 %v331, %v318
  %v462 = vpack.c.b16 %v332, %v319
  %v463 = vpack.c.b16 %v333, %v320
  %v464 = vpack.c.b16 %v334, %v321
  %v465 = vpack.c.b16 %v335, %v322
  %v466 = vpack.c.b16 %v336, %v323
  %v467 = vpack.c.b16 %v337, %v324
  %v468 = vpack.c.b16 %v338, %v325
  %v469 = vpack.c.b16 %v339, %v326
  %v470 = vpack.c.b16 %v340, %v327
  %v471 = vpack.c.b16 %v341, %v328
  %v472 = vpack.c.b16 %v342, %v329
  %v473 = vpack.c.b16 %v343, %v330
  %v474 = vpack.c.b16 %v357, %v344
  %v475 = vpack.c.b16 %v358, %v345
  %v476 = vpack.c.b16 %v359, %v346
  %v477 = vpack.c.b16 %v360, %v347
  %v478 = vpack.c.b16 %v361, %v348
  %v479 = vpack.c.b16 %v362, %v349
  %v480 = vpack.c.b16 %v363, %v350
  %v481 = vpack.c.b16 %v364, %v351
  %v482 = vpack.c.b16 %v365, %v352
  %v483 = vpack.c.b16 %v366, %v353
  %v484 = vpack.c.b16 %v367, %v354
  %v485 = vpack.c.b16 %v368, %v355
  %v486 = vpack.c.b16 %v369, %v356
  %v487 = vpack.c.b16 %v383, %v370
  %v488 = vpack.c.b16 %v384, %v371
  %v489 = vpack.c.b16 %v385, %v372
  %v490 = vpack.c.b16 %v386, %v373
  %v491 = vpack.c.b16 %v387, %v374
  %v492 = vpack.c.b16 %v388, %v375
  %v493 = vpack.c.b16 %v389, %v376
  %v494 = vpack.c.b16 %v390, %v377
  %v495 = vpack.c.b16 %v391, %v378
  %v496 = vpack.c.b16 %v392, %v379
  %v497 = vpack.c.b16 %v393, %v380
  %v498 = vpack.c.b16 %v394, %v381
  %v499 = vpack.c.b16 %v395, %v382
  %v500 = vpack.c.b16 %v409, %v396
  %v501 = vpack.c.b16 %v410, %v397
  %v502 = vpack.c.b16 %v411, %v398
  %v503 = vpack.c.b16 %v412, %v399
  %v504 = vpack.c.b16 %v413, %v400
  %v505 = vpack.c.b16 %v414, %v401
  %v506 = vpack.c.b16 %v415, %v402
  %v507 = vpack.c.b16 %v416, %v403
  %v508 = vpack.c.b16 %v417, %v404
  %v509 = vpack.c.b16 %v418, %v405
  %v510 = vpack.c.b16 %v419, %v406
  %v511 = vpack.c.b16 %v420, %v407
  %v512 = vpack.c.b16 %v421, %v408
  %vm591 = vcmask 883712
  %v593 = vsel %vm591, %v140, 0
  %v596 = vsel %vm591, %v141, 0
  %vm598 = vcmask 1045504
  %v600 = vsel %vm598, %v500, 0
  %v603 = vsel %vm598, %v501, 0
  %v606 = vsel %vm598, %v502, 0
  %v609 = vsel %vm598, %v503, 0
  %v612 = vsel %vm598, %v504, 0
  %v615 = vsel %vm598, %v505, 0
  %v618 = vsel %vm598, %v506, 0
  %v621 = vsel %vm598, %v507, 0
  %v624 = vsel %vm598, %v508, 0
  %v627 = vsel %vm598, %v509, 0
  %v630 = vsel %vm598, %v510, 0
  %v633 = vsel %vm598, %v511, 0
  %v636 = vsel %vm598, %v512, 0
  %638 = vmatpush.bf16.msra.mxu0 0
  %639 = vmatpush.bf16.msra.mxu0 %v600
  %640 = vmatpush.bf16.msra.mxu0 %v487
  %641 = vmatpush.bf16.msra.mxu0 %v474
  %642 = vmatpush.bf16.msra.mxu0 %v461
  %643 = vmatpush.bf16.msra.mxu0 %v448
  %644 = vmatpush.bf16.msra.mxu0 %v435
  %645 = vmatpush.bf16.msra.mxu0 %v422
  %646 = vmatmul.bf16.gmra.mxu0 %v593
  %v647 = vpop.f32.mrf.mxu0
  %v648 = vadd.f32 %v122, %v647
  %v649 = vpop.f32.mrf.mxu0
  %v650 = vadd.f32 %v127, %v649
  %651 = vmatmul.bf16.gmra.mxu0 %v596
  %v652 = vpop.f32.mrf.mxu0
  %v653 = vadd.f32 %v132, %v652
  %v654 = vpop.f32.mrf.mxu0
  %655 = vdwg.mxu0
  %656 = vmatpush.bf16.msra.mxu0 0
  %657 = vmatpush.bf16.msra.mxu0 %v603
  %658 = vmatpush.bf16.msra.mxu0 %v488
  %659 = vmatpush.bf16.msra.mxu0 %v475
  %660 = vmatpush.bf16.msra.mxu0 %v462
  %661 = vmatpush.bf16.msra.mxu0 %v449
  %662 = vmatpush.bf16.msra.mxu0 %v436
  %663 = vmatpush.bf16.msra.mxu0 %v423
  %664 = vmatmul.bf16.gmra.mxu0 %v593
  %v665 = vpop.f32.mrf.mxu0
  %v666 = vadd.f32 %v122, %v665
  %v667 = vpop.f32.mrf.mxu0
  %v668 = vadd.f32 %v127, %v667
  %669 = vmatmul.bf16.gmra.mxu0 %v596
  %v670 = vpop.f32.mrf.mxu0
  %v671 = vadd.f32 %v132, %v670
  %v672 = vpop.f32.mrf.mxu0
  %673 = vdwg.mxu0
  %674 = vmatpush.bf16.msra.mxu0 0
  %675 = vmatpush.bf16.msra.mxu0 %v606
  %676 = vmatpush.bf16.msra.mxu0 %v489
  %677 = vmatpush.bf16.msra.mxu0 %v476
  %678 = vmatpush.bf16.msra.mxu0 %v463
  %679 = vmatpush.bf16.msra.mxu0 %v450
  %680 = vmatpush.bf16.msra.mxu0 %v437
  %681 = vmatpush.bf16.msra.mxu0 %v424
  %682 = vmatmul.bf16.gmra.mxu0 %v593
  %v683 = vpop.f32.mrf.mxu0
  %v684 = vadd.f32 %v122, %v683
  %v685 = vpop.f32.mrf.mxu0
  %v686 = vadd.f32 %v127, %v685
  %687 = vmatmul.bf16.gmra.mxu0 %v596
  %v688 = vpop.f32.mrf.mxu0
  %v689 = vadd.f32 %v132, %v688
  %v690 = vpop.f32.mrf.mxu0
  %691 = vdwg.mxu0
  %692 = vmatpush.bf16.msra.mxu0 0
  %693 = vmatpush.bf16.msra.mxu0 %v609
  %694 = vmatpush.bf16.msra.mxu0 %v490
  %695 = vmatpush.bf16.msra.mxu0 %v477
  %696 = vmatpush.bf16.msra.mxu0 %v464
  %697 = vmatpush.bf16.msra.mxu0 %v451
  %698 = vmatpush.bf16.msra.mxu0 %v438
  %699 = vmatpush.bf16.msra.mxu0 %v425
  %700 = vmatmul.bf16.gmra.mxu0 %v593
  %v701 = vpop.f32.mrf.mxu0
  %v702 = vadd.f32 %v122, %v701
  %v703 = vpop.f32.mrf.mxu0
  %v704 = vadd.f32 %v127, %v703
  %705 = vmatmul.bf16.gmra.mxu0 %v596
  %v706 = vpop.f32.mrf.mxu0
  %v707 = vadd.f32 %v132, %v706
  %v708 = vpop.f32.mrf.mxu0
  %709 = vdwg.mxu0
  %710 = vmatpush.bf16.msra.mxu0 0
  %711 = vmatpush.bf16.msra.mxu0 %v612
  %712 = vmatpush.bf16.msra.mxu0 %v491
  %713 = vmatpush.bf16.msra.mxu0 %v478
  %714 = vmatpush.bf16.msra.mxu0 %v465
  %715 = vmatpush.bf16.msra.mxu0 %v452
  %716 = vmatpush.bf16.msra.mxu0 %v439
  %717 = vmatpush.bf16.msra.mxu0 %v426
  %718 = vmatmul.bf16.gmra.mxu0 %v593
  %v719 = vpop.f32.mrf.mxu0
  %v720 = vadd.f32 %v122, %v719
  %v721 = vpop.f32.mrf.mxu0
  %v722 = vadd.f32 %v127, %v721
  %723 = vmatmul.bf16.gmra.mxu0 %v596
  %v724 = vpop.f32.mrf.mxu0
  %v725 = vadd.f32 %v132, %v724
  %v726 = vpop.f32.mrf.mxu0
  %727 = vdwg.mxu0
  %728 = vmatpush.bf16.msra.mxu0 0
  %729 = vmatpush.bf16.msra.mxu0 %v615
  %730 = vmatpush.bf16.msra.mxu0 %v492
  %731 = vmatpush.bf16.msra.mxu0 %v479
  %732 = vmatpush.bf16.msra.mxu0 %v466
  %733 = vmatpush.bf16.msra.mxu0 %v453
  %734 = vmatpush.bf16.msra.mxu0 %v440
  %735 = vmatpush.bf16.msra.mxu0 %v427
  %736 = vmatmul.bf16.gmra.mxu0 %v593
  %v737 = vpop.f32.mrf.mxu0
  %v738 = vadd.f32 %v122, %v737
  %v739 = vpop.f32.mrf.mxu0
  %v740 = vadd.f32 %v127, %v739
  %741 = vmatmul.bf16.gmra.mxu0 %v596
  %v742 = vpop.f32.mrf.mxu0
  %v743 = vadd.f32 %v132, %v742
  %v744 = vpop.f32.mrf.mxu0
  %745 = vdwg.mxu0
  %746 = vmatpush.bf16.msra.mxu0 0
  %747 = vmatpush.bf16.msra.mxu0 %v618
  %748 = vmatpush.bf16.msra.mxu0 %v493
  %749 = vmatpush.bf16.msra.mxu0 %v480
  %750 = vmatpush.bf16.msra.mxu0 %v467
  %751 = vmatpush.bf16.msra.mxu0 %v454
  %752 = vmatpush.bf16.msra.mxu0 %v441
  %753 = vmatpush.bf16.msra.mxu0 %v428
  %754 = vmatmul.bf16.gmra.mxu0 %v593
  %v755 = vpop.f32.mrf.mxu0
  %v756 = vadd.f32 %v122, %v755
  %v757 = vpop.f32.mrf.mxu0
  %v758 = vadd.f32 %v127, %v757
  %759 = vmatmul.bf16.gmra.mxu0 %v596
  %v760 = vpop.f32.mrf.mxu0
  %v761 = vadd.f32 %v132, %v760
  %v762 = vpop.f32.mrf.mxu0
  %763 = vdwg.mxu0
  %764 = vmatpush.bf16.msra.mxu0 0
  %765 = vmatpush.bf16.msra.mxu0 %v621
  %766 = vmatpush.bf16.msra.mxu0 %v494
  %767 = vmatpush.bf16.msra.mxu0 %v481
  %768 = vmatpush.bf16.msra.mxu0 %v468
  %769 = vmatpush.bf16.msra.mxu0 %v455
  %770 = vmatpush.bf16.msra.mxu0 %v442
  %771 = vmatpush.bf16.msra.mxu0 %v429
  %772 = vmatmul.bf16.gmra.mxu0 %v593
  %v773 = vpop.f32.mrf.mxu0
  %v774 = vadd.f32 %v122, %v773
  %v775 = vpop.f32.mrf.mxu0
  %v776 = vadd.f32 %v127, %v775
  %777 = vmatmul.bf16.gmra.mxu0 %v596
  %v778 = vpop.f32.mrf.mxu0
  %v779 = vadd.f32 %v132, %v778
  %v780 = vpop.f32.mrf.mxu0
  %781 = vdwg.mxu0
  %782 = vmatpush.bf16.msra.mxu0 0
  %783 = vmatpush.bf16.msra.mxu0 %v624
  %784 = vmatpush.bf16.msra.mxu0 %v495
  %785 = vmatpush.bf16.msra.mxu0 %v482
  %786 = vmatpush.bf16.msra.mxu0 %v469
  %787 = vmatpush.bf16.msra.mxu0 %v456
  %788 = vmatpush.bf16.msra.mxu0 %v443
  %789 = vmatpush.bf16.msra.mxu0 %v430
  %790 = vmatmul.bf16.gmra.mxu0 %v593
  %v791 = vpop.f32.mrf.mxu0
  %v792 = vadd.f32 %v122, %v791
  %v793 = vpop.f32.mrf.mxu0
  %v794 = vadd.f32 %v127, %v793
  %795 = vmatmul.bf16.gmra.mxu0 %v596
  %v796 = vpop.f32.mrf.mxu0
  %v797 = vadd.f32 %v132, %v796
  %v798 = vpop.f32.mrf.mxu0
  %799 = vdwg.mxu0
  %800 = vmatpush.bf16.msra.mxu0 0
  %801 = vmatpush.bf16.msra.mxu0 %v627
  %802 = vmatpush.bf16.msra.mxu0 %v496
  %803 = vmatpush.bf16.msra.mxu0 %v483
  %804 = vmatpush.bf16.msra.mxu0 %v470
  %805 = vmatpush.bf16.msra.mxu0 %v457
  %806 = vmatpush.bf16.msra.mxu0 %v444
  %807 = vmatpush.bf16.msra.mxu0 %v431
  %808 = vmatmul.bf16.gmra.mxu0 %v593
  %v809 = vpop.f32.mrf.mxu0
  %v810 = vadd.f32 %v122, %v809
  %v811 = vpop.f32.mrf.mxu0
  %v812 = vadd.f32 %v127, %v811
  %813 = vmatmul.bf16.gmra.mxu0 %v596
  %v814 = vpop.f32.mrf.mxu0
  %v815 = vadd.f32 %v132, %v814
  %v816 = vpop.f32.mrf.mxu0
  %817 = vdwg.mxu0
  %818 = vmatpush.bf16.msra.mxu0 0
  %819 = vmatpush.bf16.msra.mxu0 %v630
  %820 = vmatpush.bf16.msra.mxu0 %v497
  %821 = vmatpush.bf16.msra.mxu0 %v484
  %822 = vmatpush.bf16.msra.mxu0 %v471
  %823 = vmatpush.bf16.msra.mxu0 %v458
  %824 = vmatpush.bf16.msra.mxu0 %v445
  %825 = vmatpush.bf16.msra.mxu0 %v432
  %826 = vmatmul.bf16.gmra.mxu0 %v593
  %v827 = vpop.f32.mrf.mxu0
  %v828 = vadd.f32 %v122, %v827
  %v829 = vpop.f32.mrf.mxu0
  %v830 = vadd.f32 %v127, %v829
  %831 = vmatmul.bf16.gmra.mxu0 %v596
  %v832 = vpop.f32.mrf.mxu0
  %v833 = vadd.f32 %v132, %v832
  %v834 = vpop.f32.mrf.mxu0
  %835 = vdwg.mxu0
  %836 = vmatpush.bf16.msra.mxu0 0
  %837 = vmatpush.bf16.msra.mxu0 %v633
  %838 = vmatpush.bf16.msra.mxu0 %v498
  %839 = vmatpush.bf16.msra.mxu0 %v485
  %840 = vmatpush.bf16.msra.mxu0 %v472
  %841 = vmatpush.bf16.msra.mxu0 %v459
  %842 = vmatpush.bf16.msra.mxu0 %v446
  %843 = vmatpush.bf16.msra.mxu0 %v433
  %844 = vmatmul.bf16.gmra.mxu0 %v593
  %v845 = vpop.f32.mrf.mxu0
  %v846 = vadd.f32 %v122, %v845
  %v847 = vpop.f32.mrf.mxu0
  %v848 = vadd.f32 %v127, %v847
  %849 = vmatmul.bf16.gmra.mxu0 %v596
  %v850 = vpop.f32.mrf.mxu0
  %v851 = vadd.f32 %v132, %v850
  %v852 = vpop.f32.mrf.mxu0
  %853 = vdwg.mxu0
  %854 = vmatpush.bf16.msra.mxu0 0
  %855 = vmatpush.bf16.msra.mxu0 %v636
  %856 = vmatpush.bf16.msra.mxu0 %v499
  %857 = vmatpush.bf16.msra.mxu0 %v486
  %858 = vmatpush.bf16.msra.mxu0 %v473
  %859 = vmatpush.bf16.msra.mxu0 %v460
  %860 = vmatpush.bf16.msra.mxu0 %v447
  %861 = vmatpush.bf16.msra.mxu0 %v434
  %862 = vmatmul.bf16.gmra.mxu0 %v593
  %v863 = vpop.f32.mrf.mxu0
  %v864 = vadd.f32 %v122, %v863
  %v865 = vpop.f32.mrf.mxu0
  %v866 = vadd.f32 %v127, %v865
  %867 = vmatmul.bf16.gmra.mxu0 %v596
  %v868 = vpop.f32.mrf.mxu0
  %v869 = vadd.f32 %v132, %v868
  %v870 = vpop.f32.mrf.mxu0
  %871 = vdwg.mxu0
  %v872 = vmax.f32 %v648, 0.0
  %v873 = vmax.f32 %v666, 0.0
  %v874 = vmax.f32 %v684, 0.0
  %v875 = vmax.f32 %v702, 0.0
  %v876 = vmax.f32 %v720, 0.0
  %v877 = vmax.f32 %v738, 0.0
  %v878 = vmax.f32 %v756, 0.0
  %v879 = vmax.f32 %v774, 0.0
  %v880 = vmax.f32 %v792, 0.0
  %v881 = vmax.f32 %v810, 0.0
  %v882 = vmax.f32 %v828, 0.0
  %v883 = vmax.f32 %v846, 0.0
  %v884 = vmax.f32 %v864, 0.0
  %v885 = vmax.f32 %v650, 0.0
  %v886 = vmax.f32 %v668, 0.0
  %v887 = vmax.f32 %v686, 0.0
  %v888 = vmax.f32 %v704, 0.0
  %v889 = vmax.f32 %v722, 0.0
  %v890 = vmax.f32 %v740, 0.0
  %v891 = vmax.f32 %v758, 0.0
  %v892 = vmax.f32 %v776, 0.0
  %v893 = vmax.f32 %v794, 0.0
  %v894 = vmax.f32 %v812, 0.0
  %v895 = vmax.f32 %v830, 0.0
  %v896 = vmax.f32 %v848, 0.0
  %v897 = vmax.f32 %v866, 0.0
  %v898 = vmax.f32 %v653, 0.0
  %v899 = vmax.f32 %v671, 0.0
  %v900 = vmax.f32 %v689, 0.0
  %v901 = vmax.f32 %v707, 0.0
  %v902 = vmax.f32 %v725, 0.0
  %v903 = vmax.f32 %v743, 0.0
  %v904 = vmax.f32 %v761, 0.0
  %v905 = vmax.f32 %v779, 0.0
  %v906 = vmax.f32 %v797, 0.0
  %v907 = vmax.f32 %v815, 0.0
  %v908 = vmax.f32 %v833, 0.0
  %v909 = vmax.f32 %v851, 0.0
  %v910 = vmax.f32 %v869, 0.0
  %v911 = vpack.c.bf16 %v873, %v872
  %v912 = vpack.c.bf16 %v875, %v874
  %v913 = vpack.c.bf16 %v877, %v876
  %v914 = vpack.c.bf16 %v879, %v878
  %v915 = vpack.c.bf16 %v881, %v880
  %v916 = vpack.c.bf16 %v883, %v882
  %v917 = vpack.c.bf16 %v884, %v884
  %v918 = vpack.c.bf16 %v886, %v885
  %v919 = vpack.c.bf16 %v888, %v887
  %v920 = vpack.c.bf16 %v890, %v889
  %v921 = vpack.c.bf16 %v892, %v891
  %v922 = vpack.c.bf16 %v894, %v893
  %v923 = vpack.c.bf16 %v896, %v895
  %v924 = vpack.c.bf16 %v897, %v897
  %v925 = vpack.c.bf16 %v899, %v898
  %v926 = vpack.c.bf16 %v901, %v900
  %v927 = vpack.c.bf16 %v903, %v902
  %v928 = vpack.c.bf16 %v905, %v904
  %v929 = vpack.c.bf16 %v907, %v906
  %v930 = vpack.c.bf16 %v909, %v908
  %v931 = vpack.c.bf16 %v910, %v910
  %932 = vst [vmem:[%s3] sm:$0xff] %v911
  %933 = vst [vmem:[%s3 + $0x8] sm:$0xff] %v912
  %934 = vst [vmem:[%s3 + $0x10] sm:$0xff] %v913
  %935 = vst [vmem:[%s3 + $0x18] sm:$0xff] %v914
  %936 = vst [vmem:[%s3 + $0x20] sm:$0xff] %v915
  %937 = vst [vmem:[%s3 + $0x28] sm:$0xff] %v916
  %vm938 = vcmask 257024
  %939 = vst.msk [vmem:[%s3 + $0x30] sm:$0xf] %vm938, %v917
  %940 = vst [vmem:[%s3 + $0x34] sm:$0xff] %v918
  %941 = vst [vmem:[%s3 + $0x3c] sm:$0xff] %v919
  %942 = vst [vmem:[%s3 + $0x44] sm:$0xff] %v920
  %943 = vst [vmem:[%s3 + $0x4c] sm:$0xff] %v921
  %944 = vst [vmem:[%s3 + $0x54] sm:$0xff] %v922
  %945 = vst [vmem:[%s3 + $0x5c] sm:$0xff] %v923
  %946 = vst.msk [vmem:[%s3 + $0x64] sm:$0xf] %vm938, %v924
  %947 = vst [vmem:[%s3 + $0x68] sm:$0xff] %v925
  %948 = vst [vmem:[%s3 + $0x70] sm:$0xff] %v926
  %949 = vst [vmem:[%s3 + $0x78] sm:$0xff] %v927
  %950 = vst [vmem:[%s3 + $0x80] sm:$0xff] %v928
  %951 = vst [vmem:[%s3 + $0x88] sm:$0xff] %v929
  %952 = vst [vmem:[%s3 + $0x90] sm:$0xff] %v930
  %953 = vst.msk [vmem:[%s3 + $0x98] sm:$0xf] %vm938, %v931
  // Predicated region
  $region14: #{reconstructor_forward.11} parent=0 // pred_check
    _
  $region15: #{reconstructor_forward.11} parent=0 // pred_check_branch
    %955 = sbr.rel (0) target = $region17
  $region16: #{reconstructor_forward.11} parent=0 // pred_region
    _
  $region17: #{reconstructor_forward.11} parent=0 // pred_fallthru
    _
  // Predicated region
  $region18: #{reconstructor_forward.11} parent=0 // pred_check
    _
  $region19: #{reconstructor_forward.11} parent=0 // pred_check_branch
    %957 = sbr.rel (0) target = $region21
  $region20: #{reconstructor_forward.11} parent=0 // pred_region
    _
  $region21: #{reconstructor_forward.11} parent=0 // pred_fallthru
    _

// kernel: reconstructor_forward.12
$region0: #{reconstructor_forward.12}
  #allocation0 [shape = 'u32[]', space=smem, size = 0x4, offset = 0x4, fixed_abs, tag = 'smem constant byte address 0x4 - core index']
  #allocation1 [shape = 'u32[72,128]{1,0:T(1,128)}', space=vmem, size = 0x9000, scoped, tag = 'internal scratch']
  %s0 = inlined_call_operand.vmem [shape: bf16[24,54], index: 0, kind: input, shape index: {}]
  %s1 = inlined_call_operand.vmem [shape: bf16[54,6272], index: 1, kind: input, shape index: {}]
  %s2 = inlined_call_operand.vmem [shape: f32[24,1], index: 2, kind: input, shape index: {}]
  %s3 = inlined_call_operand.vmem [shape: bf16[24,6272], index: 3, kind: output, shape index: {}]
  %s4 = sld [smem:[#allocation0]]
  $region173: #{reconstructor_forward.12} parent=0
    _
  %s6 = ssub.s32 1, %s4
  %s7 = scalar_select 0, %s6, %s4
  $region1: #{reconstructor_forward.12} parent=0
    #allocation2 [shape = 'u8[917504]{0}', space=vmem, size = 0xe0000, scoped, tag = 'input window, operand 1']
    #allocation3 [shape = 'u8[393216]{0}', space=vmem, size = 0x60000, scoped, tag = 'output window, operand 0']
    loop: start=0, step=1, limit=4
    $region2: #{reconstructor_forward.12} parent=1 // loop_pre_header
      _
    $region3: #{reconstructor_forward.12} parent=1 // loop_header
      %s9 = sphi 0, %s13
      %p10 = scmp.ge.s32.totalorder %s9, 4
      %s17 = sphi 0, %s17
      %s19 = sphi 0, %s17
      %s20 = sphi 0, %s19
      %s34 = sphi 0, %s20
      %s40 = sphi 0, %s42
      %s43 = sphi 0, %s40
      %s44 = sphi 0, %s43
      %s60 = sphi 0, %s44
      %s64 = sphi 0, %s64
      %s66 = sphi 0, %s64
      %s67 = sphi 0, %s66
      %s81 = sphi 0, %s67
      %s87 = sphi 0, %s89
      %s90 = sphi 0, %s87
      %s91 = sphi 0, %s90
      %s107 = sphi 0, %s91
    $region4: #{reconstructor_forward.12} parent=1 // loop_header_branch
      %12 = sbr.rel (%p10) target = $region8
    $region5: #{reconstructor_forward.12} parent=1 // loop_body
      %s14 = ssub.s32 %s9, 1
      %s15 = ssub.s32 %s9, 2
      %s16 = sadd.s32 %s9, 1
      %s18 = sadd.s32 %s17, 1
      %p21 = scmp.eq.s32.totalorder %s9, 1
      %p22 = scmp.ne.s32.totalorder %s17, %s19
      %p23 = scmp.eq.s32.totalorder %s9, 0
      %p24 = por %p22, %p23
      %p25 = scmp.ne.s32.totalorder %s17, %s19
      %p26 = scmp.eq.s32.totalorder %s14, 1
      %p27 = por %p25, %p26
      %p28 = scmp.ne.s32.totalorder %s19, %s20
      %p29 = scmp.eq.s32.totalorder %s14, 0
      %p30 = por %p28, %p29
      %p31 = scmp.ne.s32.totalorder %s19, %s20
      %p32 = scmp.eq.s32.totalorder %s15, 1
      %p33 = por %p31, %p32
      %p35 = scmp.ne.s32.totalorder %s20, %s34
      %p36 = scmp.eq.s32.totalorder %s15, 0
      %p37 = por %p35, %p36
      %s38 = ssub.s32 %s9, %s16
      %p39 = scmp.eq.s32.totalorder %s38, 0
      %s41 = sadd.s32 %s40, 1
      %s42 = scalar_select %p39, %s40, %s41
      %p45 = pneg %p39
      %p46 = scmp.eq.s32.totalorder %s9, 1
      %p47 = por %p45, %p46
      %p48 = scmp.ne.s32.totalorder %s40, %s43
      %p49 = scmp.eq.s32.totalorder %s9, 0
      %p50 = por %p48, %p49
      %p51 = scmp.ne.s32.totalorder %s40, %s43
      %p52 = scmp.eq.s32.totalorder %s14, 1
      %p53 = por %p51, %p52
      %p54 = scmp.ne.s32.totalorder %s43, %s44
      %p55 = scmp.eq.s32.totalorder %s14, 0
      %p56 = por %p54, %p55
      %p57 = scmp.ne.s32.totalorder %s43, %s44
      %p58 = scmp.eq.s32.totalorder %s15, 1
      %p59 = por %p57, %p58
      %p61 = scmp.ne.s32.totalorder %s44, %s60
      %p62 = scmp.eq.s32.totalorder %s15, 0
      %p63 = por %p61, %p62
      %s65 = sadd.s32 %s64, 1
      %p68 = scmp.eq.s32.totalorder %s9, 1
      %p69 = scmp.ne.s32.totalorder %s64, %s66
      %p70 = scmp.eq.s32.totalorder %s9, 0
      %p71 = por %p69, %p70
      %p72 = scmp.ne.s32.totalorder %s64, %s66
      %p73 = scmp.eq.s32.totalorder %s14, 1
      %p74 = por %p72, %p73
      %p75 = scmp.ne.s32.totalorder %s66, %s67
      %p76 = scmp.eq.s32.totalorder %s14, 0
      %p77 = por %p75, %p76
      %p78 = scmp.ne.s32.totalorder %s66, %s67
      %p79 = scmp.eq.s32.totalorder %s15, 1
      %p80 = por %p78, %p79
      %p82 = scmp.ne.s32.totalorder %s67, %s81
      %p83 = scmp.eq.s32.totalorder %s15, 0
      %p84 = por %p82, %p83
      %s85 = ssub.s32 %s9, %s16
      %p86 = scmp.eq.s32.totalorder %s85, 0
      %s88 = sadd.s32 %s87, 1
      %s89 = scalar_select %p86, %s87, %s88
      %p92 = pneg %p86
      %p93 = scmp.eq.s32.totalorder %s9, 1
      %p94 = por %p92, %p93
      %p95 = scmp.ne.s32.totalorder %s87, %s90
      %p96 = scmp.eq.s32.totalorder %s9, 0
      %p97 = por %p95, %p96
      %p98 = scmp.ne.s32.totalorder %s87, %s90
      %p99 = scmp.eq.s32.totalorder %s14, 1
      %p100 = por %p98, %p99
      %p101 = scmp.ne.s32.totalorder %s90, %s91
      %p102 = scmp.eq.s32.totalorder %s14, 0
      %p103 = por %p101, %p102
      %p104 = scmp.ne.s32.totalorder %s90, %s91
      %p105 = scmp.eq.s32.totalorder %s15, 1
      %p106 = por %p104, %p105
      %p108 = scmp.ne.s32.totalorder %s91, %s107
      %p109 = scmp.eq.s32.totalorder %s15, 0
      %p110 = por %p108, %p109
      %p111 = scmp.le.s32.totalorder 1, %s9
      %p112 = scmp.lt.s32.totalorder %s9, 3
      %p113 = pnand %p111, %p112
      %p114 = pneg %p113
      // Predicated region
      $region9: #{reconstructor_forward.12} parent=5 // pred_check
        _
      $region10: #{reconstructor_forward.12} parent=5 // pred_check_branch
        %116 = sbr.rel (%p113) target = $region12
      $region11: #{reconstructor_forward.12} parent=5 // pred_region
        %s117 = ssub.s32 %s9, 1
        // Predicated region
        $region13: #{reconstructor_forward.12} parent=11 // pred_check
          %p118 = pneg %p30
        $region14: #{reconstructor_forward.12} parent=11 // pred_check_branch
          %120 = sbr.rel (%p118) target = $region16
        $region15: #{reconstructor_forward.12} parent=11 // pred_region
          _
        $region16: #{reconstructor_forward.12} parent=11 // pred_fallthru
          _
        // Predicated region
        $region17: #{reconstructor_forward.12} parent=11 // pred_check
          %p121 = pneg %p77
        $region18: #{reconstructor_forward.12} parent=11 // pred_check_branch
          %123 = sbr.rel (%p121) target = $region20
        $region19: #{reconstructor_forward.12} parent=11 // pred_region
          _
        $region20: #{reconstructor_forward.12} parent=11 // pred_fallthru
          _
      $region12: #{reconstructor_forward.12} parent=5 // pred_fallthru
        _
      %p124 = scmp.lt.s32.totalorder %s9, 2
      // Predicated region
      $region21: #{reconstructor_forward.12} parent=5 // pred_check
        %p125 = pneg %p124
      $region22: #{reconstructor_forward.12} parent=5 // pred_check_branch
        %127 = sbr.rel (%p125) target = $region24
      $region23: #{reconstructor_forward.12} parent=5 // pred_region
        // Predicated region
        $region25: #{reconstructor_forward.12} parent=23 // pred_check
          %p128 = pneg %p50
        $region26: #{reconstructor_forward.12} parent=23 // pred_check_branch
          %130 = sbr.rel (%p128) target = $region28
        $region27: #{reconstructor_forward.12} parent=23 // pred_region
          %s131 = sand.u32 %s40, 1
          %s132 = sand.u32 %s40, 1
          %s133 = smul.addr %s132, 896
          %s134 = scalar_lea.vmem [#allocation2], %s133
          %s135 = smul.u32 32, %s9
          %s136 = ssub.s32 49, %s135
          %p137 = scmp.lt.s32.totalorder %s136, 32
          %s138 = scalar_select %p137, %s136, 32
          %s139 = smul.u32 28, %s138
          %p140 = scmp.ne.s32.totalorder 0, %s139
          %s141 = smul.addr %s135, 4
          %s142 = scalar_lea.vmem %s1, %s141
          %s143 = smul.u32 %s138, 4
          // Predicated region
          $region29: #{reconstructor_forward.12} parent=27 // pred_check
            %p144 = pneg %p140
          $region30: #{reconstructor_forward.12} parent=27 // pred_check_branch
            %146 = sbr.rel (%p144) target = $region32
          $region31: #{reconstructor_forward.12} parent=27 // pred_region
            %p147 = scmp.lt.u32.totalorder %s143, 8
            %p148 = pneg %p147
            // Predicated region
            $region33: #{reconstructor_forward.12} parent=31 // pred_check
              _
            $region34: #{reconstructor_forward.12} parent=31 // pred_check_branch
              %150 = sbr.rel (%p147) target = $region36
            $region35: #{reconstructor_forward.12} parent=31 // pred_region
              %s178 = sand.u32 %s143, 7
              %p179 = scmp.eq.s32.totalorder %s178, 0
              // Predicated region
              $region48: #{reconstructor_forward.12} parent=35 // pred_check
                %p180 = pneg %p179
              $region49: #{reconstructor_forward.12} parent=35 // pred_check_branch
                %182 = sbr.rel (%p180) target = $region51
              $region50: #{reconstructor_forward.12} parent=35 // pred_region
                %s183 = sshrl.u32 %s143, 3
                %s184 = sdiv.u32.pop %s183, 6
                %s185 = srem.u32.pop %s183, 6
                // While loop
                $region52: #{reconstructor_forward.12} parent=50 // loop_pre_header
                  _
                $region53: #{reconstructor_forward.12} parent=50 // loop_header
                  %s187 = sphi 0, %s189
                  %p188 = scmp.ge.s32.totalorder %s187, %s184
                  %s192 = sphi 0, %s281
                  %s193 = sphi %s142, %s284
                  %s194 = sphi %s134, %s285
                $region54: #{reconstructor_forward.12} parent=50 // loop_header_branch
                  %191 = sbr.rel (%p188) target = $region58
                $region55: #{reconstructor_forward.12} parent=50 // loop_body
                  %v195 = vld [vmem:[%s193] sm:$0xff]
                  %196 = vst [vmem:[%s194] sm:$0xff] %v195
                  %v197 = vld [vmem:[%s193 + $0x8] sm:$0xff]
                  %198 = vst [vmem:[%s194 + $0x8] sm:$0xff] %v197
                  %v199 = vld [vmem:[%s193 + $0x10] sm:$0xff]
                  %200 = vst [vmem:[%s194 + $0x10] sm:$0xff] %v199
                  %v201 = vld [vmem:[%s193 + $0x18] sm:$0xff]
                  %202 = vst [vmem:[%s194 + $0x18] sm:$0xff] %v201
                  %v203 = vld [vmem:[%s193 + $0x20] sm:$0xff]
                  %204 = vst [vmem:[%s194 + $0x20] sm:$0xff] %v203
                  %v205 = vld [vmem:[%s193 + $0x28] sm:$0xff]
                  %206 = vst [vmem:[%s194 + $0x28] sm:$0xff] %v205
                  %v207 = vld [vmem:[%s193 + $0xc4] sm:$0xff]
                  %208 = vst [vmem:[%s194 + $0x80] sm:$0xff] %v207
                  %v209 = vld [vmem:[%s193 + $0xcc] sm:$0xff]
                  %210 = vst [vmem:[%s194 + $0x88] sm:$0xff] %v209
                  %v211 = vld [vmem:[%s193 + $0xd4] sm:$0xff]
                  %212 = vst [vmem:[%s194 + $0x90] sm:$0xff] %v211
                  %v213 = vld [vmem:[%s193 + $0xdc] sm:$0xff]
                  %214 = vst [vmem:[%s194 + $0x98] sm:$0xff] %v213
                  %v215 = vld [vmem:[%s193 + $0xe4] sm:$0xff]
                  %216 = vst [vmem:[%s194 + $0xa0] sm:$0xff] %v215
                  %v217 = vld [vmem:[%s193 + $0xec] sm:$0xff]
                  %218 = vst [vmem:[%s194 + $0xa8] sm:$0xff] %v217
                  %v219 = vld [vmem:[%s193 + $0x188] sm:$0xff]
                  %220 = vst [vmem:[%s194 + $0x100] sm:$0xff] %v219
                  %v221 = vld [vmem:[%s193 + $0x190] sm:$0xff]
                  %222 = vst [vmem:[%s194 + $0x108] sm:$0xff] %v221
                  %v223 = vld [vmem:[%s193 + $0x198] sm:$0xff]
                  %224 = vst [vmem:[%s194 + $0x110] sm:$0xff] %v223
                  %v225 = vld [vmem:[%s193 + $0x1a0] sm:$0xff]
                  %226 = vst [vmem:[%s194 + $0x118] sm:$0xff] %v225
                  %v227 = vld [vmem:[%s193 + $0x1a8] sm:$0xff]
                  %228 = vst [vmem:[%s194 + $0x120] sm:$0xff] %v227
                  %v229 = vld [vmem:[%s193 + $0x1b0] sm:$0xff]
                  %230 = vst [vmem:[%s194 + $0x128] sm:$0xff] %v229
                  %v231 = vld [vmem:[%s193 + $0x24c] sm:$0xff]
                  %232 = vst [vmem:[%s194 + $0x180] sm:$0xff] %v231
                  %v233 = vld [vmem:[%s193 + $0x254] sm:$0xff]
                  %234 = vst [vmem:[%s194 + $0x188] sm:$0xff] %v233
                  %v235 = vld [vmem:[%s193 + $0x25c] sm:$0xff]
                  %236 = vst [vmem:[%s194 + $0x190] sm:$0xff] %v235
                  %v237 = vld [vmem:[%s193 + $0x264] sm:$0xff]
                  %238 = vst [vmem:[%s194 + $0x198] sm:$0xff] %v237
                  %v239 = vld [vmem:[%s193 + $0x26c] sm:$0xff]
                  %240 = vst [vmem:[%s194 + $0x1a0] sm:$0xff] %v239
                  %v241 = vld [vmem:[%s193 + $0x274] sm:$0xff]
                  %242 = vst [vmem:[%s194 + $0x1a8] sm:$0xff] %v241
                  %v243 = vld [vmem:[%s193 + $0x310] sm:$0xff]
                  %244 = vst [vmem:[%s194 + $0x200] sm:$0xff] %v243
                  %v245 = vld [vmem:[%s193 + $0x318] sm:$0xff]
                  %246 = vst [vmem:[%s194 + $0x208] sm:$0xff] %v245
                  %v247 = vld [vmem:[%s193 + $0x320] sm:$0xff]
                  %248 = vst [vmem:[%s194 + $0x210] sm:$0xff] %v247
                  %v249 = vld [vmem:[%s193 + $0x328] sm:$0xff]
                  %250 = vst [vmem:[%s194 + $0x218] sm:$0xff] %v249
                  %v251 = vld [vmem:[%s193 + $0x330] sm:$0xff]
                  %252 = vst [vmem:[%s194 + $0x220] sm:$0xff] %v251
                  %v253 = vld [vmem:[%s193 + $0x338] sm:$0xff]
                  %254 = vst [vmem:[%s194 + $0x228] sm:$0xff] %v253
                  %v255 = vld [vmem:[%s193 + $0x3d4] sm:$0xff]
                  %256 = vst [vmem:[%s194 + $0x280] sm:$0xff] %v255
                  %v257 = vld [vmem:[%s193 + $0x3dc] sm:$0xff]
                  %258 = vst [vmem:[%s194 + $0x288] sm:$0xff] %v257
                  %v259 = vld [vmem:[%s193 + $0x3e4] sm:$0xff]
                  %260 = vst [vmem:[%s194 + $0x290] sm:$0xff] %v259
                  %v261 = vld [vmem:[%s193 + $0x3ec] sm:$0xff]
                  %262 = vst [vmem:[%s194 + $0x298] sm:$0xff] %v261
                  %v263 = vld [vmem:[%s193 + $0x3f4] sm:$0xff]
                  %264 = vst [vmem:[%s194 + $0x2a0] sm:$0xff] %v263
                  %v265 = vld [vmem:[%s193 + $0x3fc] sm:$0xff]
                  %266 = vst [vmem:[%s194 + $0x2a8] sm:$0xff] %v265
                  %v267 = vld [vmem:[%s193 + $0x498] sm:$0xff]
                  %268 = vst [vmem:[%s194 + $0x300] sm:$0xff] %v267
                  %v269 = vld [vmem:[%s193 + $0x4a0] sm:$0xff]
                  %270 = vst [vmem:[%s194 + $0x308] sm:$0xff] %v269
                  %v271 = vld [vmem:[%s193 + $0x4a8] sm:$0xff]
                  %272 = vst [vmem:[%s194 + $0x310] sm:$0xff] %v271
                  %v273 = vld [vmem:[%s193 + $0x4b0] sm:$0xff]
                  %274 = vst [vmem:[%s194 + $0x318] sm:$0xff] %v273
                  %v275 = vld [vmem:[%s193 + $0x4b8] sm:$0xff]
                  %276 = vst [vmem:[%s194 + $0x320] sm:$0xff] %v275
                  %v277 = vld [vmem:[%s193 + $0x4c0] sm:$0xff]
                  %278 = vst [vmem:[%s194 + $0x328] sm:$0xff] %v277
                  %s279 = sadd.s32 1, %s192
                  %p280 = scmp.ge.s32.totalorder %s279, %s184
                  %s281 = scalar_select %p280, 0, %s279
                  %s282 = smul.u32 %s281, 48
                  %s283 = smul.u32 %s281, 48
                  %s284 = scalar_lea.vmem %s142, %s282
                  %s285 = scalar_lea.vmem %s134, %s283 [#allocation2]
                $region56: #{reconstructor_forward.12} parent=50 // loop_footer
                  %s189 = sadd.s32 %s187, 1
                $region57: #{reconstructor_forward.12} parent=50 // loop_footer_branch
                  %186 = sbr.rel target = $region53
                $region58: #{reconstructor_forward.12} parent=50 // loop_exit
                  _
                %s286 = sdiv.u32.pop %s183, 6
                %s287 = srem.u32.pop %s183, 6
                %s288 = smul.u32 %s286, 6
                %s289 = smul.u32 8, %s288
                %s290 = scalar_lea.vmem %s142, %s289
                %s291 = smul.u32 8, %s288
                %s292 = scalar_lea.vmem %s134, %s291 [#allocation2]
                // While loop
                $region59: #{reconstructor_forward.12} parent=50 // loop_pre_header
                  _
                $region60: #{reconstructor_forward.12} parent=50 // loop_header
                  %s294 = sphi 0, %s296
                  %p295 = scmp.ge.s32.totalorder %s294, %s287
                  %s299 = sphi 0, %s318
                  %s300 = sphi %s290, %s321
                  %s301 = sphi %s292, %s322
                $region61: #{reconstructor_forward.12} parent=50 // loop_header_branch
                  %298 = sbr.rel (%p295) target = $region65
                $region62: #{reconstructor_forward.12} parent=50 // loop_body
                  %v302 = vld [vmem:[%s300] sm:$0xff]
                  %303 = vst [vmem:[%s301] sm:$0xff] %v302
                  %v304 = vld [vmem:[%s300 + $0xc4] sm:$0xff]
                  %305 = vst [vmem:[%s301 + $0x80] sm:$0xff] %v304
                  %v306 = vld [vmem:[%s300 + $0x188] sm:$0xff]
                  %307 = vst [vmem:[%s301 + $0x100] sm:$0xff] %v306
                  %v308 = vld [vmem:[%s300 + $0x24c] sm:$0xff]
                  %309 = vst [vmem:[%s301 + $0x180] sm:$0xff] %v308
                  %v310 = vld [vmem:[%s300 + $0x310] sm:$0xff]
                  %311 = vst [vmem:[%s301 + $0x200] sm:$0xff] %v310
                  %v312 = vld [vmem:[%s300 + $0x3d4] sm:$0xff]
                  %313 = vst [vmem:[%s301 + $0x280] sm:$0xff] %v312
                  %v314 = vld [vmem:[%s300 + $0x498] sm:$0xff]
                  %315 = vst [vmem:[%s301 + $0x300] sm:$0xff] %v314
                  %s316 = sadd.s32 1, %s299
                  %p317 = scmp.ge.s32.totalorder %s316, %s287
                  %s318 = scalar_select %p317, 0, %s316
                  %s319 = smul.u32 %s318, 8
                  %s320 = smul.u32 %s318, 8
                  %s321 = scalar_lea.vmem %s290, %s319
                  %s322 = scalar_lea.vmem %s292, %s320 [#allocation2]
                $region63: #{reconstructor_forward.12} parent=50 // loop_footer
                  %s296 = sadd.s32 %s294, 1
                $region64: #{reconstructor_forward.12} parent=50 // loop_footer_branch
                  %293 = sbr.rel target = $region60
                $region65: #{reconstructor_forward.12} parent=50 // loop_exit
                  _
              $region51: #{reconstructor_forward.12} parent=35 // pred_fallthru
                _
              %p323 = pneg %p179
              // Predicated region
              $region66: #{reconstructor_forward.12} parent=35 // pred_check
                _
              $region67: #{reconstructor_forward.12} parent=35 // pred_check_branch
                %325 = sbr.rel (%p179) target = $region69
              $region68: #{reconstructor_forward.12} parent=35 // pred_region
                %s326 = sand.u32 %s143, 7
                %s327 = ssub.s32 %s143, %s326
                %s328 = scalar_lea.vmem %s142, %s327
                %s329 = ssub.s32 %s143, %s326
                %s330 = scalar_lea.vmem %s134, %s329 [#allocation2]
                %s331 = sshrl.u32 %s143, 3
                %s332 = sdiv.u32.pop %s331, 6
                %s333 = srem.u32.pop %s331, 6
                // While loop
                $region70: #{reconstructor_forward.12} parent=68 // loop_pre_header
                  _
                $region71: #{reconstructor_forward.12} parent=68 // loop_header
                  %s335 = sphi 0, %s337
                  %p336 = scmp.ge.s32.totalorder %s335, %s332
                  %s340 = sphi 0, %s429
                  %s341 = sphi %s142, %s432
                  %s342 = sphi %s134, %s433
                $region72: #{reconstructor_forward.12} parent=68 // loop_header_branch
                  %339 = sbr.rel (%p336) target = $region76
                $region73: #{reconstructor_forward.12} parent=68 // loop_body
                  %v343 = vld [vmem:[%s341] sm:$0xff]
                  %344 = vst [vmem:[%s342] sm:$0xff] %v343
                  %v345 = vld [vmem:[%s341 + $0x8] sm:$0xff]
                  %346 = vst [vmem:[%s342 + $0x8] sm:$0xff] %v345
                  %v347 = vld [vmem:[%s341 + $0x10] sm:$0xff]
                  %348 = vst [vmem:[%s342 + $0x10] sm:$0xff] %v347
                  %v349 = vld [vmem:[%s341 + $0x18] sm:$0xff]
                  %350 = vst [vmem:[%s342 + $0x18] sm:$0xff] %v349
                  %v351 = vld [vmem:[%s341 + $0x20] sm:$0xff]
                  %352 = vst [vmem:[%s342 + $0x20] sm:$0xff] %v351
                  %v353 = vld [vmem:[%s341 + $0x28] sm:$0xff]
                  %354 = vst [vmem:[%s342 + $0x28] sm:$0xff] %v353
                  %v355 = vld [vmem:[%s341 + $0xc4] sm:$0xff]
                  %356 = vst [vmem:[%s342 + $0x80] sm:$0xff] %v355
                  %v357 = vld [vmem:[%s341 + $0xcc] sm:$0xff]
                  %358 = vst [vmem:[%s342 + $0x88] sm:$0xff] %v357
                  %v359 = vld [vmem:[%s341 + $0xd4] sm:$0xff]
                  %360 = vst [vmem:[%s342 + $0x90] sm:$0xff] %v359
                  %v361 = vld [vmem:[%s341 + $0xdc] sm:$0xff]
                  %362 = vst [vmem:[%s342 + $0x98] sm:$0xff] %v361
                  %v363 = vld [vmem:[%s341 + $0xe4] sm:$0xff]
                  %364 = vst [vmem:[%s342 + $0xa0] sm:$0xff] %v363
                  %v365 = vld [vmem:[%s341 + $0xec] sm:$0xff]
                  %366 = vst [vmem:[%s342 + $0xa8] sm:$0xff] %v365
                  %v367 = vld [vmem:[%s341 + $0x188] sm:$0xff]
                  %368 = vst [vmem:[%s342 + $0x100] sm:$0xff] %v367
                  %v369 = vld [vmem:[%s341 + $0x190] sm:$0xff]
                  %370 = vst [vmem:[%s342 + $0x108] sm:$0xff] %v369
                  %v371 = vld [vmem:[%s341 + $0x198] sm:$0xff]
                  %372 = vst [vmem:[%s342 + $0x110] sm:$0xff] %v371
                  %v373 = vld [vmem:[%s341 + $0x1a0] sm:$0xff]
                  %374 = vst [vmem:[%s342 + $0x118] sm:$0xff] %v373
                  %v375 = vld [vmem:[%s341 + $0x1a8] sm:$0xff]
                  %376 = vst [vmem:[%s342 + $0x120] sm:$0xff] %v375
                  %v377 = vld [vmem:[%s341 + $0x1b0] sm:$0xff]
                  %378 = vst [vmem:[%s342 + $0x128] sm:$0xff] %v377
                  %v379 = vld [vmem:[%s341 + $0x24c] sm:$0xff]
                  %380 = vst [vmem:[%s342 + $0x180] sm:$0xff] %v379
                  %v381 = vld [vmem:[%s341 + $0x254] sm:$0xff]
                  %382 = vst [vmem:[%s342 + $0x188] sm:$0xff] %v381
                  %v383 = vld [vmem:[%s341 + $0x25c] sm:$0xff]
                  %384 = vst [vmem:[%s342 + $0x190] sm:$0xff] %v383
                  %v385 = vld [vmem:[%s341 + $0x264] sm:$0xff]
                  %386 = vst [vmem:[%s342 + $0x198] sm:$0xff] %v385
                  %v387 = vld [vmem:[%s341 + $0x26c] sm:$0xff]
                  %388 = vst [vmem:[%s342 + $0x1a0] sm:$0xff] %v387
                  %v389 = vld [vmem:[%s341 + $0x274] sm:$0xff]
                  %390 = vst [vmem:[%s342 + $0x1a8] sm:$0xff] %v389
                  %v391 = vld [vmem:[%s341 + $0x310] sm:$0xff]
                  %392 = vst [vmem:[%s342 + $0x200] sm:$0xff] %v391
                  %v393 = vld [vmem:[%s341 + $0x318] sm:$0xff]
                  %394 = vst [vmem:[%s342 + $0x208] sm:$0xff] %v393
                  %v395 = vld [vmem:[%s341 + $0x320] sm:$0xff]
                  %396 = vst [vmem:[%s342 + $0x210] sm:$0xff] %v395
                  %v397 = vld [vmem:[%s341 + $0x328] sm:$0xff]
                  %398 = vst [vmem:[%s342 + $0x218] sm:$0xff] %v397
                  %v399 = vld [vmem:[%s341 + $0x330] sm:$0xff]
                  %400 = vst [vmem:[%s342 + $0x220] sm:$0xff] %v399
                  %v401 = vld [vmem:[%s341 + $0x338] sm:$0xff]
                  %402 = vst [vmem:[%s342 + $0x228] sm:$0xff] %v401
                  %v403 = vld [vmem:[%s341 + $0x3d4] sm:$0xff]
                  %404 = vst [vmem:[%s342 + $0x280] sm:$0xff] %v403
                  %v405 = vld [vmem:[%s341 + $0x3dc] sm:$0xff]
                  %406 = vst [vmem:[%s342 + $0x288] sm:$0xff] %v405
                  %v407 = vld [vmem:[%s341 + $0x3e4] sm:$0xff]
                  %408 = vst [vmem:[%s342 + $0x290] sm:$0xff] %v407
                  %v409 = vld [vmem:[%s341 + $0x3ec] sm:$0xff]
                  %410 = vst [vmem:[%s342 + $0x298] sm:$0xff] %v409
                  %v411 = vld [vmem:[%s341 + $0x3f4] sm:$0xff]
                  %412 = vst [vmem:[%s342 + $0x2a0] sm:$0xff] %v411
                  %v413 = vld [vmem:[%s341 + $0x3fc] sm:$0xff]
                  %414 = vst [vmem:[%s342 + $0x2a8] sm:$0xff] %v413
                  %v415 = vld [vmem:[%s341 + $0x498] sm:$0xff]
                  %416 = vst [vmem:[%s342 + $0x300] sm:$0xff] %v415
                  %v417 = vld [vmem:[%s341 + $0x4a0] sm:$0xff]
                  %418 = vst [vmem:[%s342 + $0x308] sm:$0xff] %v417
                  %v419 = vld [vmem:[%s341 + $0x4a8] sm:$0xff]
                  %420 = vst [vmem:[%s342 + $0x310] sm:$0xff] %v419
                  %v421 = vld [vmem:[%s341 + $0x4b0] sm:$0xff]
                  %422 = vst [vmem:[%s342 + $0x318] sm:$0xff] %v421
                  %v423 = vld [vmem:[%s341 + $0x4b8] sm:$0xff]
                  %424 = vst [vmem:[%s342 + $0x320] sm:$0xff] %v423
                  %v425 = vld [vmem:[%s341 + $0x4c0] sm:$0xff]
                  %426 = vst [vmem:[%s342 + $0x328] sm:$0xff] %v425
                  %s427 = sadd.s32 1, %s340
                  %p428 = scmp.ge.s32.totalorder %s427, %s332
                  %s429 = scalar_select %p428, 0, %s427
                  %s430 = smul.u32 %s429, 48
                  %s431 = smul.u32 %s429, 48
                  %s432 = scalar_lea.vmem %s142, %s430
                  %s433 = scalar_lea.vmem %s134, %s431 [#allocation2]
                $region74: #{reconstructor_forward.12} parent=68 // loop_footer
                  %s337 = sadd.s32 %s335, 1
                $region75: #{reconstructor_forward.12} parent=68 // loop_footer_branch
                  %334 = sbr.rel target = $region71
                $region76: #{reconstructor_forward.12} parent=68 // loop_exit
                  _
                %s434 = sdiv.u32.pop %s331, 6
                %s435 = srem.u32.pop %s331, 6
                %s436 = smul.u32 %s434, 6
                %s437 = smul.u32 8, %s436
                %s438 = scalar_lea.vmem %s142, %s437
                %s439 = smul.u32 8, %s436
                %s440 = scalar_lea.vmem %s134, %s439 [#allocation2]
                // While loop
                $region77: #{reconstructor_forward.12} parent=68 // loop_pre_header
                  _
                $region78: #{reconstructor_forward.12} parent=68 // loop_header
                  %s442 = sphi 0, %s444
                  %p443 = scmp.ge.s32.totalorder %s442, %s435
                  %s447 = sphi 0, %s466
                  %s448 = sphi %s438, %s469
                  %s449 = sphi %s440, %s470
                $region79: #{reconstructor_forward.12} parent=68 // loop_header_branch
                  %446 = sbr.rel (%p443) target = $region83
                $region80: #{reconstructor_forward.12} parent=68 // loop_body
                  %v450 = vld [vmem:[%s448] sm:$0xff]
                  %451 = vst [vmem:[%s449] sm:$0xff] %v450
                  %v452 = vld [vmem:[%s448 + $0xc4] sm:$0xff]
                  %453 = vst [vmem:[%s449 + $0x80] sm:$0xff] %v452
                  %v454 = vld [vmem:[%s448 + $0x188] sm:$0xff]
                  %455 = vst [vmem:[%s449 + $0x100] sm:$0xff] %v454
                  %v456 = vld [vmem:[%s448 + $0x24c] sm:$0xff]
                  %457 = vst [vmem:[%s449 + $0x180] sm:$0xff] %v456
                  %v458 = vld [vmem:[%s448 + $0x310] sm:$0xff]
                  %459 = vst [vmem:[%s449 + $0x200] sm:$0xff] %v458
                  %v460 = vld [vmem:[%s448 + $0x3d4] sm:$0xff]
                  %461 = vst [vmem:[%s449 + $0x280] sm:$0xff] %v460
                  %v462 = vld [vmem:[%s448 + $0x498] sm:$0xff]
                  %463 = vst [vmem:[%s449 + $0x300] sm:$0xff] %v462
                  %s464 = sadd.s32 1, %s447
                  %p465 = scmp.ge.s32.totalorder %s464, %s435
                  %s466 = scalar_select %p465, 0, %s464
                  %s467 = smul.u32 %s466, 8
                  %s468 = smul.u32 %s466, 8
                  %s469 = scalar_lea.vmem %s438, %s467
                  %s470 = scalar_lea.vmem %s440, %s468 [#allocation2]
                $region81: #{reconstructor_forward.12} parent=68 // loop_footer
                  %s444 = sadd.s32 %s442, 1
                $region82: #{reconstructor_forward.12} parent=68 // loop_footer_branch
                  %441 = sbr.rel target = $region78
                $region83: #{reconstructor_forward.12} parent=68 // loop_exit
                  _
                %s471 = sshll.u32 1, %s326
                %s472 = ssub.s32 %s471, 1
                loop: start=0, step=1, limit=1
                $region84: #{reconstructor_forward.12} parent=68 // loop_pre_header
                  _
                $region85: #{reconstructor_forward.12} parent=68 // loop_header
                  %s474 = sphi 0, %s478
                  %p475 = scmp.ge.s32.totalorder %s474, 1
                  %s479 = sphi %s328, %s328
                  %s480 = sphi %s330, %s330
                $region86: #{reconstructor_forward.12} parent=68 // loop_header_branch
                  %477 = sbr.rel (%p475) target = $region90
                $region87: #{reconstructor_forward.12} parent=68 // loop_body
                  %v481 = vld [vmem:[%s479] sm:%s472]
                  %482 = vst [vmem:[%s480] sm:%s472] %v481
                  %v483 = vld [vmem:[%s479 + $0xc4] sm:%s472]
                  %484 = vst [vmem:[%s480 + $0x80] sm:%s472] %v483
                  %v485 = vld [vmem:[%s479 + $0x188] sm:%s472]
                  %486 = vst [vmem:[%s480 + $0x100] sm:%s472] %v485
                  %v487 = vld [vmem:[%s479 + $0x24c] sm:%s472]
                  %488 = vst [vmem:[%s480 + $0x180] sm:%s472] %v487
                  %v489 = vld [vmem:[%s479 + $0x310] sm:%s472]
                  %490 = vst [vmem:[%s480 + $0x200] sm:%s472] %v489
                  %v491 = vld [vmem:[%s479 + $0x3d4] sm:%s472]
                  %492 = vst [vmem:[%s480 + $0x280] sm:%s472] %v491
                  %v493 = vld [vmem:[%s479 + $0x498] sm:%s472]
                  %494 = vst [vmem:[%s480 + $0x300] sm:%s472] %v493
                $region88: #{reconstructor_forward.12} parent=68 // loop_footer
                  %s478 = sadd.s32 1, %s474
                $region89: #{reconstructor_forward.12} parent=68 // loop_footer_branch
                  %473 = sbr.rel target = $region85
                $region90: #{reconstructor_forward.12} parent=68 // loop_exit
                  _
              $region69: #{reconstructor_forward.12} parent=35 // pred_fallthru
                _
            $region36: #{reconstructor_forward.12} parent=31 // pred_fallthru
              _
            // Predicated region
            $region37: #{reconstructor_forward.12} parent=31 // pred_check
              %p151 = pneg %p147
            $region38: #{reconstructor_forward.12} parent=31 // pred_check_branch
              %153 = sbr.rel (%p151) target = $region40
            $region39: #{reconstructor_forward.12} parent=31 // pred_region
              %s154 = sshll.u32 1, %s143
              %s155 = ssub.s32 %s154, 1
              loop: start=0, step=1, limit=1
              $region41: #{reconstructor_forward.12} parent=39 // loop_pre_header
                _
              $region42: #{reconstructor_forward.12} parent=39 // loop_header
                %s157 = sphi 0, %s161
                %p158 = scmp.ge.s32.totalorder %s157, 1
                %s162 = sphi %s142, %s142
                %s163 = sphi %s134, %s134
              $region43: #{reconstructor_forward.12} parent=39 // loop_header_branch
                %160 = sbr.rel (%p158) target = $region47
              $region44: #{reconstructor_forward.12} parent=39 // loop_body
                %v164 = vld [vmem:[%s162] sm:%s155]
                %165 = vst [vmem:[%s163] sm:%s155] %v164
                %v166 = vld [vmem:[%s162 + $0xc4] sm:%s155]
                %167 = vst [vmem:[%s163 + $0x80] sm:%s155] %v166
                %v168 = vld [vmem:[%s162 + $0x188] sm:%s155]
                %169 = vst [vmem:[%s163 + $0x100] sm:%s155] %v168
                %v170 = vld [vmem:[%s162 + $0x24c] sm:%s155]
                %171 = vst [vmem:[%s163 + $0x180] sm:%s155] %v170
                %v172 = vld [vmem:[%s162 + $0x310] sm:%s155]
                %173 = vst [vmem:[%s163 + $0x200] sm:%s155] %v172
                %v174 = vld [vmem:[%s162 + $0x3d4] sm:%s155]
                %175 = vst [vmem:[%s163 + $0x280] sm:%s155] %v174
                %v176 = vld [vmem:[%s162 + $0x498] sm:%s155]
                %177 = vst [vmem:[%s163 + $0x300] sm:%s155] %v176
              $region45: #{reconstructor_forward.12} parent=39 // loop_footer
                %s161 = sadd.s32 1, %s157
              $region46: #{reconstructor_forward.12} parent=39 // loop_footer_branch
                %156 = sbr.rel target = $region42
              $region47: #{reconstructor_forward.12} parent=39 // loop_exit
                _
            $region40: #{reconstructor_forward.12} parent=31 // pred_fallthru
              _
          $region32: #{reconstructor_forward.12} parent=27 // pred_fallthru
            _
          %495 = vnop
        $region28: #{reconstructor_forward.12} parent=23 // pred_fallthru
          _
      $region24: #{reconstructor_forward.12} parent=5 // pred_fallthru
        _
      %p496 = scmp.le.s32.totalorder 1, %s9
      %p497 = scmp.lt.s32.totalorder %s9, 3
      %p498 = pnand %p496, %p497
      %p499 = pneg %p498
      // Predicated region
      $region91: #{reconstructor_forward.12} parent=5 // pred_check
        _
      $region92: #{reconstructor_forward.12} parent=5 // pred_check_branch
        %501 = sbr.rel (%p498) target = $region94
      $region93: #{reconstructor_forward.12} parent=5 // pred_region
        %s502 = ssub.s32 %s9, 1
        %s503 = sand.u32 %s43, 1
        %s504 = sand.u32 %s43, 1
        %s505 = smul.addr %s504, 896
        %s506 = scalar_lea.vmem [#allocation2], %s505
        // Predicated region
        $region95: #{reconstructor_forward.12} parent=93 // pred_check
          %p507 = pneg %p56
        $region96: #{reconstructor_forward.12} parent=93 // pred_check_branch
          %509 = sbr.rel (%p507) target = $region98
        $region97: #{reconstructor_forward.12} parent=93 // pred_region
          _
        $region98: #{reconstructor_forward.12} parent=93 // pred_fallthru
          _
        %p510 = pneg %p30
        %p511 = pneg %p27
        %s512 = sand.u32 %s43, 1
        %s513 = sand.u32 %s43, 1
        %s514 = smul.addr %s513, 896
        %s515 = scalar_lea.vmem [#allocation2], %s514
        %p516 = pneg %p56
        %p517 = pneg %p53
        %p518 = pneg %p77
        %p519 = pneg %p74
        %p520 = pneg %p103
        %p521 = pneg %p100
        %s522 = sand.u32 %s90, 1
        %s523 = sand.u32 %s90, 1
        %s524 = smul.addr %s523, 384
        %s525 = scalar_lea.vmem [#allocation3], %s524
        %s526 = smul.u32 32, %s14
        %s527 = ssub.s32 49, %s526
        %p528 = scmp.lt.s32.totalorder %s527, 32
        %s529 = scalar_select %p528, %s527, 32
        %s530 = smul.u32 28, %s529
        %s531 = smul.u32 32, %s14
        %s532 = ssub.s32 49, %s531
        %p533 = scmp.lt.s32.totalorder %s532, 32
        %s534 = scalar_select %p533, %s532, 32
        %s535 = smul.u32 12, %s534
        %v537 = vld [vmem:[%s0] sm:$0xf]
        %v538 = vld [vmem:[%s0 + $0x4] sm:$0xf]
        %v539 = vld [vmem:[%s0 + $0x8] sm:$0xf]
        %v540 = vld [vmem:[%s506] sm:$0xff]
        %v541 = vld [vmem:[%s506 + $0x8] sm:$0xff]
        %v542 = vld [vmem:[%s506 + $0x10] sm:$0xff]
        %v543 = vld [vmem:[%s506 + $0x18] sm:$0xff]
        %v544 = vld [vmem:[%s506 + $0x20] sm:$0xff]
        %v545 = vld [vmem:[%s506 + $0x28] sm:$0xff]
        %v546 = vld [vmem:[%s506 + $0x30] sm:$0xff]
        %v547 = vld [vmem:[%s506 + $0x38] sm:$0xff]
        %v548 = vld [vmem:[%s506 + $0x40] sm:$0xff]
        %v549 = vld [vmem:[%s506 + $0x48] sm:$0xff]
        %v550 = vld [vmem:[%s506 + $0x50] sm:$0xff]
        %v551 = vld [vmem:[%s506 + $0x58] sm:$0xff]
        %v552 = vld [vmem:[%s506 + $0x60] sm:$0xff]
        %v553 = vld [vmem:[%s506 + $0x68] sm:$0xff]
        %v554 = vld [vmem:[%s506 + $0x70] sm:$0xff]
        %v555 = vld [vmem:[%s506 + $0x78] sm:$0xff]
        %v556 = vld [vmem:[%s506 + $0x80] sm:$0xff]
        %v557 = vld [vmem:[%s506 + $0x88] sm:$0xff]
        %v558 = vld [vmem:[%s506 + $0x90] sm:$0xff]
        %v559 = vld [vmem:[%s506 + $0x98] sm:$0xff]
        %v560 = vld [vmem:[%s506 + $0xa0] sm:$0xff]
        %v561 = vld [vmem:[%s506 + $0xa8] sm:$0xff]
        %v562 = vld [vmem:[%s506 + $0xb0] sm:$0xff]
        %v563 = vld [vmem:[%s506 + $0xb8] sm:$0xff]
        %v564 = vld [vmem:[%s506 + $0xc0] sm:$0xff]
        %v565 = vld [vmem:[%s506 + $0xc8] sm:$0xff]
        %v566 = vld [vmem:[%s506 + $0xd0] sm:$0xff]
        %v567 = vld [vmem:[%s506 + $0xd8] sm:$0xff]
        %v568 = vld [vmem:[%s506 + $0xe0] sm:$0xff]
        %v569 = vld [vmem:[%s506 + $0xe8] sm:$0xff]
        %v570 = vld [vmem:[%s506 + $0xf0] sm:$0xff]
        %v571 = vld [vmem:[%s506 + $0xf8] sm:$0xff]
        %v572 = vld [vmem:[%s506 + $0x100] sm:$0xff]
        %v573 = vld [vmem:[%s506 + $0x108] sm:$0xff]
        %v574 = vld [vmem:[%s506 + $0x110] sm:$0xff]
        %v575 = vld [vmem:[%s506 + $0x118] sm:$0xff]
        %v576 = vld [vmem:[%s506 + $0x120] sm:$0xff]
        %v577 = vld [vmem:[%s506 + $0x128] sm:$0xff]
        %v578 = vld [vmem:[%s506 + $0x130] sm:$0xff]
        %v579 = vld [vmem:[%s506 + $0x138] sm:$0xff]
        %v580 = vld [vmem:[%s506 + $0x140] sm:$0xff]
        %v581 = vld [vmem:[%s506 + $0x148] sm:$0xff]
        %v582 = vld [vmem:[%s506 + $0x150] sm:$0xff]
        %v583 = vld [vmem:[%s506 + $0x158] sm:$0xff]
        %v584 = vld [vmem:[%s506 + $0x160] sm:$0xff]
        %v585 = vld [vmem:[%s506 + $0x168] sm:$0xff]
        %v586 = vld [vmem:[%s506 + $0x170] sm:$0xff]
        %v587 = vld [vmem:[%s506 + $0x178] sm:$0xff]
        %v588 = vld [vmem:[%s506 + $0x180] sm:$0xff]
        %v589 = vld [vmem:[%s506 + $0x188] sm:$0xff]
        %v590 = vld [vmem:[%s506 + $0x190] sm:$0xff]
        %v591 = vld [vmem:[%s506 + $0x198] sm:$0xff]
        %v592 = vld [vmem:[%s506 + $0x1a0] sm:$0xff]
        %v593 = vld [vmem:[%s506 + $0x1a8] sm:$0xff]
        %v594 = vld [vmem:[%s506 + $0x1b0] sm:$0xff]
        %v595 = vld [vmem:[%s506 + $0x1b8] sm:$0xff]
        %v596 = vld [vmem:[%s506 + $0x1c0] sm:$0xff]
        %v597 = vld [vmem:[%s506 + $0x1c8] sm:$0xff]
        %v598 = vld [vmem:[%s506 + $0x1d0] sm:$0xff]
        %v599 = vld [vmem:[%s506 + $0x1d8] sm:$0xff]
        %v600 = vld [vmem:[%s506 + $0x1e0] sm:$0xff]
        %v601 = vld [vmem:[%s506 + $0x1e8] sm:$0xff]
        %v602 = vld [vmem:[%s506 + $0x1f0] sm:$0xff]
        %v603 = vld [vmem:[%s506 + $0x1f8] sm:$0xff]
        %v604 = vld [vmem:[%s506 + $0x200] sm:$0xff]
        %v605 = vld [vmem:[%s506 + $0x208] sm:$0xff]
        %v606 = vld [vmem:[%s506 + $0x210] sm:$0xff]
        %v607 = vld [vmem:[%s506 + $0x218] sm:$0xff]
        %v608 = vld [vmem:[%s506 + $0x220] sm:$0xff]
        %v609 = vld [vmem:[%s506 + $0x228] sm:$0xff]
        %v610 = vld [vmem:[%s506 + $0x230] sm:$0xff]
        %v611 = vld [vmem:[%s506 + $0x238] sm:$0xff]
        %v612 = vld [vmem:[%s506 + $0x240] sm:$0xff]
        %v613 = vld [vmem:[%s506 + $0x248] sm:$0xff]
        %v614 = vld [vmem:[%s506 + $0x250] sm:$0xff]
        %v615 = vld [vmem:[%s506 + $0x258] sm:$0xff]
        %v616 = vld [vmem:[%s506 + $0x260] sm:$0xff]
        %v617 = vld [vmem:[%s506 + $0x268] sm:$0xff]
        %v618 = vld [vmem:[%s506 + $0x270] sm:$0xff]
        %v619 = vld [vmem:[%s506 + $0x278] sm:$0xff]
        %v620 = vld [vmem:[%s506 + $0x280] sm:$0xff]
        %v621 = vld [vmem:[%s506 + $0x288] sm:$0xff]
        %v622 = vld [vmem:[%s506 + $0x290] sm:$0xff]
        %v623 = vld [vmem:[%s506 + $0x298] sm:$0xff]
        %v624 = vld [vmem:[%s506 + $0x2a0] sm:$0xff]
        %v625 = vld [vmem:[%s506 + $0x2a8] sm:$0xff]
        %v626 = vld [vmem:[%s506 + $0x2b0] sm:$0xff]
        %v627 = vld [vmem:[%s506 + $0x2b8] sm:$0xff]
        %v628 = vld [vmem:[%s506 + $0x2c0] sm:$0xff]
        %v629 = vld [vmem:[%s506 + $0x2c8] sm:$0xff]
        %v630 = vld [vmem:[%s506 + $0x2d0] sm:$0xff]
        %v631 = vld [vmem:[%s506 + $0x2d8] sm:$0xff]
        %v632 = vld [vmem:[%s506 + $0x2e0] sm:$0xff]
        %v633 = vld [vmem:[%s506 + $0x2e8] sm:$0xff]
        %v634 = vld [vmem:[%s506 + $0x2f0] sm:$0xff]
        %v635 = vld [vmem:[%s506 + $0x2f8] sm:$0xff]
        %v636 = vld [vmem:[%s506 + $0x300] sm:$0x77]
        %v637 = vld [vmem:[%s506 + $0x308] sm:$0x77]
        %v638 = vld [vmem:[%s506 + $0x310] sm:$0x77]
        %v639 = vld [vmem:[%s506 + $0x318] sm:$0x77]
        %v640 = vld [vmem:[%s506 + $0x320] sm:$0x77]
        %v641 = vld [vmem:[%s506 + $0x328] sm:$0x77]
        %v642 = vld [vmem:[%s506 + $0x330] sm:$0x77]
        %v643 = vld [vmem:[%s506 + $0x338] sm:$0x77]
        %v644 = vld [vmem:[%s506 + $0x340] sm:$0x77]
        %v645 = vld [vmem:[%s506 + $0x348] sm:$0x77]
        %v646 = vld [vmem:[%s506 + $0x350] sm:$0x77]
        %v647 = vld [vmem:[%s506 + $0x358] sm:$0x77]
        %v648 = vld [vmem:[%s506 + $0x360] sm:$0x77]
        %v649 = vld [vmem:[%s506 + $0x368] sm:$0x77]
        %v650 = vld [vmem:[%s506 + $0x370] sm:$0x77]
        %v651 = vld [vmem:[%s506 + $0x378] sm:$0x77]
        %v652 = vld [vmem:[%s2] sm:$0xff]
        %v653 = vld [vmem:[%s2 + $0x8] sm:$0xff]
        %v654 = vld [vmem:[%s2 + $0x10] sm:$0xff]
        %656 = vset.pattern.permute.xlu0 0
        %657 = vperm.xlu0 %656, %v652
        %v658 = vpop.permute.xlu0 %657
        %661 = vset.pattern.permute.xlu0 0
        %662 = vperm.xlu0 %661, %v653
        %v663 = vpop.permute.xlu0 %662
        %666 = vset.pattern.permute.xlu0 0
        %667 = vperm.xlu0 %666, %v654
        %v668 = vpop.permute.xlu0 %667
        %v673 = vunpack.c.l.b16 %v537
        %v674 = vunpack.c.l.b16 %v538
        %v675 = vunpack.c.l.b16 %v539
        %v676 = vpack.c.b16 %v674, %v673
        %v677 = vpack.c.b16 %v675, %v675
        %v790 = vunpack.c.l.b16 %v540
        %v791 = vunpack.c.h.b16 %v540
        %v792 = vunpack.c.l.b16 %v541
        %v793 = vunpack.c.h.b16 %v541
        %v794 = vunpack.c.l.b16 %v542
        %v795 = vunpack.c.h.b16 %v542
        %v796 = vunpack.c.l.b16 %v543
        %v797 = vunpack.c.h.b16 %v543
        %v798 = vunpack.c.l.b16 %v544
        %v799 = vunpack.c.h.b16 %v544
        %v800 = vunpack.c.l.b16 %v545
        %v801 = vunpack.c.h.b16 %v545
        %v802 = vunpack.c.l.b16 %v546
        %v803 = vunpack.c.h.b16 %v546
        %v804 = vunpack.c.l.b16 %v547
        %v805 = vunpack.c.h.b16 %v547
        %v806 = vunpack.c.l.b16 %v548
        %v807 = vunpack.c.h.b16 %v548
        %v808 = vunpack.c.l.b16 %v549
        %v809 = vunpack.c.h.b16 %v549
        %v810 = vunpack.c.l.b16 %v550
        %v811 = vunpack.c.h.b16 %v550
        %v812 = vunpack.c.l.b16 %v551
        %v813 = vunpack.c.h.b16 %v551
        %v814 = vunpack.c.l.b16 %v552
        %v815 = vunpack.c.h.b16 %v552
        %v816 = vunpack.c.l.b16 %v553
        %v817 = vunpack.c.h.b16 %v553
        %v818 = vunpack.c.l.b16 %v554
        %v819 = vunpack.c.h.b16 %v554
        %v820 = vunpack.c.l.b16 %v555
        %v821 = vunpack.c.h.b16 %v555
        %v822 = vunpack.c.l.b16 %v556
        %v823 = vunpack.c.h.b16 %v556
        %v824 = vunpack.c.l.b16 %v557
        %v825 = vunpack.c.h.b16 %v557
        %v826 = vunpack.c.l.b16 %v558
        %v827 = vunpack.c.h.b16 %v558
        %v828 = vunpack.c.l.b16 %v559
        %v829 = vunpack.c.h.b16 %v559
        %v830 = vunpack.c.l.b16 %v560
        %v831 = vunpack.c.h.b16 %v560
        %v832 = vunpack.c.l.b16 %v561
        %v833 = vunpack.c.h.b16 %v561
        %v834 = vunpack.c.l.b16 %v562
        %v835 = vunpack.c.h.b16 %v562
        %v836 = vunpack.c.l.b16 %v563
        %v837 = vunpack.c.h.b16 %v563
        %v838 = vunpack.c.l.b16 %v564
        %v839 = vunpack.c.h.b16 %v564
        %v840 = vunpack.c.l.b16 %v565
        %v841 = vunpack.c.h.b16 %v565
        %v842 = vunpack.c.l.b16 %v566
        %v843 = vunpack.c.h.b16 %v566
        %v844 = vunpack.c.l.b16 %v567
        %v845 = vunpack.c.h.b16 %v567
        %v846 = vunpack.c.l.b16 %v568
        %v847 = vunpack.c.h.b16 %v568
        %v848 = vunpack.c.l.b16 %v569
        %v849 = vunpack.c.h.b16 %v569
        %v850 = vunpack.c.l.b16 %v570
        %v851 = vunpack.c.h.b16 %v570
        %v852 = vunpack.c.l.b16 %v571
        %v853 = vunpack.c.h.b16 %v571
        %v854 = vunpack.c.l.b16 %v572
        %v855 = vunpack.c.h.b16 %v572
        %v856 = vunpack.c.l.b16 %v573
        %v857 = vunpack.c.h.b16 %v573
        %v858 = vunpack.c.l.b16 %v574
        %v859 = vunpack.c.h.b16 %v574
        %v860 = vunpack.c.l.b16 %v575
        %v861 = vunpack.c.h.b16 %v575
        %v862 = vunpack.c.l.b16 %v576
        %v863 = vunpack.c.h.b16 %v576
        %v864 = vunpack.c.l.b16 %v577
        %v865 = vunpack.c.h.b16 %v577
        %v866 = vunpack.c.l.b16 %v578
        %v867 = vunpack.c.h.b16 %v578
        %v868 = vunpack.c.l.b16 %v579
        %v869 = vunpack.c.h.b16 %v579
        %v870 = vunpack.c.l.b16 %v580
        %v871 = vunpack.c.h.b16 %v580
        %v872 = vunpack.c.l.b16 %v581
        %v873 = vunpack.c.h.b16 %v581
        %v874 = vunpack.c.l.b16 %v582
        %v875 = vunpack.c.h.b16 %v582
        %v876 = vunpack.c.l.b16 %v583
        %v877 = vunpack.c.h.b16 %v583
        %v878 = vunpack.c.l.b16 %v584
        %v879 = vunpack.c.h.b16 %v584
        %v880 = vunpack.c.l.b16 %v585
        %v881 = vunpack.c.h.b16 %v585
        %v882 = vunpack.c.l.b16 %v586
        %v883 = vunpack.c.h.b16 %v586
        %v884 = vunpack.c.l.b16 %v587
        %v885 = vunpack.c.h.b16 %v587
        %v886 = vunpack.c.l.b16 %v588
        %v887 = vunpack.c.h.b16 %v588
        %v888 = vunpack.c.l.b16 %v589
        %v889 = vunpack.c.h.b16 %v589
        %v890 = vunpack.c.l.b16 %v590
        %v891 = vunpack.c.h.b16 %v590
        %v892 = vunpack.c.l.b16 %v591
        %v893 = vunpack.c.h.b16 %v591
        %v894 = vunpack.c.l.b16 %v592
        %v895 = vunpack.c.h.b16 %v592
        %v896 = vunpack.c.l.b16 %v593
        %v897 = vunpack.c.h.b16 %v593
        %v898 = vunpack.c.l.b16 %v594
        %v899 = vunpack.c.h.b16 %v594
        %v900 = vunpack.c.l.b16 %v595
        %v901 = vunpack.c.h.b16 %v595
        %v902 = vunpack.c.l.b16 %v596
        %v903 = vunpack.c.h.b16 %v596
        %v904 = vunpack.c.l.b16 %v597
        %v905 = vunpack.c.h.b16 %v597
        %v906 = vunpack.c.l.b16 %v598
        %v907 = vunpack.c.h.b16 %v598
        %v908 = vunpack.c.l.b16 %v599
        %v909 = vunpack.c.h.b16 %v599
        %v910 = vunpack.c.l.b16 %v600
        %v911 = vunpack.c.h.b16 %v600
        %v912 = vunpack.c.l.b16 %v601
        %v913 = vunpack.c.h.b16 %v601
        %v914 = vunpack.c.l.b16 %v602
        %v915 = vunpack.c.h.b16 %v602
        %v916 = vunpack.c.l.b16 %v603
        %v917 = vunpack.c.h.b16 %v603
        %v918 = vunpack.c.l.b16 %v604
        %v919 = vunpack.c.h.b16 %v604
        %v920 = vunpack.c.l.b16 %v605
        %v921 = vunpack.c.h.b16 %v605
        %v922 = vunpack.c.l.b16 %v606
        %v923 = vunpack.c.h.b16 %v606
        %v924 = vunpack.c.l.b16 %v607
        %v925 = vunpack.c.h.b16 %v607
        %v926 = vunpack.c.l.b16 %v608
        %v927 = vunpack.c.h.b16 %v608
        %v928 = vunpack.c.l.b16 %v609
        %v929 = vunpack.c.h.b16 %v609
        %v930 = vunpack.c.l.b16 %v610
        %v931 = vunpack.c.h.b16 %v610
        %v932 = vunpack.c.l.b16 %v611
        %v933 = vunpack.c.h.b16 %v611
        %v934 = vunpack.c.l.b16 %v612
        %v935 = vunpack.c.h.b16 %v612
        %v936 = vunpack.c.l.b16 %v613
        %v937 = vunpack.c.h.b16 %v613
        %v938 = vunpack.c.l.b16 %v614
        %v939 = vunpack.c.h.b16 %v614
        %v940 = vunpack.c.l.b16 %v615
        %v941 = vunpack.c.h.b16 %v615
        %v942 = vunpack.c.l.b16 %v616
        %v943 = vunpack.c.h.b16 %v616
        %v944 = vunpack.c.l.b16 %v617
        %v945 = vunpack.c.h.b16 %v617
        %v946 = vunpack.c.l.b16 %v618
        %v947 = vunpack.c.h.b16 %v618
        %v948 = vunpack.c.l.b16 %v619
        %v949 = vunpack.c.h.b16 %v619
        %v950 = vunpack.c.l.b16 %v620
        %v951 = vunpack.c.h.b16 %v620
        %v952 = vunpack.c.l.b16 %v621
        %v953 = vunpack.c.h.b16 %v621
        %v954 = vunpack.c.l.b16 %v622
        %v955 = vunpack.c.h.b16 %v622
        %v956 = vunpack.c.l.b16 %v623
        %v957 = vunpack.c.h.b16 %v623
        %v958 = vunpack.c.l.b16 %v624
        %v959 = vunpack.c.h.b16 %v624
        %v960 = vunpack.c.l.b16 %v625
        %v961 = vunpack.c.h.b16 %v625
        %v962 = vunpack.c.l.b16 %v626
        %v963 = vunpack.c.h.b16 %v626
        %v964 = vunpack.c.l.b16 %v627
        %v965 = vunpack.c.h.b16 %v627
        %v966 = vunpack.c.l.b16 %v628
        %v967 = vunpack.c.h.b16 %v628
        %v968 = vunpack.c.l.b16 %v629
        %v969 = vunpack.c.h.b16 %v629
        %v970 = vunpack.c.l.b16 %v630
        %v971 = vunpack.c.h.b16 %v630
        %v972 = vunpack.c.l.b16 %v631
        %v973 = vunpack.c.h.b16 %v631
        %v974 = vunpack.c.l.b16 %v632
        %v975 = vunpack.c.h.b16 %v632
        %v976 = vunpack.c.l.b16 %v633
        %v977 = vunpack.c.h.b16 %v633
        %v978 = vunpack.c.l.b16 %v634
        %v979 = vunpack.c.h.b16 %v634
        %v980 = vunpack.c.l.b16 %v635
        %v981 = vunpack.c.h.b16 %v635
        %v982 = vunpack.c.l.b16 %v636
        %v983 = vunpack.c.h.b16 %v636
        %v984 = vunpack.c.l.b16 %v637
        %v985 = vunpack.c.h.b16 %v637
        %v986 = vunpack.c.l.b16 %v638
        %v987 = vunpack.c.h.b16 %v638
        %v988 = vunpack.c.l.b16 %v639
        %v989 = vunpack.c.h.b16 %v639
        %v990 = vunpack.c.l.b16 %v640
        %v991 = vunpack.c.h.b16 %v640
        %v992 = vunpack.c.l.b16 %v641
        %v993 = vunpack.c.h.b16 %v641
        %v994 = vunpack.c.l.b16 %v642
        %v995 = vunpack.c.h.b16 %v642
        %v996 = vunpack.c.l.b16 %v643
        %v997 = vunpack.c.h.b16 %v643
        %v998 = vunpack.c.l.b16 %v644
        %v999 = vunpack.c.h.b16 %v644
        %v1000 = vunpack.c.l.b16 %v645
        %v1001 = vunpack.c.h.b16 %v645
        %v1002 = vunpack.c.l.b16 %v646
        %v1003 = vunpack.c.h.b16 %v646
        %v1004 = vunpack.c.l.b16 %v647
        %v1005 = vunpack.c.h.b16 %v647
        %v1006 = vunpack.c.l.b16 %v648
        %v1007 = vunpack.c.h.b16 %v648
        %v1008 = vunpack.c.l.b16 %v649
        %v1009 = vunpack.c.h.b16 %v649
        %v1010 = vunpack.c.l.b16 %v650
        %v1011 = vunpack.c.h.b16 %v650
        %v1012 = vunpack.c.l.b16 %v651
        %v1013 = vunpack.c.h.b16 %v651
        %v1014 = vpack.c.b16 %v822, %v790
        %v1015 = vpack.c.b16 %v823, %v791
        %v1016 = vpack.c.b16 %v824, %v792
        %v1017 = vpack.c.b16 %v825, %v793
        %v1018 = vpack.c.b16 %v826, %v794
        %v1019 = vpack.c.b16 %v827, %v795
        %v1020 = vpack.c.b16 %v828, %v796
        %v1021 = vpack.c.b16 %v829, %v797
        %v1022 = vpack.c.b16 %v830, %v798
        %v1023 = vpack.c.b16 %v831, %v799
        %v1024 = vpack.c.b16 %v832, %v800
        %v1025 = vpack.c.b16 %v833, %v801
        %v1026 = vpack.c.b16 %v834, %v802
        %v1027 = vpack.c.b16 %v835, %v803
        %v1028 = vpack.c.b16 %v836, %v804
        %v1029 = vpack.c.b16 %v837, %v805
        %v1030 = vpack.c.b16 %v838, %v806
        %v1031 = vpack.c.b16 %v839, %v807
        %v1032 = vpack.c.b16 %v840, %v808
        %v1033 = vpack.c.b16 %v841, %v809
        %v1034 = vpack.c.b16 %v842, %v810
        %v1035 = vpack.c.b16 %v843, %v811
        %v1036 = vpack.c.b16 %v844, %v812
        %v1037 = vpack.c.b16 %v845, %v813
        %v1038 = vpack.c.b16 %v846, %v814
        %v1039 = vpack.c.b16 %v847, %v815
        %v1040 = vpack.c.b16 %v848, %v816
        %v1041 = vpack.c.b16 %v849, %v817
        %v1042 = vpack.c.b16 %v850, %v818
        %v1043 = vpack.c.b16 %v851, %v819
        %v1044 = vpack.c.b16 %v852, %v820
        %v1045 = vpack.c.b16 %v853, %v821
        %v1046 = vpack.c.b16 %v886, %v854
        %v1047 = vpack.c.b16 %v887, %v855
        %v1048 = vpack.c.b16 %v888, %v856
        %v1049 = vpack.c.b16 %v889, %v857
        %v1050 = vpack.c.b16 %v890, %v858
        %v1051 = vpack.c.b16 %v891, %v859
        %v1052 = vpack.c.b16 %v892, %v860
        %v1053 = vpack.c.b16 %v893, %v861
        %v1054 = vpack.c.b16 %v894, %v862
        %v1055 = vpack.c.b16 %v895, %v863
        %v1056 = vpack.c.b16 %v896, %v864
        %v1057 = vpack.c.b16 %v897, %v865
        %v1058 = vpack.c.b16 %v898, %v866
        %v1059 = vpack.c.b16 %v899, %v867
        %v1060 = vpack.c.b16 %v900, %v868
        %v1061 = vpack.c.b16 %v901, %v869
        %v1062 = vpack.c.b16 %v902, %v870
        %v1063 = vpack.c.b16 %v903, %v871
        %v1064 = vpack.c.b16 %v904, %v872
        %v1065 = vpack.c.b16 %v905, %v873
        %v1066 = vpack.c.b16 %v906, %v874
        %v1067 = vpack.c.b16 %v907, %v875
        %v1068 = vpack.c.b16 %v908, %v876
        %v1069 = vpack.c.b16 %v909, %v877
        %v1070 = vpack.c.b16 %v910, %v878
        %v1071 = vpack.c.b16 %v911, %v879
        %v1072 = vpack.c.b16 %v912, %v880
        %v1073 = vpack.c.b16 %v913, %v881
        %v1074 = vpack.c.b16 %v914, %v882
        %v1075 = vpack.c.b16 %v915, %v883
        %v1076 = vpack.c.b16 %v916, %v884
        %v1077 = vpack.c.b16 %v917, %v885
        %v1078 = vpack.c.b16 %v950, %v918
        %v1079 = vpack.c.b16 %v951, %v919
        %v1080 = vpack.c.b16 %v952, %v920
        %v1081 = vpack.c.b16 %v953, %v921
        %v1082 = vpack.c.b16 %v954, %v922
        %v1083 = vpack.c.b16 %v955, %v923
        %v1084 = vpack.c.b16 %v956, %v924
        %v1085 = vpack.c.b16 %v957, %v925
        %v1086 = vpack.c.b16 %v958, %v926
        %v1087 = vpack.c.b16 %v959, %v927
        %v1088 = vpack.c.b16 %v960, %v928
        %v1089 = vpack.c.b16 %v961, %v929
        %v1090 = vpack.c.b16 %v962, %v930
        %v1091 = vpack.c.b16 %v963, %v931
        %v1092 = vpack.c.b16 %v964, %v932
        %v1093 = vpack.c.b16 %v965, %v933
        %v1094 = vpack.c.b16 %v966, %v934
        %v1095 = vpack.c.b16 %v967, %v935
        %v1096 = vpack.c.b16 %v968, %v936
        %v1097 = vpack.c.b16 %v969, %v937
        %v1098 = vpack.c.b16 %v970, %v938
        %v1099 = vpack.c.b16 %v971, %v939
        %v1100 = vpack.c.b16 %v972, %v940
        %v1101 = vpack.c.b16 %v973, %v941
        %v1102 = vpack.c.b16 %v974, %v942
        %v1103 = vpack.c.b16 %v975, %v943
        %v1104 = vpack.c.b16 %v976, %v944
        %v1105 = vpack.c.b16 %v977, %v945
        %v1106 = vpack.c.b16 %v978, %v946
        %v1107 = vpack.c.b16 %v979, %v947
        %v1108 = vpack.c.b16 %v980, %v948
        %v1109 = vpack.c.b16 %v981, %v949
        %v1110 = vpack.c.b16 %v982, %v982
        %v1111 = vpack.c.b16 %v983, %v983
        %v1112 = vpack.c.b16 %v984, %v984
        %v1113 = vpack.c.b16 %v985, %v985
        %v1114 = vpack.c.b16 %v986, %v986
        %v1115 = vpack.c.b16 %v987, %v987
        %v1116 = vpack.c.b16 %v988, %v988
        %v1117 = vpack.c.b16 %v989, %v989
        %v1118 = vpack.c.b16 %v990, %v990
        %v1119 = vpack.c.b16 %v991, %v991
        %v1120 = vpack.c.b16 %v992, %v992
        %v1121 = vpack.c.b16 %v993, %v993
        %v1122 = vpack.c.b16 %v994, %v994
        %v1123 = vpack.c.b16 %v995, %v995
        %v1124 = vpack.c.b16 %v996, %v996
        %v1125 = vpack.c.b16 %v997, %v997
        %v1126 = vpack.c.b16 %v998, %v998
        %v1127 = vpack.c.b16 %v999, %v999
        %v1128 = vpack.c.b16 %v1000, %v1000
        %v1129 = vpack.c.b16 %v1001, %v1001
        %v1130 = vpack.c.b16 %v1002, %v1002
        %v1131 = vpack.c.b16 %v1003, %v1003
        %v1132 = vpack.c.b16 %v1004, %v1004
        %v1133 = vpack.c.b16 %v1005, %v1005
        %v1134 = vpack.c.b16 %v1006, %v1006
        %v1135 = vpack.c.b16 %v1007, %v1007
        %v1136 = vpack.c.b16 %v1008, %v1008
        %v1137 = vpack.c.b16 %v1009, %v1009
        %v1138 = vpack.c.b16 %v1010, %v1010
        %v1139 = vpack.c.b16 %v1011, %v1011
        %v1140 = vpack.c.b16 %v1012, %v1012
        %v1141 = vpack.c.b16 %v1013, %v1013
        %vm1238 = vcmask 441344
        %v1240 = vsel %vm1238, %v676, 0
        %v1243 = vsel %vm1238, %v677, 0
        %vm1245 = vcmask 1042432
        %v1247 = vsel %vm1245, %v1110, 0
        %v1250 = vsel %vm1245, %v1111, 0
        %v1253 = vsel %vm1245, %v1112, 0
        %v1256 = vsel %vm1245, %v1113, 0
        %v1259 = vsel %vm1245, %v1114, 0
        %v1262 = vsel %vm1245, %v1115, 0
        %v1265 = vsel %vm1245, %v1116, 0
        %v1268 = vsel %vm1245, %v1117, 0
        %v1271 = vsel %vm1245, %v1118, 0
        %v1274 = vsel %vm1245, %v1119, 0
        %v1277 = vsel %vm1245, %v1120, 0
        %v1280 = vsel %vm1245, %v1121, 0
        %v1283 = vsel %vm1245, %v1122, 0
        %v1286 = vsel %vm1245, %v1123, 0
        %v1289 = vsel %vm1245, %v1124, 0
        %v1292 = vsel %vm1245, %v1125, 0
        %v1295 = vsel %vm1245, %v1126, 0
        %v1298 = vsel %vm1245, %v1127, 0
        %v1301 = vsel %vm1245, %v1128, 0
        %v1304 = vsel %vm1245, %v1129, 0
        %v1307 = vsel %vm1245, %v1130, 0
        %v1310 = vsel %vm1245, %v1131, 0
        %v1313 = vsel %vm1245, %v1132, 0
        %v1316 = vsel %vm1245, %v1133, 0
        %v1319 = vsel %vm1245, %v1134, 0
        %v1322 = vsel %vm1245, %v1135, 0
        %v1325 = vsel %vm1245, %v1136, 0
        %v1328 = vsel %vm1245, %v1137, 0
        %v1331 = vsel %vm1245, %v1138, 0
        %v1334 = vsel %vm1245, %v1139, 0
        %v1337 = vsel %vm1245, %v1140, 0
        %v1340 = vsel %vm1245, %v1141, 0
        %1342 = vmatpush.bf16.msra.mxu0 0
        %1343 = vmatpush.bf16.msra.mxu0 0
        %1344 = vmatpush.bf16.msra.mxu0 0
        %1345 = vmatpush.bf16.msra.mxu0 0
        %1346 = vmatpush.bf16.msra.mxu0 %v1247
        %1347 = vmatpush.bf16.msra.mxu0 %v1078
        %1348 = vmatpush.bf16.msra.mxu0 %v1046
        %1349 = vmatpush.bf16.msra.mxu0 %v1014
        %1350 = vmatmul.bf16.gmra.mxu0 %v1240
        %v1351 = vpop.f32.mrf.mxu0
        %v1352 = vadd.f32 %v658, %v1351
        %v1353 = vpop.f32.mrf.mxu0
        %v1354 = vadd.f32 %v663, %v1353
        %1355 = vmatmul.bf16.gmra.mxu0 %v1243
        %v1356 = vpop.f32.mrf.mxu0
        %v1357 = vadd.f32 %v668, %v1356
        %v1358 = vpop.f32.mrf.mxu0
        %1359 = vdwg.mxu0
        %1360 = vmatpush.bf16.msra.mxu0 0
        %1361 = vmatpush.bf16.msra.mxu0 0
        %1362 = vmatpush.bf16.msra.mxu0 0
        %1363 = vmatpush.bf16.msra.mxu0 0
        %1364 = vmatpush.bf16.msra.mxu0 %v1250
        %1365 = vmatpush.bf16.msra.mxu0 %v1079
        %1366 = vmatpush.bf16.msra.mxu0 %v1047
        %1367 = vmatpush.bf16.msra.mxu0 %v1015
        %1368 = vmatmul.bf16.gmra.mxu0 %v1240
        %v1369 = vpop.f32.mrf.mxu0
        %v1370 = vadd.f32 %v658, %v1369
        %v1371 = vpop.f32.mrf.mxu0
        %v1372 = vadd.f32 %v663, %v1371
        %1373 = vmatmul.bf16.gmra.mxu0 %v1243
        %v1374 = vpop.f32.mrf.mxu0
        %v1375 = vadd.f32 %v668, %v1374
        %v1376 = vpop.f32.mrf.mxu0
        %1377 = vdwg.mxu0
        %1378 = vmatpush.bf16.msra.mxu0 0
        %1379 = vmatpush.bf16.msra.mxu0 0
        %1380 = vmatpush.bf16.msra.mxu0 0
        %1381 = vmatpush.bf16.msra.mxu0 0
        %1382 = vmatpush.bf16.msra.mxu0 %v1253
        %1383 = vmatpush.bf16.msra.mxu0 %v1080
        %1384 = vmatpush.bf16.msra.mxu0 %v1048
        %1385 = vmatpush.bf16.msra.mxu0 %v1016
        %1386 = vmatmul.bf16.gmra.mxu0 %v1240
        %v1387 = vpop.f32.mrf.mxu0
        %v1388 = vadd.f32 %v658, %v1387
        %v1389 = vpop.f32.mrf.mxu0
        %v1390 = vadd.f32 %v663, %v1389
        %1391 = vmatmul.bf16.gmra.mxu0 %v1243
        %v1392 = vpop.f32.mrf.mxu0
        %v1393 = vadd.f32 %v668, %v1392
        %v1394 = vpop.f32.mrf.mxu0
        %1395 = vdwg.mxu0
        %1396 = vmatpush.bf16.msra.mxu0 0
        %1397 = vmatpush.bf16.msra.mxu0 0
        %1398 = vmatpush.bf16.msra.mxu0 0
        %1399 = vmatpush.bf16.msra.mxu0 0
        %1400 = vmatpush.bf16.msra.mxu0 %v1256
        %1401 = vmatpush.bf16.msra.mxu0 %v1081
        %1402 = vmatpush.bf16.msra.mxu0 %v1049
        %1403 = vmatpush.bf16.msra.mxu0 %v1017
        %1404 = vmatmul.bf16.gmra.mxu0 %v1240
        %v1405 = vpop.f32.mrf.mxu0
        %v1406 = vadd.f32 %v658, %v1405
        %v1407 = vpop.f32.mrf.mxu0
        %v1408 = vadd.f32 %v663, %v1407
        %1409 = vmatmul.bf16.gmra.mxu0 %v1243
        %v1410 = vpop.f32.mrf.mxu0
        %v1411 = vadd.f32 %v668, %v1410
        %v1412 = vpop.f32.mrf.mxu0
        %1413 = vdwg.mxu0
        %1414 = vmatpush.bf16.msra.mxu0 0
        %1415 = vmatpush.bf16.msra.mxu0 0
        %1416 = vmatpush.bf16.msra.mxu0 0
        %1417 = vmatpush.bf16.msra.mxu0 0
        %1418 = vmatpush.bf16.msra.mxu0 %v1259
        %1419 = vmatpush.bf16.msra.mxu0 %v1082
        %1420 = vmatpush.bf16.msra.mxu0 %v1050
        %1421 = vmatpush.bf16.msra.mxu0 %v1018
        %1422 = vmatmul.bf16.gmra.mxu0 %v1240
        %v1423 = vpop.f32.mrf.mxu0
        %v1424 = vadd.f32 %v658, %v1423
        %v1425 = vpop.f32.mrf.mxu0
        %v1426 = vadd.f32 %v663, %v1425
        %1427 = vmatmul.bf16.gmra.mxu0 %v1243
        %v1428 = vpop.f32.mrf.mxu0
        %v1429 = vadd.f32 %v668, %v1428
        %v1430 = vpop.f32.mrf.mxu0
        %1431 = vdwg.mxu0
        %1432 = vmatpush.bf16.msra.mxu0 0
        %1433 = vmatpush.bf16.msra.mxu0 0
        %1434 = vmatpush.bf16.msra.mxu0 0
        %1435 = vmatpush.bf16.msra.mxu0 0
        %1436 = vmatpush.bf16.msra.mxu0 %v1262
        %1437 = vmatpush.bf16.msra.mxu0 %v1083
        %1438 = vmatpush.bf16.msra.mxu0 %v1051
        %1439 = vmatpush.bf16.msra.mxu0 %v1019
        %1440 = vmatmul.bf16.gmra.mxu0 %v1240
        %v1441 = vpop.f32.mrf.mxu0
        %v1442 = vadd.f32 %v658, %v1441
        %v1443 = vpop.f32.mrf.mxu0
        %v1444 = vadd.f32 %v663, %v1443
        %1445 = vmatmul.bf16.gmra.mxu0 %v1243
        %v1446 = vpop.f32.mrf.mxu0
        %v1447 = vadd.f32 %v668, %v1446
        %v1448 = vpop.f32.mrf.mxu0
        %1449 = vdwg.mxu0
        %1450 = vmatpush.bf16.msra.mxu0 0
        %1451 = vmatpush.bf16.msra.mxu0 0
        %1452 = vmatpush.bf16.msra.mxu0 0
        %1453 = vmatpush.bf16.msra.mxu0 0
        %1454 = vmatpush.bf16.msra.mxu0 %v1265
        %1455 = vmatpush.bf16.msra.mxu0 %v1084
        %1456 = vmatpush.bf16.msra.mxu0 %v1052
        %1457 = vmatpush.bf16.msra.mxu0 %v1020
        %1458 = vmatmul.bf16.gmra.mxu0 %v1240
        %v1459 = vpop.f32.mrf.mxu0
        %v1460 = vadd.f32 %v658, %v1459
        %v1461 = vpop.f32.mrf.mxu0
        %v1462 = vadd.f32 %v663, %v1461
        %1463 = vmatmul.bf16.gmra.mxu0 %v1243
        %v1464 = vpop.f32.mrf.mxu0
        %v1465 = vadd.f32 %v668, %v1464
        %v1466 = vpop.f32.mrf.mxu0
        %1467 = vdwg.mxu0
        %1468 = vmatpush.bf16.msra.mxu0 0
        %1469 = vmatpush.bf16.msra.mxu0 0
        %1470 = vmatpush.bf16.msra.mxu0 0
        %1471 = vmatpush.bf16.msra.mxu0 0
        %1472 = vmatpush.bf16.msra.mxu0 %v1268
        %1473 = vmatpush.bf16.msra.mxu0 %v1085
        %1474 = vmatpush.bf16.msra.mxu0 %v1053
        %1475 = vmatpush.bf16.msra.mxu0 %v1021
        %1476 = vmatmul.bf16.gmra.mxu0 %v1240
        %v1477 = vpop.f32.mrf.mxu0
        %v1478 = vadd.f32 %v658, %v1477
        %v1479 = vpop.f32.mrf.mxu0
        %v1480 = vadd.f32 %v663, %v1479
        %1481 = vmatmul.bf16.gmra.mxu0 %v1243
        %v1482 = vpop.f32.mrf.mxu0
        %v1483 = vadd.f32 %v668, %v1482
        %v1484 = vpop.f32.mrf.mxu0
        %1485 = vdwg.mxu0
        %1486 = vmatpush.bf16.msra.mxu0 0
        %1487 = vmatpush.bf16.msra.mxu0 0
        %1488 = vmatpush.bf16.msra.mxu0 0
        %1489 = vmatpush.bf16.msra.mxu0 0
        %1490 = vmatpush.bf16.msra.mxu0 %v1271
        %1491 = vmatpush.bf16.msra.mxu0 %v1086
        %1492 = vmatpush.bf16.msra.mxu0 %v1054
        %1493 = vmatpush.bf16.msra.mxu0 %v1022
        %1494 = vmatmul.bf16.gmra.mxu0 %v1240
        %v1495 = vpop.f32.mrf.mxu0
        %v1496 = vadd.f32 %v658, %v1495
        %v1497 = vpop.f32.mrf.mxu0
        %v1498 = vadd.f32 %v663, %v1497
        %1499 = vmatmul.bf16.gmra.mxu0 %v1243
        %v1500 = vpop.f32.mrf.mxu0
        %v1501 = vadd.f32 %v668, %v1500
        %v1502 = vpop.f32.mrf.mxu0
        %1503 = vdwg.mxu0
        %1504 = vmatpush.bf16.msra.mxu0 0
        %1505 = vmatpush.bf16.msra.mxu0 0
        %1506 = vmatpush.bf16.msra.mxu0 0
        %1507 = vmatpush.bf16.msra.mxu0 0
        %1508 = vmatpush.bf16.msra.mxu0 %v1274
        %1509 = vmatpush.bf16.msra.mxu0 %v1087
        %1510 = vmatpush.bf16.msra.mxu0 %v1055
        %1511 = vmatpush.bf16.msra.mxu0 %v1023
        %1512 = vmatmul.bf16.gmra.mxu0 %v1240
        %v1513 = vpop.f32.mrf.mxu0
        %v1514 = vadd.f32 %v658, %v1513
        %v1515 = vpop.f32.mrf.mxu0
        %v1516 = vadd.f32 %v663, %v1515
        %1517 = vmatmul.bf16.gmra.mxu0 %v1243
        %v1518 = vpop.f32.mrf.mxu0
        %v1519 = vadd.f32 %v668, %v1518
        %v1520 = vpop.f32.mrf.mxu0
        %1521 = vdwg.mxu0
        %1522 = vmatpush.bf16.msra.mxu0 0
        %1523 = vmatpush.bf16.msra.mxu0 0
        %1524 = vmatpush.bf16.msra.mxu0 0
        %1525 = vmatpush.bf16.msra.mxu0 0
        %1526 = vmatpush.bf16.msra.mxu0 %v1277
        %1527 = vmatpush.bf16.msra.mxu0 %v1088
        %1528 = vmatpush.bf16.msra.mxu0 %v1056
        %1529 = vmatpush.bf16.msra.mxu0 %v1024
        %1530 = vmatmul.bf16.gmra.mxu0 %v1240
        %v1531 = vpop.f32.mrf.mxu0
        %v1532 = vadd.f32 %v658, %v1531
        %v1533 = vpop.f32.mrf.mxu0
        %v1534 = vadd.f32 %v663, %v1533
        %1535 = vmatmul.bf16.gmra.mxu0 %v1243
        %v1536 = vpop.f32.mrf.mxu0
        %v1537 = vadd.f32 %v668, %v1536
        %v1538 = vpop.f32.mrf.mxu0
        %1539 = vdwg.mxu0
        %1540 = vmatpush.bf16.msra.mxu0 0
        %1541 = vmatpush.bf16.msra.mxu0 0
        %1542 = vmatpush.bf16.msra.mxu0 0
        %1543 = vmatpush.bf16.msra.mxu0 0
        %1544 = vmatpush.bf16.msra.mxu0 %v1280
        %1545 = vmatpush.bf16.msra.mxu0 %v1089
        %1546 = vmatpush.bf16.msra.mxu0 %v1057
        %1547 = vmatpush.bf16.msra.mxu0 %v1025
        %1548 = vmatmul.bf16.gmra.mxu0 %v1240
        %v1549 = vpop.f32.mrf.mxu0
        %v1550 = vadd.f32 %v658, %v1549
        %v1551 = vpop.f32.mrf.mxu0
        %v1552 = vadd.f32 %v663, %v1551
        %1553 = vmatmul.bf16.gmra.mxu0 %v1243
        %v1554 = vpop.f32.mrf.mxu0
        %v1555 = vadd.f32 %v668, %v1554
        %v1556 = vpop.f32.mrf.mxu0
        %1557 = vdwg.mxu0
        %1558 = vmatpush.bf16.msra.mxu0 0
        %1559 = vmatpush.bf16.msra.mxu0 0
        %1560 = vmatpush.bf16.msra.mxu0 0
        %1561 = vmatpush.bf16.msra.mxu0 0
        %1562 = vmatpush.bf16.msra.mxu0 %v1283
        %1563 = vmatpush.bf16.msra.mxu0 %v1090
        %1564 = vmatpush.bf16.msra.mxu0 %v1058
        %1565 = vmatpush.bf16.msra.mxu0 %v1026
        %1566 = vmatmul.bf16.gmra.mxu0 %v1240
        %v1567 = vpop.f32.mrf.mxu0
        %v1568 = vadd.f32 %v658, %v1567
        %v1569 = vpop.f32.mrf.mxu0
        %v1570 = vadd.f32 %v663, %v1569
        %1571 = vmatmul.bf16.gmra.mxu0 %v1243
        %v1572 = vpop.f32.mrf.mxu0
        %v1573 = vadd.f32 %v668, %v1572
        %v1574 = vpop.f32.mrf.mxu0
        %1575 = vdwg.mxu0
        %1576 = vmatpush.bf16.msra.mxu0 0
        %1577 = vmatpush.bf16.msra.mxu0 0
        %1578 = vmatpush.bf16.msra.mxu0 0
        %1579 = vmatpush.bf16.msra.mxu0 0
        %1580 = vmatpush.bf16.msra.mxu0 %v1286
        %1581 = vmatpush.bf16.msra.mxu0 %v1091
        %1582 = vmatpush.bf16.msra.mxu0 %v1059
        %1583 = vmatpush.bf16.msra.mxu0 %v1027
        %1584 = vmatmul.bf16.gmra.mxu0 %v1240
        %v1585 = vpop.f32.mrf.mxu0
        %v1586 = vadd.f32 %v658, %v1585
        %v1587 = vpop.f32.mrf.mxu0
        %v1588 = vadd.f32 %v663, %v1587
        %1589 = vmatmul.bf16.gmra.mxu0 %v1243
        %v1590 = vpop.f32.mrf.mxu0
        %v1591 = vadd.f32 %v668, %v1590
        %v1592 = vpop.f32.mrf.mxu0
        %1593 = vdwg.mxu0
        %1594 = vmatpush.bf16.msra.mxu0 0
        %1595 = vmatpush.bf16.msra.mxu0 0
        %1596 = vmatpush.bf16.msra.mxu0 0
        %1597 = vmatpush.bf16.msra.mxu0 0
        %1598 = vmatpush.bf16.msra.mxu0 %v1289
        %1599 = vmatpush.bf16.msra.mxu0 %v1092
        %1600 = vmatpush.bf16.msra.mxu0 %v1060
        %1601 = vmatpush.bf16.msra.mxu0 %v1028
        %1602 = vmatmul.bf16.gmra.mxu0 %v1240
        %v1603 = vpop.f32.mrf.mxu0
        %v1604 = vadd.f32 %v658, %v1603
        %v1605 = vpop.f32.mrf.mxu0
        %v1606 = vadd.f32 %v663, %v1605
        %1607 = vmatmul.bf16.gmra.mxu0 %v1243
        %v1608 = vpop.f32.mrf.mxu0
        %v1609 = vadd.f32 %v668, %v1608
        %v1610 = vpop.f32.mrf.mxu0
        %1611 = vdwg.mxu0
        %1612 = vmatpush.bf16.msra.mxu0 0
        %1613 = vmatpush.bf16.msra.mxu0 0
        %1614 = vmatpush.bf16.msra.mxu0 0
        %1615 = vmatpush.bf16.msra.mxu0 0
        %1616 = vmatpush.bf16.msra.mxu0 %v1292
        %1617 = vmatpush.bf16.msra.mxu0 %v1093
        %1618 = vmatpush.bf16.msra.mxu0 %v1061
        %1619 = vmatpush.bf16.msra.mxu0 %v1029
        %1620 = vmatmul.bf16.gmra.mxu0 %v1240
        %v1621 = vpop.f32.mrf.mxu0
        %v1622 = vadd.f32 %v658, %v1621
        %v1623 = vpop.f32.mrf.mxu0
        %v1624 = vadd.f32 %v663, %v1623
        %1625 = vmatmul.bf16.gmra.mxu0 %v1243
        %v1626 = vpop.f32.mrf.mxu0
        %v1627 = vadd.f32 %v668, %v1626
        %v1628 = vpop.f32.mrf.mxu0
        %1629 = vdwg.mxu0
        %1630 = vmatpush.bf16.msra.mxu0 0
        %1631 = vmatpush.bf16.msra.mxu0 0
        %1632 = vmatpush.bf16.msra.mxu0 0
        %1633 = vmatpush.bf16.msra.mxu0 0
        %1634 = vmatpush.bf16.msra.mxu0 %v1295
        %1635 = vmatpush.bf16.msra.mxu0 %v1094
        %1636 = vmatpush.bf16.msra.mxu0 %v1062
        %1637 = vmatpush.bf16.msra.mxu0 %v1030
        %1638 = vmatmul.bf16.gmra.mxu0 %v1240
        %v1639 = vpop.f32.mrf.mxu0
        %v1640 = vadd.f32 %v658, %v1639
        %v1641 = vpop.f32.mrf.mxu0
        %v1642 = vadd.f32 %v663, %v1641
        %1643 = vmatmul.bf16.gmra.mxu0 %v1243
        %v1644 = vpop.f32.mrf.mxu0
        %v1645 = vadd.f32 %v668, %v1644
        %v1646 = vpop.f32.mrf.mxu0
        %1647 = vdwg.mxu0
        %1648 = vmatpush.bf16.msra.mxu0 0
        %1649 = vmatpush.bf16.msra.mxu0 0
        %1650 = vmatpush.bf16.msra.mxu0 0
        %1651 = vmatpush.bf16.msra.mxu0 0
        %1652 = vmatpush.bf16.msra.mxu0 %v1298
        %1653 = vmatpush.bf16.msra.mxu0 %v1095
        %1654 = vmatpush.bf16.msra.mxu0 %v1063
        %1655 = vmatpush.bf16.msra.mxu0 %v1031
        %1656 = vmatmul.bf16.gmra.mxu0 %v1240
        %v1657 = vpop.f32.mrf.mxu0
        %v1658 = vadd.f32 %v658, %v1657
        %v1659 = vpop.f32.mrf.mxu0
        %v1660 = vadd.f32 %v663, %v1659
        %1661 = vmatmul.bf16.gmra.mxu0 %v1243
        %v1662 = vpop.f32.mrf.mxu0
        %v1663 = vadd.f32 %v668, %v1662
        %v1664 = vpop.f32.mrf.mxu0
        %1665 = vdwg.mxu0
        %1666 = vmatpush.bf16.msra.mxu0 0
        %1667 = vmatpush.bf16.msra.mxu0 0
        %1668 = vmatpush.bf16.msra.mxu0 0
        %1669 = vmatpush.bf16.msra.mxu0 0
        %1670 = vmatpush.bf16.msra.mxu0 %v1301
        %1671 = vmatpush.bf16.msra.mxu0 %v1096
        %1672 = vmatpush.bf16.msra.mxu0 %v1064
        %1673 = vmatpush.bf16.msra.mxu0 %v1032
        %1674 = vmatmul.bf16.gmra.mxu0 %v1240
        %v1675 = vpop.f32.mrf.mxu0
        %v1676 = vadd.f32 %v658, %v1675
        %v1677 = vpop.f32.mrf.mxu0
        %v1678 = vadd.f32 %v663, %v1677
        %1679 = vmatmul.bf16.gmra.mxu0 %v1243
        %v1680 = vpop.f32.mrf.mxu0
        %v1681 = vadd.f32 %v668, %v1680
        %v1682 = vpop.f32.mrf.mxu0
        %1683 = vdwg.mxu0
        %1684 = vmatpush.bf16.msra.mxu0 0
        %1685 = vmatpush.bf16.msra.mxu0 0
        %1686 = vmatpush.bf16.msra.mxu0 0
        %1687 = vmatpush.bf16.msra.mxu0 0
        %1688 = vmatpush.bf16.msra.mxu0 %v1304
        %1689 = vmatpush.bf16.msra.mxu0 %v1097
        %1690 = vmatpush.bf16.msra.mxu0 %v1065
        %1691 = vmatpush.bf16.msra.mxu0 %v1033
        %1692 = vmatmul.bf16.gmra.mxu0 %v1240
        %v1693 = vpop.f32.mrf.mxu0
        %v1694 = vadd.f32 %v658, %v1693
        %v1695 = vpop.f32.mrf.mxu0
        %v1696 = vadd.f32 %v663, %v1695
        %1697 = vmatmul.bf16.gmra.mxu0 %v1243
        %v1698 = vpop.f32.mrf.mxu0
        %v1699 = vadd.f32 %v668, %v1698
        %v1700 = vpop.f32.mrf.mxu0
        %1701 = vdwg.mxu0
        %1702 = vmatpush.bf16.msra.mxu0 0
        %1703 = vmatpush.bf16.msra.mxu0 0
        %1704 = vmatpush.bf16.msra.mxu0 0
        %1705 = vmatpush.bf16.msra.mxu0 0
        %1706 = vmatpush.bf16.msra.mxu0 %v1307
        %1707 = vmatpush.bf16.msra.mxu0 %v1098
        %1708 = vmatpush.bf16.msra.mxu0 %v1066
        %1709 = vmatpush.bf16.msra.mxu0 %v1034
        %1710 = vmatmul.bf16.gmra.mxu0 %v1240
        %v1711 = vpop.f32.mrf.mxu0
        %v1712 = vadd.f32 %v658, %v1711
        %v1713 = vpop.f32.mrf.mxu0
        %v1714 = vadd.f32 %v663, %v1713
        %1715 = vmatmul.bf16.gmra.mxu0 %v1243
        %v1716 = vpop.f32.mrf.mxu0
        %v1717 = vadd.f32 %v668, %v1716
        %v1718 = vpop.f32.mrf.mxu0
        %1719 = vdwg.mxu0
        %1720 = vmatpush.bf16.msra.mxu0 0
        %1721 = vmatpush.bf16.msra.mxu0 0
        %1722 = vmatpush.bf16.msra.mxu0 0
        %1723 = vmatpush.bf16.msra.mxu0 0
        %1724 = vmatpush.bf16.msra.mxu0 %v1310
        %1725 = vmatpush.bf16.msra.mxu0 %v1099
        %1726 = vmatpush.bf16.msra.mxu0 %v1067
        %1727 = vmatpush.bf16.msra.mxu0 %v1035
        %1728 = vmatmul.bf16.gmra.mxu0 %v1240
        %v1729 = vpop.f32.mrf.mxu0
        %v1730 = vadd.f32 %v658, %v1729
        %v1731 = vpop.f32.mrf.mxu0
        %v1732 = vadd.f32 %v663, %v1731
        %1733 = vmatmul.bf16.gmra.mxu0 %v1243
        %v1734 = vpop.f32.mrf.mxu0
        %v1735 = vadd.f32 %v668, %v1734
        %v1736 = vpop.f32.mrf.mxu0
        %1737 = vdwg.mxu0
        %1738 = vmatpush.bf16.msra.mxu0 0
        %1739 = vmatpush.bf16.msra.mxu0 0
        %1740 = vmatpush.bf16.msra.mxu0 0
        %1741 = vmatpush.bf16.msra.mxu0 0
        %1742 = vmatpush.bf16.msra.mxu0 %v1313
        %1743 = vmatpush.bf16.msra.mxu0 %v1100
        %1744 = vmatpush.bf16.msra.mxu0 %v1068
        %1745 = vmatpush.bf16.msra.mxu0 %v1036
        %1746 = vmatmul.bf16.gmra.mxu0 %v1240
        %v1747 = vpop.f32.mrf.mxu0
        %v1748 = vadd.f32 %v658, %v1747
        %v1749 = vpop.f32.mrf.mxu0
        %v1750 = vadd.f32 %v663, %v1749
        %1751 = vmatmul.bf16.gmra.mxu0 %v1243
        %v1752 = vpop.f32.mrf.mxu0
        %v1753 = vadd.f32 %v668, %v1752
        %v1754 = vpop.f32.mrf.mxu0
        %1755 = vdwg.mxu0
        %1756 = vmatpush.bf16.msra.mxu0 0
        %1757 = vmatpush.bf16.msra.mxu0 0
        %1758 = vmatpush.bf16.msra.mxu0 0
        %1759 = vmatpush.bf16.msra.mxu0 0
        %1760 = vmatpush.bf16.msra.mxu0 %v1316
        %1761 = vmatpush.bf16.msra.mxu0 %v1101
        %1762 = vmatpush.bf16.msra.mxu0 %v1069
        %1763 = vmatpush.bf16.msra.mxu0 %v1037
        %1764 = vmatmul.bf16.gmra.mxu0 %v1240
        %v1765 = vpop.f32.mrf.mxu0
        %v1766 = vadd.f32 %v658, %v1765
        %v1767 = vpop.f32.mrf.mxu0
        %v1768 = vadd.f32 %v663, %v1767
        %1769 = vmatmul.bf16.gmra.mxu0 %v1243
        %v1770 = vpop.f32.mrf.mxu0
        %v1771 = vadd.f32 %v668, %v1770
        %v1772 = vpop.f32.mrf.mxu0
        %1773 = vdwg.mxu0
        %1774 = vmatpush.bf16.msra.mxu0 0
        %1775 = vmatpush.bf16.msra.mxu0 0
        %1776 = vmatpush.bf16.msra.mxu0 0
        %1777 = vmatpush.bf16.msra.mxu0 0
        %1778 = vmatpush.bf16.msra.mxu0 %v1319
        %1779 = vmatpush.bf16.msra.mxu0 %v1102
        %1780 = vmatpush.bf16.msra.mxu0 %v1070
        %1781 = vmatpush.bf16.msra.mxu0 %v1038
        %1782 = vmatmul.bf16.gmra.mxu0 %v1240
        %v1783 = vpop.f32.mrf.mxu0
        %v1784 = vadd.f32 %v658, %v1783
        %v1785 = vpop.f32.mrf.mxu0
        %v1786 = vadd.f32 %v663, %v1785
        %1787 = vmatmul.bf16.gmra.mxu0 %v1243
        %v1788 = vpop.f32.mrf.mxu0
        %v1789 = vadd.f32 %v668, %v1788
        %v1790 = vpop.f32.mrf.mxu0
        %1791 = vdwg.mxu0
        %1792 = vmatpush.bf16.msra.mxu0 0
        %1793 = vmatpush.bf16.msra.mxu0 0
        %1794 = vmatpush.bf16.msra.mxu0 0
        %1795 = vmatpush.bf16.msra.mxu0 0
        %1796 = vmatpush.bf16.msra.mxu0 %v1322
        %1797 = vmatpush.bf16.msra.mxu0 %v1103
        %1798 = vmatpush.bf16.msra.mxu0 %v1071
        %1799 = vmatpush.bf16.msra.mxu0 %v1039
        %1800 = vmatmul.bf16.gmra.mxu0 %v1240
        %v1801 = vpop.f32.mrf.mxu0
        %v1802 = vadd.f32 %v658, %v1801
        %v1803 = vpop.f32.mrf.mxu0
        %v1804 = vadd.f32 %v663, %v1803
        %1805 = vmatmul.bf16.gmra.mxu0 %v1243
        %v1806 = vpop.f32.mrf.mxu0
        %v1807 = vadd.f32 %v668, %v1806
        %v1808 = vpop.f32.mrf.mxu0
        %1809 = vdwg.mxu0
        %1810 = vmatpush.bf16.msra.mxu0 0
        %1811 = vmatpush.bf16.msra.mxu0 0
        %1812 = vmatpush.bf16.msra.mxu0 0
        %1813 = vmatpush.bf16.msra.mxu0 0
        %1814 = vmatpush.bf16.msra.mxu0 %v1325
        %1815 = vmatpush.bf16.msra.mxu0 %v1104
        %1816 = vmatpush.bf16.msra.mxu0 %v1072
        %1817 = vmatpush.bf16.msra.mxu0 %v1040
        %1818 = vmatmul.bf16.gmra.mxu0 %v1240
        %v1819 = vpop.f32.mrf.mxu0
        %v1820 = vadd.f32 %v658, %v1819
        %v1821 = vpop.f32.mrf.mxu0
        %v1822 = vadd.f32 %v663, %v1821
        %1823 = vmatmul.bf16.gmra.mxu0 %v1243
        %v1824 = vpop.f32.mrf.mxu0
        %v1825 = vadd.f32 %v668, %v1824
        %v1826 = vpop.f32.mrf.mxu0
        %1827 = vdwg.mxu0
        %1828 = vmatpush.bf16.msra.mxu0 0
        %1829 = vmatpush.bf16.msra.mxu0 0
        %1830 = vmatpush.bf16.msra.mxu0 0
        %1831 = vmatpush.bf16.msra.mxu0 0
        %1832 = vmatpush.bf16.msra.mxu0 %v1328
        %1833 = vmatpush.bf16.msra.mxu0 %v1105
        %1834 = vmatpush.bf16.msra.mxu0 %v1073
        %1835 = vmatpush.bf16.msra.mxu0 %v1041
        %1836 = vmatmul.bf16.gmra.mxu0 %v1240
        %v1837 = vpop.f32.mrf.mxu0
        %v1838 = vadd.f32 %v658, %v1837
        %v1839 = vpop.f32.mrf.mxu0
        %v1840 = vadd.f32 %v663, %v1839
        %1841 = vmatmul.bf16.gmra.mxu0 %v1243
        %v1842 = vpop.f32.mrf.mxu0
        %v1843 = vadd.f32 %v668, %v1842
        %v1844 = vpop.f32.mrf.mxu0
        %1845 = vdwg.mxu0
        %1846 = vmatpush.bf16.msra.mxu0 0
        %1847 = vmatpush.bf16.msra.mxu0 0
        %1848 = vmatpush.bf16.msra.mxu0 0
        %1849 = vmatpush.bf16.msra.mxu0 0
        %1850 = vmatpush.bf16.msra.mxu0 %v1331
        %1851 = vmatpush.bf16.msra.mxu0 %v1106
        %1852 = vmatpush.bf16.msra.mxu0 %v1074
        %1853 = vmatpush.bf16.msra.mxu0 %v1042
        %1854 = vmatmul.bf16.gmra.mxu0 %v1240
        %v1855 = vpop.f32.mrf.mxu0
        %v1856 = vadd.f32 %v658, %v1855
        %v1857 = vpop.f32.mrf.mxu0
        %v1858 = vadd.f32 %v663, %v1857
        %1859 = vmatmul.bf16.gmra.mxu0 %v1243
        %v1860 = vpop.f32.mrf.mxu0
        %v1861 = vadd.f32 %v668, %v1860
        %v1862 = vpop.f32.mrf.mxu0
        %1863 = vdwg.mxu0
        %1864 = vmatpush.bf16.msra.mxu0 0
        %1865 = vmatpush.bf16.msra.mxu0 0
        %1866 = vmatpush.bf16.msra.mxu0 0
        %1867 = vmatpush.bf16.msra.mxu0 0
        %1868 = vmatpush.bf16.msra.mxu0 %v1334
        %1869 = vmatpush.bf16.msra.mxu0 %v1107
        %1870 = vmatpush.bf16.msra.mxu0 %v1075
        %1871 = vmatpush.bf16.msra.mxu0 %v1043
        %1872 = vmatmul.bf16.gmra.mxu0 %v1240
        %v1873 = vpop.f32.mrf.mxu0
        %v1874 = vadd.f32 %v658, %v1873
        %v1875 = vpop.f32.mrf.mxu0
        %v1876 = vadd.f32 %v663, %v1875
        %1877 = vmatmul.bf16.gmra.mxu0 %v1243
        %v1878 = vpop.f32.mrf.mxu0
        %v1879 = vadd.f32 %v668, %v1878
        %v1880 = vpop.f32.mrf.mxu0
        %1881 = vdwg.mxu0
        %1882 = vmatpush.bf16.msra.mxu0 0
        %1883 = vmatpush.bf16.msra.mxu0 0
        %1884 = vmatpush.bf16.msra.mxu0 0
        %1885 = vmatpush.bf16.msra.mxu0 0
        %1886 = vmatpush.bf16.msra.mxu0 %v1337
        %1887 = vmatpush.bf16.msra.mxu0 %v1108
        %1888 = vmatpush.bf16.msra.mxu0 %v1076
        %1889 = vmatpush.bf16.msra.mxu0 %v1044
        %1890 = vmatmul.bf16.gmra.mxu0 %v1240
        %v1891 = vpop.f32.mrf.mxu0
        %v1892 = vadd.f32 %v658, %v1891
        %v1893 = vpop.f32.mrf.mxu0
        %v1894 = vadd.f32 %v663, %v1893
        %1895 = vmatmul.bf16.gmra.mxu0 %v1243
        %v1896 = vpop.f32.mrf.mxu0
        %v1897 = vadd.f32 %v668, %v1896
        %v1898 = vpop.f32.mrf.mxu0
        %1899 = vdwg.mxu0
        %1900 = vmatpush.bf16.msra.mxu0 0
        %1901 = vmatpush.bf16.msra.mxu0 0
        %1902 = vmatpush.bf16.msra.mxu0 0
        %1903 = vmatpush.bf16.msra.mxu0 0
        %1904 = vmatpush.bf16.msra.mxu0 %v1340
        %1905 = vmatpush.bf16.msra.mxu0 %v1109
        %1906 = vmatpush.bf16.msra.mxu0 %v1077
        %1907 = vmatpush.bf16.msra.mxu0 %v1045
        %1908 = vmatmul.bf16.gmra.mxu0 %v1240
        %v1909 = vpop.f32.mrf.mxu0
        %v1910 = vadd.f32 %v658, %v1909
        %v1911 = vpop.f32.mrf.mxu0
        %v1912 = vadd.f32 %v663, %v1911
        %1913 = vmatmul.bf16.gmra.mxu0 %v1243
        %v1914 = vpop.f32.mrf.mxu0
        %v1915 = vadd.f32 %v668, %v1914
        %v1916 = vpop.f32.mrf.mxu0
        %1917 = vdwg.mxu0
        %v1918 = vmax.f32 %v1352, 0.0
        %v1919 = vmax.f32 %v1370, 0.0
        %v1920 = vmax.f32 %v1388, 0.0
        %v1921 = vmax.f32 %v1406, 0.0
        %v1922 = vmax.f32 %v1424, 0.0
        %v1923 = vmax.f32 %v1442, 0.0
        %v1924 = vmax.f32 %v1460, 0.0
        %v1925 = vmax.f32 %v1478, 0.0
        %v1926 = vmax.f32 %v1496, 0.0
        %v1927 = vmax.f32 %v1514, 0.0
        %v1928 = vmax.f32 %v1532, 0.0
        %v1929 = vmax.f32 %v1550, 0.0
        %v1930 = vmax.f32 %v1568, 0.0
        %v1931 = vmax.f32 %v1586, 0.0
        %v1932 = vmax.f32 %v1604, 0.0
        %v1933 = vmax.f32 %v1622, 0.0
        %v1934 = vmax.f32 %v1640, 0.0
        %v1935 = vmax.f32 %v1658, 0.0
        %v1936 = vmax.f32 %v1676, 0.0
        %v1937 = vmax.f32 %v1694, 0.0
        %v1938 = vmax.f32 %v1712, 0.0
        %v1939 = vmax.f32 %v1730, 0.0
        %v1940 = vmax.f32 %v1748, 0.0
        %v1941 = vmax.f32 %v1766, 0.0
        %v1942 = vmax.f32 %v1784, 0.0
        %v1943 = vmax.f32 %v1802, 0.0
        %v1944 = vmax.f32 %v1820, 0.0
        %v1945 = vmax.f32 %v1838, 0.0
        %v1946 = vmax.f32 %v1856, 0.0
        %v1947 = vmax.f32 %v1874, 0.0
        %v1948 = vmax.f32 %v1892, 0.0
        %v1949 = vmax.f32 %v1910, 0.0
        %v1950 = vmax.f32 %v1354, 0.0
        %v1951 = vmax.f32 %v1372, 0.0
        %v1952 = vmax.f32 %v1390, 0.0
        %v1953 = vmax.f32 %v1408, 0.0
        %v1954 = vmax.f32 %v1426, 0.0
        %v1955 = vmax.f32 %v1444, 0.0
        %v1956 = vmax.f32 %v1462, 0.0
        %v1957 = vmax.f32 %v1480, 0.0
        %v1958 = vmax.f32 %v1498, 0.0
        %v1959 = vmax.f32 %v1516, 0.0
        %v1960 = vmax.f32 %v1534, 0.0
        %v1961 = vmax.f32 %v1552, 0.0
        %v1962 = vmax.f32 %v1570, 0.0
        %v1963 = vmax.f32 %v1588, 0.0
        %v1964 = vmax.f32 %v1606, 0.0
        %v1965 = vmax.f32 %v1624, 0.0
        %v1966 = vmax.f32 %v1642, 0.0
        %v1967 = vmax.f32 %v1660, 0.0
        %v1968 = vmax.f32 %v1678, 0.0
        %v1969 = vmax.f32 %v1696, 0.0
        %v1970 = vmax.f32 %v1714, 0.0
        %v1971 = vmax.f32 %v1732, 0.0
        %v1972 = vmax.f32 %v1750, 0.0
        %v1973 = vmax.f32 %v1768, 0.0
        %v1974 = vmax.f32 %v1786, 0.0
        %v1975 = vmax.f32 %v1804, 0.0
        %v1976 = vmax.f32 %v1822, 0.0
        %v1977 = vmax.f32 %v1840, 0.0
        %v1978 = vmax.f32 %v1858, 0.0
        %v1979 = vmax.f32 %v1876, 0.0
        %v1980 = vmax.f32 %v1894, 0.0
        %v1981 = vmax.f32 %v1912, 0.0
        %v1982 = vmax.f32 %v1357, 0.0
        %v1983 = vmax.f32 %v1375, 0.0
        %v1984 = vmax.f32 %v1393, 0.0
        %v1985 = vmax.f32 %v1411, 0.0
        %v1986 = vmax.f32 %v1429, 0.0
        %v1987 = vmax.f32 %v1447, 0.0
        %v1988 = vmax.f32 %v1465, 0.0
        %v1989 = vmax.f32 %v1483, 0.0
        %v1990 = vmax.f32 %v1501, 0.0
        %v1991 = vmax.f32 %v1519, 0.0
        %v1992 = vmax.f32 %v1537, 0.0
        %v1993 = vmax.f32 %v1555, 0.0
        %v1994 = vmax.f32 %v1573, 0.0
        %v1995 = vmax.f32 %v1591, 0.0
        %v1996 = vmax.f32 %v1609, 0.0
        %v1997 = vmax.f32 %v1627, 0.0
        %v1998 = vmax.f32 %v1645, 0.0
        %v1999 = vmax.f32 %v1663, 0.0
        %v2000 = vmax.f32 %v1681, 0.0
        %v2001 = vmax.f32 %v1699, 0.0
        %v2002 = vmax.f32 %v1717, 0.0
        %v2003 = vmax.f32 %v1735, 0.0
        %v2004 = vmax.f32 %v1753, 0.0
        %v2005 = vmax.f32 %v1771, 0.0
        %v2006 = vmax.f32 %v1789, 0.0
        %v2007 = vmax.f32 %v1807, 0.0
        %v2008 = vmax.f32 %v1825, 0.0
        %v2009 = vmax.f32 %v1843, 0.0
        %v2010 = vmax.f32 %v1861, 0.0
        %v2011 = vmax.f32 %v1879, 0.0
        %v2012 = vmax.f32 %v1897, 0.0
        %v2013 = vmax.f32 %v1915, 0.0
        %v2014 = vpack.c.bf16 %v1919, %v1918
        %v2015 = vpack.c.bf16 %v1921, %v1920
        %v2016 = vpack.c.bf16 %v1923, %v1922
        %v2017 = vpack.c.bf16 %v1925, %v1924
        %v2018 = vpack.c.bf16 %v1927, %v1926
        %v2019 = vpack.c.bf16 %v1929, %v1928
        %v2020 = vpack.c.bf16 %v1931, %v1930
        %v2021 = vpack.c.bf16 %v1933, %v1932
        %v2022 = vpack.c.bf16 %v1935, %v1934
        %v2023 = vpack.c.bf16 %v1937, %v1936
        %v2024 = vpack.c.bf16 %v1939, %v1938
        %v2025 = vpack.c.bf16 %v1941, %v1940
        %v2026 = vpack.c.bf16 %v1943, %v1942
        %v2027 = vpack.c.bf16 %v1945, %v1944
        %v2028 = vpack.c.bf16 %v1947, %v1946
        %v2029 = vpack.c.bf16 %v1949, %v1948
        %v2030 = vpack.c.bf16 %v1951, %v1950
        %v2031 = vpack.c.bf16 %v1953, %v1952
        %v2032 = vpack.c.bf16 %v1955, %v1954
        %v2033 = vpack.c.bf16 %v1957, %v1956
        %v2034 = vpack.c.bf16 %v1959, %v1958
        %v2035 = vpack.c.bf16 %v1961, %v1960
        %v2036 = vpack.c.bf16 %v1963, %v1962
        %v2037 = vpack.c.bf16 %v1965, %v1964
        %v2038 = vpack.c.bf16 %v1967, %v1966
        %v2039 = vpack.c.bf16 %v1969, %v1968
        %v2040 = vpack.c.bf16 %v1971, %v1970
        %v2041 = vpack.c.bf16 %v1973, %v1972
        %v2042 = vpack.c.bf16 %v1975, %v1974
        %v2043 = vpack.c.bf16 %v1977, %v1976
        %v2044 = vpack.c.bf16 %v1979, %v1978
        %v2045 = vpack.c.bf16 %v1981, %v1980
        %v2046 = vpack.c.bf16 %v1983, %v1982
        %v2047 = vpack.c.bf16 %v1985, %v1984
        %v2048 = vpack.c.bf16 %v1987, %v1986
        %v2049 = vpack.c.bf16 %v1989, %v1988
        %v2050 = vpack.c.bf16 %v1991, %v1990
        %v2051 = vpack.c.bf16 %v1993, %v1992
        %v2052 = vpack.c.bf16 %v1995, %v1994
        %v2053 = vpack.c.bf16 %v1997, %v1996
        %v2054 = vpack.c.bf16 %v1999, %v1998
        %v2055 = vpack.c.bf16 %v2001, %v2000
        %v2056 = vpack.c.bf16 %v2003, %v2002
        %v2057 = vpack.c.bf16 %v2005, %v2004
        %v2058 = vpack.c.bf16 %v2007, %v2006
        %v2059 = vpack.c.bf16 %v2009, %v2008
        %v2060 = vpack.c.bf16 %v2011, %v2010
        %v2061 = vpack.c.bf16 %v2013, %v2012
        %2062 = vst [vmem:[%s525] sm:$0xff] %v2014
        %2063 = vst [vmem:[%s525 + $0x8] sm:$0xff] %v2015
        %2064 = vst [vmem:[%s525 + $0x10] sm:$0xff] %v2016
        %2065 = vst [vmem:[%s525 + $0x18] sm:$0xff] %v2017
        %2066 = vst [vmem:[%s525 + $0x20] sm:$0xff] %v2018
        %2067 = vst [vmem:[%s525 + $0x28] sm:$0xff] %v2019
        %2068 = vst [vmem:[%s525 + $0x30] sm:$0xff] %v2020
        %2069 = vst [vmem:[%s525 + $0x38] sm:$0xff] %v2021
        %2070 = vst [vmem:[%s525 + $0x40] sm:$0xff] %v2022
        %2071 = vst [vmem:[%s525 + $0x48] sm:$0xff] %v2023
        %2072 = vst [vmem:[%s525 + $0x50] sm:$0xff] %v2024
        %2073 = vst [vmem:[%s525 + $0x58] sm:$0xff] %v2025
        %2074 = vst [vmem:[%s525 + $0x60] sm:$0xff] %v2026
        %2075 = vst [vmem:[%s525 + $0x68] sm:$0xff] %v2027
        %2076 = vst [vmem:[%s525 + $0x70] sm:$0xff] %v2028
        %2077 = vst [vmem:[%s525 + $0x78] sm:$0xff] %v2029
        %2078 = vst [vmem:[%s525 + $0x80] sm:$0xff] %v2030
        %2079 = vst [vmem:[%s525 + $0x88] sm:$0xff] %v2031
        %2080 = vst [vmem:[%s525 + $0x90] sm:$0xff] %v2032
        %2081 = vst [vmem:[%s525 + $0x98] sm:$0xff] %v2033
        %2082 = vst [vmem:[%s525 + $0xa0] sm:$0xff] %v2034
        %2083 = vst [vmem:[%s525 + $0xa8] sm:$0xff] %v2035
        %2084 = vst [vmem:[%s525 + $0xb0] sm:$0xff] %v2036
        %2085 = vst [vmem:[%s525 + $0xb8] sm:$0xff] %v2037
        %2086 = vst [vmem:[%s525 + $0xc0] sm:$0xff] %v2038
        %2087 = vst [vmem:[%s525 + $0xc8] sm:$0xff] %v2039
        %2088 = vst [vmem:[%s525 + $0xd0] sm:$0xff] %v2040
        %2089 = vst [vmem:[%s525 + $0xd8] sm:$0xff] %v2041
        %2090 = vst [vmem:[%s525 + $0xe0] sm:$0xff] %v2042
        %2091 = vst [vmem:[%s525 + $0xe8] sm:$0xff] %v2043
        %2092 = vst [vmem:[%s525 + $0xf0] sm:$0xff] %v2044
        %2093 = vst [vmem:[%s525 + $0xf8] sm:$0xff] %v2045
        %2094 = vst [vmem:[%s525 + $0x100] sm:$0xff] %v2046
        %2095 = vst [vmem:[%s525 + $0x108] sm:$0xff] %v2047
        %2096 = vst [vmem:[%s525 + $0x110] sm:$0xff] %v2048
        %2097 = vst [vmem:[%s525 + $0x118] sm:$0xff] %v2049
        %2098 = vst [vmem:[%s525 + $0x120] sm:$0xff] %v2050
        %2099 = vst [vmem:[%s525 + $0x128] sm:$0xff] %v2051
        %2100 = vst [vmem:[%s525 + $0x130] sm:$0xff] %v2052
        %2101 = vst [vmem:[%s525 + $0x138] sm:$0xff] %v2053
        %2102 = vst [vmem:[%s525 + $0x140] sm:$0xff] %v2054
        %2103 = vst [vmem:[%s525 + $0x148] sm:$0xff] %v2055
        %2104 = vst [vmem:[%s525 + $0x150] sm:$0xff] %v2056
        %2105 = vst [vmem:[%s525 + $0x158] sm:$0xff] %v2057
        %2106 = vst [vmem:[%s525 + $0x160] sm:$0xff] %v2058
        %2107 = vst [vmem:[%s525 + $0x168] sm:$0xff] %v2059
        %2108 = vst [vmem:[%s525 + $0x170] sm:$0xff] %v2060
        %2109 = vst [vmem:[%s525 + $0x178] sm:$0xff] %v2061
        %s2110 = sand.u32 %s90, 1
        %s2111 = sand.u32 %s90, 1
        %s2112 = smul.addr %s2111, 384
        %s2113 = scalar_lea.vmem [#allocation3], %s2112
        // Predicated region
        $region99: #{reconstructor_forward.12} parent=93 // pred_check
          %p2114 = pneg %p100
        $region100: #{reconstructor_forward.12} parent=93 // pred_check_branch
          %2116 = sbr.rel (%p2114) target = $region102
        $region101: #{reconstructor_forward.12} parent=93 // pred_region
          %s2117 = smul.u32 32, %s14
          %s2118 = ssub.s32 49, %s2117
          %p2119 = scmp.lt.s32.totalorder %s2118, 32
          %s2120 = scalar_select %p2119, %s2118, 32
          %s2121 = smul.u32 12, %s2120
          %p2122 = scmp.ne.s32.totalorder 0, %s2121
          %s2123 = smul.addr %s2117, 4
          %s2124 = scalar_lea.vmem %s3, %s2123
          %s2125 = smul.u32 %s2120, 4
          // Predicated region
          $region103: #{reconstructor_forward.12} parent=101 // pred_check
            %p2126 = pneg %p2122
          $region104: #{reconstructor_forward.12} parent=101 // pred_check_branch
            %2128 = sbr.rel (%p2126) target = $region106
          $region105: #{reconstructor_forward.12} parent=101 // pred_region
            %p2129 = scmp.lt.u32.totalorder %s2125, 8
            %p2130 = pneg %p2129
            // Predicated region
            $region107: #{reconstructor_forward.12} parent=105 // pred_check
              _
            $region108: #{reconstructor_forward.12} parent=105 // pred_check_branch
              %2132 = sbr.rel (%p2129) target = $region110
            $region109: #{reconstructor_forward.12} parent=105 // pred_region
              %s2152 = sand.u32 %s2125, 7
              %p2153 = scmp.eq.s32.totalorder %s2152, 0
              // Predicated region
              $region122: #{reconstructor_forward.12} parent=109 // pred_check
                %p2154 = pneg %p2153
              $region123: #{reconstructor_forward.12} parent=109 // pred_check_branch
                %2156 = sbr.rel (%p2154) target = $region125
              $region124: #{reconstructor_forward.12} parent=109 // pred_region
                %s2157 = sshrl.u32 %s2125, 3
                %s2158 = sdiv.u32.pop %s2157, 12
                %s2159 = srem.u32.pop %s2157, 12
                // While loop
                $region126: #{reconstructor_forward.12} parent=124 // loop_pre_header
                  _
                $region127: #{reconstructor_forward.12} parent=124 // loop_header
                  %s2161 = sphi 0, %s2163
                  %p2162 = scmp.ge.s32.totalorder %s2161, %s2158
                  %s2166 = sphi 0, %s2243
                  %s2167 = sphi %s2113, %s2246
                  %s2168 = sphi %s2124, %s2247
                $region128: #{reconstructor_forward.12} parent=124 // loop_header_branch
                  %2165 = sbr.rel (%p2162) target = $region132
                $region129: #{reconstructor_forward.12} parent=124 // loop_body
                  %v2169 = vld [vmem:[%s2167] sm:$0xff]
                  %2170 = vst [vmem:[%s2168] sm:$0xff] %v2169
                  %v2171 = vld [vmem:[%s2167 + $0x8] sm:$0xff]
                  %2172 = vst [vmem:[%s2168 + $0x8] sm:$0xff] %v2171
                  %v2173 = vld [vmem:[%s2167 + $0x10] sm:$0xff]
                  %2174 = vst [vmem:[%s2168 + $0x10] sm:$0xff] %v2173
                  %v2175 = vld [vmem:[%s2167 + $0x18] sm:$0xff]
                  %2176 = vst [vmem:[%s2168 + $0x18] sm:$0xff] %v2175
                  %v2177 = vld [vmem:[%s2167 + $0x20] sm:$0xff]
                  %2178 = vst [vmem:[%s2168 + $0x20] sm:$0xff] %v2177
                  %v2179 = vld [vmem:[%s2167 + $0x28] sm:$0xff]
                  %2180 = vst [vmem:[%s2168 + $0x28] sm:$0xff] %v2179
                  %v2181 = vld [vmem:[%s2167 + $0x30] sm:$0xff]
                  %2182 = vst [vmem:[%s2168 + $0x30] sm:$0xff] %v2181
                  %v2183 = vld [vmem:[%s2167 + $0x38] sm:$0xff]
                  %2184 = vst [vmem:[%s2168 + $0x38] sm:$0xff] %v2183
                  %v2185 = vld [vmem:[%s2167 + $0x40] sm:$0xff]
                  %2186 = vst [vmem:[%s2168 + $0x40] sm:$0xff] %v2185
                  %v2187 = vld [vmem:[%s2167 + $0x48] sm:$0xff]
                  %2188 = vst [vmem:[%s2168 + $0x48] sm:$0xff] %v2187
                  %v2189 = vld [vmem:[%s2167 + $0x50] sm:$0xff]
                  %2190 = vst [vmem:[%s2168 + $0x50] sm:$0xff] %v2189
                  %v2191 = vld [vmem:[%s2167 + $0x58] sm:$0xff]
                  %2192 = vst [vmem:[%s2168 + $0x58] sm:$0xff] %v2191
                  %v2193 = vld [vmem:[%s2167 + $0x80] sm:$0xff]
                  %2194 = vst [vmem:[%s2168 + $0xc4] sm:$0xff] %v2193
                  %v2195 = vld [vmem:[%s2167 + $0x88] sm:$0xff]
                  %2196 = vst [vmem:[%s2168 + $0xcc] sm:$0xff] %v2195
                  %v2197 = vld [vmem:[%s2167 + $0x90] sm:$0xff]
                  %2198 = vst [vmem:[%s2168 + $0xd4] sm:$0xff] %v2197
                  %v2199 = vld [vmem:[%s2167 + $0x98] sm:$0xff]
                  %2200 = vst [vmem:[%s2168 + $0xdc] sm:$0xff] %v2199
                  %v2201 = vld [vmem:[%s2167 + $0xa0] sm:$0xff]
                  %2202 = vst [vmem:[%s2168 + $0xe4] sm:$0xff] %v2201
                  %v2203 = vld [vmem:[%s2167 + $0xa8] sm:$0xff]
                  %2204 = vst [vmem:[%s2168 + $0xec] sm:$0xff] %v2203
                  %v2205 = vld [vmem:[%s2167 + $0xb0] sm:$0xff]
                  %2206 = vst [vmem:[%s2168 + $0xf4] sm:$0xff] %v2205
                  %v2207 = vld [vmem:[%s2167 + $0xb8] sm:$0xff]
                  %2208 = vst [vmem:[%s2168 + $0xfc] sm:$0xff] %v2207
                  %v2209 = vld [vmem:[%s2167 + $0xc0] sm:$0xff]
                  %2210 = vst [vmem:[%s2168 + $0x104] sm:$0xff] %v2209
                  %v2211 = vld [vmem:[%s2167 + $0xc8] sm:$0xff]
                  %2212 = vst [vmem:[%s2168 + $0x10c] sm:$0xff] %v2211
                  %v2213 = vld [vmem:[%s2167 + $0xd0] sm:$0xff]
                  %2214 = vst [vmem:[%s2168 + $0x114] sm:$0xff] %v2213
                  %v2215 = vld [vmem:[%s2167 + $0xd8] sm:$0xff]
                  %2216 = vst [vmem:[%s2168 + $0x11c] sm:$0xff] %v2215
                  %v2217 = vld [vmem:[%s2167 + $0x100] sm:$0xff]
                  %2218 = vst [vmem:[%s2168 + $0x188] sm:$0xff] %v2217
                  %v2219 = vld [vmem:[%s2167 + $0x108] sm:$0xff]
                  %2220 = vst [vmem:[%s2168 + $0x190] sm:$0xff] %v2219
                  %v2221 = vld [vmem:[%s2167 + $0x110] sm:$0xff]
                  %2222 = vst [vmem:[%s2168 + $0x198] sm:$0xff] %v2221
                  %v2223 = vld [vmem:[%s2167 + $0x118] sm:$0xff]
                  %2224 = vst [vmem:[%s2168 + $0x1a0] sm:$0xff] %v2223
                  %v2225 = vld [vmem:[%s2167 + $0x120] sm:$0xff]
                  %2226 = vst [vmem:[%s2168 + $0x1a8] sm:$0xff] %v2225
                  %v2227 = vld [vmem:[%s2167 + $0x128] sm:$0xff]
                  %2228 = vst [vmem:[%s2168 + $0x1b0] sm:$0xff] %v2227
                  %v2229 = vld [vmem:[%s2167 + $0x130] sm:$0xff]
                  %2230 = vst [vmem:[%s2168 + $0x1b8] sm:$0xff] %v2229
                  %v2231 = vld [vmem:[%s2167 + $0x138] sm:$0xff]
                  %2232 = vst [vmem:[%s2168 + $0x1c0] sm:$0xff] %v2231
                  %v2233 = vld [vmem:[%s2167 + $0x140] sm:$0xff]
                  %2234 = vst [vmem:[%s2168 + $0x1c8] sm:$0xff] %v2233
                  %v2235 = vld [vmem:[%s2167 + $0x148] sm:$0xff]
                  %2236 = vst [vmem:[%s2168 + $0x1d0] sm:$0xff] %v2235
                  %v2237 = vld [vmem:[%s2167 + $0x150] sm:$0xff]
                  %2238 = vst [vmem:[%s2168 + $0x1d8] sm:$0xff] %v2237
                  %v2239 = vld [vmem:[%s2167 + $0x158] sm:$0xff]
                  %2240 = vst [vmem:[%s2168 + $0x1e0] sm:$0xff] %v2239
                  %s2241 = sadd.s32 1, %s2166
                  %p2242 = scmp.ge.s32.totalorder %s2241, %s2158
                  %s2243 = scalar_select %p2242, 0, %s2241
                  %s2244 = smul.u32 %s2243, 96
                  %s2245 = smul.u32 %s2243, 96
                  %s2246 = scalar_lea.vmem %s2113, %s2244 [#allocation3]
                  %s2247 = scalar_lea.vmem %s2124, %s2245
                $region130: #{reconstructor_forward.12} parent=124 // loop_footer
                  %s2163 = sadd.s32 %s2161, 1
                $region131: #{reconstructor_forward.12} parent=124 // loop_footer_branch
                  %2160 = sbr.rel target = $region127
                $region132: #{reconstructor_forward.12} parent=124 // loop_exit
                  _
                %s2248 = sdiv.u32.pop %s2157, 12
                %s2249 = srem.u32.pop %s2157, 12
                %s2250 = smul.u32 %s2248, 12
                %s2251 = smul.u32 8, %s2250
                %s2252 = scalar_lea.vmem %s2113, %s2251 [#allocation3]
                %s2253 = smul.u32 8, %s2250
                %s2254 = scalar_lea.vmem %s2124, %s2253
                // While loop
                $region133: #{reconstructor_forward.12} parent=124 // loop_pre_header
                  _
                $region134: #{reconstructor_forward.12} parent=124 // loop_header
                  %s2256 = sphi 0, %s2258
                  %p2257 = scmp.ge.s32.totalorder %s2256, %s2249
                  %s2261 = sphi 0, %s2272
                  %s2262 = sphi %s2252, %s2275
                  %s2263 = sphi %s2254, %s2276
                $region135: #{reconstructor_forward.12} parent=124 // loop_header_branch
                  %2260 = sbr.rel (%p2257) target = $region139
                $region136: #{reconstructor_forward.12} parent=124 // loop_body
                  %v2264 = vld [vmem:[%s2262] sm:$0xff]
                  %2265 = vst [vmem:[%s2263] sm:$0xff] %v2264
                  %v2266 = vld [vmem:[%s2262 + $0x80] sm:$0xff]
                  %2267 = vst [vmem:[%s2263 + $0xc4] sm:$0xff] %v2266
                  %v2268 = vld [vmem:[%s2262 + $0x100] sm:$0xff]
                  %2269 = vst [vmem:[%s2263 + $0x188] sm:$0xff] %v2268
                  %s2270 = sadd.s32 1, %s2261
                  %p2271 = scmp.ge.s32.totalorder %s2270, %s2249
                  %s2272 = scalar_select %p2271, 0, %s2270
                  %s2273 = smul.u32 %s2272, 8
                  %s2274 = smul.u32 %s2272, 8
                  %s2275 = scalar_lea.vmem %s2252, %s2273 [#allocation3]
                  %s2276 = scalar_lea.vmem %s2254, %s2274
                $region137: #{reconstructor_forward.12} parent=124 // loop_footer
                  %s2258 = sadd.s32 %s2256, 1
                $region138: #{reconstructor_forward.12} parent=124 // loop_footer_branch
                  %2255 = sbr.rel target = $region134
                $region139: #{reconstructor_forward.12} parent=124 // loop_exit
                  _
              $region125: #{reconstructor_forward.12} parent=109 // pred_fallthru
                _
              %p2277 = pneg %p2153
              // Predicated region
              $region140: #{reconstructor_forward.12} parent=109 // pred_check
                _
              $region141: #{reconstructor_forward.12} parent=109 // pred_check_branch
                %2279 = sbr.rel (%p2153) target = $region143
              $region142: #{reconstructor_forward.12} parent=109 // pred_region
                %s2280 = sand.u32 %s2125, 7
                %s2281 = ssub.s32 %s2125, %s2280
                %s2282 = scalar_lea.vmem %s2113, %s2281 [#allocation3]
                %s2283 = ssub.s32 %s2125, %s2280
                %s2284 = scalar_lea.vmem %s2124, %s2283
                %s2285 = sshrl.u32 %s2125, 3
                %s2286 = sdiv.u32.pop %s2285, 12
                %s2287 = srem.u32.pop %s2285, 12
                // While loop
                $region144: #{reconstructor_forward.12} parent=142 // loop_pre_header
                  _
                $region145: #{reconstructor_forward.12} parent=142 // loop_header
                  %s2289 = sphi 0, %s2291
                  %p2290 = scmp.ge.s32.totalorder %s2289, %s2286
                  %s2294 = sphi 0, %s2371
                  %s2295 = sphi %s2113, %s2374
                  %s2296 = sphi %s2124, %s2375
                $region146: #{reconstructor_forward.12} parent=142 // loop_header_branch
                  %2293 = sbr.rel (%p2290) target = $region150
                $region147: #{reconstructor_forward.12} parent=142 // loop_body
                  %v2297 = vld [vmem:[%s2295] sm:$0xff]
                  %2298 = vst [vmem:[%s2296] sm:$0xff] %v2297
                  %v2299 = vld [vmem:[%s2295 + $0x8] sm:$0xff]
                  %2300 = vst [vmem:[%s2296 + $0x8] sm:$0xff] %v2299
                  %v2301 = vld [vmem:[%s2295 + $0x10] sm:$0xff]
                  %2302 = vst [vmem:[%s2296 + $0x10] sm:$0xff] %v2301
                  %v2303 = vld [vmem:[%s2295 + $0x18] sm:$0xff]
                  %2304 = vst [vmem:[%s2296 + $0x18] sm:$0xff] %v2303
                  %v2305 = vld [vmem:[%s2295 + $0x20] sm:$0xff]
                  %2306 = vst [vmem:[%s2296 + $0x20] sm:$0xff] %v2305
                  %v2307 = vld [vmem:[%s2295 + $0x28] sm:$0xff]
                  %2308 = vst [vmem:[%s2296 + $0x28] sm:$0xff] %v2307
                  %v2309 = vld [vmem:[%s2295 + $0x30] sm:$0xff]
                  %2310 = vst [vmem:[%s2296 + $0x30] sm:$0xff] %v2309
                  %v2311 = vld [vmem:[%s2295 + $0x38] sm:$0xff]
                  %2312 = vst [vmem:[%s2296 + $0x38] sm:$0xff] %v2311
                  %v2313 = vld [vmem:[%s2295 + $0x40] sm:$0xff]
                  %2314 = vst [vmem:[%s2296 + $0x40] sm:$0xff] %v2313
                  %v2315 = vld [vmem:[%s2295 + $0x48] sm:$0xff]
                  %2316 = vst [vmem:[%s2296 + $0x48] sm:$0xff] %v2315
                  %v2317 = vld [vmem:[%s2295 + $0x50] sm:$0xff]
                  %2318 = vst [vmem:[%s2296 + $0x50] sm:$0xff] %v2317
                  %v2319 = vld [vmem:[%s2295 + $0x58] sm:$0xff]
                  %2320 = vst [vmem:[%s2296 + $0x58] sm:$0xff] %v2319
                  %v2321 = vld [vmem:[%s2295 + $0x80] sm:$0xff]
                  %2322 = vst [vmem:[%s2296 + $0xc4] sm:$0xff] %v2321
                  %v2323 = vld [vmem:[%s2295 + $0x88] sm:$0xff]
                  %2324 = vst [vmem:[%s2296 + $0xcc] sm:$0xff] %v2323
                  %v2325 = vld [vmem:[%s2295 + $0x90] sm:$0xff]
                  %2326 = vst [vmem:[%s2296 + $0xd4] sm:$0xff] %v2325
                  %v2327 = vld [vmem:[%s2295 + $0x98] sm:$0xff]
                  %2328 = vst [vmem:[%s2296 + $0xdc] sm:$0xff] %v2327
                  %v2329 = vld [vmem:[%s2295 + $0xa0] sm:$0xff]
                  %2330 = vst [vmem:[%s2296 + $0xe4] sm:$0xff] %v2329
                  %v2331 = vld [vmem:[%s2295 + $0xa8] sm:$0xff]
                  %2332 = vst [vmem:[%s2296 + $0xec] sm:$0xff] %v2331
                  %v2333 = vld [vmem:[%s2295 + $0xb0] sm:$0xff]
                  %2334 = vst [vmem:[%s2296 + $0xf4] sm:$0xff] %v2333
                  %v2335 = vld [vmem:[%s2295 + $0xb8] sm:$0xff]
                  %2336 = vst [vmem:[%s2296 + $0xfc] sm:$0xff] %v2335
                  %v2337 = vld [vmem:[%s2295 + $0xc0] sm:$0xff]
                  %2338 = vst [vmem:[%s2296 + $0x104] sm:$0xff] %v2337
                  %v2339 = vld [vmem:[%s2295 + $0xc8] sm:$0xff]
                  %2340 = vst [vmem:[%s2296 + $0x10c] sm:$0xff] %v2339
                  %v2341 = vld [vmem:[%s2295 + $0xd0] sm:$0xff]
                  %2342 = vst [vmem:[%s2296 + $0x114] sm:$0xff] %v2341
                  %v2343 = vld [vmem:[%s2295 + $0xd8] sm:$0xff]
                  %2344 = vst [vmem:[%s2296 + $0x11c] sm:$0xff] %v2343
                  %v2345 = vld [vmem:[%s2295 + $0x100] sm:$0xff]
                  %2346 = vst [vmem:[%s2296 + $0x188] sm:$0xff] %v2345
                  %v2347 = vld [vmem:[%s2295 + $0x108] sm:$0xff]
                  %2348 = vst [vmem:[%s2296 + $0x190] sm:$0xff] %v2347
                  %v2349 = vld [vmem:[%s2295 + $0x110] sm:$0xff]
                  %2350 = vst [vmem:[%s2296 + $0x198] sm:$0xff] %v2349
                  %v2351 = vld [vmem:[%s2295 + $0x118] sm:$0xff]
                  %2352 = vst [vmem:[%s2296 + $0x1a0] sm:$0xff] %v2351
                  %v2353 = vld [vmem:[%s2295 + $0x120] sm:$0xff]
                  %2354 = vst [vmem:[%s2296 + $0x1a8] sm:$0xff] %v2353
                  %v2355 = vld [vmem:[%s2295 + $0x128] sm:$0xff]
                  %2356 = vst [vmem:[%s2296 + $0x1b0] sm:$0xff] %v2355
                  %v2357 = vld [vmem:[%s2295 + $0x130] sm:$0xff]
                  %2358 = vst [vmem:[%s2296 + $0x1b8] sm:$0xff] %v2357
                  %v2359 = vld [vmem:[%s2295 + $0x138] sm:$0xff]
                  %2360 = vst [vmem:[%s2296 + $0x1c0] sm:$0xff] %v2359
                  %v2361 = vld [vmem:[%s2295 + $0x140] sm:$0xff]
                  %2362 = vst [vmem:[%s2296 + $0x1c8] sm:$0xff] %v2361
                  %v2363 = vld [vmem:[%s2295 + $0x148] sm:$0xff]
                  %2364 = vst [vmem:[%s2296 + $0x1d0] sm:$0xff] %v2363
                  %v2365 = vld [vmem:[%s2295 + $0x150] sm:$0xff]
                  %2366 = vst [vmem:[%s2296 + $0x1d8] sm:$0xff] %v2365
                  %v2367 = vld [vmem:[%s2295 + $0x158] sm:$0xff]
                  %2368 = vst [vmem:[%s2296 + $0x1e0] sm:$0xff] %v2367
                  %s2369 = sadd.s32 1, %s2294
                  %p2370 = scmp.ge.s32.totalorder %s2369, %s2286
                  %s2371 = scalar_select %p2370, 0, %s2369
                  %s2372 = smul.u32 %s2371, 96
                  %s2373 = smul.u32 %s2371, 96
                  %s2374 = scalar_lea.vmem %s2113, %s2372 [#allocation3]
                  %s2375 = scalar_lea.vmem %s2124, %s2373
                $region148: #{reconstructor_forward.12} parent=142 // loop_footer
                  %s2291 = sadd.s32 %s2289, 1
                $region149: #{reconstructor_forward.12} parent=142 // loop_footer_branch
                  %2288 = sbr.rel target = $region145
                $region150: #{reconstructor_forward.12} parent=142 // loop_exit
                  _
                %s2376 = sdiv.u32.pop %s2285, 12
                %s2377 = srem.u32.pop %s2285, 12
                %s2378 = smul.u32 %s2376, 12
                %s2379 = smul.u32 8, %s2378
                %s2380 = scalar_lea.vmem %s2113, %s2379 [#allocation3]
                %s2381 = smul.u32 8, %s2378
                %s2382 = scalar_lea.vmem %s2124, %s2381
                // While loop
                $region151: #{reconstructor_forward.12} parent=142 // loop_pre_header
                  _
                $region152: #{reconstructor_forward.12} parent=142 // loop_header
                  %s2384 = sphi 0, %s2386
                  %p2385 = scmp.ge.s32.totalorder %s2384, %s2377
                  %s2389 = sphi 0, %s2400
                  %s2390 = sphi %s2380, %s2403
                  %s2391 = sphi %s2382, %s2404
                $region153: #{reconstructor_forward.12} parent=142 // loop_header_branch
                  %2388 = sbr.rel (%p2385) target = $region157
                $region154: #{reconstructor_forward.12} parent=142 // loop_body
                  %v2392 = vld [vmem:[%s2390] sm:$0xff]
                  %2393 = vst [vmem:[%s2391] sm:$0xff] %v2392
                  %v2394 = vld [vmem:[%s2390 + $0x80] sm:$0xff]
                  %2395 = vst [vmem:[%s2391 + $0xc4] sm:$0xff] %v2394
                  %v2396 = vld [vmem:[%s2390 + $0x100] sm:$0xff]
                  %2397 = vst [vmem:[%s2391 + $0x188] sm:$0xff] %v2396
                  %s2398 = sadd.s32 1, %s2389
                  %p2399 = scmp.ge.s32.totalorder %s2398, %s2377
                  %s2400 = scalar_select %p2399, 0, %s2398
                  %s2401 = smul.u32 %s2400, 8
                  %s2402 = smul.u32 %s2400, 8
                  %s2403 = scalar_lea.vmem %s2380, %s2401 [#allocation3]
                  %s2404 = scalar_lea.vmem %s2382, %s2402
                $region155: #{reconstructor_forward.12} parent=142 // loop_footer
                  %s2386 = sadd.s32 %s2384, 1
                $region156: #{reconstructor_forward.12} parent=142 // loop_footer_branch
                  %2383 = sbr.rel target = $region152
                $region157: #{reconstructor_forward.12} parent=142 // loop_exit
                  _
                %s2405 = sshll.u32 1, %s2280
                %s2406 = ssub.s32 %s2405, 1
                loop: start=0, step=1, limit=1
                $region158: #{reconstructor_forward.12} parent=142 // loop_pre_header
                  _
                $region159: #{reconstructor_forward.12} parent=142 // loop_header
                  %s2408 = sphi 0, %s2412
                  %p2409 = scmp.ge.s32.totalorder %s2408, 1
                  %s2413 = sphi %s2282, %s2282
                  %s2414 = sphi %s2284, %s2284
                $region160: #{reconstructor_forward.12} parent=142 // loop_header_branch
                  %2411 = sbr.rel (%p2409) target = $region164
                $region161: #{reconstructor_forward.12} parent=142 // loop_body
                  %v2415 = vld [vmem:[%s2413] sm:%s2406]
                  %2416 = vst [vmem:[%s2414] sm:%s2406] %v2415
                  %v2417 = vld [vmem:[%s2413 + $0x80] sm:%s2406]
                  %2418 = vst [vmem:[%s2414 + $0xc4] sm:%s2406] %v2417
                  %v2419 = vld [vmem:[%s2413 + $0x100] sm:%s2406]
                  %2420 = vst [vmem:[%s2414 + $0x188] sm:%s2406] %v2419
                $region162: #{reconstructor_forward.12} parent=142 // loop_footer
                  %s2412 = sadd.s32 1, %s2408
                $region163: #{reconstructor_forward.12} parent=142 // loop_footer_branch
                  %2407 = sbr.rel target = $region159
                $region164: #{reconstructor_forward.12} parent=142 // loop_exit
                  _
              $region143: #{reconstructor_forward.12} parent=109 // pred_fallthru
                _
            $region110: #{reconstructor_forward.12} parent=105 // pred_fallthru
              _
            // Predicated region
            $region111: #{reconstructor_forward.12} parent=105 // pred_check
              %p2133 = pneg %p2129
            $region112: #{reconstructor_forward.12} parent=105 // pred_check_branch
              %2135 = sbr.rel (%p2133) target = $region114
            $region113: #{reconstructor_forward.12} parent=105 // pred_region
              %s2136 = sshll.u32 1, %s2125
              %s2137 = ssub.s32 %s2136, 1
              loop: start=0, step=1, limit=1
              $region115: #{reconstructor_forward.12} parent=113 // loop_pre_header
                _
              $region116: #{reconstructor_forward.12} parent=113 // loop_header
                %s2139 = sphi 0, %s2143
                %p2140 = scmp.ge.s32.totalorder %s2139, 1
                %s2144 = sphi %s2113, %s2113
                %s2145 = sphi %s2124, %s2124
              $region117: #{reconstructor_forward.12} parent=113 // loop_header_branch
                %2142 = sbr.rel (%p2140) target = $region121
              $region118: #{reconstructor_forward.12} parent=113 // loop_body
                %v2146 = vld [vmem:[%s2144] sm:%s2137]
                %2147 = vst [vmem:[%s2145] sm:%s2137] %v2146
                %v2148 = vld [vmem:[%s2144 + $0x80] sm:%s2137]
                %2149 = vst [vmem:[%s2145 + $0xc4] sm:%s2137] %v2148
                %v2150 = vld [vmem:[%s2144 + $0x100] sm:%s2137]
                %2151 = vst [vmem:[%s2145 + $0x188] sm:%s2137] %v2150
              $region119: #{reconstructor_forward.12} parent=113 // loop_footer
                %s2143 = sadd.s32 1, %s2139
              $region120: #{reconstructor_forward.12} parent=113 // loop_footer_branch
                %2138 = sbr.rel target = $region116
              $region121: #{reconstructor_forward.12} parent=113 // loop_exit
                _
            $region114: #{reconstructor_forward.12} parent=105 // pred_fallthru
              _
          $region106: #{reconstructor_forward.12} parent=101 // pred_fallthru
            _
          %2421 = vnop
        $region102: #{reconstructor_forward.12} parent=93 // pred_fallthru
          _
      $region94: #{reconstructor_forward.12} parent=5 // pred_fallthru
        _
      %p2422 = scmp.le.s32.totalorder 2, %s9
      // Predicated region
      $region165: #{reconstructor_forward.12} parent=5 // pred_check
        %p2423 = pneg %p2422
      $region166: #{reconstructor_forward.12} parent=5 // pred_check_branch
        %2425 = sbr.rel (%p2423) target = $region168
      $region167: #{reconstructor_forward.12} parent=5 // pred_region
        %s2426 = ssub.s32 %s9, 2
        // Predicated region
        $region169: #{reconstructor_forward.12} parent=167 // pred_check
          %p2427 = pneg %p106
        $region170: #{reconstructor_forward.12} parent=167 // pred_check_branch
          %2429 = sbr.rel (%p2427) target = $region172
        $region171: #{reconstructor_forward.12} parent=167 // pred_region
          %s2430 = sand.u32 %s91, 1
          %s2431 = sand.u32 %s91, 1
          %s2432 = smul.addr %s2431, 384
          %s2433 = scalar_lea.vmem [#allocation3], %s2432
        $region172: #{reconstructor_forward.12} parent=167 // pred_fallthru
          _
      $region168: #{reconstructor_forward.12} parent=5 // pred_fallthru
        _
    $region6: #{reconstructor_forward.12} parent=1 // loop_footer
      %s13 = sadd.s32 1, %s9
    $region7: #{reconstructor_forward.12} parent=1 // loop_footer_branch
      %8 = sbr.rel target = $region3
    $region8: #{reconstructor_forward.12} parent=1 // loop_exit
      _

// kernel: reconstructor_forward.13
$region0: #{reconstructor_forward.13}
  #allocation0 [shape = 'u32[]', space=smem, size = 0x4, offset = 0x4, fixed_abs, tag = 'smem constant byte address 0x4 - core index']
  #allocation1 [shape = 'u32[72,128]{1,0:T(1,128)}', space=vmem, size = 0x9000, scoped, tag = 'internal scratch']
  %s0 = inlined_call_operand.vmem [shape: bf16[12,54], index: 0, kind: input, shape index: {}]
  %s1 = inlined_call_operand.vmem [shape: bf16[54,25088], index: 1, kind: input, shape index: {}]
  %s2 = inlined_call_operand.vmem [shape: f32[12,1], index: 2, kind: input, shape index: {}]
  %s3 = inlined_call_operand.vmem [shape: f32[12,25088], index: 3, kind: output, shape index: {}]
  %s4 = sld [smem:[#allocation0]]
  $region173: #{reconstructor_forward.13} parent=0
    _
  %s6 = ssub.s32 1, %s4
  %s7 = scalar_select 0, %s6, %s4
  $region1: #{reconstructor_forward.13} parent=0
    #allocation2 [shape = 'u8[917504]{0}', space=vmem, size = 0xe0000, scoped, tag = 'input window, operand 1']
    #allocation3 [shape = 'u8[524288]{0}', space=vmem, size = 0x80000, scoped, tag = 'output window, operand 0']
    loop: start=0, step=1, limit=9
    $region2: #{reconstructor_forward.13} parent=1 // loop_pre_header
      _
    $region3: #{reconstructor_forward.13} parent=1 // loop_header
      %s9 = sphi 0, %s13
      %p10 = scmp.ge.s32.totalorder %s9, 9
      %s17 = sphi 0, %s17
      %s19 = sphi 0, %s17
      %s20 = sphi 0, %s19
      %s34 = sphi 0, %s20
      %s40 = sphi 0, %s42
      %s43 = sphi 0, %s40
      %s44 = sphi 0, %s43
      %s60 = sphi 0, %s44
      %s64 = sphi 0, %s64
      %s66 = sphi 0, %s64
      %s67 = sphi 0, %s66
      %s81 = sphi 0, %s67
      %s87 = sphi 0, %s89
      %s90 = sphi 0, %s87
      %s91 = sphi 0, %s90
      %s107 = sphi 0, %s91
    $region4: #{reconstructor_forward.13} parent=1 // loop_header_branch
      %12 = sbr.rel (%p10) target = $region8
    $region5: #{reconstructor_forward.13} parent=1 // loop_body
      %s14 = ssub.s32 %s9, 1
      %s15 = ssub.s32 %s9, 2
      %s16 = sadd.s32 %s9, 1
      %s18 = sadd.s32 %s17, 1
      %p21 = scmp.eq.s32.totalorder %s9, 6
      %p22 = scmp.ne.s32.totalorder %s17, %s19
      %p23 = scmp.eq.s32.totalorder %s9, 0
      %p24 = por %p22, %p23
      %p25 = scmp.ne.s32.totalorder %s17, %s19
      %p26 = scmp.eq.s32.totalorder %s14, 6
      %p27 = por %p25, %p26
      %p28 = scmp.ne.s32.totalorder %s19, %s20
      %p29 = scmp.eq.s32.totalorder %s14, 0
      %p30 = por %p28, %p29
      %p31 = scmp.ne.s32.totalorder %s19, %s20
      %p32 = scmp.eq.s32.totalorder %s15, 6
      %p33 = por %p31, %p32
      %p35 = scmp.ne.s32.totalorder %s20, %s34
      %p36 = scmp.eq.s32.totalorder %s15, 0
      %p37 = por %p35, %p36
      %s38 = ssub.s32 %s9, %s16
      %p39 = scmp.eq.s32.totalorder %s38, 0
      %s41 = sadd.s32 %s40, 1
      %s42 = scalar_select %p39, %s40, %s41
      %p45 = pneg %p39
      %p46 = scmp.eq.s32.totalorder %s9, 6
      %p47 = por %p45, %p46
      %p48 = scmp.ne.s32.totalorder %s40, %s43
      %p49 = scmp.eq.s32.totalorder %s9, 0
      %p50 = por %p48, %p49
      %p51 = scmp.ne.s32.totalorder %s40, %s43
      %p52 = scmp.eq.s32.totalorder %s14, 6
      %p53 = por %p51, %p52
      %p54 = scmp.ne.s32.totalorder %s43, %s44
      %p55 = scmp.eq.s32.totalorder %s14, 0
      %p56 = por %p54, %p55
      %p57 = scmp.ne.s32.totalorder %s43, %s44
      %p58 = scmp.eq.s32.totalorder %s15, 6
      %p59 = por %p57, %p58
      %p61 = scmp.ne.s32.totalorder %s44, %s60
      %p62 = scmp.eq.s32.totalorder %s15, 0
      %p63 = por %p61, %p62
      %s65 = sadd.s32 %s64, 1
      %p68 = scmp.eq.s32.totalorder %s9, 6
      %p69 = scmp.ne.s32.totalorder %s64, %s66
      %p70 = scmp.eq.s32.totalorder %s9, 0
      %p71 = por %p69, %p70
      %p72 = scmp.ne.s32.totalorder %s64, %s66
      %p73 = scmp.eq.s32.totalorder %s14, 6
      %p74 = por %p72, %p73
      %p75 = scmp.ne.s32.totalorder %s66, %s67
      %p76 = scmp.eq.s32.totalorder %s14, 0
      %p77 = por %p75, %p76
      %p78 = scmp.ne.s32.totalorder %s66, %s67
      %p79 = scmp.eq.s32.totalorder %s15, 6
      %p80 = por %p78, %p79
      %p82 = scmp.ne.s32.totalorder %s67, %s81
      %p83 = scmp.eq.s32.totalorder %s15, 0
      %p84 = por %p82, %p83
      %s85 = ssub.s32 %s9, %s16
      %p86 = scmp.eq.s32.totalorder %s85, 0
      %s88 = sadd.s32 %s87, 1
      %s89 = scalar_select %p86, %s87, %s88
      %p92 = pneg %p86
      %p93 = scmp.eq.s32.totalorder %s9, 6
      %p94 = por %p92, %p93
      %p95 = scmp.ne.s32.totalorder %s87, %s90
      %p96 = scmp.eq.s32.totalorder %s9, 0
      %p97 = por %p95, %p96
      %p98 = scmp.ne.s32.totalorder %s87, %s90
      %p99 = scmp.eq.s32.totalorder %s14, 6
      %p100 = por %p98, %p99
      %p101 = scmp.ne.s32.totalorder %s90, %s91
      %p102 = scmp.eq.s32.totalorder %s14, 0
      %p103 = por %p101, %p102
      %p104 = scmp.ne.s32.totalorder %s90, %s91
      %p105 = scmp.eq.s32.totalorder %s15, 6
      %p106 = por %p104, %p105
      %p108 = scmp.ne.s32.totalorder %s91, %s107
      %p109 = scmp.eq.s32.totalorder %s15, 0
      %p110 = por %p108, %p109
      %p111 = scmp.le.s32.totalorder 1, %s9
      %p112 = scmp.lt.s32.totalorder %s9, 8
      %p113 = pnand %p111, %p112
      %p114 = pneg %p113
      // Predicated region
      $region9: #{reconstructor_forward.13} parent=5 // pred_check
        _
      $region10: #{reconstructor_forward.13} parent=5 // pred_check_branch
        %116 = sbr.rel (%p113) target = $region12
      $region11: #{reconstructor_forward.13} parent=5 // pred_region
        %s117 = ssub.s32 %s9, 1
        // Predicated region
        $region13: #{reconstructor_forward.13} parent=11 // pred_check
          %p118 = pneg %p30
        $region14: #{reconstructor_forward.13} parent=11 // pred_check_branch
          %120 = sbr.rel (%p118) target = $region16
        $region15: #{reconstructor_forward.13} parent=11 // pred_region
          _
        $region16: #{reconstructor_forward.13} parent=11 // pred_fallthru
          _
        // Predicated region
        $region17: #{reconstructor_forward.13} parent=11 // pred_check
          %p121 = pneg %p77
        $region18: #{reconstructor_forward.13} parent=11 // pred_check_branch
          %123 = sbr.rel (%p121) target = $region20
        $region19: #{reconstructor_forward.13} parent=11 // pred_region
          _
        $region20: #{reconstructor_forward.13} parent=11 // pred_fallthru
          _
      $region12: #{reconstructor_forward.13} parent=5 // pred_fallthru
        _
      %p124 = scmp.lt.s32.totalorder %s9, 7
      // Predicated region
      $region21: #{reconstructor_forward.13} parent=5 // pred_check
        %p125 = pneg %p124
      $region22: #{reconstructor_forward.13} parent=5 // pred_check_branch
        %127 = sbr.rel (%p125) target = $region24
      $region23: #{reconstructor_forward.13} parent=5 // pred_region
        // Predicated region
        $region25: #{reconstructor_forward.13} parent=23 // pred_check
          %p128 = pneg %p50
        $region26: #{reconstructor_forward.13} parent=23 // pred_check_branch
          %130 = sbr.rel (%p128) target = $region28
        $region27: #{reconstructor_forward.13} parent=23 // pred_region
          %s131 = sand.u32 %s40, 1
          %s132 = sand.u32 %s40, 1
          %s133 = smul.addr %s132, 896
          %s134 = scalar_lea.vmem [#allocation2], %s133
          %s135 = smul.u32 32, %s9
          %s136 = ssub.s32 196, %s135
          %p137 = scmp.lt.s32.totalorder %s136, 32
          %s138 = scalar_select %p137, %s136, 32
          %s139 = smul.u32 28, %s138
          %p140 = scmp.ne.s32.totalorder 0, %s139
          %s141 = smul.addr %s135, 4
          %s142 = scalar_lea.vmem %s1, %s141
          %s143 = smul.u32 %s138, 4
          // Predicated region
          $region29: #{reconstructor_forward.13} parent=27 // pred_check
            %p144 = pneg %p140
          $region30: #{reconstructor_forward.13} parent=27 // pred_check_branch
            %146 = sbr.rel (%p144) target = $region32
          $region31: #{reconstructor_forward.13} parent=27 // pred_region
            %p147 = scmp.lt.u32.totalorder %s143, 8
            %p148 = pneg %p147
            // Predicated region
            $region33: #{reconstructor_forward.13} parent=31 // pred_check
              _
            $region34: #{reconstructor_forward.13} parent=31 // pred_check_branch
              %150 = sbr.rel (%p147) target = $region36
            $region35: #{reconstructor_forward.13} parent=31 // pred_region
              %s178 = sand.u32 %s143, 7
              %p179 = scmp.eq.s32.totalorder %s178, 0
              // Predicated region
              $region48: #{reconstructor_forward.13} parent=35 // pred_check
                %p180 = pneg %p179
              $region49: #{reconstructor_forward.13} parent=35 // pred_check_branch
                %182 = sbr.rel (%p180) target = $region51
              $region50: #{reconstructor_forward.13} parent=35 // pred_region
                %s183 = sshrl.u32 %s143, 3
                %s184 = sdiv.u32.pop %s183, 6
                %s185 = srem.u32.pop %s183, 6
                // While loop
                $region52: #{reconstructor_forward.13} parent=50 // loop_pre_header
                  _
                $region53: #{reconstructor_forward.13} parent=50 // loop_header
                  %s187 = sphi 0, %s189
                  %p188 = scmp.ge.s32.totalorder %s187, %s184
                  %s192 = sphi 0, %s281
                  %s193 = sphi %s142, %s284
                  %s194 = sphi %s134, %s285
                $region54: #{reconstructor_forward.13} parent=50 // loop_header_branch
                  %191 = sbr.rel (%p188) target = $region58
                $region55: #{reconstructor_forward.13} parent=50 // loop_body
                  %v195 = vld [vmem:[%s193] sm:$0xff]
                  %196 = vst [vmem:[%s194] sm:$0xff] %v195
                  %v197 = vld [vmem:[%s193 + $0x8] sm:$0xff]
                  %198 = vst [vmem:[%s194 + $0x8] sm:$0xff] %v197
                  %v199 = vld [vmem:[%s193 + $0x10] sm:$0xff]
                  %200 = vst [vmem:[%s194 + $0x10] sm:$0xff] %v199
                  %v201 = vld [vmem:[%s193 + $0x18] sm:$0xff]
                  %202 = vst [vmem:[%s194 + $0x18] sm:$0xff] %v201
                  %v203 = vld [vmem:[%s193 + $0x20] sm:$0xff]
                  %204 = vst [vmem:[%s194 + $0x20] sm:$0xff] %v203
                  %v205 = vld [vmem:[%s193 + $0x28] sm:$0xff]
                  %206 = vst [vmem:[%s194 + $0x28] sm:$0xff] %v205
                  %v207 = vld [vmem:[%s193 + $0x310] sm:$0xff]
                  %208 = vst [vmem:[%s194 + $0x80] sm:$0xff] %v207
                  %v209 = vld [vmem:[%s193 + $0x318] sm:$0xff]
                  %210 = vst [vmem:[%s194 + $0x88] sm:$0xff] %v209
                  %v211 = vld [vmem:[%s193 + $0x320] sm:$0xff]
                  %212 = vst [vmem:[%s194 + $0x90] sm:$0xff] %v211
                  %v213 = vld [vmem:[%s193 + $0x328] sm:$0xff]
                  %214 = vst [vmem:[%s194 + $0x98] sm:$0xff] %v213
                  %v215 = vld [vmem:[%s193 + $0x330] sm:$0xff]
                  %216 = vst [vmem:[%s194 + $0xa0] sm:$0xff] %v215
                  %v217 = vld [vmem:[%s193 + $0x338] sm:$0xff]
                  %218 = vst [vmem:[%s194 + $0xa8] sm:$0xff] %v217
                  %v219 = vld [vmem:[%s193 + $0x620] sm:$0xff]
                  %220 = vst [vmem:[%s194 + $0x100] sm:$0xff] %v219
                  %v221 = vld [vmem:[%s193 + $0x628] sm:$0xff]
                  %222 = vst [vmem:[%s194 + $0x108] sm:$0xff] %v221
                  %v223 = vld [vmem:[%s193 + $0x630] sm:$0xff]
                  %224 = vst [vmem:[%s194 + $0x110] sm:$0xff] %v223
                  %v225 = vld [vmem:[%s193 + $0x638] sm:$0xff]
                  %226 = vst [vmem:[%s194 + $0x118] sm:$0xff] %v225
                  %v227 = vld [vmem:[%s193 + $0x640] sm:$0xff]
                  %228 = vst [vmem:[%s194 + $0x120] sm:$0xff] %v227
                  %v229 = vld [vmem:[%s193 + $0x648] sm:$0xff]
                  %230 = vst [vmem:[%s194 + $0x128] sm:$0xff] %v229
                  %v231 = vld [vmem:[%s193 + $0x930] sm:$0xff]
                  %232 = vst [vmem:[%s194 + $0x180] sm:$0xff] %v231
                  %v233 = vld [vmem:[%s193 + $0x938] sm:$0xff]
                  %234 = vst [vmem:[%s194 + $0x188] sm:$0xff] %v233
                  %v235 = vld [vmem:[%s193 + $0x940] sm:$0xff]
                  %236 = vst [vmem:[%s194 + $0x190] sm:$0xff] %v235
                  %v237 = vld [vmem:[%s193 + $0x948] sm:$0xff]
                  %238 = vst [vmem:[%s194 + $0x198] sm:$0xff] %v237
                  %v239 = vld [vmem:[%s193 + $0x950] sm:$0xff]
                  %240 = vst [vmem:[%s194 + $0x1a0] sm:$0xff] %v239
                  %v241 = vld [vmem:[%s193 + $0x958] sm:$0xff]
                  %242 = vst [vmem:[%s194 + $0x1a8] sm:$0xff] %v241
                  %v243 = vld [vmem:[%s193 + $0xc40] sm:$0xff]
                  %244 = vst [vmem:[%s194 + $0x200] sm:$0xff] %v243
                  %v245 = vld [vmem:[%s193 + $0xc48] sm:$0xff]
                  %246 = vst [vmem:[%s194 + $0x208] sm:$0xff] %v245
                  %v247 = vld [vmem:[%s193 + $0xc50] sm:$0xff]
                  %248 = vst [vmem:[%s194 + $0x210] sm:$0xff] %v247
                  %v249 = vld [vmem:[%s193 + $0xc58] sm:$0xff]
                  %250 = vst [vmem:[%s194 + $0x218] sm:$0xff] %v249
                  %v251 = vld [vmem:[%s193 + $0xc60] sm:$0xff]
                  %252 = vst [vmem:[%s194 + $0x220] sm:$0xff] %v251
                  %v253 = vld [vmem:[%s193 + $0xc68] sm:$0xff]
                  %254 = vst [vmem:[%s194 + $0x228] sm:$0xff] %v253
                  %v255 = vld [vmem:[%s193 + $0xf50] sm:$0xff]
                  %256 = vst [vmem:[%s194 + $0x280] sm:$0xff] %v255
                  %v257 = vld [vmem:[%s193 + $0xf58] sm:$0xff]
                  %258 = vst [vmem:[%s194 + $0x288] sm:$0xff] %v257
                  %v259 = vld [vmem:[%s193 + $0xf60] sm:$0xff]
                  %260 = vst [vmem:[%s194 + $0x290] sm:$0xff] %v259
                  %v261 = vld [vmem:[%s193 + $0xf68] sm:$0xff]
                  %262 = vst [vmem:[%s194 + $0x298] sm:$0xff] %v261
                  %v263 = vld [vmem:[%s193 + $0xf70] sm:$0xff]
                  %264 = vst [vmem:[%s194 + $0x2a0] sm:$0xff] %v263
                  %v265 = vld [vmem:[%s193 + $0xf78] sm:$0xff]
                  %266 = vst [vmem:[%s194 + $0x2a8] sm:$0xff] %v265
                  %v267 = vld [vmem:[%s193 + $0x1260] sm:$0xff]
                  %268 = vst [vmem:[%s194 + $0x300] sm:$0xff] %v267
                  %v269 = vld [vmem:[%s193 + $0x1268] sm:$0xff]
                  %270 = vst [vmem:[%s194 + $0x308] sm:$0xff] %v269
                  %v271 = vld [vmem:[%s193 + $0x1270] sm:$0xff]
                  %272 = vst [vmem:[%s194 + $0x310] sm:$0xff] %v271
                  %v273 = vld [vmem:[%s193 + $0x1278] sm:$0xff]
                  %274 = vst [vmem:[%s194 + $0x318] sm:$0xff] %v273
                  %v275 = vld [vmem:[%s193 + $0x1280] sm:$0xff]
                  %276 = vst [vmem:[%s194 + $0x320] sm:$0xff] %v275
                  %v277 = vld [vmem:[%s193 + $0x1288] sm:$0xff]
                  %278 = vst [vmem:[%s194 + $0x328] sm:$0xff] %v277
                  %s279 = sadd.s32 1, %s192
                  %p280 = scmp.ge.s32.totalorder %s279, %s184
                  %s281 = scalar_select %p280, 0, %s279
                  %s282 = smul.u32 %s281, 48
                  %s283 = smul.u32 %s281, 48
                  %s284 = scalar_lea.vmem %s142, %s282
                  %s285 = scalar_lea.vmem %s134, %s283 [#allocation2]
                $region56: #{reconstructor_forward.13} parent=50 // loop_footer
                  %s189 = sadd.s32 %s187, 1
                $region57: #{reconstructor_forward.13} parent=50 // loop_footer_branch
                  %186 = sbr.rel target = $region53
                $region58: #{reconstructor_forward.13} parent=50 // loop_exit
                  _
                %s286 = sdiv.u32.pop %s183, 6
                %s287 = srem.u32.pop %s183, 6
                %s288 = smul.u32 %s286, 6
                %s289 = smul.u32 8, %s288
                %s290 = scalar_lea.vmem %s142, %s289
                %s291 = smul.u32 8, %s288
                %s292 = scalar_lea.vmem %s134, %s291 [#allocation2]
                // While loop
                $region59: #{reconstructor_forward.13} parent=50 // loop_pre_header
                  _
                $region60: #{reconstructor_forward.13} parent=50 // loop_header
                  %s294 = sphi 0, %s296
                  %p295 = scmp.ge.s32.totalorder %s294, %s287
                  %s299 = sphi 0, %s318
                  %s300 = sphi %s290, %s321
                  %s301 = sphi %s292, %s322
                $region61: #{reconstructor_forward.13} parent=50 // loop_header_branch
                  %298 = sbr.rel (%p295) target = $region65
                $region62: #{reconstructor_forward.13} parent=50 // loop_body
                  %v302 = vld [vmem:[%s300] sm:$0xff]
                  %303 = vst [vmem:[%s301] sm:$0xff] %v302
                  %v304 = vld [vmem:[%s300 + $0x310] sm:$0xff]
                  %305 = vst [vmem:[%s301 + $0x80] sm:$0xff] %v304
                  %v306 = vld [vmem:[%s300 + $0x620] sm:$0xff]
                  %307 = vst [vmem:[%s301 + $0x100] sm:$0xff] %v306
                  %v308 = vld [vmem:[%s300 + $0x930] sm:$0xff]
                  %309 = vst [vmem:[%s301 + $0x180] sm:$0xff] %v308
                  %v310 = vld [vmem:[%s300 + $0xc40] sm:$0xff]
                  %311 = vst [vmem:[%s301 + $0x200] sm:$0xff] %v310
                  %v312 = vld [vmem:[%s300 + $0xf50] sm:$0xff]
                  %313 = vst [vmem:[%s301 + $0x280] sm:$0xff] %v312
                  %v314 = vld [vmem:[%s300 + $0x1260] sm:$0xff]
                  %315 = vst [vmem:[%s301 + $0x300] sm:$0xff] %v314
                  %s316 = sadd.s32 1, %s299
                  %p317 = scmp.ge.s32.totalorder %s316, %s287
                  %s318 = scalar_select %p317, 0, %s316
                  %s319 = smul.u32 %s318, 8
                  %s320 = smul.u32 %s318, 8
                  %s321 = scalar_lea.vmem %s290, %s319
                  %s322 = scalar_lea.vmem %s292, %s320 [#allocation2]
                $region63: #{reconstructor_forward.13} parent=50 // loop_footer
                  %s296 = sadd.s32 %s294, 1
                $region64: #{reconstructor_forward.13} parent=50 // loop_footer_branch
                  %293 = sbr.rel target = $region60
                $region65: #{reconstructor_forward.13} parent=50 // loop_exit
                  _
              $region51: #{reconstructor_forward.13} parent=35 // pred_fallthru
                _
              %p323 = pneg %p179
              // Predicated region
              $region66: #{reconstructor_forward.13} parent=35 // pred_check
                _
              $region67: #{reconstructor_forward.13} parent=35 // pred_check_branch
                %325 = sbr.rel (%p179) target = $region69
              $region68: #{reconstructor_forward.13} parent=35 // pred_region
                %s326 = sand.u32 %s143, 7
                %s327 = ssub.s32 %s143, %s326
                %s328 = scalar_lea.vmem %s142, %s327
                %s329 = ssub.s32 %s143, %s326
                %s330 = scalar_lea.vmem %s134, %s329 [#allocation2]
                %s331 = sshrl.u32 %s143, 3
                %s332 = sdiv.u32.pop %s331, 6
                %s333 = srem.u32.pop %s331, 6
                // While loop
                $region70: #{reconstructor_forward.13} parent=68 // loop_pre_header
                  _
                $region71: #{reconstructor_forward.13} parent=68 // loop_header
                  %s335 = sphi 0, %s337
                  %p336 = scmp.ge.s32.totalorder %s335, %s332
                  %s340 = sphi 0, %s429
                  %s341 = sphi %s142, %s432
                  %s342 = sphi %s134, %s433
                $region72: #{reconstructor_forward.13} parent=68 // loop_header_branch
                  %339 = sbr.rel (%p336) target = $region76
                $region73: #{reconstructor_forward.13} parent=68 // loop_body
                  %v343 = vld [vmem:[%s341] sm:$0xff]
                  %344 = vst [vmem:[%s342] sm:$0xff] %v343
                  %v345 = vld [vmem:[%s341 + $0x8] sm:$0xff]
                  %346 = vst [vmem:[%s342 + $0x8] sm:$0xff] %v345
                  %v347 = vld [vmem:[%s341 + $0x10] sm:$0xff]
                  %348 = vst [vmem:[%s342 + $0x10] sm:$0xff] %v347
                  %v349 = vld [vmem:[%s341 + $0x18] sm:$0xff]
                  %350 = vst [vmem:[%s342 + $0x18] sm:$0xff] %v349
                  %v351 = vld [vmem:[%s341 + $0x20] sm:$0xff]
                  %352 = vst [vmem:[%s342 + $0x20] sm:$0xff] %v351
                  %v353 = vld [vmem:[%s341 + $0x28] sm:$0xff]
                  %354 = vst [vmem:[%s342 + $0x28] sm:$0xff] %v353
                  %v355 = vld [vmem:[%s341 + $0x310] sm:$0xff]
                  %356 = vst [vmem:[%s342 + $0x80] sm:$0xff] %v355
                  %v357 = vld [vmem:[%s341 + $0x318] sm:$0xff]
                  %358 = vst [vmem:[%s342 + $0x88] sm:$0xff] %v357
                  %v359 = vld [vmem:[%s341 + $0x320] sm:$0xff]
                  %360 = vst [vmem:[%s342 + $0x90] sm:$0xff] %v359
                  %v361 = vld [vmem:[%s341 + $0x328] sm:$0xff]
                  %362 = vst [vmem:[%s342 + $0x98] sm:$0xff] %v361
                  %v363 = vld [vmem:[%s341 + $0x330] sm:$0xff]
                  %364 = vst [vmem:[%s342 + $0xa0] sm:$0xff] %v363
                  %v365 = vld [vmem:[%s341 + $0x338] sm:$0xff]
                  %366 = vst [vmem:[%s342 + $0xa8] sm:$0xff] %v365
                  %v367 = vld [vmem:[%s341 + $0x620] sm:$0xff]
                  %368 = vst [vmem:[%s342 + $0x100] sm:$0xff] %v367
                  %v369 = vld [vmem:[%s341 + $0x628] sm:$0xff]
                  %370 = vst [vmem:[%s342 + $0x108] sm:$0xff] %v369
                  %v371 = vld [vmem:[%s341 + $0x630] sm:$0xff]
                  %372 = vst [vmem:[%s342 + $0x110] sm:$0xff] %v371
                  %v373 = vld [vmem:[%s341 + $0x638] sm:$0xff]
                  %374 = vst [vmem:[%s342 + $0x118] sm:$0xff] %v373
                  %v375 = vld [vmem:[%s341 + $0x640] sm:$0xff]
                  %376 = vst [vmem:[%s342 + $0x120] sm:$0xff] %v375
                  %v377 = vld [vmem:[%s341 + $0x648] sm:$0xff]
                  %378 = vst [vmem:[%s342 + $0x128] sm:$0xff] %v377
                  %v379 = vld [vmem:[%s341 + $0x930] sm:$0xff]
                  %380 = vst [vmem:[%s342 + $0x180] sm:$0xff] %v379
                  %v381 = vld [vmem:[%s341 + $0x938] sm:$0xff]
                  %382 = vst [vmem:[%s342 + $0x188] sm:$0xff] %v381
                  %v383 = vld [vmem:[%s341 + $0x940] sm:$0xff]
                  %384 = vst [vmem:[%s342 + $0x190] sm:$0xff] %v383
                  %v385 = vld [vmem:[%s341 + $0x948] sm:$0xff]
                  %386 = vst [vmem:[%s342 + $0x198] sm:$0xff] %v385
                  %v387 = vld [vmem:[%s341 + $0x950] sm:$0xff]
                  %388 = vst [vmem:[%s342 + $0x1a0] sm:$0xff] %v387
                  %v389 = vld [vmem:[%s341 + $0x958] sm:$0xff]
                  %390 = vst [vmem:[%s342 + $0x1a8] sm:$0xff] %v389
                  %v391 = vld [vmem:[%s341 + $0xc40] sm:$0xff]
                  %392 = vst [vmem:[%s342 + $0x200] sm:$0xff] %v391
                  %v393 = vld [vmem:[%s341 + $0xc48] sm:$0xff]
                  %394 = vst [vmem:[%s342 + $0x208] sm:$0xff] %v393
                  %v395 = vld [vmem:[%s341 + $0xc50] sm:$0xff]
                  %396 = vst [vmem:[%s342 + $0x210] sm:$0xff] %v395
                  %v397 = vld [vmem:[%s341 + $0xc58] sm:$0xff]
                  %398 = vst [vmem:[%s342 + $0x218] sm:$0xff] %v397
                  %v399 = vld [vmem:[%s341 + $0xc60] sm:$0xff]
                  %400 = vst [vmem:[%s342 + $0x220] sm:$0xff] %v399
                  %v401 = vld [vmem:[%s341 + $0xc68] sm:$0xff]
                  %402 = vst [vmem:[%s342 + $0x228] sm:$0xff] %v401
                  %v403 = vld [vmem:[%s341 + $0xf50] sm:$0xff]
                  %404 = vst [vmem:[%s342 + $0x280] sm:$0xff] %v403
                  %v405 = vld [vmem:[%s341 + $0xf58] sm:$0xff]
                  %406 = vst [vmem:[%s342 + $0x288] sm:$0xff] %v405
                  %v407 = vld [vmem:[%s341 + $0xf60] sm:$0xff]
                  %408 = vst [vmem:[%s342 + $0x290] sm:$0xff] %v407
                  %v409 = vld [vmem:[%s341 + $0xf68] sm:$0xff]
                  %410 = vst [vmem:[%s342 + $0x298] sm:$0xff] %v409
                  %v411 = vld [vmem:[%s341 + $0xf70] sm:$0xff]
                  %412 = vst [vmem:[%s342 + $0x2a0] sm:$0xff] %v411
                  %v413 = vld [vmem:[%s341 + $0xf78] sm:$0xff]
                  %414 = vst [vmem:[%s342 + $0x2a8] sm:$0xff] %v413
                  %v415 = vld [vmem:[%s341 + $0x1260] sm:$0xff]
                  %416 = vst [vmem:[%s342 + $0x300] sm:$0xff] %v415
                  %v417 = vld [vmem:[%s341 + $0x1268] sm:$0xff]
                  %418 = vst [vmem:[%s342 + $0x308] sm:$0xff] %v417
                  %v419 = vld [vmem:[%s341 + $0x1270] sm:$0xff]
                  %420 = vst [vmem:[%s342 + $0x310] sm:$0xff] %v419
                  %v421 = vld [vmem:[%s341 + $0x1278] sm:$0xff]
                  %422 = vst [vmem:[%s342 + $0x318] sm:$0xff] %v421
                  %v423 = vld [vmem:[%s341 + $0x1280] sm:$0xff]
                  %424 = vst [vmem:[%s342 + $0x320] sm:$0xff] %v423
                  %v425 = vld [vmem:[%s341 + $0x1288] sm:$0xff]
                  %426 = vst [vmem:[%s342 + $0x328] sm:$0xff] %v425
                  %s427 = sadd.s32 1, %s340
                  %p428 = scmp.ge.s32.totalorder %s427, %s332
                  %s429 = scalar_select %p428, 0, %s427
                  %s430 = smul.u32 %s429, 48
                  %s431 = smul.u32 %s429, 48
                  %s432 = scalar_lea.vmem %s142, %s430
                  %s433 = scalar_lea.vmem %s134, %s431 [#allocation2]
                $region74: #{reconstructor_forward.13} parent=68 // loop_footer
                  %s337 = sadd.s32 %s335, 1
                $region75: #{reconstructor_forward.13} parent=68 // loop_footer_branch
                  %334 = sbr.rel target = $region71
                $region76: #{reconstructor_forward.13} parent=68 // loop_exit
                  _
                %s434 = sdiv.u32.pop %s331, 6
                %s435 = srem.u32.pop %s331, 6
                %s436 = smul.u32 %s434, 6
                %s437 = smul.u32 8, %s436
                %s438 = scalar_lea.vmem %s142, %s437
                %s439 = smul.u32 8, %s436
                %s440 = scalar_lea.vmem %s134, %s439 [#allocation2]
                // While loop
                $region77: #{reconstructor_forward.13} parent=68 // loop_pre_header
                  _
                $region78: #{reconstructor_forward.13} parent=68 // loop_header
                  %s442 = sphi 0, %s444
                  %p443 = scmp.ge.s32.totalorder %s442, %s435
                  %s447 = sphi 0, %s466
                  %s448 = sphi %s438, %s469
                  %s449 = sphi %s440, %s470
                $region79: #{reconstructor_forward.13} parent=68 // loop_header_branch
                  %446 = sbr.rel (%p443) target = $region83
                $region80: #{reconstructor_forward.13} parent=68 // loop_body
                  %v450 = vld [vmem:[%s448] sm:$0xff]
                  %451 = vst [vmem:[%s449] sm:$0xff] %v450
                  %v452 = vld [vmem:[%s448 + $0x310] sm:$0xff]
                  %453 = vst [vmem:[%s449 + $0x80] sm:$0xff] %v452
                  %v454 = vld [vmem:[%s448 + $0x620] sm:$0xff]
                  %455 = vst [vmem:[%s449 + $0x100] sm:$0xff] %v454
                  %v456 = vld [vmem:[%s448 + $0x930] sm:$0xff]
                  %457 = vst [vmem:[%s449 + $0x180] sm:$0xff] %v456
                  %v458 = vld [vmem:[%s448 + $0xc40] sm:$0xff]
                  %459 = vst [vmem:[%s449 + $0x200] sm:$0xff] %v458
                  %v460 = vld [vmem:[%s448 + $0xf50] sm:$0xff]
                  %461 = vst [vmem:[%s449 + $0x280] sm:$0xff] %v460
                  %v462 = vld [vmem:[%s448 + $0x1260] sm:$0xff]
                  %463 = vst [vmem:[%s449 + $0x300] sm:$0xff] %v462
                  %s464 = sadd.s32 1, %s447
                  %p465 = scmp.ge.s32.totalorder %s464, %s435
                  %s466 = scalar_select %p465, 0, %s464
                  %s467 = smul.u32 %s466, 8
                  %s468 = smul.u32 %s466, 8
                  %s469 = scalar_lea.vmem %s438, %s467
                  %s470 = scalar_lea.vmem %s440, %s468 [#allocation2]
                $region81: #{reconstructor_forward.13} parent=68 // loop_footer
                  %s444 = sadd.s32 %s442, 1
                $region82: #{reconstructor_forward.13} parent=68 // loop_footer_branch
                  %441 = sbr.rel target = $region78
                $region83: #{reconstructor_forward.13} parent=68 // loop_exit
                  _
                %s471 = sshll.u32 1, %s326
                %s472 = ssub.s32 %s471, 1
                loop: start=0, step=1, limit=1
                $region84: #{reconstructor_forward.13} parent=68 // loop_pre_header
                  _
                $region85: #{reconstructor_forward.13} parent=68 // loop_header
                  %s474 = sphi 0, %s478
                  %p475 = scmp.ge.s32.totalorder %s474, 1
                  %s479 = sphi %s328, %s328
                  %s480 = sphi %s330, %s330
                $region86: #{reconstructor_forward.13} parent=68 // loop_header_branch
                  %477 = sbr.rel (%p475) target = $region90
                $region87: #{reconstructor_forward.13} parent=68 // loop_body
                  %v481 = vld [vmem:[%s479] sm:%s472]
                  %482 = vst [vmem:[%s480] sm:%s472] %v481
                  %v483 = vld [vmem:[%s479 + $0x310] sm:%s472]
                  %484 = vst [vmem:[%s480 + $0x80] sm:%s472] %v483
                  %v485 = vld [vmem:[%s479 + $0x620] sm:%s472]
                  %486 = vst [vmem:[%s480 + $0x100] sm:%s472] %v485
                  %v487 = vld [vmem:[%s479 + $0x930] sm:%s472]
                  %488 = vst [vmem:[%s480 + $0x180] sm:%s472] %v487
                  %v489 = vld [vmem:[%s479 + $0xc40] sm:%s472]
                  %490 = vst [vmem:[%s480 + $0x200] sm:%s472] %v489
                  %v491 = vld [vmem:[%s479 + $0xf50] sm:%s472]
                  %492 = vst [vmem:[%s480 + $0x280] sm:%s472] %v491
                  %v493 = vld [vmem:[%s479 + $0x1260] sm:%s472]
                  %494 = vst [vmem:[%s480 + $0x300] sm:%s472] %v493
                $region88: #{reconstructor_forward.13} parent=68 // loop_footer
                  %s478 = sadd.s32 1, %s474
                $region89: #{reconstructor_forward.13} parent=68 // loop_footer_branch
                  %473 = sbr.rel target = $region85
                $region90: #{reconstructor_forward.13} parent=68 // loop_exit
                  _
              $region69: #{reconstructor_forward.13} parent=35 // pred_fallthru
                _
            $region36: #{reconstructor_forward.13} parent=31 // pred_fallthru
              _
            // Predicated region
            $region37: #{reconstructor_forward.13} parent=31 // pred_check
              %p151 = pneg %p147
            $region38: #{reconstructor_forward.13} parent=31 // pred_check_branch
              %153 = sbr.rel (%p151) target = $region40
            $region39: #{reconstructor_forward.13} parent=31 // pred_region
              %s154 = sshll.u32 1, %s143
              %s155 = ssub.s32 %s154, 1
              loop: start=0, step=1, limit=1
              $region41: #{reconstructor_forward.13} parent=39 // loop_pre_header
                _
              $region42: #{reconstructor_forward.13} parent=39 // loop_header
                %s157 = sphi 0, %s161
                %p158 = scmp.ge.s32.totalorder %s157, 1
                %s162 = sphi %s142, %s142
                %s163 = sphi %s134, %s134
              $region43: #{reconstructor_forward.13} parent=39 // loop_header_branch
                %160 = sbr.rel (%p158) target = $region47
              $region44: #{reconstructor_forward.13} parent=39 // loop_body
                %v164 = vld [vmem:[%s162] sm:%s155]
                %165 = vst [vmem:[%s163] sm:%s155] %v164
                %v166 = vld [vmem:[%s162 + $0x310] sm:%s155]
                %167 = vst [vmem:[%s163 + $0x80] sm:%s155] %v166
                %v168 = vld [vmem:[%s162 + $0x620] sm:%s155]
                %169 = vst [vmem:[%s163 + $0x100] sm:%s155] %v168
                %v170 = vld [vmem:[%s162 + $0x930] sm:%s155]
                %171 = vst [vmem:[%s163 + $0x180] sm:%s155] %v170
                %v172 = vld [vmem:[%s162 + $0xc40] sm:%s155]
                %173 = vst [vmem:[%s163 + $0x200] sm:%s155] %v172
                %v174 = vld [vmem:[%s162 + $0xf50] sm:%s155]
                %175 = vst [vmem:[%s163 + $0x280] sm:%s155] %v174
                %v176 = vld [vmem:[%s162 + $0x1260] sm:%s155]
                %177 = vst [vmem:[%s163 + $0x300] sm:%s155] %v176
              $region45: #{reconstructor_forward.13} parent=39 // loop_footer
                %s161 = sadd.s32 1, %s157
              $region46: #{reconstructor_forward.13} parent=39 // loop_footer_branch
                %156 = sbr.rel target = $region42
              $region47: #{reconstructor_forward.13} parent=39 // loop_exit
                _
            $region40: #{reconstructor_forward.13} parent=31 // pred_fallthru
              _
          $region32: #{reconstructor_forward.13} parent=27 // pred_fallthru
            _
          %495 = vnop
        $region28: #{reconstructor_forward.13} parent=23 // pred_fallthru
          _
      $region24: #{reconstructor_forward.13} parent=5 // pred_fallthru
        _
      %p496 = scmp.le.s32.totalorder 1, %s9
      %p497 = scmp.lt.s32.totalorder %s9, 8
      %p498 = pnand %p496, %p497
      %p499 = pneg %p498
      // Predicated region
      $region91: #{reconstructor_forward.13} parent=5 // pred_check
        _
      $region92: #{reconstructor_forward.13} parent=5 // pred_check_branch
        %501 = sbr.rel (%p498) target = $region94
      $region93: #{reconstructor_forward.13} parent=5 // pred_region
        %s502 = ssub.s32 %s9, 1
        %s503 = sand.u32 %s43, 1
        %s504 = sand.u32 %s43, 1
        %s505 = smul.addr %s504, 896
        %s506 = scalar_lea.vmem [#allocation2], %s505
        // Predicated region
        $region95: #{reconstructor_forward.13} parent=93 // pred_check
          %p507 = pneg %p56
        $region96: #{reconstructor_forward.13} parent=93 // pred_check_branch
          %509 = sbr.rel (%p507) target = $region98
        $region97: #{reconstructor_forward.13} parent=93 // pred_region
          _
        $region98: #{reconstructor_forward.13} parent=93 // pred_fallthru
          _
        %p510 = pneg %p30
        %p511 = pneg %p27
        %s512 = sand.u32 %s43, 1
        %s513 = sand.u32 %s43, 1
        %s514 = smul.addr %s513, 896
        %s515 = scalar_lea.vmem [#allocation2], %s514
        %p516 = pneg %p56
        %p517 = pneg %p53
        %p518 = pneg %p77
        %p519 = pneg %p74
        %p520 = pneg %p103
        %p521 = pneg %p100
        %s522 = sand.u32 %s90, 1
        %s523 = sand.u32 %s90, 1
        %s524 = smul.addr %s523, 512
        %s525 = scalar_lea.vmem [#allocation3], %s524
        %s526 = smul.u32 32, %s14
        %s527 = ssub.s32 196, %s526
        %p528 = scmp.lt.s32.totalorder %s527, 32
        %s529 = scalar_select %p528, %s527, 32
        %s530 = smul.u32 28, %s529
        %s531 = smul.u32 32, %s14
        %s532 = ssub.s32 196, %s531
        %p533 = scmp.lt.s32.totalorder %s532, 32
        %s534 = scalar_select %p533, %s532, 32
        %s535 = smul.u32 16, %s534
        %v537 = vld [vmem:[%s0] sm:$0xf]
        %v538 = vld [vmem:[%s0 + $0x4] sm:$0x3]
        %v539 = vld [vmem:[%s506] sm:$0xff]
        %v540 = vld [vmem:[%s506 + $0x8] sm:$0xff]
        %v541 = vld [vmem:[%s506 + $0x10] sm:$0xff]
        %v542 = vld [vmem:[%s506 + $0x18] sm:$0xff]
        %v543 = vld [vmem:[%s506 + $0x20] sm:$0xff]
        %v544 = vld [vmem:[%s506 + $0x28] sm:$0xff]
        %v545 = vld [vmem:[%s506 + $0x30] sm:$0xff]
        %v546 = vld [vmem:[%s506 + $0x38] sm:$0xff]
        %v547 = vld [vmem:[%s506 + $0x40] sm:$0xff]
        %v548 = vld [vmem:[%s506 + $0x48] sm:$0xff]
        %v549 = vld [vmem:[%s506 + $0x50] sm:$0xff]
        %v550 = vld [vmem:[%s506 + $0x58] sm:$0xff]
        %v551 = vld [vmem:[%s506 + $0x60] sm:$0xff]
        %v552 = vld [vmem:[%s506 + $0x68] sm:$0xff]
        %v553 = vld [vmem:[%s506 + $0x70] sm:$0xff]
        %v554 = vld [vmem:[%s506 + $0x78] sm:$0xff]
        %v555 = vld [vmem:[%s506 + $0x80] sm:$0xff]
        %v556 = vld [vmem:[%s506 + $0x88] sm:$0xff]
        %v557 = vld [vmem:[%s506 + $0x90] sm:$0xff]
        %v558 = vld [vmem:[%s506 + $0x98] sm:$0xff]
        %v559 = vld [vmem:[%s506 + $0xa0] sm:$0xff]
        %v560 = vld [vmem:[%s506 + $0xa8] sm:$0xff]
        %v561 = vld [vmem:[%s506 + $0xb0] sm:$0xff]
        %v562 = vld [vmem:[%s506 + $0xb8] sm:$0xff]
        %v563 = vld [vmem:[%s506 + $0xc0] sm:$0xff]
        %v564 = vld [vmem:[%s506 + $0xc8] sm:$0xff]
        %v565 = vld [vmem:[%s506 + $0xd0] sm:$0xff]
        %v566 = vld [vmem:[%s506 + $0xd8] sm:$0xff]
        %v567 = vld [vmem:[%s506 + $0xe0] sm:$0xff]
        %v568 = vld [vmem:[%s506 + $0xe8] sm:$0xff]
        %v569 = vld [vmem:[%s506 + $0xf0] sm:$0xff]
        %v570 = vld [vmem:[%s506 + $0xf8] sm:$0xff]
        %v571 = vld [vmem:[%s506 + $0x100] sm:$0xff]
        %v572 = vld [vmem:[%s506 + $0x108] sm:$0xff]
        %v573 = vld [vmem:[%s506 + $0x110] sm:$0xff]
        %v574 = vld [vmem:[%s506 + $0x118] sm:$0xff]
        %v575 = vld [vmem:[%s506 + $0x120] sm:$0xff]
        %v576 = vld [vmem:[%s506 + $0x128] sm:$0xff]
        %v577 = vld [vmem:[%s506 + $0x130] sm:$0xff]
        %v578 = vld [vmem:[%s506 + $0x138] sm:$0xff]
        %v579 = vld [vmem:[%s506 + $0x140] sm:$0xff]
        %v580 = vld [vmem:[%s506 + $0x148] sm:$0xff]
        %v581 = vld [vmem:[%s506 + $0x150] sm:$0xff]
        %v582 = vld [vmem:[%s506 + $0x158] sm:$0xff]
        %v583 = vld [vmem:[%s506 + $0x160] sm:$0xff]
        %v584 = vld [vmem:[%s506 + $0x168] sm:$0xff]
        %v585 = vld [vmem:[%s506 + $0x170] sm:$0xff]
        %v586 = vld [vmem:[%s506 + $0x178] sm:$0xff]
        %v587 = vld [vmem:[%s506 + $0x180] sm:$0xff]
        %v588 = vld [vmem:[%s506 + $0x188] sm:$0xff]
        %v589 = vld [vmem:[%s506 + $0x190] sm:$0xff]
        %v590 = vld [vmem:[%s506 + $0x198] sm:$0xff]
        %v591 = vld [vmem:[%s506 + $0x1a0] sm:$0xff]
        %v592 = vld [vmem:[%s506 + $0x1a8] sm:$0xff]
        %v593 = vld [vmem:[%s506 + $0x1b0] sm:$0xff]
        %v594 = vld [vmem:[%s506 + $0x1b8] sm:$0xff]
        %v595 = vld [vmem:[%s506 + $0x1c0] sm:$0xff]
        %v596 = vld [vmem:[%s506 + $0x1c8] sm:$0xff]
        %v597 = vld [vmem:[%s506 + $0x1d0] sm:$0xff]
        %v598 = vld [vmem:[%s506 + $0x1d8] sm:$0xff]
        %v599 = vld [vmem:[%s506 + $0x1e0] sm:$0xff]
        %v600 = vld [vmem:[%s506 + $0x1e8] sm:$0xff]
        %v601 = vld [vmem:[%s506 + $0x1f0] sm:$0xff]
        %v602 = vld [vmem:[%s506 + $0x1f8] sm:$0xff]
        %v603 = vld [vmem:[%s506 + $0x200] sm:$0xff]
        %v604 = vld [vmem:[%s506 + $0x208] sm:$0xff]
        %v605 = vld [vmem:[%s506 + $0x210] sm:$0xff]
        %v606 = vld [vmem:[%s506 + $0x218] sm:$0xff]
        %v607 = vld [vmem:[%s506 + $0x220] sm:$0xff]
        %v608 = vld [vmem:[%s506 + $0x228] sm:$0xff]
        %v609 = vld [vmem:[%s506 + $0x230] sm:$0xff]
        %v610 = vld [vmem:[%s506 + $0x238] sm:$0xff]
        %v611 = vld [vmem:[%s506 + $0x240] sm:$0xff]
        %v612 = vld [vmem:[%s506 + $0x248] sm:$0xff]
        %v613 = vld [vmem:[%s506 + $0x250] sm:$0xff]
        %v614 = vld [vmem:[%s506 + $0x258] sm:$0xff]
        %v615 = vld [vmem:[%s506 + $0x260] sm:$0xff]
        %v616 = vld [vmem:[%s506 + $0x268] sm:$0xff]
        %v617 = vld [vmem:[%s506 + $0x270] sm:$0xff]
        %v618 = vld [vmem:[%s506 + $0x278] sm:$0xff]
        %v619 = vld [vmem:[%s506 + $0x280] sm:$0xff]
        %v620 = vld [vmem:[%s506 + $0x288] sm:$0xff]
        %v621 = vld [vmem:[%s506 + $0x290] sm:$0xff]
        %v622 = vld [vmem:[%s506 + $0x298] sm:$0xff]
        %v623 = vld [vmem:[%s506 + $0x2a0] sm:$0xff]
        %v624 = vld [vmem:[%s506 + $0x2a8] sm:$0xff]
        %v625 = vld [vmem:[%s506 + $0x2b0] sm:$0xff]
        %v626 = vld [vmem:[%s506 + $0x2b8] sm:$0xff]
        %v627 = vld [vmem:[%s506 + $0x2c0] sm:$0xff]
        %v628 = vld [vmem:[%s506 + $0x2c8] sm:$0xff]
        %v629 = vld [vmem:[%s506 + $0x2d0] sm:$0xff]
        %v630 = vld [vmem:[%s506 + $0x2d8] sm:$0xff]
        %v631 = vld [vmem:[%s506 + $0x2e0] sm:$0xff]
        %v632 = vld [vmem:[%s506 + $0x2e8] sm:$0xff]
        %v633 = vld [vmem:[%s506 + $0x2f0] sm:$0xff]
        %v634 = vld [vmem:[%s506 + $0x2f8] sm:$0xff]
        %v635 = vld [vmem:[%s506 + $0x300] sm:$0x77]
        %v636 = vld [vmem:[%s506 + $0x308] sm:$0x77]
        %v637 = vld [vmem:[%s506 + $0x310] sm:$0x77]
        %v638 = vld [vmem:[%s506 + $0x318] sm:$0x77]
        %v639 = vld [vmem:[%s506 + $0x320] sm:$0x77]
        %v640 = vld [vmem:[%s506 + $0x328] sm:$0x77]
        %v641 = vld [vmem:[%s506 + $0x330] sm:$0x77]
        %v642 = vld [vmem:[%s506 + $0x338] sm:$0x77]
        %v643 = vld [vmem:[%s506 + $0x340] sm:$0x77]
        %v644 = vld [vmem:[%s506 + $0x348] sm:$0x77]
        %v645 = vld [vmem:[%s506 + $0x350] sm:$0x77]
        %v646 = vld [vmem:[%s506 + $0x358] sm:$0x77]
        %v647 = vld [vmem:[%s506 + $0x360] sm:$0x77]
        %v648 = vld [vmem:[%s506 + $0x368] sm:$0x77]
        %v649 = vld [vmem:[%s506 + $0x370] sm:$0x77]
        %v650 = vld [vmem:[%s506 + $0x378] sm:$0x77]
        %v651 = vld [vmem:[%s2] sm:$0xff]
        %v652 = vld [vmem:[%s2 + $0x8] sm:$0xf]
        %654 = vset.pattern.permute.xlu0 0
        %655 = vperm.xlu0 %654, %v651
        %v656 = vpop.permute.xlu0 %655
        %659 = vset.pattern.permute.xlu0 0
        %660 = vperm.xlu0 %659, %v652
        %v661 = vpop.permute.xlu0 %660
        %v665 = vunpack.c.l.b16 %v537
        %v666 = vunpack.c.l.b16 %v538
        %v667 = vpack.c.b16 %v666, %v665
        %v780 = vunpack.c.l.b16 %v539
        %v781 = vunpack.c.h.b16 %v539
        %v782 = vunpack.c.l.b16 %v540
        %v783 = vunpack.c.h.b16 %v540
        %v784 = vunpack.c.l.b16 %v541
        %v785 = vunpack.c.h.b16 %v541
        %v786 = vunpack.c.l.b16 %v542
        %v787 = vunpack.c.h.b16 %v542
        %v788 = vunpack.c.l.b16 %v543
        %v789 = vunpack.c.h.b16 %v543
        %v790 = vunpack.c.l.b16 %v544
        %v791 = vunpack.c.h.b16 %v544
        %v792 = vunpack.c.l.b16 %v545
        %v793 = vunpack.c.h.b16 %v545
        %v794 = vunpack.c.l.b16 %v546
        %v795 = vunpack.c.h.b16 %v546
        %v796 = vunpack.c.l.b16 %v547
        %v797 = vunpack.c.h.b16 %v547
        %v798 = vunpack.c.l.b16 %v548
        %v799 = vunpack.c.h.b16 %v548
        %v800 = vunpack.c.l.b16 %v549
        %v801 = vunpack.c.h.b16 %v549
        %v802 = vunpack.c.l.b16 %v550
        %v803 = vunpack.c.h.b16 %v550
        %v804 = vunpack.c.l.b16 %v551
        %v805 = vunpack.c.h.b16 %v551
        %v806 = vunpack.c.l.b16 %v552
        %v807 = vunpack.c.h.b16 %v552
        %v808 = vunpack.c.l.b16 %v553
        %v809 = vunpack.c.h.b16 %v553
        %v810 = vunpack.c.l.b16 %v554
        %v811 = vunpack.c.h.b16 %v554
        %v812 = vunpack.c.l.b16 %v555
        %v813 = vunpack.c.h.b16 %v555
        %v814 = vunpack.c.l.b16 %v556
        %v815 = vunpack.c.h.b16 %v556
        %v816 = vunpack.c.l.b16 %v557
        %v817 = vunpack.c.h.b16 %v557
        %v818 = vunpack.c.l.b16 %v558
        %v819 = vunpack.c.h.b16 %v558
        %v820 = vunpack.c.l.b16 %v559
        %v821 = vunpack.c.h.b16 %v559
        %v822 = vunpack.c.l.b16 %v560
        %v823 = vunpack.c.h.b16 %v560
        %v824 = vunpack.c.l.b16 %v561
        %v825 = vunpack.c.h.b16 %v561
        %v826 = vunpack.c.l.b16 %v562
        %v827 = vunpack.c.h.b16 %v562
        %v828 = vunpack.c.l.b16 %v563
        %v829 = vunpack.c.h.b16 %v563
        %v830 = vunpack.c.l.b16 %v564
        %v831 = vunpack.c.h.b16 %v564
        %v832 = vunpack.c.l.b16 %v565
        %v833 = vunpack.c.h.b16 %v565
        %v834 = vunpack.c.l.b16 %v566
        %v835 = vunpack.c.h.b16 %v566
        %v836 = vunpack.c.l.b16 %v567
        %v837 = vunpack.c.h.b16 %v567
        %v838 = vunpack.c.l.b16 %v568
        %v839 = vunpack.c.h.b16 %v568
        %v840 = vunpack.c.l.b16 %v569
        %v841 = vunpack.c.h.b16 %v569
        %v842 = vunpack.c.l.b16 %v570
        %v843 = vunpack.c.h.b16 %v570
        %v844 = vunpack.c.l.b16 %v571
        %v845 = vunpack.c.h.b16 %v571
        %v846 = vunpack.c.l.b16 %v572
        %v847 = vunpack.c.h.b16 %v572
        %v848 = vunpack.c.l.b16 %v573
        %v849 = vunpack.c.h.b16 %v573
        %v850 = vunpack.c.l.b16 %v574
        %v851 = vunpack.c.h.b16 %v574
        %v852 = vunpack.c.l.b16 %v575
        %v853 = vunpack.c.h.b16 %v575
        %v854 = vunpack.c.l.b16 %v576
        %v855 = vunpack.c.h.b16 %v576
        %v856 = vunpack.c.l.b16 %v577
        %v857 = vunpack.c.h.b16 %v577
        %v858 = vunpack.c.l.b16 %v578
        %v859 = vunpack.c.h.b16 %v578
        %v860 = vunpack.c.l.b16 %v579
        %v861 = vunpack.c.h.b16 %v579
        %v862 = vunpack.c.l.b16 %v580
        %v863 = vunpack.c.h.b16 %v580
        %v864 = vunpack.c.l.b16 %v581
        %v865 = vunpack.c.h.b16 %v581
        %v866 = vunpack.c.l.b16 %v582
        %v867 = vunpack.c.h.b16 %v582
        %v868 = vunpack.c.l.b16 %v583
        %v869 = vunpack.c.h.b16 %v583
        %v870 = vunpack.c.l.b16 %v584
        %v871 = vunpack.c.h.b16 %v584
        %v872 = vunpack.c.l.b16 %v585
        %v873 = vunpack.c.h.b16 %v585
        %v874 = vunpack.c.l.b16 %v586
        %v875 = vunpack.c.h.b16 %v586
        %v876 = vunpack.c.l.b16 %v587
        %v877 = vunpack.c.h.b16 %v587
        %v878 = vunpack.c.l.b16 %v588
        %v879 = vunpack.c.h.b16 %v588
        %v880 = vunpack.c.l.b16 %v589
        %v881 = vunpack.c.h.b16 %v589
        %v882 = vunpack.c.l.b16 %v590
        %v883 = vunpack.c.h.b16 %v590
        %v884 = vunpack.c.l.b16 %v591
        %v885 = vunpack.c.h.b16 %v591
        %v886 = vunpack.c.l.b16 %v592
        %v887 = vunpack.c.h.b16 %v592
        %v888 = vunpack.c.l.b16 %v593
        %v889 = vunpack.c.h.b16 %v593
        %v890 = vunpack.c.l.b16 %v594
        %v891 = vunpack.c.h.b16 %v594
        %v892 = vunpack.c.l.b16 %v595
        %v893 = vunpack.c.h.b16 %v595
        %v894 = vunpack.c.l.b16 %v596
        %v895 = vunpack.c.h.b16 %v596
        %v896 = vunpack.c.l.b16 %v597
        %v897 = vunpack.c.h.b16 %v597
        %v898 = vunpack.c.l.b16 %v598
        %v899 = vunpack.c.h.b16 %v598
        %v900 = vunpack.c.l.b16 %v599
        %v901 = vunpack.c.h.b16 %v599
        %v902 = vunpack.c.l.b16 %v600
        %v903 = vunpack.c.h.b16 %v600
        %v904 = vunpack.c.l.b16 %v601
        %v905 = vunpack.c.h.b16 %v601
        %v906 = vunpack.c.l.b16 %v602
        %v907 = vunpack.c.h.b16 %v602
        %v908 = vunpack.c.l.b16 %v603
        %v909 = vunpack.c.h.b16 %v603
        %v910 = vunpack.c.l.b16 %v604
        %v911 = vunpack.c.h.b16 %v604
        %v912 = vunpack.c.l.b16 %v605
        %v913 = vunpack.c.h.b16 %v605
        %v914 = vunpack.c.l.b16 %v606
        %v915 = vunpack.c.h.b16 %v606
        %v916 = vunpack.c.l.b16 %v607
        %v917 = vunpack.c.h.b16 %v607
        %v918 = vunpack.c.l.b16 %v608
        %v919 = vunpack.c.h.b16 %v608
        %v920 = vunpack.c.l.b16 %v609
        %v921 = vunpack.c.h.b16 %v609
        %v922 = vunpack.c.l.b16 %v610
        %v923 = vunpack.c.h.b16 %v610
        %v924 = vunpack.c.l.b16 %v611
        %v925 = vunpack.c.h.b16 %v611
        %v926 = vunpack.c.l.b16 %v612
        %v927 = vunpack.c.h.b16 %v612
        %v928 = vunpack.c.l.b16 %v613
        %v929 = vunpack.c.h.b16 %v613
        %v930 = vunpack.c.l.b16 %v614
        %v931 = vunpack.c.h.b16 %v614
        %v932 = vunpack.c.l.b16 %v615
        %v933 = vunpack.c.h.b16 %v615
        %v934 = vunpack.c.l.b16 %v616
        %v935 = vunpack.c.h.b16 %v616
        %v936 = vunpack.c.l.b16 %v617
        %v937 = vunpack.c.h.b16 %v617
        %v938 = vunpack.c.l.b16 %v618
        %v939 = vunpack.c.h.b16 %v618
        %v940 = vunpack.c.l.b16 %v619
        %v941 = vunpack.c.h.b16 %v619
        %v942 = vunpack.c.l.b16 %v620
        %v943 = vunpack.c.h.b16 %v620
        %v944 = vunpack.c.l.b16 %v621
        %v945 = vunpack.c.h.b16 %v621
        %v946 = vunpack.c.l.b16 %v622
        %v947 = vunpack.c.h.b16 %v622
        %v948 = vunpack.c.l.b16 %v623
        %v949 = vunpack.c.h.b16 %v623
        %v950 = vunpack.c.l.b16 %v624
        %v951 = vunpack.c.h.b16 %v624
        %v952 = vunpack.c.l.b16 %v625
        %v953 = vunpack.c.h.b16 %v625
        %v954 = vunpack.c.l.b16 %v626
        %v955 = vunpack.c.h.b16 %v626
        %v956 = vunpack.c.l.b16 %v627
        %v957 = vunpack.c.h.b16 %v627
        %v958 = vunpack.c.l.b16 %v628
        %v959 = vunpack.c.h.b16 %v628
        %v960 = vunpack.c.l.b16 %v629
        %v961 = vunpack.c.h.b16 %v629
        %v962 = vunpack.c.l.b16 %v630
        %v963 = vunpack.c.h.b16 %v630
        %v964 = vunpack.c.l.b16 %v631
        %v965 = vunpack.c.h.b16 %v631
        %v966 = vunpack.c.l.b16 %v632
        %v967 = vunpack.c.h.b16 %v632
        %v968 = vunpack.c.l.b16 %v633
        %v969 = vunpack.c.h.b16 %v633
        %v970 = vunpack.c.l.b16 %v634
        %v971 = vunpack.c.h.b16 %v634
        %v972 = vunpack.c.l.b16 %v635
        %v973 = vunpack.c.h.b16 %v635
        %v974 = vunpack.c.l.b16 %v636
        %v975 = vunpack.c.h.b16 %v636
        %v976 = vunpack.c.l.b16 %v637
        %v977 = vunpack.c.h.b16 %v637
        %v978 = vunpack.c.l.b16 %v638
        %v979 = vunpack.c.h.b16 %v638
        %v980 = vunpack.c.l.b16 %v639
        %v981 = vunpack.c.h.b16 %v639
        %v982 = vunpack.c.l.b16 %v640
        %v983 = vunpack.c.h.b16 %v640
        %v984 = vunpack.c.l.b16 %v641
        %v985 = vunpack.c.h.b16 %v641
        %v986 = vunpack.c.l.b16 %v642
        %v987 = vunpack.c.h.b16 %v642
        %v988 = vunpack.c.l.b16 %v643
        %v989 = vunpack.c.h.b16 %v643
        %v990 = vunpack.c.l.b16 %v644
        %v991 = vunpack.c.h.b16 %v644
        %v992 = vunpack.c.l.b16 %v645
        %v993 = vunpack.c.h.b16 %v645
        %v994 = vunpack.c.l.b16 %v646
        %v995 = vunpack.c.h.b16 %v646
        %v996 = vunpack.c.l.b16 %v647
        %v997 = vunpack.c.h.b16 %v647
        %v998 = vunpack.c.l.b16 %v648
        %v999 = vunpack.c.h.b16 %v648
        %v1000 = vunpack.c.l.b16 %v649
        %v1001 = vunpack.c.h.b16 %v649
        %v1002 = vunpack.c.l.b16 %v650
        %v1003 = vunpack.c.h.b16 %v650
        %v1004 = vpack.c.b16 %v812, %v780
        %v1005 = vpack.c.b16 %v813, %v781
        %v1006 = vpack.c.b16 %v814, %v782
        %v1007 = vpack.c.b16 %v815, %v783
        %v1008 = vpack.c.b16 %v816, %v784
        %v1009 = vpack.c.b16 %v817, %v785
        %v1010 = vpack.c.b16 %v818, %v786
        %v1011 = vpack.c.b16 %v819, %v787
        %v1012 = vpack.c.b16 %v820, %v788
        %v1013 = vpack.c.b16 %v821, %v789
        %v1014 = vpack.c.b16 %v822, %v790
        %v1015 = vpack.c.b16 %v823, %v791
        %v1016 = vpack.c.b16 %v824, %v792
        %v1017 = vpack.c.b16 %v825, %v793
        %v1018 = vpack.c.b16 %v826, %v794
        %v1019 = vpack.c.b16 %v827, %v795
        %v1020 = vpack.c.b16 %v828, %v796
        %v1021 = vpack.c.b16 %v829, %v797
        %v1022 = vpack.c.b16 %v830, %v798
        %v1023 = vpack.c.b16 %v831, %v799
        %v1024 = vpack.c.b16 %v832, %v800
        %v1025 = vpack.c.b16 %v833, %v801
        %v1026 = vpack.c.b16 %v834, %v802
        %v1027 = vpack.c.b16 %v835, %v803
        %v1028 = vpack.c.b16 %v836, %v804
        %v1029 = vpack.c.b16 %v837, %v805
        %v1030 = vpack.c.b16 %v838, %v806
        %v1031 = vpack.c.b16 %v839, %v807
        %v1032 = vpack.c.b16 %v840, %v808
        %v1033 = vpack.c.b16 %v841, %v809
        %v1034 = vpack.c.b16 %v842, %v810
        %v1035 = vpack.c.b16 %v843, %v811
        %v1036 = vpack.c.b16 %v876, %v844
        %v1037 = vpack.c.b16 %v877, %v845
        %v1038 = vpack.c.b16 %v878, %v846
        %v1039 = vpack.c.b16 %v879, %v847
        %v1040 = vpack.c.b16 %v880, %v848
        %v1041 = vpack.c.b16 %v881, %v849
        %v1042 = vpack.c.b16 %v882, %v850
        %v1043 = vpack.c.b16 %v883, %v851
        %v1044 = vpack.c.b16 %v884, %v852
        %v1045 = vpack.c.b16 %v885, %v853
        %v1046 = vpack.c.b16 %v886, %v854
        %v1047 = vpack.c.b16 %v887, %v855
        %v1048 = vpack.c.b16 %v888, %v856
        %v1049 = vpack.c.b16 %v889, %v857
        %v1050 = vpack.c.b16 %v890, %v858
        %v1051 = vpack.c.b16 %v891, %v859
        %v1052 = vpack.c.b16 %v892, %v860
        %v1053 = vpack.c.b16 %v893, %v861
        %v1054 = vpack.c.b16 %v894, %v862
        %v1055 = vpack.c.b16 %v895, %v863
        %v1056 = vpack.c.b16 %v896, %v864
        %v1057 = vpack.c.b16 %v897, %v865
        %v1058 = vpack.c.b16 %v898, %v866
        %v1059 = vpack.c.b16 %v899, %v867
        %v1060 = vpack.c.b16 %v900, %v868
        %v1061 = vpack.c.b16 %v901, %v869
        %v1062 = vpack.c.b16 %v902, %v870
        %v1063 = vpack.c.b16 %v903, %v871
        %v1064 = vpack.c.b16 %v904, %v872
        %v1065 = vpack.c.b16 %v905, %v873
        %v1066 = vpack.c.b16 %v906, %v874
        %v1067 = vpack.c.b16 %v907, %v875
        %v1068 = vpack.c.b16 %v940, %v908
        %v1069 = vpack.c.b16 %v941, %v909
        %v1070 = vpack.c.b16 %v942, %v910
        %v1071 = vpack.c.b16 %v943, %v911
        %v1072 = vpack.c.b16 %v944, %v912
        %v1073 = vpack.c.b16 %v945, %v913
        %v1074 = vpack.c.b16 %v946, %v914
        %v1075 = vpack.c.b16 %v947, %v915
        %v1076 = vpack.c.b16 %v948, %v916
        %v1077 = vpack.c.b16 %v949, %v917
        %v1078 = vpack.c.b16 %v950, %v918
        %v1079 = vpack.c.b16 %v951, %v919
        %v1080 = vpack.c.b16 %v952, %v920
        %v1081 = vpack.c.b16 %v953, %v921
        %v1082 = vpack.c.b16 %v954, %v922
        %v1083 = vpack.c.b16 %v955, %v923
        %v1084 = vpack.c.b16 %v956, %v924
        %v1085 = vpack.c.b16 %v957, %v925
        %v1086 = vpack.c.b16 %v958, %v926
        %v1087 = vpack.c.b16 %v959, %v927
        %v1088 = vpack.c.b16 %v960, %v928
        %v1089 = vpack.c.b16 %v961, %v929
        %v1090 = vpack.c.b16 %v962, %v930
        %v1091 = vpack.c.b16 %v963, %v931
        %v1092 = vpack.c.b16 %v964, %v932
        %v1093 = vpack.c.b16 %v965, %v933
        %v1094 = vpack.c.b16 %v966, %v934
        %v1095 = vpack.c.b16 %v967, %v935
        %v1096 = vpack.c.b16 %v968, %v936
        %v1097 = vpack.c.b16 %v969, %v937
        %v1098 = vpack.c.b16 %v970, %v938
        %v1099 = vpack.c.b16 %v971, %v939
        %v1100 = vpack.c.b16 %v972, %v972
        %v1101 = vpack.c.b16 %v973, %v973
        %v1102 = vpack.c.b16 %v974, %v974
        %v1103 = vpack.c.b16 %v975, %v975
        %v1104 = vpack.c.b16 %v976, %v976
        %v1105 = vpack.c.b16 %v977, %v977
        %v1106 = vpack.c.b16 %v978, %v978
        %v1107 = vpack.c.b16 %v979, %v979
        %v1108 = vpack.c.b16 %v980, %v980
        %v1109 = vpack.c.b16 %v981, %v981
        %v1110 = vpack.c.b16 %v982, %v982
        %v1111 = vpack.c.b16 %v983, %v983
        %v1112 = vpack.c.b16 %v984, %v984
        %v1113 = vpack.c.b16 %v985, %v985
        %v1114 = vpack.c.b16 %v986, %v986
        %v1115 = vpack.c.b16 %v987, %v987
        %v1116 = vpack.c.b16 %v988, %v988
        %v1117 = vpack.c.b16 %v989, %v989
        %v1118 = vpack.c.b16 %v990, %v990
        %v1119 = vpack.c.b16 %v991, %v991
        %v1120 = vpack.c.b16 %v992, %v992
        %v1121 = vpack.c.b16 %v993, %v993
        %v1122 = vpack.c.b16 %v994, %v994
        %v1123 = vpack.c.b16 %v995, %v995
        %v1124 = vpack.c.b16 %v996, %v996
        %v1125 = vpack.c.b16 %v997, %v997
        %v1126 = vpack.c.b16 %v998, %v998
        %v1127 = vpack.c.b16 %v999, %v999
        %v1128 = vpack.c.b16 %v1000, %v1000
        %v1129 = vpack.c.b16 %v1001, %v1001
        %v1130 = vpack.c.b16 %v1002, %v1002
        %v1131 = vpack.c.b16 %v1003, %v1003
        %vm1228 = vcmask 441344
        %v1230 = vsel %vm1228, %v667, 0
        %vm1232 = vcmask 1042432
        %v1234 = vsel %vm1232, %v1100, 0
        %v1237 = vsel %vm1232, %v1101, 0
        %v1240 = vsel %vm1232, %v1102, 0
        %v1243 = vsel %vm1232, %v1103, 0
        %v1246 = vsel %vm1232, %v1104, 0
        %v1249 = vsel %vm1232, %v1105, 0
        %v1252 = vsel %vm1232, %v1106, 0
        %v1255 = vsel %vm1232, %v1107, 0
        %v1258 = vsel %vm1232, %v1108, 0
        %v1261 = vsel %vm1232, %v1109, 0
        %v1264 = vsel %vm1232, %v1110, 0
        %v1267 = vsel %vm1232, %v1111, 0
        %v1270 = vsel %vm1232, %v1112, 0
        %v1273 = vsel %vm1232, %v1113, 0
        %v1276 = vsel %vm1232, %v1114, 0
        %v1279 = vsel %vm1232, %v1115, 0
        %v1282 = vsel %vm1232, %v1116, 0
        %v1285 = vsel %vm1232, %v1117, 0
        %v1288 = vsel %vm1232, %v1118, 0
        %v1291 = vsel %vm1232, %v1119, 0
        %v1294 = vsel %vm1232, %v1120, 0
        %v1297 = vsel %vm1232, %v1121, 0
        %v1300 = vsel %vm1232, %v1122, 0
        %v1303 = vsel %vm1232, %v1123, 0
        %v1306 = vsel %vm1232, %v1124, 0
        %v1309 = vsel %vm1232, %v1125, 0
        %v1312 = vsel %vm1232, %v1126, 0
        %v1315 = vsel %vm1232, %v1127, 0
        %v1318 = vsel %vm1232, %v1128, 0
        %v1321 = vsel %vm1232, %v1129, 0
        %v1324 = vsel %vm1232, %v1130, 0
        %v1327 = vsel %vm1232, %v1131, 0
        %1329 = vmatpush.bf16.msra.mxu0 0
        %1330 = vmatpush.bf16.msra.mxu0 0
        %1331 = vmatpush.bf16.msra.mxu0 0
        %1332 = vmatpush.bf16.msra.mxu0 0
        %1333 = vmatpush.bf16.msra.mxu0 %v1234
        %1334 = vmatpush.bf16.msra.mxu0 %v1068
        %1335 = vmatpush.bf16.msra.mxu0 %v1036
        %1336 = vmatpush.bf16.msra.mxu0 %v1004
        %1337 = vmatmul.bf16.gmra.mxu0 %v1230
        %v1338 = vpop.f32.mrf.mxu0
        %v1339 = vadd.f32 %v656, %v1338
        %v1340 = vpop.f32.mrf.mxu0
        %v1341 = vadd.f32 %v661, %v1340
        %1342 = vdwg.mxu0
        %1343 = vmatpush.bf16.msra.mxu0 0
        %1344 = vmatpush.bf16.msra.mxu0 0
        %1345 = vmatpush.bf16.msra.mxu0 0
        %1346 = vmatpush.bf16.msra.mxu0 0
        %1347 = vmatpush.bf16.msra.mxu0 %v1237
        %1348 = vmatpush.bf16.msra.mxu0 %v1069
        %1349 = vmatpush.bf16.msra.mxu0 %v1037
        %1350 = vmatpush.bf16.msra.mxu0 %v1005
        %1351 = vmatmul.bf16.gmra.mxu0 %v1230
        %v1352 = vpop.f32.mrf.mxu0
        %v1353 = vadd.f32 %v656, %v1352
        %v1354 = vpop.f32.mrf.mxu0
        %v1355 = vadd.f32 %v661, %v1354
        %1356 = vdwg.mxu0
        %1357 = vmatpush.bf16.msra.mxu0 0
        %1358 = vmatpush.bf16.msra.mxu0 0
        %1359 = vmatpush.bf16.msra.mxu0 0
        %1360 = vmatpush.bf16.msra.mxu0 0
        %1361 = vmatpush.bf16.msra.mxu0 %v1240
        %1362 = vmatpush.bf16.msra.mxu0 %v1070
        %1363 = vmatpush.bf16.msra.mxu0 %v1038
        %1364 = vmatpush.bf16.msra.mxu0 %v1006
        %1365 = vmatmul.bf16.gmra.mxu0 %v1230
        %v1366 = vpop.f32.mrf.mxu0
        %v1367 = vadd.f32 %v656, %v1366
        %v1368 = vpop.f32.mrf.mxu0
        %v1369 = vadd.f32 %v661, %v1368
        %1370 = vdwg.mxu0
        %1371 = vmatpush.bf16.msra.mxu0 0
        %1372 = vmatpush.bf16.msra.mxu0 0
        %1373 = vmatpush.bf16.msra.mxu0 0
        %1374 = vmatpush.bf16.msra.mxu0 0
        %1375 = vmatpush.bf16.msra.mxu0 %v1243
        %1376 = vmatpush.bf16.msra.mxu0 %v1071
        %1377 = vmatpush.bf16.msra.mxu0 %v1039
        %1378 = vmatpush.bf16.msra.mxu0 %v1007
        %1379 = vmatmul.bf16.gmra.mxu0 %v1230
        %v1380 = vpop.f32.mrf.mxu0
        %v1381 = vadd.f32 %v656, %v1380
        %v1382 = vpop.f32.mrf.mxu0
        %v1383 = vadd.f32 %v661, %v1382
        %1384 = vdwg.mxu0
        %1385 = vmatpush.bf16.msra.mxu0 0
        %1386 = vmatpush.bf16.msra.mxu0 0
        %1387 = vmatpush.bf16.msra.mxu0 0
        %1388 = vmatpush.bf16.msra.mxu0 0
        %1389 = vmatpush.bf16.msra.mxu0 %v1246
        %1390 = vmatpush.bf16.msra.mxu0 %v1072
        %1391 = vmatpush.bf16.msra.mxu0 %v1040
        %1392 = vmatpush.bf16.msra.mxu0 %v1008
        %1393 = vmatmul.bf16.gmra.mxu0 %v1230
        %v1394 = vpop.f32.mrf.mxu0
        %v1395 = vadd.f32 %v656, %v1394
        %v1396 = vpop.f32.mrf.mxu0
        %v1397 = vadd.f32 %v661, %v1396
        %1398 = vdwg.mxu0
        %1399 = vmatpush.bf16.msra.mxu0 0
        %1400 = vmatpush.bf16.msra.mxu0 0
        %1401 = vmatpush.bf16.msra.mxu0 0
        %1402 = vmatpush.bf16.msra.mxu0 0
        %1403 = vmatpush.bf16.msra.mxu0 %v1249
        %1404 = vmatpush.bf16.msra.mxu0 %v1073
        %1405 = vmatpush.bf16.msra.mxu0 %v1041
        %1406 = vmatpush.bf16.msra.mxu0 %v1009
        %1407 = vmatmul.bf16.gmra.mxu0 %v1230
        %v1408 = vpop.f32.mrf.mxu0
        %v1409 = vadd.f32 %v656, %v1408
        %v1410 = vpop.f32.mrf.mxu0
        %v1411 = vadd.f32 %v661, %v1410
        %1412 = vdwg.mxu0
        %1413 = vmatpush.bf16.msra.mxu0 0
        %1414 = vmatpush.bf16.msra.mxu0 0
        %1415 = vmatpush.bf16.msra.mxu0 0
        %1416 = vmatpush.bf16.msra.mxu0 0
        %1417 = vmatpush.bf16.msra.mxu0 %v1252
        %1418 = vmatpush.bf16.msra.mxu0 %v1074
        %1419 = vmatpush.bf16.msra.mxu0 %v1042
        %1420 = vmatpush.bf16.msra.mxu0 %v1010
        %1421 = vmatmul.bf16.gmra.mxu0 %v1230
        %v1422 = vpop.f32.mrf.mxu0
        %v1423 = vadd.f32 %v656, %v1422
        %v1424 = vpop.f32.mrf.mxu0
        %v1425 = vadd.f32 %v661, %v1424
        %1426 = vdwg.mxu0
        %1427 = vmatpush.bf16.msra.mxu0 0
        %1428 = vmatpush.bf16.msra.mxu0 0
        %1429 = vmatpush.bf16.msra.mxu0 0
        %1430 = vmatpush.bf16.msra.mxu0 0
        %1431 = vmatpush.bf16.msra.mxu0 %v1255
        %1432 = vmatpush.bf16.msra.mxu0 %v1075
        %1433 = vmatpush.bf16.msra.mxu0 %v1043
        %1434 = vmatpush.bf16.msra.mxu0 %v1011
        %1435 = vmatmul.bf16.gmra.mxu0 %v1230
        %v1436 = vpop.f32.mrf.mxu0
        %v1437 = vadd.f32 %v656, %v1436
        %v1438 = vpop.f32.mrf.mxu0
        %v1439 = vadd.f32 %v661, %v1438
        %1440 = vdwg.mxu0
        %1441 = vmatpush.bf16.msra.mxu0 0
        %1442 = vmatpush.bf16.msra.mxu0 0
        %1443 = vmatpush.bf16.msra.mxu0 0
        %1444 = vmatpush.bf16.msra.mxu0 0
        %1445 = vmatpush.bf16.msra.mxu0 %v1258
        %1446 = vmatpush.bf16.msra.mxu0 %v1076
        %1447 = vmatpush.bf16.msra.mxu0 %v1044
        %1448 = vmatpush.bf16.msra.mxu0 %v1012
        %1449 = vmatmul.bf16.gmra.mxu0 %v1230
        %v1450 = vpop.f32.mrf.mxu0
        %v1451 = vadd.f32 %v656, %v1450
        %v1452 = vpop.f32.mrf.mxu0
        %v1453 = vadd.f32 %v661, %v1452
        %1454 = vdwg.mxu0
        %1455 = vmatpush.bf16.msra.mxu0 0
        %1456 = vmatpush.bf16.msra.mxu0 0
        %1457 = vmatpush.bf16.msra.mxu0 0
        %1458 = vmatpush.bf16.msra.mxu0 0
        %1459 = vmatpush.bf16.msra.mxu0 %v1261
        %1460 = vmatpush.bf16.msra.mxu0 %v1077
        %1461 = vmatpush.bf16.msra.mxu0 %v1045
        %1462 = vmatpush.bf16.msra.mxu0 %v1013
        %1463 = vmatmul.bf16.gmra.mxu0 %v1230
        %v1464 = vpop.f32.mrf.mxu0
        %v1465 = vadd.f32 %v656, %v1464
        %v1466 = vpop.f32.mrf.mxu0
        %v1467 = vadd.f32 %v661, %v1466
        %1468 = vdwg.mxu0
        %1469 = vmatpush.bf16.msra.mxu0 0
        %1470 = vmatpush.bf16.msra.mxu0 0
        %1471 = vmatpush.bf16.msra.mxu0 0
        %1472 = vmatpush.bf16.msra.mxu0 0
        %1473 = vmatpush.bf16.msra.mxu0 %v1264
        %1474 = vmatpush.bf16.msra.mxu0 %v1078
        %1475 = vmatpush.bf16.msra.mxu0 %v1046
        %1476 = vmatpush.bf16.msra.mxu0 %v1014
        %1477 = vmatmul.bf16.gmra.mxu0 %v1230
        %v1478 = vpop.f32.mrf.mxu0
        %v1479 = vadd.f32 %v656, %v1478
        %v1480 = vpop.f32.mrf.mxu0
        %v1481 = vadd.f32 %v661, %v1480
        %1482 = vdwg.mxu0
        %1483 = vmatpush.bf16.msra.mxu0 0
        %1484 = vmatpush.bf16.msra.mxu0 0
        %1485 = vmatpush.bf16.msra.mxu0 0
        %1486 = vmatpush.bf16.msra.mxu0 0
        %1487 = vmatpush.bf16.msra.mxu0 %v1267
        %1488 = vmatpush.bf16.msra.mxu0 %v1079
        %1489 = vmatpush.bf16.msra.mxu0 %v1047
        %1490 = vmatpush.bf16.msra.mxu0 %v1015
        %1491 = vmatmul.bf16.gmra.mxu0 %v1230
        %v1492 = vpop.f32.mrf.mxu0
        %v1493 = vadd.f32 %v656, %v1492
        %v1494 = vpop.f32.mrf.mxu0
        %v1495 = vadd.f32 %v661, %v1494
        %1496 = vdwg.mxu0
        %1497 = vmatpush.bf16.msra.mxu0 0
        %1498 = vmatpush.bf16.msra.mxu0 0
        %1499 = vmatpush.bf16.msra.mxu0 0
        %1500 = vmatpush.bf16.msra.mxu0 0
        %1501 = vmatpush.bf16.msra.mxu0 %v1270
        %1502 = vmatpush.bf16.msra.mxu0 %v1080
        %1503 = vmatpush.bf16.msra.mxu0 %v1048
        %1504 = vmatpush.bf16.msra.mxu0 %v1016
        %1505 = vmatmul.bf16.gmra.mxu0 %v1230
        %v1506 = vpop.f32.mrf.mxu0
        %v1507 = vadd.f32 %v656, %v1506
        %v1508 = vpop.f32.mrf.mxu0
        %v1509 = vadd.f32 %v661, %v1508
        %1510 = vdwg.mxu0
        %1511 = vmatpush.bf16.msra.mxu0 0
        %1512 = vmatpush.bf16.msra.mxu0 0
        %1513 = vmatpush.bf16.msra.mxu0 0
        %1514 = vmatpush.bf16.msra.mxu0 0
        %1515 = vmatpush.bf16.msra.mxu0 %v1273
        %1516 = vmatpush.bf16.msra.mxu0 %v1081
        %1517 = vmatpush.bf16.msra.mxu0 %v1049
        %1518 = vmatpush.bf16.msra.mxu0 %v1017
        %1519 = vmatmul.bf16.gmra.mxu0 %v1230
        %v1520 = vpop.f32.mrf.mxu0
        %v1521 = vadd.f32 %v656, %v1520
        %v1522 = vpop.f32.mrf.mxu0
        %v1523 = vadd.f32 %v661, %v1522
        %1524 = vdwg.mxu0
        %1525 = vmatpush.bf16.msra.mxu0 0
        %1526 = vmatpush.bf16.msra.mxu0 0
        %1527 = vmatpush.bf16.msra.mxu0 0
        %1528 = vmatpush.bf16.msra.mxu0 0
        %1529 = vmatpush.bf16.msra.mxu0 %v1276
        %1530 = vmatpush.bf16.msra.mxu0 %v1082
        %1531 = vmatpush.bf16.msra.mxu0 %v1050
        %1532 = vmatpush.bf16.msra.mxu0 %v1018
        %1533 = vmatmul.bf16.gmra.mxu0 %v1230
        %v1534 = vpop.f32.mrf.mxu0
        %v1535 = vadd.f32 %v656, %v1534
        %v1536 = vpop.f32.mrf.mxu0
        %v1537 = vadd.f32 %v661, %v1536
        %1538 = vdwg.mxu0
        %1539 = vmatpush.bf16.msra.mxu0 0
        %1540 = vmatpush.bf16.msra.mxu0 0
        %1541 = vmatpush.bf16.msra.mxu0 0
        %1542 = vmatpush.bf16.msra.mxu0 0
        %1543 = vmatpush.bf16.msra.mxu0 %v1279
        %1544 = vmatpush.bf16.msra.mxu0 %v1083
        %1545 = vmatpush.bf16.msra.mxu0 %v1051
        %1546 = vmatpush.bf16.msra.mxu0 %v1019
        %1547 = vmatmul.bf16.gmra.mxu0 %v1230
        %v1548 = vpop.f32.mrf.mxu0
        %v1549 = vadd.f32 %v656, %v1548
        %v1550 = vpop.f32.mrf.mxu0
        %v1551 = vadd.f32 %v661, %v1550
        %1552 = vdwg.mxu0
        %1553 = vmatpush.bf16.msra.mxu0 0
        %1554 = vmatpush.bf16.msra.mxu0 0
        %1555 = vmatpush.bf16.msra.mxu0 0
        %1556 = vmatpush.bf16.msra.mxu0 0
        %1557 = vmatpush.bf16.msra.mxu0 %v1282
        %1558 = vmatpush.bf16.msra.mxu0 %v1084
        %1559 = vmatpush.bf16.msra.mxu0 %v1052
        %1560 = vmatpush.bf16.msra.mxu0 %v1020
        %1561 = vmatmul.bf16.gmra.mxu0 %v1230
        %v1562 = vpop.f32.mrf.mxu0
        %v1563 = vadd.f32 %v656, %v1562
        %v1564 = vpop.f32.mrf.mxu0
        %v1565 = vadd.f32 %v661, %v1564
        %1566 = vdwg.mxu0
        %1567 = vmatpush.bf16.msra.mxu0 0
        %1568 = vmatpush.bf16.msra.mxu0 0
        %1569 = vmatpush.bf16.msra.mxu0 0
        %1570 = vmatpush.bf16.msra.mxu0 0
        %1571 = vmatpush.bf16.msra.mxu0 %v1285
        %1572 = vmatpush.bf16.msra.mxu0 %v1085
        %1573 = vmatpush.bf16.msra.mxu0 %v1053
        %1574 = vmatpush.bf16.msra.mxu0 %v1021
        %1575 = vmatmul.bf16.gmra.mxu0 %v1230
        %v1576 = vpop.f32.mrf.mxu0
        %v1577 = vadd.f32 %v656, %v1576
        %v1578 = vpop.f32.mrf.mxu0
        %v1579 = vadd.f32 %v661, %v1578
        %1580 = vdwg.mxu0
        %1581 = vmatpush.bf16.msra.mxu0 0
        %1582 = vmatpush.bf16.msra.mxu0 0
        %1583 = vmatpush.bf16.msra.mxu0 0
        %1584 = vmatpush.bf16.msra.mxu0 0
        %1585 = vmatpush.bf16.msra.mxu0 %v1288
        %1586 = vmatpush.bf16.msra.mxu0 %v1086
        %1587 = vmatpush.bf16.msra.mxu0 %v1054
        %1588 = vmatpush.bf16.msra.mxu0 %v1022
        %1589 = vmatmul.bf16.gmra.mxu0 %v1230
        %v1590 = vpop.f32.mrf.mxu0
        %v1591 = vadd.f32 %v656, %v1590
        %v1592 = vpop.f32.mrf.mxu0
        %v1593 = vadd.f32 %v661, %v1592
        %1594 = vdwg.mxu0
        %1595 = vmatpush.bf16.msra.mxu0 0
        %1596 = vmatpush.bf16.msra.mxu0 0
        %1597 = vmatpush.bf16.msra.mxu0 0
        %1598 = vmatpush.bf16.msra.mxu0 0
        %1599 = vmatpush.bf16.msra.mxu0 %v1291
        %1600 = vmatpush.bf16.msra.mxu0 %v1087
        %1601 = vmatpush.bf16.msra.mxu0 %v1055
        %1602 = vmatpush.bf16.msra.mxu0 %v1023
        %1603 = vmatmul.bf16.gmra.mxu0 %v1230
        %v1604 = vpop.f32.mrf.mxu0
        %v1605 = vadd.f32 %v656, %v1604
        %v1606 = vpop.f32.mrf.mxu0
        %v1607 = vadd.f32 %v661, %v1606
        %1608 = vdwg.mxu0
        %1609 = vmatpush.bf16.msra.mxu0 0
        %1610 = vmatpush.bf16.msra.mxu0 0
        %1611 = vmatpush.bf16.msra.mxu0 0
        %1612 = vmatpush.bf16.msra.mxu0 0
        %1613 = vmatpush.bf16.msra.mxu0 %v1294
        %1614 = vmatpush.bf16.msra.mxu0 %v1088
        %1615 = vmatpush.bf16.msra.mxu0 %v1056
        %1616 = vmatpush.bf16.msra.mxu0 %v1024
        %1617 = vmatmul.bf16.gmra.mxu0 %v1230
        %v1618 = vpop.f32.mrf.mxu0
        %v1619 = vadd.f32 %v656, %v1618
        %v1620 = vpop.f32.mrf.mxu0
        %v1621 = vadd.f32 %v661, %v1620
        %1622 = vdwg.mxu0
        %1623 = vmatpush.bf16.msra.mxu0 0
        %1624 = vmatpush.bf16.msra.mxu0 0
        %1625 = vmatpush.bf16.msra.mxu0 0
        %1626 = vmatpush.bf16.msra.mxu0 0
        %1627 = vmatpush.bf16.msra.mxu0 %v1297
        %1628 = vmatpush.bf16.msra.mxu0 %v1089
        %1629 = vmatpush.bf16.msra.mxu0 %v1057
        %1630 = vmatpush.bf16.msra.mxu0 %v1025
        %1631 = vmatmul.bf16.gmra.mxu0 %v1230
        %v1632 = vpop.f32.mrf.mxu0
        %v1633 = vadd.f32 %v656, %v1632
        %v1634 = vpop.f32.mrf.mxu0
        %v1635 = vadd.f32 %v661, %v1634
        %1636 = vdwg.mxu0
        %1637 = vmatpush.bf16.msra.mxu0 0
        %1638 = vmatpush.bf16.msra.mxu0 0
        %1639 = vmatpush.bf16.msra.mxu0 0
        %1640 = vmatpush.bf16.msra.mxu0 0
        %1641 = vmatpush.bf16.msra.mxu0 %v1300
        %1642 = vmatpush.bf16.msra.mxu0 %v1090
        %1643 = vmatpush.bf16.msra.mxu0 %v1058
        %1644 = vmatpush.bf16.msra.mxu0 %v1026
        %1645 = vmatmul.bf16.gmra.mxu0 %v1230
        %v1646 = vpop.f32.mrf.mxu0
        %v1647 = vadd.f32 %v656, %v1646
        %v1648 = vpop.f32.mrf.mxu0
        %v1649 = vadd.f32 %v661, %v1648
        %1650 = vdwg.mxu0
        %1651 = vmatpush.bf16.msra.mxu0 0
        %1652 = vmatpush.bf16.msra.mxu0 0
        %1653 = vmatpush.bf16.msra.mxu0 0
        %1654 = vmatpush.bf16.msra.mxu0 0
        %1655 = vmatpush.bf16.msra.mxu0 %v1303
        %1656 = vmatpush.bf16.msra.mxu0 %v1091
        %1657 = vmatpush.bf16.msra.mxu0 %v1059
        %1658 = vmatpush.bf16.msra.mxu0 %v1027
        %1659 = vmatmul.bf16.gmra.mxu0 %v1230
        %v1660 = vpop.f32.mrf.mxu0
        %v1661 = vadd.f32 %v656, %v1660
        %v1662 = vpop.f32.mrf.mxu0
        %v1663 = vadd.f32 %v661, %v1662
        %1664 = vdwg.mxu0
        %1665 = vmatpush.bf16.msra.mxu0 0
        %1666 = vmatpush.bf16.msra.mxu0 0
        %1667 = vmatpush.bf16.msra.mxu0 0
        %1668 = vmatpush.bf16.msra.mxu0 0
        %1669 = vmatpush.bf16.msra.mxu0 %v1306
        %1670 = vmatpush.bf16.msra.mxu0 %v1092
        %1671 = vmatpush.bf16.msra.mxu0 %v1060
        %1672 = vmatpush.bf16.msra.mxu0 %v1028
        %1673 = vmatmul.bf16.gmra.mxu0 %v1230
        %v1674 = vpop.f32.mrf.mxu0
        %v1675 = vadd.f32 %v656, %v1674
        %v1676 = vpop.f32.mrf.mxu0
        %v1677 = vadd.f32 %v661, %v1676
        %1678 = vdwg.mxu0
        %1679 = vmatpush.bf16.msra.mxu0 0
        %1680 = vmatpush.bf16.msra.mxu0 0
        %1681 = vmatpush.bf16.msra.mxu0 0
        %1682 = vmatpush.bf16.msra.mxu0 0
        %1683 = vmatpush.bf16.msra.mxu0 %v1309
        %1684 = vmatpush.bf16.msra.mxu0 %v1093
        %1685 = vmatpush.bf16.msra.mxu0 %v1061
        %1686 = vmatpush.bf16.msra.mxu0 %v1029
        %1687 = vmatmul.bf16.gmra.mxu0 %v1230
        %v1688 = vpop.f32.mrf.mxu0
        %v1689 = vadd.f32 %v656, %v1688
        %v1690 = vpop.f32.mrf.mxu0
        %v1691 = vadd.f32 %v661, %v1690
        %1692 = vdwg.mxu0
        %1693 = vmatpush.bf16.msra.mxu0 0
        %1694 = vmatpush.bf16.msra.mxu0 0
        %1695 = vmatpush.bf16.msra.mxu0 0
        %1696 = vmatpush.bf16.msra.mxu0 0
        %1697 = vmatpush.bf16.msra.mxu0 %v1312
        %1698 = vmatpush.bf16.msra.mxu0 %v1094
        %1699 = vmatpush.bf16.msra.mxu0 %v1062
        %1700 = vmatpush.bf16.msra.mxu0 %v1030
        %1701 = vmatmul.bf16.gmra.mxu0 %v1230
        %v1702 = vpop.f32.mrf.mxu0
        %v1703 = vadd.f32 %v656, %v1702
        %v1704 = vpop.f32.mrf.mxu0
        %v1705 = vadd.f32 %v661, %v1704
        %1706 = vdwg.mxu0
        %1707 = vmatpush.bf16.msra.mxu0 0
        %1708 = vmatpush.bf16.msra.mxu0 0
        %1709 = vmatpush.bf16.msra.mxu0 0
        %1710 = vmatpush.bf16.msra.mxu0 0
        %1711 = vmatpush.bf16.msra.mxu0 %v1315
        %1712 = vmatpush.bf16.msra.mxu0 %v1095
        %1713 = vmatpush.bf16.msra.mxu0 %v1063
        %1714 = vmatpush.bf16.msra.mxu0 %v1031
        %1715 = vmatmul.bf16.gmra.mxu0 %v1230
        %v1716 = vpop.f32.mrf.mxu0
        %v1717 = vadd.f32 %v656, %v1716
        %v1718 = vpop.f32.mrf.mxu0
        %v1719 = vadd.f32 %v661, %v1718
        %1720 = vdwg.mxu0
        %1721 = vmatpush.bf16.msra.mxu0 0
        %1722 = vmatpush.bf16.msra.mxu0 0
        %1723 = vmatpush.bf16.msra.mxu0 0
        %1724 = vmatpush.bf16.msra.mxu0 0
        %1725 = vmatpush.bf16.msra.mxu0 %v1318
        %1726 = vmatpush.bf16.msra.mxu0 %v1096
        %1727 = vmatpush.bf16.msra.mxu0 %v1064
        %1728 = vmatpush.bf16.msra.mxu0 %v1032
        %1729 = vmatmul.bf16.gmra.mxu0 %v1230
        %v1730 = vpop.f32.mrf.mxu0
        %v1731 = vadd.f32 %v656, %v1730
        %v1732 = vpop.f32.mrf.mxu0
        %v1733 = vadd.f32 %v661, %v1732
        %1734 = vdwg.mxu0
        %1735 = vmatpush.bf16.msra.mxu0 0
        %1736 = vmatpush.bf16.msra.mxu0 0
        %1737 = vmatpush.bf16.msra.mxu0 0
        %1738 = vmatpush.bf16.msra.mxu0 0
        %1739 = vmatpush.bf16.msra.mxu0 %v1321
        %1740 = vmatpush.bf16.msra.mxu0 %v1097
        %1741 = vmatpush.bf16.msra.mxu0 %v1065
        %1742 = vmatpush.bf16.msra.mxu0 %v1033
        %1743 = vmatmul.bf16.gmra.mxu0 %v1230
        %v1744 = vpop.f32.mrf.mxu0
        %v1745 = vadd.f32 %v656, %v1744
        %v1746 = vpop.f32.mrf.mxu0
        %v1747 = vadd.f32 %v661, %v1746
        %1748 = vdwg.mxu0
        %1749 = vmatpush.bf16.msra.mxu0 0
        %1750 = vmatpush.bf16.msra.mxu0 0
        %1751 = vmatpush.bf16.msra.mxu0 0
        %1752 = vmatpush.bf16.msra.mxu0 0
        %1753 = vmatpush.bf16.msra.mxu0 %v1324
        %1754 = vmatpush.bf16.msra.mxu0 %v1098
        %1755 = vmatpush.bf16.msra.mxu0 %v1066
        %1756 = vmatpush.bf16.msra.mxu0 %v1034
        %1757 = vmatmul.bf16.gmra.mxu0 %v1230
        %v1758 = vpop.f32.mrf.mxu0
        %v1759 = vadd.f32 %v656, %v1758
        %v1760 = vpop.f32.mrf.mxu0
        %v1761 = vadd.f32 %v661, %v1760
        %1762 = vdwg.mxu0
        %1763 = vmatpush.bf16.msra.mxu0 0
        %1764 = vmatpush.bf16.msra.mxu0 0
        %1765 = vmatpush.bf16.msra.mxu0 0
        %1766 = vmatpush.bf16.msra.mxu0 0
        %1767 = vmatpush.bf16.msra.mxu0 %v1327
        %1768 = vmatpush.bf16.msra.mxu0 %v1099
        %1769 = vmatpush.bf16.msra.mxu0 %v1067
        %1770 = vmatpush.bf16.msra.mxu0 %v1035
        %1771 = vmatmul.bf16.gmra.mxu0 %v1230
        %v1772 = vpop.f32.mrf.mxu0
        %v1773 = vadd.f32 %v656, %v1772
        %v1774 = vpop.f32.mrf.mxu0
        %v1775 = vadd.f32 %v661, %v1774
        %1776 = vdwg.mxu0
        %v1777 = vtanh.pop %v1339
        %v1778 = vtanh.pop %v1353
        %v1779 = vtanh.pop %v1367
        %v1780 = vtanh.pop %v1381
        %v1781 = vtanh.pop %v1395
        %v1782 = vtanh.pop %v1409
        %v1783 = vtanh.pop %v1423
        %v1784 = vtanh.pop %v1437
        %v1785 = vtanh.pop %v1451
        %v1786 = vtanh.pop %v1465
        %v1787 = vtanh.pop %v1479
        %v1788 = vtanh.pop %v1493
        %v1789 = vtanh.pop %v1507
        %v1790 = vtanh.pop %v1521
        %v1791 = vtanh.pop %v1535
        %v1792 = vtanh.pop %v1549
        %v1793 = vtanh.pop %v1563
        %v1794 = vtanh.pop %v1577
        %v1795 = vtanh.pop %v1591
        %v1796 = vtanh.pop %v1605
        %v1797 = vtanh.pop %v1619
        %v1798 = vtanh.pop %v1633
        %v1799 = vtanh.pop %v1647
        %v1800 = vtanh.pop %v1661
        %v1801 = vtanh.pop %v1675
        %v1802 = vtanh.pop %v1689
        %v1803 = vtanh.pop %v1703
        %v1804 = vtanh.pop %v1717
        %v1805 = vtanh.pop %v1731
        %v1806 = vtanh.pop %v1745
        %v1807 = vtanh.pop %v1759
        %v1808 = vtanh.pop %v1773
        %v1809 = vtanh.pop %v1341
        %v1810 = vtanh.pop %v1355
        %v1811 = vtanh.pop %v1369
        %v1812 = vtanh.pop %v1383
        %v1813 = vtanh.pop %v1397
        %v1814 = vtanh.pop %v1411
        %v1815 = vtanh.pop %v1425
        %v1816 = vtanh.pop %v1439
        %v1817 = vtanh.pop %v1453
        %v1818 = vtanh.pop %v1467
        %v1819 = vtanh.pop %v1481
        %v1820 = vtanh.pop %v1495
        %v1821 = vtanh.pop %v1509
        %v1822 = vtanh.pop %v1523
        %v1823 = vtanh.pop %v1537
        %v1824 = vtanh.pop %v1551
        %v1825 = vtanh.pop %v1565
        %v1826 = vtanh.pop %v1579
        %v1827 = vtanh.pop %v1593
        %v1828 = vtanh.pop %v1607
        %v1829 = vtanh.pop %v1621
        %v1830 = vtanh.pop %v1635
        %v1831 = vtanh.pop %v1649
        %v1832 = vtanh.pop %v1663
        %v1833 = vtanh.pop %v1677
        %v1834 = vtanh.pop %v1691
        %v1835 = vtanh.pop %v1705
        %v1836 = vtanh.pop %v1719
        %v1837 = vtanh.pop %v1733
        %v1838 = vtanh.pop %v1747
        %v1839 = vtanh.pop %v1761
        %v1840 = vtanh.pop %v1775
        %1841 = vst [vmem:[%s525] sm:$0xff] %v1777
        %1842 = vst [vmem:[%s525 + $0x8] sm:$0xff] %v1778
        %1843 = vst [vmem:[%s525 + $0x10] sm:$0xff] %v1779
        %1844 = vst [vmem:[%s525 + $0x18] sm:$0xff] %v1780
        %1845 = vst [vmem:[%s525 + $0x20] sm:$0xff] %v1781
        %1846 = vst [vmem:[%s525 + $0x28] sm:$0xff] %v1782
        %1847 = vst [vmem:[%s525 + $0x30] sm:$0xff] %v1783
        %1848 = vst [vmem:[%s525 + $0x38] sm:$0xff] %v1784
        %1849 = vst [vmem:[%s525 + $0x40] sm:$0xff] %v1785
        %1850 = vst [vmem:[%s525 + $0x48] sm:$0xff] %v1786
        %1851 = vst [vmem:[%s525 + $0x50] sm:$0xff] %v1787
        %1852 = vst [vmem:[%s525 + $0x58] sm:$0xff] %v1788
        %1853 = vst [vmem:[%s525 + $0x60] sm:$0xff] %v1789
        %1854 = vst [vmem:[%s525 + $0x68] sm:$0xff] %v1790
        %1855 = vst [vmem:[%s525 + $0x70] sm:$0xff] %v1791
        %1856 = vst [vmem:[%s525 + $0x78] sm:$0xff] %v1792
        %1857 = vst [vmem:[%s525 + $0x80] sm:$0xff] %v1793
        %1858 = vst [vmem:[%s525 + $0x88] sm:$0xff] %v1794
        %1859 = vst [vmem:[%s525 + $0x90] sm:$0xff] %v1795
        %1860 = vst [vmem:[%s525 + $0x98] sm:$0xff] %v1796
        %1861 = vst [vmem:[%s525 + $0xa0] sm:$0xff] %v1797
        %1862 = vst [vmem:[%s525 + $0xa8] sm:$0xff] %v1798
        %1863 = vst [vmem:[%s525 + $0xb0] sm:$0xff] %v1799
        %1864 = vst [vmem:[%s525 + $0xb8] sm:$0xff] %v1800
        %1865 = vst [vmem:[%s525 + $0xc0] sm:$0xff] %v1801
        %1866 = vst [vmem:[%s525 + $0xc8] sm:$0xff] %v1802
        %1867 = vst [vmem:[%s525 + $0xd0] sm:$0xff] %v1803
        %1868 = vst [vmem:[%s525 + $0xd8] sm:$0xff] %v1804
        %1869 = vst [vmem:[%s525 + $0xe0] sm:$0xff] %v1805
        %1870 = vst [vmem:[%s525 + $0xe8] sm:$0xff] %v1806
        %1871 = vst [vmem:[%s525 + $0xf0] sm:$0xff] %v1807
        %1872 = vst [vmem:[%s525 + $0xf8] sm:$0xff] %v1808
        %1873 = vst [vmem:[%s525 + $0x100] sm:$0xf] %v1809
        %1874 = vst [vmem:[%s525 + $0x108] sm:$0xf] %v1810
        %1875 = vst [vmem:[%s525 + $0x110] sm:$0xf] %v1811
        %1876 = vst [vmem:[%s525 + $0x118] sm:$0xf] %v1812
        %1877 = vst [vmem:[%s525 + $0x120] sm:$0xf] %v1813
        %1878 = vst [vmem:[%s525 + $0x128] sm:$0xf] %v1814
        %1879 = vst [vmem:[%s525 + $0x130] sm:$0xf] %v1815
        %1880 = vst [vmem:[%s525 + $0x138] sm:$0xf] %v1816
        %1881 = vst [vmem:[%s525 + $0x140] sm:$0xf] %v1817
        %1882 = vst [vmem:[%s525 + $0x148] sm:$0xf] %v1818
        %1883 = vst [vmem:[%s525 + $0x150] sm:$0xf] %v1819
        %1884 = vst [vmem:[%s525 + $0x158] sm:$0xf] %v1820
        %1885 = vst [vmem:[%s525 + $0x160] sm:$0xf] %v1821
        %1886 = vst [vmem:[%s525 + $0x168] sm:$0xf] %v1822
        %1887 = vst [vmem:[%s525 + $0x170] sm:$0xf] %v1823
        %1888 = vst [vmem:[%s525 + $0x178] sm:$0xf] %v1824
        %1889 = vst [vmem:[%s525 + $0x180] sm:$0xf] %v1825
        %1890 = vst [vmem:[%s525 + $0x188] sm:$0xf] %v1826
        %1891 = vst [vmem:[%s525 + $0x190] sm:$0xf] %v1827
        %1892 = vst [vmem:[%s525 + $0x198] sm:$0xf] %v1828
        %1893 = vst [vmem:[%s525 + $0x1a0] sm:$0xf] %v1829
        %1894 = vst [vmem:[%s525 + $0x1a8] sm:$0xf] %v1830
        %1895 = vst [vmem:[%s525 + $0x1b0] sm:$0xf] %v1831
        %1896 = vst [vmem:[%s525 + $0x1b8] sm:$0xf] %v1832
        %1897 = vst [vmem:[%s525 + $0x1c0] sm:$0xf] %v1833
        %1898 = vst [vmem:[%s525 + $0x1c8] sm:$0xf] %v1834
        %1899 = vst [vmem:[%s525 + $0x1d0] sm:$0xf] %v1835
        %1900 = vst [vmem:[%s525 + $0x1d8] sm:$0xf] %v1836
        %1901 = vst [vmem:[%s525 + $0x1e0] sm:$0xf] %v1837
        %1902 = vst [vmem:[%s525 + $0x1e8] sm:$0xf] %v1838
        %1903 = vst [vmem:[%s525 + $0x1f0] sm:$0xf] %v1839
        %1904 = vst [vmem:[%s525 + $0x1f8] sm:$0xf] %v1840
        %s1905 = sand.u32 %s90, 1
        %s1906 = sand.u32 %s90, 1
        %s1907 = smul.addr %s1906, 512
        %s1908 = scalar_lea.vmem [#allocation3], %s1907
        // Predicated region
        $region99: #{reconstructor_forward.13} parent=93 // pred_check
          %p1909 = pneg %p100
        $region100: #{reconstructor_forward.13} parent=93 // pred_check_branch
          %1911 = sbr.rel (%p1909) target = $region102
        $region101: #{reconstructor_forward.13} parent=93 // pred_region
          %s1912 = smul.u32 32, %s14
          %s1913 = ssub.s32 196, %s1912
          %p1914 = scmp.lt.s32.totalorder %s1913, 32
          %s1915 = scalar_select %p1914, %s1913, 32
          %s1916 = smul.u32 16, %s1915
          %p1917 = scmp.ne.s32.totalorder 0, %s1916
          %s1918 = smul.addr %s1912, 8
          %s1919 = scalar_lea.vmem %s3, %s1918
          %s1920 = smul.u32 %s1915, 8
          // Predicated region
          $region103: #{reconstructor_forward.13} parent=101 // pred_check
            %p1921 = pneg %p1917
          $region104: #{reconstructor_forward.13} parent=101 // pred_check_branch
            %1923 = sbr.rel (%p1921) target = $region106
          $region105: #{reconstructor_forward.13} parent=101 // pred_region
            %p1924 = scmp.lt.u32.totalorder %s1920, 8
            %p1925 = pneg %p1924
            // Predicated region
            $region107: #{reconstructor_forward.13} parent=105 // pred_check
              _
            $region108: #{reconstructor_forward.13} parent=105 // pred_check_branch
              %1927 = sbr.rel (%p1924) target = $region110
            $region109: #{reconstructor_forward.13} parent=105 // pred_region
              %s1945 = sand.u32 %s1920, 7
              %p1946 = scmp.eq.s32.totalorder %s1945, 0
              // Predicated region
              $region122: #{reconstructor_forward.13} parent=109 // pred_check
                %p1947 = pneg %p1946
              $region123: #{reconstructor_forward.13} parent=109 // pred_check_branch
                %1949 = sbr.rel (%p1947) target = $region125
              $region124: #{reconstructor_forward.13} parent=109 // pred_region
                %s1950 = sshrl.u32 %s1920, 3
                %s1951 = sshrl.u32 %s1950, 4
                // While loop
                $region126: #{reconstructor_forward.13} parent=124 // loop_pre_header
                  _
                $region127: #{reconstructor_forward.13} parent=124 // loop_header
                  %s1953 = sphi 0, %s1955
                  %p1954 = scmp.ge.s32.totalorder %s1953, %s1951
                  %s1958 = sphi 0, %s2027
                  %s1959 = sphi %s1908, %s2030
                  %s1960 = sphi %s1919, %s2031
                $region128: #{reconstructor_forward.13} parent=124 // loop_header_branch
                  %1957 = sbr.rel (%p1954) target = $region132
                $region129: #{reconstructor_forward.13} parent=124 // loop_body
                  %v1961 = vld [vmem:[%s1959] sm:$0xff]
                  %1962 = vst [vmem:[%s1960] sm:$0xff] %v1961
                  %v1963 = vld [vmem:[%s1959 + $0x8] sm:$0xff]
                  %1964 = vst [vmem:[%s1960 + $0x8] sm:$0xff] %v1963
                  %v1965 = vld [vmem:[%s1959 + $0x10] sm:$0xff]
                  %1966 = vst [vmem:[%s1960 + $0x10] sm:$0xff] %v1965
                  %v1967 = vld [vmem:[%s1959 + $0x18] sm:$0xff]
                  %1968 = vst [vmem:[%s1960 + $0x18] sm:$0xff] %v1967
                  %v1969 = vld [vmem:[%s1959 + $0x20] sm:$0xff]
                  %1970 = vst [vmem:[%s1960 + $0x20] sm:$0xff] %v1969
                  %v1971 = vld [vmem:[%s1959 + $0x28] sm:$0xff]
                  %1972 = vst [vmem:[%s1960 + $0x28] sm:$0xff] %v1971
                  %v1973 = vld [vmem:[%s1959 + $0x30] sm:$0xff]
                  %1974 = vst [vmem:[%s1960 + $0x30] sm:$0xff] %v1973
                  %v1975 = vld [vmem:[%s1959 + $0x38] sm:$0xff]
                  %1976 = vst [vmem:[%s1960 + $0x38] sm:$0xff] %v1975
                  %v1977 = vld [vmem:[%s1959 + $0x40] sm:$0xff]
                  %1978 = vst [vmem:[%s1960 + $0x40] sm:$0xff] %v1977
                  %v1979 = vld [vmem:[%s1959 + $0x48] sm:$0xff]
                  %1980 = vst [vmem:[%s1960 + $0x48] sm:$0xff] %v1979
                  %v1981 = vld [vmem:[%s1959 + $0x50] sm:$0xff]
                  %1982 = vst [vmem:[%s1960 + $0x50] sm:$0xff] %v1981
                  %v1983 = vld [vmem:[%s1959 + $0x58] sm:$0xff]
                  %1984 = vst [vmem:[%s1960 + $0x58] sm:$0xff] %v1983
                  %v1985 = vld [vmem:[%s1959 + $0x60] sm:$0xff]
                  %1986 = vst [vmem:[%s1960 + $0x60] sm:$0xff] %v1985
                  %v1987 = vld [vmem:[%s1959 + $0x68] sm:$0xff]
                  %1988 = vst [vmem:[%s1960 + $0x68] sm:$0xff] %v1987
                  %v1989 = vld [vmem:[%s1959 + $0x70] sm:$0xff]
                  %1990 = vst [vmem:[%s1960 + $0x70] sm:$0xff] %v1989
                  %v1991 = vld [vmem:[%s1959 + $0x78] sm:$0xff]
                  %1992 = vst [vmem:[%s1960 + $0x78] sm:$0xff] %v1991
                  %v1993 = vld [vmem:[%s1959 + $0x100] sm:$0xff]
                  %1994 = vst [vmem:[%s1960 + $0x620] sm:$0xff] %v1993
                  %v1995 = vld [vmem:[%s1959 + $0x108] sm:$0xff]
                  %1996 = vst [vmem:[%s1960 + $0x628] sm:$0xff] %v1995
                  %v1997 = vld [vmem:[%s1959 + $0x110] sm:$0xff]
                  %1998 = vst [vmem:[%s1960 + $0x630] sm:$0xff] %v1997
                  %v1999 = vld [vmem:[%s1959 + $0x118] sm:$0xff]
                  %2000 = vst [vmem:[%s1960 + $0x638] sm:$0xff] %v1999
                  %v2001 = vld [vmem:[%s1959 + $0x120] sm:$0xff]
                  %2002 = vst [vmem:[%s1960 + $0x640] sm:$0xff] %v2001
                  %v2003 = vld [vmem:[%s1959 + $0x128] sm:$0xff]
                  %2004 = vst [vmem:[%s1960 + $0x648] sm:$0xff] %v2003
                  %v2005 = vld [vmem:[%s1959 + $0x130] sm:$0xff]
                  %2006 = vst [vmem:[%s1960 + $0x650] sm:$0xff] %v2005
                  %v2007 = vld [vmem:[%s1959 + $0x138] sm:$0xff]
                  %2008 = vst [vmem:[%s1960 + $0x658] sm:$0xff] %v2007
                  %v2009 = vld [vmem:[%s1959 + $0x140] sm:$0xff]
                  %2010 = vst [vmem:[%s1960 + $0x660] sm:$0xff] %v2009
                  %v2011 = vld [vmem:[%s1959 + $0x148] sm:$0xff]
                  %2012 = vst [vmem:[%s1960 + $0x668] sm:$0xff] %v2011
                  %v2013 = vld [vmem:[%s1959 + $0x150] sm:$0xff]
                  %2014 = vst [vmem:[%s1960 + $0x670] sm:$0xff] %v2013
                  %v2015 = vld [vmem:[%s1959 + $0x158] sm:$0xff]
                  %2016 = vst [vmem:[%s1960 + $0x678] sm:$0xff] %v2015
                  %v2017 = vld [vmem:[%s1959 + $0x160] sm:$0xff]
                  %2018 = vst [vmem:[%s1960 + $0x680] sm:$0xff] %v2017
                  %v2019 = vld [vmem:[%s1959 + $0x168] sm:$0xff]
                  %2020 = vst [vmem:[%s1960 + $0x688] sm:$0xff] %v2019
                  %v2021 = vld [vmem:[%s1959 + $0x170] sm:$0xff]
                  %2022 = vst [vmem:[%s1960 + $0x690] sm:$0xff] %v2021
                  %v2023 = vld [vmem:[%s1959 + $0x178] sm:$0xff]
                  %2024 = vst [vmem:[%s1960 + $0x698] sm:$0xff] %v2023
                  %s2025 = sadd.s32 1, %s1958
                  %p2026 = scmp.ge.s32.totalorder %s2025, %s1951
                  %s2027 = scalar_select %p2026, 0, %s2025
                  %s2028 = smul.u32 %s2027, 128
                  %s2029 = smul.u32 %s2027, 128
                  %s2030 = scalar_lea.vmem %s1908, %s2028 [#allocation3]
                  %s2031 = scalar_lea.vmem %s1919, %s2029
                $region130: #{reconstructor_forward.13} parent=124 // loop_footer
                  %s1955 = sadd.s32 %s1953, 1
                $region131: #{reconstructor_forward.13} parent=124 // loop_footer_branch
                  %1952 = sbr.rel target = $region127
                $region132: #{reconstructor_forward.13} parent=124 // loop_exit
                  _
                %s2032 = sshrl.u32 %s1950, 4
                %s2033 = sand.u32 %s1950, 15
                %s2034 = smul.u32 %s2032, 16
                %s2035 = smul.u32 8, %s2034
                %s2036 = scalar_lea.vmem %s1908, %s2035 [#allocation3]
                %s2037 = smul.u32 8, %s2034
                %s2038 = scalar_lea.vmem %s1919, %s2037
                // While loop
                $region133: #{reconstructor_forward.13} parent=124 // loop_pre_header
                  _
                $region134: #{reconstructor_forward.13} parent=124 // loop_header
                  %s2040 = sphi 0, %s2042
                  %p2041 = scmp.ge.s32.totalorder %s2040, %s2033
                  %s2045 = sphi 0, %s2054
                  %s2046 = sphi %s2036, %s2057
                  %s2047 = sphi %s2038, %s2058
                $region135: #{reconstructor_forward.13} parent=124 // loop_header_branch
                  %2044 = sbr.rel (%p2041) target = $region139
                $region136: #{reconstructor_forward.13} parent=124 // loop_body
                  %v2048 = vld [vmem:[%s2046] sm:$0xff]
                  %2049 = vst [vmem:[%s2047] sm:$0xff] %v2048
                  %v2050 = vld [vmem:[%s2046 + $0x100] sm:$0xff]
                  %2051 = vst [vmem:[%s2047 + $0x620] sm:$0xff] %v2050
                  %s2052 = sadd.s32 1, %s2045
                  %p2053 = scmp.ge.s32.totalorder %s2052, %s2033
                  %s2054 = scalar_select %p2053, 0, %s2052
                  %s2055 = smul.u32 %s2054, 8
                  %s2056 = smul.u32 %s2054, 8
                  %s2057 = scalar_lea.vmem %s2036, %s2055 [#allocation3]
                  %s2058 = scalar_lea.vmem %s2038, %s2056
                $region137: #{reconstructor_forward.13} parent=124 // loop_footer
                  %s2042 = sadd.s32 %s2040, 1
                $region138: #{reconstructor_forward.13} parent=124 // loop_footer_branch
                  %2039 = sbr.rel target = $region134
                $region139: #{reconstructor_forward.13} parent=124 // loop_exit
                  _
              $region125: #{reconstructor_forward.13} parent=109 // pred_fallthru
                _
              %p2059 = pneg %p1946
              // Predicated region
              $region140: #{reconstructor_forward.13} parent=109 // pred_check
                _
              $region141: #{reconstructor_forward.13} parent=109 // pred_check_branch
                %2061 = sbr.rel (%p1946) target = $region143
              $region142: #{reconstructor_forward.13} parent=109 // pred_region
                %s2062 = sand.u32 %s1920, 7
                %s2063 = ssub.s32 %s1920, %s2062
                %s2064 = scalar_lea.vmem %s1908, %s2063 [#allocation3]
                %s2065 = ssub.s32 %s1920, %s2062
                %s2066 = scalar_lea.vmem %s1919, %s2065
                %s2067 = sshrl.u32 %s1920, 3
                %s2068 = sshrl.u32 %s2067, 4
                // While loop
                $region144: #{reconstructor_forward.13} parent=142 // loop_pre_header
                  _
                $region145: #{reconstructor_forward.13} parent=142 // loop_header
                  %s2070 = sphi 0, %s2072
                  %p2071 = scmp.ge.s32.totalorder %s2070, %s2068
                  %s2075 = sphi 0, %s2144
                  %s2076 = sphi %s1908, %s2147
                  %s2077 = sphi %s1919, %s2148
                $region146: #{reconstructor_forward.13} parent=142 // loop_header_branch
                  %2074 = sbr.rel (%p2071) target = $region150
                $region147: #{reconstructor_forward.13} parent=142 // loop_body
                  %v2078 = vld [vmem:[%s2076] sm:$0xff]
                  %2079 = vst [vmem:[%s2077] sm:$0xff] %v2078
                  %v2080 = vld [vmem:[%s2076 + $0x8] sm:$0xff]
                  %2081 = vst [vmem:[%s2077 + $0x8] sm:$0xff] %v2080
                  %v2082 = vld [vmem:[%s2076 + $0x10] sm:$0xff]
                  %2083 = vst [vmem:[%s2077 + $0x10] sm:$0xff] %v2082
                  %v2084 = vld [vmem:[%s2076 + $0x18] sm:$0xff]
                  %2085 = vst [vmem:[%s2077 + $0x18] sm:$0xff] %v2084
                  %v2086 = vld [vmem:[%s2076 + $0x20] sm:$0xff]
                  %2087 = vst [vmem:[%s2077 + $0x20] sm:$0xff] %v2086
                  %v2088 = vld [vmem:[%s2076 + $0x28] sm:$0xff]
                  %2089 = vst [vmem:[%s2077 + $0x28] sm:$0xff] %v2088
                  %v2090 = vld [vmem:[%s2076 + $0x30] sm:$0xff]
                  %2091 = vst [vmem:[%s2077 + $0x30] sm:$0xff] %v2090
                  %v2092 = vld [vmem:[%s2076 + $0x38] sm:$0xff]
                  %2093 = vst [vmem:[%s2077 + $0x38] sm:$0xff] %v2092
                  %v2094 = vld [vmem:[%s2076 + $0x40] sm:$0xff]
                  %2095 = vst [vmem:[%s2077 + $0x40] sm:$0xff] %v2094
                  %v2096 = vld [vmem:[%s2076 + $0x48] sm:$0xff]
                  %2097 = vst [vmem:[%s2077 + $0x48] sm:$0xff] %v2096
                  %v2098 = vld [vmem:[%s2076 + $0x50] sm:$0xff]
                  %2099 = vst [vmem:[%s2077 + $0x50] sm:$0xff] %v2098
                  %v2100 = vld [vmem:[%s2076 + $0x58] sm:$0xff]
                  %2101 = vst [vmem:[%s2077 + $0x58] sm:$0xff] %v2100
                  %v2102 = vld [vmem:[%s2076 + $0x60] sm:$0xff]
                  %2103 = vst [vmem:[%s2077 + $0x60] sm:$0xff] %v2102
                  %v2104 = vld [vmem:[%s2076 + $0x68] sm:$0xff]
                  %2105 = vst [vmem:[%s2077 + $0x68] sm:$0xff] %v2104
                  %v2106 = vld [vmem:[%s2076 + $0x70] sm:$0xff]
                  %2107 = vst [vmem:[%s2077 + $0x70] sm:$0xff] %v2106
                  %v2108 = vld [vmem:[%s2076 + $0x78] sm:$0xff]
                  %2109 = vst [vmem:[%s2077 + $0x78] sm:$0xff] %v2108
                  %v2110 = vld [vmem:[%s2076 + $0x100] sm:$0xff]
                  %2111 = vst [vmem:[%s2077 + $0x620] sm:$0xff] %v2110
                  %v2112 = vld [vmem:[%s2076 + $0x108] sm:$0xff]
                  %2113 = vst [vmem:[%s2077 + $0x628] sm:$0xff] %v2112
                  %v2114 = vld [vmem:[%s2076 + $0x110] sm:$0xff]
                  %2115 = vst [vmem:[%s2077 + $0x630] sm:$0xff] %v2114
                  %v2116 = vld [vmem:[%s2076 + $0x118] sm:$0xff]
                  %2117 = vst [vmem:[%s2077 + $0x638] sm:$0xff] %v2116
                  %v2118 = vld [vmem:[%s2076 + $0x120] sm:$0xff]
                  %2119 = vst [vmem:[%s2077 + $0x640] sm:$0xff] %v2118
                  %v2120 = vld [vmem:[%s2076 + $0x128] sm:$0xff]
                  %2121 = vst [vmem:[%s2077 + $0x648] sm:$0xff] %v2120
                  %v2122 = vld [vmem:[%s2076 + $0x130] sm:$0xff]
                  %2123 = vst [vmem:[%s2077 + $0x650] sm:$0xff] %v2122
                  %v2124 = vld [vmem:[%s2076 + $0x138] sm:$0xff]
                  %2125 = vst [vmem:[%s2077 + $0x658] sm:$0xff] %v2124
                  %v2126 = vld [vmem:[%s2076 + $0x140] sm:$0xff]
                  %2127 = vst [vmem:[%s2077 + $0x660] sm:$0xff] %v2126
                  %v2128 = vld [vmem:[%s2076 + $0x148] sm:$0xff]
                  %2129 = vst [vmem:[%s2077 + $0x668] sm:$0xff] %v2128
                  %v2130 = vld [vmem:[%s2076 + $0x150] sm:$0xff]
                  %2131 = vst [vmem:[%s2077 + $0x670] sm:$0xff] %v2130
                  %v2132 = vld [vmem:[%s2076 + $0x158] sm:$0xff]
                  %2133 = vst [vmem:[%s2077 + $0x678] sm:$0xff] %v2132
                  %v2134 = vld [vmem:[%s2076 + $0x160] sm:$0xff]
                  %2135 = vst [vmem:[%s2077 + $0x680] sm:$0xff] %v2134
                  %v2136 = vld [vmem:[%s2076 + $0x168] sm:$0xff]
                  %2137 = vst [vmem:[%s2077 + $0x688] sm:$0xff] %v2136
                  %v2138 = vld [vmem:[%s2076 + $0x170] sm:$0xff]
                  %2139 = vst [vmem:[%s2077 + $0x690] sm:$0xff] %v2138
                  %v2140 = vld [vmem:[%s2076 + $0x178] sm:$0xff]
                  %2141 = vst [vmem:[%s2077 + $0x698] sm:$0xff] %v2140
                  %s2142 = sadd.s32 1, %s2075
                  %p2143 = scmp.ge.s32.totalorder %s2142, %s2068
                  %s2144 = scalar_select %p2143, 0, %s2142
                  %s2145 = smul.u32 %s2144, 128
                  %s2146 = smul.u32 %s2144, 128
                  %s2147 = scalar_lea.vmem %s1908, %s2145 [#allocation3]
                  %s2148 = scalar_lea.vmem %s1919, %s2146
                $region148: #{reconstructor_forward.13} parent=142 // loop_footer
                  %s2072 = sadd.s32 %s2070, 1
                $region149: #{reconstructor_forward.13} parent=142 // loop_footer_branch
                  %2069 = sbr.rel target = $region145
                $region150: #{reconstructor_forward.13} parent=142 // loop_exit
                  _
                %s2149 = sshrl.u32 %s2067, 4
                %s2150 = sand.u32 %s2067, 15
                %s2151 = smul.u32 %s2149, 16
                %s2152 = smul.u32 8, %s2151
                %s2153 = scalar_lea.vmem %s1908, %s2152 [#allocation3]
                %s2154 = smul.u32 8, %s2151
                %s2155 = scalar_lea.vmem %s1919, %s2154
                // While loop
                $region151: #{reconstructor_forward.13} parent=142 // loop_pre_header
                  _
                $region152: #{reconstructor_forward.13} parent=142 // loop_header
                  %s2157 = sphi 0, %s2159
                  %p2158 = scmp.ge.s32.totalorder %s2157, %s2150
                  %s2162 = sphi 0, %s2171
                  %s2163 = sphi %s2153, %s2174
                  %s2164 = sphi %s2155, %s2175
                $region153: #{reconstructor_forward.13} parent=142 // loop_header_branch
                  %2161 = sbr.rel (%p2158) target = $region157
                $region154: #{reconstructor_forward.13} parent=142 // loop_body
                  %v2165 = vld [vmem:[%s2163] sm:$0xff]
                  %2166 = vst [vmem:[%s2164] sm:$0xff] %v2165
                  %v2167 = vld [vmem:[%s2163 + $0x100] sm:$0xff]
                  %2168 = vst [vmem:[%s2164 + $0x620] sm:$0xff] %v2167
                  %s2169 = sadd.s32 1, %s2162
                  %p2170 = scmp.ge.s32.totalorder %s2169, %s2150
                  %s2171 = scalar_select %p2170, 0, %s2169
                  %s2172 = smul.u32 %s2171, 8
                  %s2173 = smul.u32 %s2171, 8
                  %s2174 = scalar_lea.vmem %s2153, %s2172 [#allocation3]
                  %s2175 = scalar_lea.vmem %s2155, %s2173
                $region155: #{reconstructor_forward.13} parent=142 // loop_footer
                  %s2159 = sadd.s32 %s2157, 1
                $region156: #{reconstructor_forward.13} parent=142 // loop_footer_branch
                  %2156 = sbr.rel target = $region152
                $region157: #{reconstructor_forward.13} parent=142 // loop_exit
                  _
                %s2176 = sshll.u32 1, %s2062
                %s2177 = ssub.s32 %s2176, 1
                loop: start=0, step=1, limit=1
                $region158: #{reconstructor_forward.13} parent=142 // loop_pre_header
                  _
                $region159: #{reconstructor_forward.13} parent=142 // loop_header
                  %s2179 = sphi 0, %s2183
                  %p2180 = scmp.ge.s32.totalorder %s2179, 1
                  %s2184 = sphi %s2064, %s2064
                  %s2185 = sphi %s2066, %s2066
                $region160: #{reconstructor_forward.13} parent=142 // loop_header_branch
                  %2182 = sbr.rel (%p2180) target = $region164
                $region161: #{reconstructor_forward.13} parent=142 // loop_body
                  %v2186 = vld [vmem:[%s2184] sm:%s2177]
                  %2187 = vst [vmem:[%s2185] sm:%s2177] %v2186
                  %v2188 = vld [vmem:[%s2184 + $0x100] sm:%s2177]
                  %2189 = vst [vmem:[%s2185 + $0x620] sm:%s2177] %v2188
                $region162: #{reconstructor_forward.13} parent=142 // loop_footer
                  %s2183 = sadd.s32 1, %s2179
                $region163: #{reconstructor_forward.13} parent=142 // loop_footer_branch
                  %2178 = sbr.rel target = $region159
                $region164: #{reconstructor_forward.13} parent=142 // loop_exit
                  _
              $region143: #{reconstructor_forward.13} parent=109 // pred_fallthru
                _
            $region110: #{reconstructor_forward.13} parent=105 // pred_fallthru
              _
            // Predicated region
            $region111: #{reconstructor_forward.13} parent=105 // pred_check
              %p1928 = pneg %p1924
            $region112: #{reconstructor_forward.13} parent=105 // pred_check_branch
              %1930 = sbr.rel (%p1928) target = $region114
            $region113: #{reconstructor_forward.13} parent=105 // pred_region
              %s1931 = sshll.u32 1, %s1920
              %s1932 = ssub.s32 %s1931, 1
              loop: start=0, step=1, limit=1
              $region115: #{reconstructor_forward.13} parent=113 // loop_pre_header
                _
              $region116: #{reconstructor_forward.13} parent=113 // loop_header
                %s1934 = sphi 0, %s1938
                %p1935 = scmp.ge.s32.totalorder %s1934, 1
                %s1939 = sphi %s1908, %s1908
                %s1940 = sphi %s1919, %s1919
              $region117: #{reconstructor_forward.13} parent=113 // loop_header_branch
                %1937 = sbr.rel (%p1935) target = $region121
              $region118: #{reconstructor_forward.13} parent=113 // loop_body
                %v1941 = vld [vmem:[%s1939] sm:%s1932]
                %1942 = vst [vmem:[%s1940] sm:%s1932] %v1941
                %v1943 = vld [vmem:[%s1939 + $0x100] sm:%s1932]
                %1944 = vst [vmem:[%s1940 + $0x620] sm:%s1932] %v1943
              $region119: #{reconstructor_forward.13} parent=113 // loop_footer
                %s1938 = sadd.s32 1, %s1934
              $region120: #{reconstructor_forward.13} parent=113 // loop_footer_branch
                %1933 = sbr.rel target = $region116
              $region121: #{reconstructor_forward.13} parent=113 // loop_exit
                _
            $region114: #{reconstructor_forward.13} parent=105 // pred_fallthru
              _
          $region106: #{reconstructor_forward.13} parent=101 // pred_fallthru
            _
          %2190 = vnop
        $region102: #{reconstructor_forward.13} parent=93 // pred_fallthru
          _
      $region94: #{reconstructor_forward.13} parent=5 // pred_fallthru
        _
      %p2191 = scmp.le.s32.totalorder 2, %s9
      // Predicated region
      $region165: #{reconstructor_forward.13} parent=5 // pred_check
        %p2192 = pneg %p2191
      $region166: #{reconstructor_forward.13} parent=5 // pred_check_branch
        %2194 = sbr.rel (%p2192) target = $region168
      $region167: #{reconstructor_forward.13} parent=5 // pred_region
        %s2195 = ssub.s32 %s9, 2
        // Predicated region
        $region169: #{reconstructor_forward.13} parent=167 // pred_check
          %p2196 = pneg %p106
        $region170: #{reconstructor_forward.13} parent=167 // pred_check_branch
          %2198 = sbr.rel (%p2196) target = $region172
        $region171: #{reconstructor_forward.13} parent=167 // pred_region
          %s2199 = sand.u32 %s91, 1
          %s2200 = sand.u32 %s91, 1
          %s2201 = smul.addr %s2200, 512
          %s2202 = scalar_lea.vmem [#allocation3], %s2201
        $region172: #{reconstructor_forward.13} parent=167 // pred_fallthru
          _
      $region168: #{reconstructor_forward.13} parent=5 // pred_fallthru
        _
    $region6: #{reconstructor_forward.13} parent=1 // loop_footer
      %s13 = sadd.s32 1, %s9
    $region7: #{reconstructor_forward.13} parent=1 // loop_footer_branch
      %8 = sbr.rel target = $region3
    $region8: #{reconstructor_forward.13} parent=1 // loop_exit
      _

// kernel: reconstructor_forward.7
$region0: #{reconstructor_forward.7}
  #allocation0 [shape = 'u32[]', space=smem, size = 0x4, offset = 0x4, fixed_abs, tag = 'smem constant byte address 0x4 - core index']
  #allocation1 [shape = 'u32[72,128]{1,0:T(1,128)}', space=vmem, size = 0x9000, scoped, tag = 'internal scratch']
  %s0 = inlined_call_operand.vmem [shape: f32[2,1024], index: 0, kind: input, shape index: {}]
  %s1 = inlined_call_operand.vmem [shape: f32[1024,10], index: 1, kind: input, shape index: {}]
  %s2 = inlined_call_operand.vmem [shape: f32[1,10], index: 2, kind: input, shape index: {}]
  %s3 = inlined_call_operand.hbm [shape: f32[2,10], index: 3, kind: output, shape index: {}]
  %s4 = sld [smem:[#allocation0]]
  $region22: #{reconstructor_forward.7} parent=0
    _
  %s6 = ssub.s32 1, %s4
  %s7 = scalar_select 0, %s6, %s4
  $region1: #{reconstructor_forward.7} parent=0
    #allocation2 [shape = 'u8[1024]{0}', space=vmem, size = 0x400, scoped, tag = 'output window, operand 0, single buffered']
    #allocation3 [shape = 's32[1]{0}', space=sflag, size = 0x4, scoped, tag = 'scoped memory for reconstructor_forward.7']
    %8 = vsyncpa [#allocation3], 0
    // Predicated region
    $region2: #{reconstructor_forward.7} parent=1 // pred_check
      _
    $region3: #{reconstructor_forward.7} parent=1 // pred_check_branch
      %10 = sbr.rel (0) target = $region5
    $region4: #{reconstructor_forward.7} parent=1 // pred_region
      _
    $region5: #{reconstructor_forward.7} parent=1 // pred_fallthru
      _
    // Predicated region
    $region6: #{reconstructor_forward.7} parent=1 // pred_check
      _
    $region7: #{reconstructor_forward.7} parent=1 // pred_check_branch
      %12 = sbr.rel (0) target = $region9
    $region8: #{reconstructor_forward.7} parent=1 // pred_region
      _
    $region9: #{reconstructor_forward.7} parent=1 // pred_fallthru
      _
    // Predicated region
    $region10: #{reconstructor_forward.7} parent=1 // pred_check
      _
    $region11: #{reconstructor_forward.7} parent=1 // pred_check_branch
      %14 = sbr.rel (0) target = $region13
    $region12: #{reconstructor_forward.7} parent=1 // pred_region
      _
    $region13: #{reconstructor_forward.7} parent=1 // pred_fallthru
      _
    %v15 = vld [vmem:[%s0] sm:$0xff]
    %v16 = vld [vmem:[%s0 + $0x8] sm:$0xff]
    %v17 = vld [vmem:[%s1] sm:$0xff]
    %v18 = vld [vmem:[%s1 + $0x8] sm:$0xff]
    %v19 = vld [vmem:[%s1 + $0x10] sm:$0xff]
    %v20 = vld [vmem:[%s1 + $0x18] sm:$0xff]
    %v21 = vld [vmem:[%s1 + $0x20] sm:$0xff]
    %v22 = vld [vmem:[%s1 + $0x28] sm:$0xff]
    %v23 = vld [vmem:[%s1 + $0x30] sm:$0xff]
    %v24 = vld [vmem:[%s1 + $0x38] sm:$0xff]
    %v25 = vld [vmem:[%s1 + $0x40] sm:$0xff]
    %v26 = vld [vmem:[%s1 + $0x48] sm:$0xff]
    %v27 = vld [vmem:[%s1 + $0x50] sm:$0xff]
    %v28 = vld [vmem:[%s1 + $0x58] sm:$0xff]
    %v29 = vld [vmem:[%s1 + $0x60] sm:$0xff]
    %v30 = vld [vmem:[%s1 + $0x68] sm:$0xff]
    %v31 = vld [vmem:[%s1 + $0x70] sm:$0xff]
    %v32 = vld [vmem:[%s1 + $0x78] sm:$0xff]
    %v33 = vld [vmem:[%s1 + $0x80] sm:$0xff]
    %v34 = vld [vmem:[%s1 + $0x88] sm:$0xff]
    %v35 = vld [vmem:[%s1 + $0x90] sm:$0xff]
    %v36 = vld [vmem:[%s1 + $0x98] sm:$0xff]
    %v37 = vld [vmem:[%s1 + $0xa0] sm:$0xff]
    %v38 = vld [vmem:[%s1 + $0xa8] sm:$0xff]
    %v39 = vld [vmem:[%s1 + $0xb0] sm:$0xff]
    %v40 = vld [vmem:[%s1 + $0xb8] sm:$0xff]
    %v41 = vld [vmem:[%s1 + $0xc0] sm:$0xff]
    %v42 = vld [vmem:[%s1 + $0xc8] sm:$0xff]
    %v43 = vld [vmem:[%s1 + $0xd0] sm:$0xff]
    %v44 = vld [vmem:[%s1 + $0xd8] sm:$0xff]
    %v45 = vld [vmem:[%s1 + $0xe0] sm:$0xff]
    %v46 = vld [vmem:[%s1 + $0xe8] sm:$0xff]
    %v47 = vld [vmem:[%s1 + $0xf0] sm:$0xff]
    %v48 = vld [vmem:[%s1 + $0xf8] sm:$0xff]
    %v49 = vld [vmem:[%s1 + $0x100] sm:$0xff]
    %v50 = vld [vmem:[%s1 + $0x108] sm:$0xff]
    %v51 = vld [vmem:[%s1 + $0x110] sm:$0xff]
    %v52 = vld [vmem:[%s1 + $0x118] sm:$0xff]
    %v53 = vld [vmem:[%s1 + $0x120] sm:$0xff]
    %v54 = vld [vmem:[%s1 + $0x128] sm:$0xff]
    %v55 = vld [vmem:[%s1 + $0x130] sm:$0xff]
    %v56 = vld [vmem:[%s1 + $0x138] sm:$0xff]
    %v57 = vld [vmem:[%s1 + $0x140] sm:$0xff]
    %v58 = vld [vmem:[%s1 + $0x148] sm:$0xff]
    %v59 = vld [vmem:[%s1 + $0x150] sm:$0xff]
    %v60 = vld [vmem:[%s1 + $0x158] sm:$0xff]
    %v61 = vld [vmem:[%s1 + $0x160] sm:$0xff]
    %v62 = vld [vmem:[%s1 + $0x168] sm:$0xff]
    %v63 = vld [vmem:[%s1 + $0x170] sm:$0xff]
    %v64 = vld [vmem:[%s1 + $0x178] sm:$0xff]
    %v65 = vld [vmem:[%s1 + $0x180] sm:$0xff]
    %v66 = vld [vmem:[%s1 + $0x188] sm:$0xff]
    %v67 = vld [vmem:[%s1 + $0x190] sm:$0xff]
    %v68 = vld [vmem:[%s1 + $0x198] sm:$0xff]
    %v69 = vld [vmem:[%s1 + $0x1a0] sm:$0xff]
    %v70 = vld [vmem:[%s1 + $0x1a8] sm:$0xff]
    %v71 = vld [vmem:[%s1 + $0x1b0] sm:$0xff]
    %v72 = vld [vmem:[%s1 + $0x1b8] sm:$0xff]
    %v73 = vld [vmem:[%s1 + $0x1c0] sm:$0xff]
    %v74 = vld [vmem:[%s1 + $0x1c8] sm:$0xff]
    %v75 = vld [vmem:[%s1 + $0x1d0] sm:$0xff]
    %v76 = vld [vmem:[%s1 + $0x1d8] sm:$0xff]
    %v77 = vld [vmem:[%s1 + $0x1e0] sm:$0xff]
    %v78 = vld [vmem:[%s1 + $0x1e8] sm:$0xff]
    %v79 = vld [vmem:[%s1 + $0x1f0] sm:$0xff]
    %v80 = vld [vmem:[%s1 + $0x1f8] sm:$0xff]
    %v81 = vld [vmem:[%s1 + $0x200] sm:$0xff]
    %v82 = vld [vmem:[%s1 + $0x208] sm:$0xff]
    %v83 = vld [vmem:[%s1 + $0x210] sm:$0xff]
    %v84 = vld [vmem:[%s1 + $0x218] sm:$0xff]
    %v85 = vld [vmem:[%s1 + $0x220] sm:$0xff]
    %v86 = vld [vmem:[%s1 + $0x228] sm:$0xff]
    %v87 = vld [vmem:[%s1 + $0x230] sm:$0xff]
    %v88 = vld [vmem:[%s1 + $0x238] sm:$0xff]
    %v89 = vld [vmem:[%s1 + $0x240] sm:$0xff]
    %v90 = vld [vmem:[%s1 + $0x248] sm:$0xff]
    %v91 = vld [vmem:[%s1 + $0x250] sm:$0xff]
    %v92 = vld [vmem:[%s1 + $0x258] sm:$0xff]
    %v93 = vld [vmem:[%s1 + $0x260] sm:$0xff]
    %v94 = vld [vmem:[%s1 + $0x268] sm:$0xff]
    %v95 = vld [vmem:[%s1 + $0x270] sm:$0xff]
    %v96 = vld [vmem:[%s1 + $0x278] sm:$0xff]
    %v97 = vld [vmem:[%s1 + $0x280] sm:$0xff]
    %v98 = vld [vmem:[%s1 + $0x288] sm:$0xff]
    %v99 = vld [vmem:[%s1 + $0x290] sm:$0xff]
    %v100 = vld [vmem:[%s1 + $0x298] sm:$0xff]
    %v101 = vld [vmem:[%s1 + $0x2a0] sm:$0xff]
    %v102 = vld [vmem:[%s1 + $0x2a8] sm:$0xff]
    %v103 = vld [vmem:[%s1 + $0x2b0] sm:$0xff]
    %v104 = vld [vmem:[%s1 + $0x2b8] sm:$0xff]
    %v105 = vld [vmem:[%s1 + $0x2c0] sm:$0xff]
    %v106 = vld [vmem:[%s1 + $0x2c8] sm:$0xff]
    %v107 = vld [vmem:[%s1 + $0x2d0] sm:$0xff]
    %v108 = vld [vmem:[%s1 + $0x2d8] sm:$0xff]
    %v109 = vld [vmem:[%s1 + $0x2e0] sm:$0xff]
    %v110 = vld [vmem:[%s1 + $0x2e8] sm:$0xff]
    %v111 = vld [vmem:[%s1 + $0x2f0] sm:$0xff]
    %v112 = vld [vmem:[%s1 + $0x2f8] sm:$0xff]
    %v113 = vld [vmem:[%s1 + $0x300] sm:$0xff]
    %v114 = vld [vmem:[%s1 + $0x308] sm:$0xff]
    %v115 = vld [vmem:[%s1 + $0x310] sm:$0xff]
    %v116 = vld [vmem:[%s1 + $0x318] sm:$0xff]
    %v117 = vld [vmem:[%s1 + $0x320] sm:$0xff]
    %v118 = vld [vmem:[%s1 + $0x328] sm:$0xff]
    %v119 = vld [vmem:[%s1 + $0x330] sm:$0xff]
    %v120 = vld [vmem:[%s1 + $0x338] sm:$0xff]
    %v121 = vld [vmem:[%s1 + $0x340] sm:$0xff]
    %v122 = vld [vmem:[%s1 + $0x348] sm:$0xff]
    %v123 = vld [vmem:[%s1 + $0x350] sm:$0xff]
    %v124 = vld [vmem:[%s1 + $0x358] sm:$0xff]
    %v125 = vld [vmem:[%s1 + $0x360] sm:$0xff]
    %v126 = vld [vmem:[%s1 + $0x368] sm:$0xff]
    %v127 = vld [vmem:[%s1 + $0x370] sm:$0xff]
    %v128 = vld [vmem:[%s1 + $0x378] sm:$0xff]
    %v129 = vld [vmem:[%s1 + $0x380] sm:$0xff]
    %v130 = vld [vmem:[%s1 + $0x388] sm:$0xff]
    %v131 = vld [vmem:[%s1 + $0x390] sm:$0xff]
    %v132 = vld [vmem:[%s1 + $0x398] sm:$0xff]
    %v133 = vld [vmem:[%s1 + $0x3a0] sm:$0xff]
    %v134 = vld [vmem:[%s1 + $0x3a8] sm:$0xff]
    %v135 = vld [vmem:[%s1 + $0x3b0] sm:$0xff]
    %v136 = vld [vmem:[%s1 + $0x3b8] sm:$0xff]
    %v137 = vld [vmem:[%s1 + $0x3c0] sm:$0xff]
    %v138 = vld [vmem:[%s1 + $0x3c8] sm:$0xff]
    %v139 = vld [vmem:[%s1 + $0x3d0] sm:$0xff]
    %v140 = vld [vmem:[%s1 + $0x3d8] sm:$0xff]
    %v141 = vld [vmem:[%s1 + $0x3e0] sm:$0xff]
    %v142 = vld [vmem:[%s1 + $0x3e8] sm:$0xff]
    %v143 = vld [vmem:[%s1 + $0x3f0] sm:$0xff]
    %v144 = vld [vmem:[%s1 + $0x3f8] sm:$0xff]
    %v145 = vld [vmem:[%s2] sm:$0x1]
    %v147 = vperm.slane %v145, 0
    %151 = vst [vmem:[#allocation1] ss:$4 sm:$0xff] %v15
    %s152 = scalar_lea.vmem [#allocation1], 32
    %153 = vst [vmem:[%s152] ss:$4 sm:$0xff] %v16
    %v154 = vld.sshfl [vmem:[#allocation1] sm:$0xff pattern:$0x73625140]
    %v155 = vld.sshfl [vmem:[#allocation1 + $0x8] sm:$0xff pattern:$0x73625140]
    %v156 = vld.sshfl [vmem:[#allocation1 + $0x10] sm:$0xff pattern:$0x73625140]
    %v157 = vld.sshfl [vmem:[#allocation1 + $0x18] sm:$0xff pattern:$0x73625140]
    %v158 = vld.sshfl [vmem:[#allocation1 + $0x20] sm:$0xff pattern:$0x73625140]
    %v159 = vld.sshfl [vmem:[#allocation1 + $0x28] sm:$0xff pattern:$0x73625140]
    %v160 = vld.sshfl [vmem:[#allocation1 + $0x30] sm:$0xff pattern:$0x73625140]
    %v161 = vld.sshfl [vmem:[#allocation1 + $0x38] sm:$0xff pattern:$0x73625140]
    %170 = vmatpush.msra.mxu0 %v32
    %171 = vmatpush.msra.mxu0 %v31
    %172 = vmatpush.msra.mxu0 %v30
    %173 = vmatpush.msra.mxu0 %v29
    %174 = vmatpush.msra.mxu0 %v28
    %175 = vmatpush.msra.mxu0 %v27
    %176 = vmatpush.msra.mxu0 %v26
    %177 = vmatpush.msra.mxu0 %v25
    %178 = vmatpush.msra.mxu0 %v24
    %179 = vmatpush.msra.mxu0 %v23
    %180 = vmatpush.msra.mxu0 %v22
    %181 = vmatpush.msra.mxu0 %v21
    %182 = vmatpush.msra.mxu0 %v20
    %183 = vmatpush.msra.mxu0 %v19
    %184 = vmatpush.msra.mxu0 %v18
    %185 = vmatpush.msra.mxu0 %v17
    %186 = vmatmul.f32.gmra.mxu0 %v154
    %v187 = vpop.f32.mrf.mxu0
    %v188 = vadd.f32 %v147, %v187
    %189 = vdwg.mxu0
    %190 = vmatpush.msra.mxu0 %v48
    %191 = vmatpush.msra.mxu0 %v47
    %192 = vmatpush.msra.mxu0 %v46
    %193 = vmatpush.msra.mxu0 %v45
    %194 = vmatpush.msra.mxu0 %v44
    %195 = vmatpush.msra.mxu0 %v43
    %196 = vmatpush.msra.mxu0 %v42
    %197 = vmatpush.msra.mxu0 %v41
    %198 = vmatpush.msra.mxu0 %v40
    %199 = vmatpush.msra.mxu0 %v39
    %200 = vmatpush.msra.mxu0 %v38
    %201 = vmatpush.msra.mxu0 %v37
    %202 = vmatpush.msra.mxu0 %v36
    %203 = vmatpush.msra.mxu0 %v35
    %204 = vmatpush.msra.mxu0 %v34
    %205 = vmatpush.msra.mxu0 %v33
    %206 = vmatmul.f32.gmra.mxu0 %v155
    %v207 = vpop.f32.mrf.mxu0
    %v208 = vadd.f32 %v188, %v207
    %209 = vdwg.mxu0
    %210 = vmatpush.msra.mxu0 %v64
    %211 = vmatpush.msra.mxu0 %v63
    %212 = vmatpush.msra.mxu0 %v62
    %213 = vmatpush.msra.mxu0 %v61
    %214 = vmatpush.msra.mxu0 %v60
    %215 = vmatpush.msra.mxu0 %v59
    %216 = vmatpush.msra.mxu0 %v58
    %217 = vmatpush.msra.mxu0 %v57
    %218 = vmatpush.msra.mxu0 %v56
    %219 = vmatpush.msra.mxu0 %v55
    %220 = vmatpush.msra.mxu0 %v54
    %221 = vmatpush.msra.mxu0 %v53
    %222 = vmatpush.msra.mxu0 %v52
    %223 = vmatpush.msra.mxu0 %v51
    %224 = vmatpush.msra.mxu0 %v50
    %225 = vmatpush.msra.mxu0 %v49
    %226 = vmatmul.f32.gmra.mxu0 %v156
    %v227 = vpop.f32.mrf.mxu0
    %v228 = vadd.f32 %v208, %v227
    %229 = vdwg.mxu0
    %230 = vmatpush.msra.mxu0 %v80
    %231 = vmatpush.msra.mxu0 %v79
    %232 = vmatpush.msra.mxu0 %v78
    %233 = vmatpush.msra.mxu0 %v77
    %234 = vmatpush.msra.mxu0 %v76
    %235 = vmatpush.msra.mxu0 %v75
    %236 = vmatpush.msra.mxu0 %v74
    %237 = vmatpush.msra.mxu0 %v73
    %238 = vmatpush.msra.mxu0 %v72
    %239 = vmatpush.msra.mxu0 %v71
    %240 = vmatpush.msra.mxu0 %v70
    %241 = vmatpush.msra.mxu0 %v69
    %242 = vmatpush.msra.mxu0 %v68
    %243 = vmatpush.msra.mxu0 %v67
    %244 = vmatpush.msra.mxu0 %v66
    %245 = vmatpush.msra.mxu0 %v65
    %246 = vmatmul.f32.gmra.mxu0 %v157
    %v247 = vpop.f32.mrf.mxu0
    %v248 = vadd.f32 %v228, %v247
    %249 = vdwg.mxu0
    %250 = vmatpush.msra.mxu0 %v96
    %251 = vmatpush.msra.mxu0 %v95
    %252 = vmatpush.msra.mxu0 %v94
    %253 = vmatpush.msra.mxu0 %v93
    %254 = vmatpush.msra.mxu0 %v92
    %255 = vmatpush.msra.mxu0 %v91
    %256 = vmatpush.msra.mxu0 %v90
    %257 = vmatpush.msra.mxu0 %v89
    %258 = vmatpush.msra.mxu0 %v88
    %259 = vmatpush.msra.mxu0 %v87
    %260 = vmatpush.msra.mxu0 %v86
    %261 = vmatpush.msra.mxu0 %v85
    %262 = vmatpush.msra.mxu0 %v84
    %263 = vmatpush.msra.mxu0 %v83
    %264 = vmatpush.msra.mxu0 %v82
    %265 = vmatpush.msra.mxu0 %v81
    %266 = vmatmul.f32.gmra.mxu0 %v158
    %v267 = vpop.f32.mrf.mxu0
    %v268 = vadd.f32 %v248, %v267
    %269 = vdwg.mxu0
    %270 = vmatpush.msra.mxu0 %v112
    %271 = vmatpush.msra.mxu0 %v111
    %272 = vmatpush.msra.mxu0 %v110
    %273 = vmatpush.msra.mxu0 %v109
    %274 = vmatpush.msra.mxu0 %v108
    %275 = vmatpush.msra.mxu0 %v107
    %276 = vmatpush.msra.mxu0 %v106
    %277 = vmatpush.msra.mxu0 %v105
    %278 = vmatpush.msra.mxu0 %v104
    %279 = vmatpush.msra.mxu0 %v103
    %280 = vmatpush.msra.mxu0 %v102
    %281 = vmatpush.msra.mxu0 %v101
    %282 = vmatpush.msra.mxu0 %v100
    %283 = vmatpush.msra.mxu0 %v99
    %284 = vmatpush.msra.mxu0 %v98
    %285 = vmatpush.msra.mxu0 %v97
    %286 = vmatmul.f32.gmra.mxu0 %v159
    %v287 = vpop.f32.mrf.mxu0
    %v288 = vadd.f32 %v268, %v287
    %289 = vdwg.mxu0
    %290 = vmatpush.msra.mxu0 %v128
    %291 = vmatpush.msra.mxu0 %v127
    %292 = vmatpush.msra.mxu0 %v126
    %293 = vmatpush.msra.mxu0 %v125
    %294 = vmatpush.msra.mxu0 %v124
    %295 = vmatpush.msra.mxu0 %v123
    %296 = vmatpush.msra.mxu0 %v122
    %297 = vmatpush.msra.mxu0 %v121
    %298 = vmatpush.msra.mxu0 %v120
    %299 = vmatpush.msra.mxu0 %v119
    %300 = vmatpush.msra.mxu0 %v118
    %301 = vmatpush.msra.mxu0 %v117
    %302 = vmatpush.msra.mxu0 %v116
    %303 = vmatpush.msra.mxu0 %v115
    %304 = vmatpush.msra.mxu0 %v114
    %305 = vmatpush.msra.mxu0 %v113
    %306 = vmatmul.f32.gmra.mxu0 %v160
    %v307 = vpop.f32.mrf.mxu0
    %v308 = vadd.f32 %v288, %v307
    %309 = vdwg.mxu0
    %310 = vmatpush.msra.mxu0 %v144
    %311 = vmatpush.msra.mxu0 %v143
    %312 = vmatpush.msra.mxu0 %v142
    %313 = vmatpush.msra.mxu0 %v141
    %314 = vmatpush.msra.mxu0 %v140
    %315 = vmatpush.msra.mxu0 %v139
    %316 = vmatpush.msra.mxu0 %v138
    %317 = vmatpush.msra.mxu0 %v137
    %318 = vmatpush.msra.mxu0 %v136
    %319 = vmatpush.msra.mxu0 %v135
    %320 = vmatpush.msra.mxu0 %v134
    %321 = vmatpush.msra.mxu0 %v133
    %322 = vmatpush.msra.mxu0 %v132
    %323 = vmatpush.msra.mxu0 %v131
    %324 = vmatpush.msra.mxu0 %v130
    %325 = vmatpush.msra.mxu0 %v129
    %326 = vmatmul.f32.gmra.mxu0 %v161
    %v327 = vpop.f32.mrf.mxu0
    %v328 = vadd.f32 %v308, %v327
    %329 = vdwg.mxu0
    %vm330 = vcmask 74752
    %331 = vst.msk [vmem:[#allocation2] sm:$0x3] %vm330, %v328
    // Predicated region
    $region14: #{reconstructor_forward.7} parent=1 // pred_check
      _
    $region15: #{reconstructor_forward.7} parent=1 // pred_check_branch
      %333 = sbr.rel (0) target = $region17
    $region16: #{reconstructor_forward.7} parent=1 // pred_region
      %335 = vsyncadd [#allocation3], 0
      %s337 = sshll.u32 [#allocation2], 4
      %s338 = int_to_ptr.vmem [resolvable:$true] %s337
      %s339 = sshll.u32 %s3, 4
      %s340 = int_to_ptr.hbm [resolvable:$true] %s339
      %342 = dma.vmem_to_hbm [thread:$0]  %s338, 32, %s340, [#allocation3]
    $region17: #{reconstructor_forward.7} parent=1 // pred_fallthru
      _
    // Predicated region
    $region18: #{reconstructor_forward.7} parent=1 // pred_check
      _
    $region19: #{reconstructor_forward.7} parent=1 // pred_check_branch
      %344 = sbr.rel (0) target = $region21
    $region20: #{reconstructor_forward.7} parent=1 // pred_region
      %346 = dma.done [#allocation3], 32
    $region21: #{reconstructor_forward.7} parent=1 // pred_fallthru
      _
    %347 = vsyncpa [#allocation3], 1

</llo_original>
